<compile_context>
chip_gen: v5e
topology: v5e:2x2
jax: 0.10.0
libtpu: 0.0.40
codegen_flags: <defaults>
</compile_context>

<pallas_src>
import functools

import jax
import jax.numpy as jnp
from jax import lax
from jax.experimental import pallas as pl
from jax.experimental.pallas import tpu as pltpu

EPS = 1e-6
INV_SQRT2 = 0.7071067811865476
VMEM_LIMIT = 32 * 1024 * 1024


def _ln(v, g, b):
    # PyTorch nn.LayerNorm semantics: biased variance, eps inside rsqrt.
    mu = jnp.mean(v, axis=-1, keepdims=True)
    var = jnp.mean(jnp.square(v - mu), axis=-1, keepdims=True)
    return (v - mu) * lax.rsqrt(var + EPS) * g + b


def _pick_tile(n, max_tile=1024):
    """Largest row tile <= max_tile that divides n; prefer grid >= 2."""
    cands = [t for t in (2048, 1024, 512, 256, 128, 64, 32, 16, 8) if t <= max_tile]
    for t in cands:
        if n % t == 0 and n // t >= 2:
            return t
    for t in cands:
        if n % t == 0:
            return t
    return n  # single full-row block (block dims equal array dims -> legal)


# --------------------- fused TTM layers + final LayerNorm --------------------
def fused_layers_kernel(x_ref, g1_ref, b1_ref, g2_ref, b2_ref,
                        w1_ref, c1_ref, w2_ref, c2_ref, gn_ref, bn_ref,
                        o_ref, *, depth):
    x = x_ref[...].astype(jnp.float32)
    g1s, b1s = g1_ref[...], b1_ref[...]
    g2s, b2s = g2_ref[...], b2_ref[...]
    w1s, c1s = w1_ref[...], c1_ref[...]
    w2s, c2s = w2_ref[...], c2_ref[...]
    for l in range(depth):                       # static unroll over layers
        # x = x + TreeSSM(LN1(x))
        # TODO(synk): Tree_SSM source is not provided in the reference code;
        #             it is treated as an identity map (only LN1 applied).
        x = x + _ln(x, g1s[l], b1s[l])
        # x = x + MLP(LN2(x)) with exact (erf) GELU; bf16 matmuls, f32 acc.
        z = _ln(x, g2s[l], b2s[l])
        u = jnp.dot(z.astype(w1s.dtype), w1s[l],
                    preferred_element_type=jnp.float32) + c1s[l]
        u = 0.5 * u * (1.0 + lax.erf(u * INV_SQRT2))
        v = jnp.dot(u.astype(w2s.dtype), w2s[l],
                    preferred_element_type=jnp.float32) + c2s[l]
        x = x + v
    # TTMBlock final LayerNorm (post_norm=False path), fused for free.
    o_ref[...] = _ln(x, gn_ref[...], bn_ref[...]).astype(o_ref.dtype)


def fused_layers_call(xf, params):
    N, C = xf.shape
    depth, _, Hd = params["w1s"].shape
    tile = _pick_tile(N)
    full2 = lambda i: (0, 0)
    full3 = lambda i: (0, 0, 0)
    kernel = functools.partial(fused_layers_kernel, depth=depth)
    return pl.pallas_call(
        kernel,
        out_shape=jax.ShapeDtypeStruct((N, C), xf.dtype),
        grid_spec=pltpu.PrefetchScalarGridSpec(
            num_scalar_prefetch=0,
            grid=(N // tile,),
            in_specs=[
                pl.BlockSpec((tile, C), lambda i: (i, 0)),
                pl.BlockSpec((depth, 1, C), full3),    # g1 (stacked)
                pl.BlockSpec((depth, 1, C), full3),    # b1
                pl.BlockSpec((depth, 1, C), full3),    # g2
                pl.BlockSpec((depth, 1, C), full3),    # b2
                pl.BlockSpec((depth, C, Hd), full3),   # fc1 weight
                pl.BlockSpec((depth, 1, Hd), full3),   # fc1 bias
                pl.BlockSpec((depth, Hd, C), full3),   # fc2 weight
                pl.BlockSpec((depth, 1, C), full3),    # fc2 bias
                pl.BlockSpec((1, C), full2),           # final norm gamma
                pl.BlockSpec((1, C), full2),           # final norm beta
            ],
            out_specs=pl.BlockSpec((tile, C), lambda i: (i, 0)),
        ),
        compiler_params=pltpu.CompilerParams(
            dimension_semantics=("parallel",),
            vmem_limit_bytes=VMEM_LIMIT),
    )(xf, params["g1s"], params["b1s"], params["g2s"], params["b2s"],
      params["w1s"], params["c1s"], params["w2s"], params["c2s"],
      params["norm_g"], params["norm_b"])


# ------------- downsample: in-kernel im2col (space-to-depth form) -----------
def downsample_kernel(sa_ref, sb_ref, w_ref, g_ref, b_ref, o_ref, *, n_out_cols):
    # sa_ref / sb_ref: rows ho (dh=0) and ho+1 (dh=1) of the padded
    # space-to-depth image, each (Wo+1, 4C).  Conv3x3/stride2 becomes
    #   out[wo] = sum_{dh,dw} S[ho+dh, wo+dw] @ W4[dh, dw]
    Wo = n_out_cols
    w_all = w_ref[...]                               # (2, 2, 4C, 2C) bf16
    acc = jnp.zeros((Wo, w_all.shape[-1]), jnp.float32)
    for dh, src_ref in ((0, sa_ref), (1, sb_ref)):
        src = src_ref[...]                           # (Wo+1, 4C)
        for dw in (0, 1):
            tap = src[dw:dw + Wo, :].astype(w_all.dtype)
            acc = acc + jnp.dot(tap, w_all[dh, dw],
                                preferred_element_type=jnp.float32)
    o_ref[...] = _ln(acc, g_ref[...], b_ref[...]).astype(o_ref.dtype)


def downsample_call(s2d, w4, g, b):
    B, Hp1, Wp1, C4 = s2d.shape
    Ho, Wo = Hp1 - 1, Wp1 - 1
    Co = w4.shape[-1]
    kernel = functools.partial(downsample_kernel, n_out_cols=Wo)
    return pl.pallas_call(
        kernel,
        out_shape=jax.ShapeDtypeStruct((B, Ho, Wo, Co), s2d.dtype),
        grid_spec=pltpu.PrefetchScalarGridSpec(
            num_scalar_prefetch=0,
            grid=(B, Ho),
            in_specs=[
                # same array passed twice: rows ho and ho+1 (overlap handled
                # by two non-overlapping size-1 block specs)
                pl.BlockSpec((None, None, Wp1, C4), lambda bb, i: (bb, i, 0, 0)),
                pl.BlockSpec((None, None, Wp1, C4), lambda bb, i: (bb, i + 1, 0, 0)),
                pl.BlockSpec((2, 2, C4, Co), lambda bb, i: (0, 0, 0, 0)),
                pl.BlockSpec((1, Co), lambda bb, i: (0, 0)),
                pl.BlockSpec((1, Co), lambda bb, i: (0, 0)),
            ],
            out_specs=pl.BlockSpec((None, None, Wo, Co),
                                   lambda bb, i: (bb, i, 0, 0)),
        ),
        compiler_params=pltpu.CompilerParams(
            dimension_semantics=("parallel", "arbitrary"),
            vmem_limit_bytes=VMEM_LIMIT),
    )(s2d, s2d, w4, g, b)


# ------------------------------ full TTMBlock --------------------------------
def ttm_block_forward(x, params):
    """x: (B, H, W, C) channels_last.  Returns (B, H//2, W//2, 2C)."""
    B, H, W, C = x.shape
    assert H % 2 == 0 and W % 2 == 0, "stride-2 downsample expects even H, W"
    Ho, Wo = H // 2, W // 2
    xf = x.reshape(B * H * W, C)
    xf = fused_layers_call(xf, params)        # all layers + final LN, one kernel
    # space-to-depth + top/left zero pad: cheap XLA glue (~1x tensor size),
    # replaces the 9x HBM-materialised im2col of the previous version.
    s2d = (xf.reshape(B, Ho, 2, Wo, 2, C)
             .transpose(0, 1, 3, 2, 4, 5)
             .reshape(B, Ho, Wo, 4 * C))
    s2d = jnp.pad(s2d, ((0, 0), (1, 0), (1, 0), (0, 0)))
    return downsample_call(s2d, params["conv_w4"], params["ds_g"], params["ds_b"])


# --------------------------- deterministic params ----------------------------
def init_params(key, channels, depth, mlp_ratio=4.0,
                dtype=jnp.float32, weight_dtype=jnp.bfloat16):
    C = channels
    Hd = int(C * mlp_ratio)
    keys = jax.random.split(key, 2 * depth + 1)
    w1s = jnp.stack([0.02 * jax.random.normal(keys[2 * l], (C, Hd))
                     for l in range(depth)])
    w2s = jnp.stack([0.02 * jax.random.normal(keys[2 * l + 1], (Hd, C))
                     for l in range(depth)])
    # Conv2d(C, 2C, k=3, s=2, p=1, bias=False) weight, HWIO layout.
    w3 = 0.02 * jax.random.normal(keys[-1], (3, 3, C, 2 * C))
    # Repack for the space-to-depth formulation:
    #   out[ho, wo] = sum_{dh,dw} S[ho+dh, wo+dw] @ W4[dh, dw]
    # with S channel order (sr, sc, c) and
    #   W4[dh, dw][(sr,sc,c), :] = w3[2*dh+sr-1, 2*dw+sc-1, c, :]  (0 if kh/kw < 0)
    w4 = jnp.zeros((2, 2, 4 * C, 2 * C), jnp.float32)
    for dh in range(2):
        for dw in range(2):
            for sr in range(2):
                for sc in range(2):
                    kh, kw = 2 * dh + sr - 1, 2 * dw + sc - 1
                    if kh >= 0 and kw >= 0:
                        off = (sr * 2 + sc) * C
                        w4 = w4.at[dh, dw, off:off + C, :].set(w3[kh, kw])
    return dict(
        g1s=jnp.ones((depth, 1, C), dtype), b1s=jnp.zeros((depth, 1, C), dtype),
        g2s=jnp.ones((depth, 1, C), dtype), b2s=jnp.zeros((depth, 1, C), dtype),
        w1s=w1s.astype(weight_dtype), c1s=jnp.zeros((depth, 1, Hd), dtype),
        w2s=w2s.astype(weight_dtype), c2s=jnp.zeros((depth, 1, C), dtype),
        norm_g=jnp.ones((1, C), dtype), norm_b=jnp.zeros((1, C), dtype),
        conv_w3=w3.astype(dtype),              # used only by the JAX reference
        conv_w4=w4.astype(weight_dtype),
        ds_g=jnp.ones((1, 2 * C), dtype), ds_b=jnp.zeros((1, 2 * C), dtype),
    )


# ------------------------- pure-JAX reference (check) ------------------------
def _reference_forward(x, params):
    B, H, W, C = x.shape
    depth = params["w1s"].shape[0]
    xf = x.reshape(-1, C).astype(jnp.float32)
    for l in range(depth):
        w1 = params["w1s"][l].astype(jnp.float32)
        w2 = params["w2s"][l].astype(jnp.float32)
        xf = xf + _ln(xf, params["g1s"][l], params["b1s"][l])   # TreeSSM ~ id
        z = _ln(xf, params["g2s"][l], params["b2s"][l])
        u = z @ w1 + params["c1s"][l]
        u = 0.5 * u * (1.0 + lax.erf(u * INV_SQRT2))
        xf = xf + (u @ w2 + params["c2s"][l])
    xf = _ln(xf, params["norm_g"], params["norm_b"])
    x4 = xf.reshape(B, H, W, C)
    w3 = params["conv_w3"].astype(jnp.bfloat16).astype(jnp.float32)
    y = lax.conv_general_dilated(x4, w3, window_strides=(2, 2),
                                 padding=((1, 1), (1, 1)),
                                 dimension_numbers=("NHWC", "HWIO", "NHWC"))
    return _ln(y, params["ds_g"], params["ds_b"])


if __name__ == "__main__":
    B, H, W, C = 2, 16, 16, 32
    depth = 2
    key = jax.random.PRNGKey(0)
    key, kx = jax.random.split(key)
    x = jax.random.normal(kx, (B, H, W, C), dtype=jnp.float32)
    params = init_params(key, C, depth)

    fwd = jax.jit(ttm_block_forward)
    out = fwd(x, params)
    jax.block_until_ready(out)
    assert out.shape == (B, H // 2, W // 2, 2 * C), out.shape
    assert bool(jnp.isfinite(out).all())

    # Numerical check vs. a pure-JAX reference using the same bf16 weights
    # (tolerance covers the in-kernel bf16 activation casts).
    ref = _reference_forward(x, params)
    err = float(jnp.max(jnp.abs(out.astype(jnp.float32) - ref)))
    assert err < 5e-2, f"max abs err {err}"
    print("KERNEL_OK")
</pallas_src>

<mosaic_0001>
module attributes {stable_mosaic.version = 11 : i64} {
  func.func @fused_layers_kernel(%arg0: i32, %arg1: memref<256x32xf32, #tpu.memory_space<vmem>>, %arg2: memref<2x1x32xf32, #tpu.memory_space<vmem>>, %arg3: memref<2x1x32xf32, #tpu.memory_space<vmem>>, %arg4: memref<2x1x32xf32, #tpu.memory_space<vmem>>, %arg5: memref<2x1x32xf32, #tpu.memory_space<vmem>>, %arg6: memref<2x32x128xbf16, #tpu.memory_space<vmem>>, %arg7: memref<2x1x128xf32, #tpu.memory_space<vmem>>, %arg8: memref<2x128x32xbf16, #tpu.memory_space<vmem>>, %arg9: memref<2x1x32xf32, #tpu.memory_space<vmem>>, %arg10: memref<1x32xf32, #tpu.memory_space<vmem>>, %arg11: memref<1x32xf32, #tpu.memory_space<vmem>>, %arg12: memref<256x32xf32, #tpu.memory_space<vmem>>) attributes {dimension_semantics = [#tpu.dimension_semantics<parallel>], iteration_bounds = array<i64: 2>, scalar_prefetch = 0 : i64, scratch_operands = 0 : i64, tpu.core_type = #tpu.core_type<tc>, window_params = [{transform_indices = @transform_0, window_bounds = array<i64: 256, 32>}, {pipeline_mode = #tpu.pipeline_mode<synchronous>, transform_indices = @transform_1, window_bounds = array<i64: 2, 1, 32>}, {pipeline_mode = #tpu.pipeline_mode<synchronous>, transform_indices = @transform_2, window_bounds = array<i64: 2, 1, 32>}, {pipeline_mode = #tpu.pipeline_mode<synchronous>, transform_indices = @transform_3, window_bounds = array<i64: 2, 1, 32>}, {pipeline_mode = #tpu.pipeline_mode<synchronous>, transform_indices = @transform_4, window_bounds = array<i64: 2, 1, 32>}, {pipeline_mode = #tpu.pipeline_mode<synchronous>, transform_indices = @transform_5, window_bounds = array<i64: 2, 32, 128>}, {pipeline_mode = #tpu.pipeline_mode<synchronous>, transform_indices = @transform_6, window_bounds = array<i64: 2, 1, 128>}, {pipeline_mode = #tpu.pipeline_mode<synchronous>, transform_indices = @transform_7, window_bounds = array<i64: 2, 128, 32>}, {pipeline_mode = #tpu.pipeline_mode<synchronous>, transform_indices = @transform_8, window_bounds = array<i64: 2, 1, 32>}, {pipeline_mode = #tpu.pipeline_mode<synchronous>, transform_indices = @transform_9, window_bounds = array<i64: 1, 32>}, {pipeline_mode = #tpu.pipeline_mode<synchronous>, transform_indices = @transform_10, window_bounds = array<i64: 1, 32>}, {transform_indices = @transform_11, window_bounds = array<i64: 256, 32>}]} {
    %c0 = arith.constant 0 : index
    %c0_0 = arith.constant 0 : index
    %0 = vector.load %arg1[%c0, %c0_0] : memref<256x32xf32, #tpu.memory_space<vmem>>, vector<256x32xf32>
    %c0_1 = arith.constant 0 : index
    %c0_2 = arith.constant 0 : index
    %c0_3 = arith.constant 0 : index
    %1 = vector.load %arg2[%c0_1, %c0_2, %c0_3] : memref<2x1x32xf32, #tpu.memory_space<vmem>>, vector<2x1x32xf32>
    %c0_4 = arith.constant 0 : index
    %c0_5 = arith.constant 0 : index
    %c0_6 = arith.constant 0 : index
    %2 = vector.load %arg3[%c0_4, %c0_5, %c0_6] : memref<2x1x32xf32, #tpu.memory_space<vmem>>, vector<2x1x32xf32>
    %c0_7 = arith.constant 0 : index
    %c0_8 = arith.constant 0 : index
    %c0_9 = arith.constant 0 : index
    %3 = vector.load %arg4[%c0_7, %c0_8, %c0_9] : memref<2x1x32xf32, #tpu.memory_space<vmem>>, vector<2x1x32xf32>
    %c0_10 = arith.constant 0 : index
    %c0_11 = arith.constant 0 : index
    %c0_12 = arith.constant 0 : index
    %4 = vector.load %arg5[%c0_10, %c0_11, %c0_12] : memref<2x1x32xf32, #tpu.memory_space<vmem>>, vector<2x1x32xf32>
    %c0_13 = arith.constant 0 : index
    %c0_14 = arith.constant 0 : index
    %c0_15 = arith.constant 0 : index
    %5 = vector.load %arg6[%c0_13, %c0_14, %c0_15] : memref<2x32x128xbf16, #tpu.memory_space<vmem>>, vector<2x32x128xbf16>
    %c0_16 = arith.constant 0 : index
    %c0_17 = arith.constant 0 : index
    %c0_18 = arith.constant 0 : index
    %6 = vector.load %arg7[%c0_16, %c0_17, %c0_18] : memref<2x1x128xf32, #tpu.memory_space<vmem>>, vector<2x1x128xf32>
    %c0_19 = arith.constant 0 : index
    %c0_20 = arith.constant 0 : index
    %c0_21 = arith.constant 0 : index
    %7 = vector.load %arg8[%c0_19, %c0_20, %c0_21] : memref<2x128x32xbf16, #tpu.memory_space<vmem>>, vector<2x128x32xbf16>
    %c0_22 = arith.constant 0 : index
    %c0_23 = arith.constant 0 : index
    %c0_24 = arith.constant 0 : index
    %8 = vector.load %arg9[%c0_22, %c0_23, %c0_24] : memref<2x1x32xf32, #tpu.memory_space<vmem>>, vector<2x1x32xf32>
    %9 = vector.extract_strided_slice %1 {offsets = [0, 0, 0], sizes = [1, 1, 32], strides = [1, 1, 1]} : vector<2x1x32xf32> to vector<1x1x32xf32>
    %10 = vector.shape_cast %9 : vector<1x1x32xf32> to vector<1x32xf32>
    %11 = vector.extract_strided_slice %2 {offsets = [0, 0, 0], sizes = [1, 1, 32], strides = [1, 1, 1]} : vector<2x1x32xf32> to vector<1x1x32xf32>
    %12 = vector.shape_cast %11 : vector<1x1x32xf32> to vector<1x32xf32>
    %cst = arith.constant dense<0.000000e+00> : vector<256xf32>
    %13 = vector.multi_reduction <add>, %0, %cst [1] : vector<256x32xf32> to vector<256xf32>
    %14 = vector.shape_cast %13 : vector<256xf32> to vector<256x1xf32>
    %cst_25 = arith.constant 3.200000e+01 : f32
    %15 = vector.broadcast %cst_25 : f32 to vector<256x1xf32>
    %16 = arith.divf %14, %15 : vector<256x1xf32>
    %17 = vector.broadcast %16 : vector<256x1xf32> to vector<256x32xf32>
    %18 = arith.subf %0, %17 : vector<256x32xf32>
    %19 = arith.mulf %18, %18 : vector<256x32xf32>
    %cst_26 = arith.constant dense<0.000000e+00> : vector<256xf32>
    %20 = vector.multi_reduction <add>, %19, %cst_26 [1] : vector<256x32xf32> to vector<256xf32>
    %21 = vector.shape_cast %20 : vector<256xf32> to vector<256x1xf32>
    %cst_27 = arith.constant 3.200000e+01 : f32
    %22 = vector.broadcast %cst_27 : f32 to vector<256x1xf32>
    %23 = arith.divf %21, %22 : vector<256x1xf32>
    %24 = vector.broadcast %16 : vector<256x1xf32> to vector<256x32xf32>
    %25 = arith.subf %0, %24 : vector<256x32xf32>
    %cst_28 = arith.constant 9.99999997E-7 : f32
    %26 = vector.broadcast %cst_28 : f32 to vector<256x1xf32>
    %27 = arith.addf %23, %26 : vector<256x1xf32>
    %28 = math.rsqrt %27 : vector<256x1xf32>
    %29 = vector.broadcast %28 : vector<256x1xf32> to vector<256x32xf32>
    %30 = arith.mulf %25, %29 : vector<256x32xf32>
    %31 = vector.broadcast %10 : vector<1x32xf32> to vector<256x32xf32>
    %32 = arith.mulf %30, %31 : vector<256x32xf32>
    %33 = vector.broadcast %12 : vector<1x32xf32> to vector<256x32xf32>
    %34 = arith.addf %32, %33 : vector<256x32xf32>
    %35 = arith.addf %0, %34 : vector<256x32xf32>
    %36 = vector.extract_strided_slice %3 {offsets = [0, 0, 0], sizes = [1, 1, 32], strides = [1, 1, 1]} : vector<2x1x32xf32> to vector<1x1x32xf32>
    %37 = vector.shape_cast %36 : vector<1x1x32xf32> to vector<1x32xf32>
    %38 = vector.extract_strided_slice %4 {offsets = [0, 0, 0], sizes = [1, 1, 32], strides = [1, 1, 1]} : vector<2x1x32xf32> to vector<1x1x32xf32>
    %39 = vector.shape_cast %38 : vector<1x1x32xf32> to vector<1x32xf32>
    %cst_29 = arith.constant dense<0.000000e+00> : vector<256xf32>
    %40 = vector.multi_reduction <add>, %35, %cst_29 [1] : vector<256x32xf32> to vector<256xf32>
    %41 = vector.shape_cast %40 : vector<256xf32> to vector<256x1xf32>
    %cst_30 = arith.constant 3.200000e+01 : f32
    %42 = vector.broadcast %cst_30 : f32 to vector<256x1xf32>
    %43 = arith.divf %41, %42 : vector<256x1xf32>
    %44 = vector.broadcast %43 : vector<256x1xf32> to vector<256x32xf32>
    %45 = arith.subf %35, %44 : vector<256x32xf32>
    %46 = arith.mulf %45, %45 : vector<256x32xf32>
    %cst_31 = arith.constant dense<0.000000e+00> : vector<256xf32>
    %47 = vector.multi_reduction <add>, %46, %cst_31 [1] : vector<256x32xf32> to vector<256xf32>
    %48 = vector.shape_cast %47 : vector<256xf32> to vector<256x1xf32>
    %cst_32 = arith.constant 3.200000e+01 : f32
    %49 = vector.broadcast %cst_32 : f32 to vector<256x1xf32>
    %50 = arith.divf %48, %49 : vector<256x1xf32>
    %51 = vector.broadcast %43 : vector<256x1xf32> to vector<256x32xf32>
    %52 = arith.subf %35, %51 : vector<256x32xf32>
    %cst_33 = arith.constant 9.99999997E-7 : f32
    %53 = vector.broadcast %cst_33 : f32 to vector<256x1xf32>
    %54 = arith.addf %50, %53 : vector<256x1xf32>
    %55 = math.rsqrt %54 : vector<256x1xf32>
    %56 = vector.broadcast %55 : vector<256x1xf32> to vector<256x32xf32>
    %57 = arith.mulf %52, %56 : vector<256x32xf32>
    %58 = vector.broadcast %37 : vector<1x32xf32> to vector<256x32xf32>
    %59 = arith.mulf %57, %58 : vector<256x32xf32>
    %60 = vector.broadcast %39 : vector<1x32xf32> to vector<256x32xf32>
    %61 = arith.addf %59, %60 : vector<256x32xf32>
    %62 = arith.truncf %61 : vector<256x32xf32> to vector<256x32xbf16>
    %63 = vector.extract_strided_slice %5 {offsets = [0, 0, 0], sizes = [1, 32, 128], strides = [1, 1, 1]} : vector<2x32x128xbf16> to vector<1x32x128xbf16>
    %64 = vector.shape_cast %63 : vector<1x32x128xbf16> to vector<32x128xbf16>
    %cst_34 = arith.constant dense<0.000000e+00> : vector<256x128xf32>
    %65 = tpu.matmul %62, %64, %cst_34 {dimension_numbers = #tpu.dot_dimension_numbers<[1], [0], [0], [1], [0, 0, 1, 1], [], []>} : vector<256x32xbf16>, vector<32x128xbf16>, vector<256x128xf32> -> vector<256x128xf32>
    %66 = vector.extract_strided_slice %6 {offsets = [0, 0, 0], sizes = [1, 1, 128], strides = [1, 1, 1]} : vector<2x1x128xf32> to vector<1x1x128xf32>
    %67 = vector.shape_cast %66 : vector<1x1x128xf32> to vector<1x128xf32>
    %68 = vector.broadcast %67 : vector<1x128xf32> to vector<256x128xf32>
    %69 = arith.addf %65, %68 : vector<256x128xf32>
    %cst_35 = arith.constant 5.000000e-01 : f32
    %70 = vector.broadcast %cst_35 : f32 to vector<256x128xf32>
    %71 = arith.mulf %70, %69 : vector<256x128xf32>
    %cst_36 = arith.constant 0.707106769 : f32
    %72 = vector.broadcast %cst_36 : f32 to vector<256x128xf32>
    %73 = arith.mulf %69, %72 : vector<256x128xf32>
    %74 = math.erf %73 : vector<256x128xf32>
    %cst_37 = arith.constant 1.000000e+00 : f32
    %75 = vector.broadcast %cst_37 : f32 to vector<256x128xf32>
    %76 = arith.addf %75, %74 : vector<256x128xf32>
    %77 = arith.mulf %71, %76 : vector<256x128xf32>
    %78 = arith.truncf %77 : vector<256x128xf32> to vector<256x128xbf16>
    %79 = vector.extract_strided_slice %7 {offsets = [0, 0, 0], sizes = [1, 128, 32], strides = [1, 1, 1]} : vector<2x128x32xbf16> to vector<1x128x32xbf16>
    %80 = vector.shape_cast %79 : vector<1x128x32xbf16> to vector<128x32xbf16>
    %cst_38 = arith.constant dense<0.000000e+00> : vector<256x32xf32>
    %81 = tpu.matmul %78, %80, %cst_38 {dimension_numbers = #tpu.dot_dimension_numbers<[1], [0], [0], [1], [0, 0, 1, 1], [], []>} : vector<256x128xbf16>, vector<128x32xbf16>, vector<256x32xf32> -> vector<256x32xf32>
    %82 = vector.extract_strided_slice %8 {offsets = [0, 0, 0], sizes = [1, 1, 32], strides = [1, 1, 1]} : vector<2x1x32xf32> to vector<1x1x32xf32>
    %83 = vector.shape_cast %82 : vector<1x1x32xf32> to vector<1x32xf32>
    %84 = vector.broadcast %83 : vector<1x32xf32> to vector<256x32xf32>
    %85 = arith.addf %81, %84 : vector<256x32xf32>
    %86 = arith.addf %35, %85 : vector<256x32xf32>
    %87 = vector.extract_strided_slice %1 {offsets = [1, 0, 0], sizes = [1, 1, 32], strides = [1, 1, 1]} : vector<2x1x32xf32> to vector<1x1x32xf32>
    %88 = vector.shape_cast %87 : vector<1x1x32xf32> to vector<1x32xf32>
    %89 = vector.extract_strided_slice %2 {offsets = [1, 0, 0], sizes = [1, 1, 32], strides = [1, 1, 1]} : vector<2x1x32xf32> to vector<1x1x32xf32>
    %90 = vector.shape_cast %89 : vector<1x1x32xf32> to vector<1x32xf32>
    %cst_39 = arith.constant dense<0.000000e+00> : vector<256xf32>
    %91 = vector.multi_reduction <add>, %86, %cst_39 [1] : vector<256x32xf32> to vector<256xf32>
    %92 = vector.shape_cast %91 : vector<256xf32> to vector<256x1xf32>
    %cst_40 = arith.constant 3.200000e+01 : f32
    %93 = vector.broadcast %cst_40 : f32 to vector<256x1xf32>
    %94 = arith.divf %92, %93 : vector<256x1xf32>
    %95 = vector.broadcast %94 : vector<256x1xf32> to vector<256x32xf32>
    %96 = arith.subf %86, %95 : vector<256x32xf32>
    %97 = arith.mulf %96, %96 : vector<256x32xf32>
    %cst_41 = arith.constant dense<0.000000e+00> : vector<256xf32>
    %98 = vector.multi_reduction <add>, %97, %cst_41 [1] : vector<256x32xf32> to vector<256xf32>
    %99 = vector.shape_cast %98 : vector<256xf32> to vector<256x1xf32>
    %cst_42 = arith.constant 3.200000e+01 : f32
    %100 = vector.broadcast %cst_42 : f32 to vector<256x1xf32>
    %101 = arith.divf %99, %100 : vector<256x1xf32>
    %102 = vector.broadcast %94 : vector<256x1xf32> to vector<256x32xf32>
    %103 = arith.subf %86, %102 : vector<256x32xf32>
    %cst_43 = arith.constant 9.99999997E-7 : f32
    %104 = vector.broadcast %cst_43 : f32 to vector<256x1xf32>
    %105 = arith.addf %101, %104 : vector<256x1xf32>
    %106 = math.rsqrt %105 : vector<256x1xf32>
    %107 = vector.broadcast %106 : vector<256x1xf32> to vector<256x32xf32>
    %108 = arith.mulf %103, %107 : vector<256x32xf32>
    %109 = vector.broadcast %88 : vector<1x32xf32> to vector<256x32xf32>
    %110 = arith.mulf %108, %109 : vector<256x32xf32>
    %111 = vector.broadcast %90 : vector<1x32xf32> to vector<256x32xf32>
    %112 = arith.addf %110, %111 : vector<256x32xf32>
    %113 = arith.addf %86, %112 : vector<256x32xf32>
    %114 = vector.extract_strided_slice %3 {offsets = [1, 0, 0], sizes = [1, 1, 32], strides = [1, 1, 1]} : vector<2x1x32xf32> to vector<1x1x32xf32>
    %115 = vector.shape_cast %114 : vector<1x1x32xf32> to vector<1x32xf32>
    %116 = vector.extract_strided_slice %4 {offsets = [1, 0, 0], sizes = [1, 1, 32], strides = [1, 1, 1]} : vector<2x1x32xf32> to vector<1x1x32xf32>
    %117 = vector.shape_cast %116 : vector<1x1x32xf32> to vector<1x32xf32>
    %cst_44 = arith.constant dense<0.000000e+00> : vector<256xf32>
    %118 = vector.multi_reduction <add>, %113, %cst_44 [1] : vector<256x32xf32> to vector<256xf32>
    %119 = vector.shape_cast %118 : vector<256xf32> to vector<256x1xf32>
    %cst_45 = arith.constant 3.200000e+01 : f32
    %120 = vector.broadcast %cst_45 : f32 to vector<256x1xf32>
    %121 = arith.divf %119, %120 : vector<256x1xf32>
    %122 = vector.broadcast %121 : vector<256x1xf32> to vector<256x32xf32>
    %123 = arith.subf %113, %122 : vector<256x32xf32>
    %124 = arith.mulf %123, %123 : vector<256x32xf32>
    %cst_46 = arith.constant dense<0.000000e+00> : vector<256xf32>
    %125 = vector.multi_reduction <add>, %124, %cst_46 [1] : vector<256x32xf32> to vector<256xf32>
    %126 = vector.shape_cast %125 : vector<256xf32> to vector<256x1xf32>
    %cst_47 = arith.constant 3.200000e+01 : f32
    %127 = vector.broadcast %cst_47 : f32 to vector<256x1xf32>
    %128 = arith.divf %126, %127 : vector<256x1xf32>
    %129 = vector.broadcast %121 : vector<256x1xf32> to vector<256x32xf32>
    %130 = arith.subf %113, %129 : vector<256x32xf32>
    %cst_48 = arith.constant 9.99999997E-7 : f32
    %131 = vector.broadcast %cst_48 : f32 to vector<256x1xf32>
    %132 = arith.addf %128, %131 : vector<256x1xf32>
    %133 = math.rsqrt %132 : vector<256x1xf32>
    %134 = vector.broadcast %133 : vector<256x1xf32> to vector<256x32xf32>
    %135 = arith.mulf %130, %134 : vector<256x32xf32>
    %136 = vector.broadcast %115 : vector<1x32xf32> to vector<256x32xf32>
    %137 = arith.mulf %135, %136 : vector<256x32xf32>
    %138 = vector.broadcast %117 : vector<1x32xf32> to vector<256x32xf32>
    %139 = arith.addf %137, %138 : vector<256x32xf32>
    %140 = arith.truncf %139 : vector<256x32xf32> to vector<256x32xbf16>
    %141 = vector.extract_strided_slice %5 {offsets = [1, 0, 0], sizes = [1, 32, 128], strides = [1, 1, 1]} : vector<2x32x128xbf16> to vector<1x32x128xbf16>
    %142 = vector.shape_cast %141 : vector<1x32x128xbf16> to vector<32x128xbf16>
    %cst_49 = arith.constant dense<0.000000e+00> : vector<256x128xf32>
    %143 = tpu.matmul %140, %142, %cst_49 {dimension_numbers = #tpu.dot_dimension_numbers<[1], [0], [0], [1], [0, 0, 1, 1], [], []>} : vector<256x32xbf16>, vector<32x128xbf16>, vector<256x128xf32> -> vector<256x128xf32>
    %144 = vector.extract_strided_slice %6 {offsets = [1, 0, 0], sizes = [1, 1, 128], strides = [1, 1, 1]} : vector<2x1x128xf32> to vector<1x1x128xf32>
    %145 = vector.shape_cast %144 : vector<1x1x128xf32> to vector<1x128xf32>
    %146 = vector.broadcast %145 : vector<1x128xf32> to vector<256x128xf32>
    %147 = arith.addf %143, %146 : vector<256x128xf32>
    %cst_50 = arith.constant 5.000000e-01 : f32
    %148 = vector.broadcast %cst_50 : f32 to vector<256x128xf32>
    %149 = arith.mulf %148, %147 : vector<256x128xf32>
    %cst_51 = arith.constant 0.707106769 : f32
    %150 = vector.broadcast %cst_51 : f32 to vector<256x128xf32>
    %151 = arith.mulf %147, %150 : vector<256x128xf32>
    %152 = math.erf %151 : vector<256x128xf32>
    %cst_52 = arith.constant 1.000000e+00 : f32
    %153 = vector.broadcast %cst_52 : f32 to vector<256x128xf32>
    %154 = arith.addf %153, %152 : vector<256x128xf32>
    %155 = arith.mulf %149, %154 : vector<256x128xf32>
    %156 = arith.truncf %155 : vector<256x128xf32> to vector<256x128xbf16>
    %157 = vector.extract_strided_slice %7 {offsets = [1, 0, 0], sizes = [1, 128, 32], strides = [1, 1, 1]} : vector<2x128x32xbf16> to vector<1x128x32xbf16>
    %158 = vector.shape_cast %157 : vector<1x128x32xbf16> to vector<128x32xbf16>
    %cst_53 = arith.constant dense<0.000000e+00> : vector<256x32xf32>
    %159 = tpu.matmul %156, %158, %cst_53 {dimension_numbers = #tpu.dot_dimension_numbers<[1], [0], [0], [1], [0, 0, 1, 1], [], []>} : vector<256x128xbf16>, vector<128x32xbf16>, vector<256x32xf32> -> vector<256x32xf32>
    %160 = vector.extract_strided_slice %8 {offsets = [1, 0, 0], sizes = [1, 1, 32], strides = [1, 1, 1]} : vector<2x1x32xf32> to vector<1x1x32xf32>
    %161 = vector.shape_cast %160 : vector<1x1x32xf32> to vector<1x32xf32>
    %162 = vector.broadcast %161 : vector<1x32xf32> to vector<256x32xf32>
    %163 = arith.addf %159, %162 : vector<256x32xf32>
    %164 = arith.addf %113, %163 : vector<256x32xf32>
    %c0_54 = arith.constant 0 : index
    %c0_55 = arith.constant 0 : index
    %165 = vector.load %arg10[%c0_54, %c0_55] : memref<1x32xf32, #tpu.memory_space<vmem>>, vector<1x32xf32>
    %c0_56 = arith.constant 0 : index
    %c0_57 = arith.constant 0 : index
    %166 = vector.load %arg11[%c0_56, %c0_57] : memref<1x32xf32, #tpu.memory_space<vmem>>, vector<1x32xf32>
    %cst_58 = arith.constant dense<0.000000e+00> : vector<256xf32>
    %167 = vector.multi_reduction <add>, %164, %cst_58 [1] : vector<256x32xf32> to vector<256xf32>
    %168 = vector.shape_cast %167 : vector<256xf32> to vector<256x1xf32>
    %cst_59 = arith.constant 3.200000e+01 : f32
    %169 = vector.broadcast %cst_59 : f32 to vector<256x1xf32>
    %170 = arith.divf %168, %169 : vector<256x1xf32>
    %171 = vector.broadcast %170 : vector<256x1xf32> to vector<256x32xf32>
    %172 = arith.subf %164, %171 : vector<256x32xf32>
    %173 = arith.mulf %172, %172 : vector<256x32xf32>
    %cst_60 = arith.constant dense<0.000000e+00> : vector<256xf32>
    %174 = vector.multi_reduction <add>, %173, %cst_60 [1] : vector<256x32xf32> to vector<256xf32>
    %175 = vector.shape_cast %174 : vector<256xf32> to vector<256x1xf32>
    %cst_61 = arith.constant 3.200000e+01 : f32
    %176 = vector.broadcast %cst_61 : f32 to vector<256x1xf32>
    %177 = arith.divf %175, %176 : vector<256x1xf32>
    %178 = vector.broadcast %170 : vector<256x1xf32> to vector<256x32xf32>
    %179 = arith.subf %164, %178 : vector<256x32xf32>
    %cst_62 = arith.constant 9.99999997E-7 : f32
    %180 = vector.broadcast %cst_62 : f32 to vector<256x1xf32>
    %181 = arith.addf %177, %180 : vector<256x1xf32>
    %182 = math.rsqrt %181 : vector<256x1xf32>
    %183 = vector.broadcast %182 : vector<256x1xf32> to vector<256x32xf32>
    %184 = arith.mulf %179, %183 : vector<256x32xf32>
    %185 = vector.broadcast %165 : vector<1x32xf32> to vector<256x32xf32>
    %186 = arith.mulf %184, %185 : vector<256x32xf32>
    %187 = vector.broadcast %166 : vector<1x32xf32> to vector<256x32xf32>
    %188 = arith.addf %186, %187 : vector<256x32xf32>
    %c0_63 = arith.constant 0 : index
    %c0_64 = arith.constant 0 : index
    %189 = vector.load %arg12[%c0_63, %c0_64] : memref<256x32xf32, #tpu.memory_space<vmem>>, vector<256x32xf32>
    tpu.vector_store %arg12[%c0_63, %c0_64], %188 {strides = array<i32>} : memref<256x32xf32, #tpu.memory_space<vmem>>, vector<256x32xf32>,
    return
  }
  func.func @transform_0(%arg0: i32) -> (i32, i32) {
    %c0_i32 = arith.constant 0 : i32
    %c0_i32_0 = arith.constant 0 : i32
    return %arg0, %c0_i32 : i32, i32
  }
  func.func @transform_1(%arg0: i32) -> (i32, i32, i32) {
    %c0_i32 = arith.constant 0 : i32
    %c0_i32_0 = arith.constant 0 : i32
    %c0_i32_1 = arith.constant 0 : i32
    %c0_i32_2 = arith.constant 0 : i32
    return %c0_i32, %c0_i32_0, %c0_i32_1 : i32, i32, i32
  }
  func.func @transform_2(%arg0: i32) -> (i32, i32, i32) {
    %c0_i32 = arith.constant 0 : i32
    %c0_i32_0 = arith.constant 0 : i32
    %c0_i32_1 = arith.constant 0 : i32
    %c0_i32_2 = arith.constant 0 : i32
    return %c0_i32, %c0_i32_0, %c0_i32_1 : i32, i32, i32
  }
  func.func @transform_3(%arg0: i32) -> (i32, i32, i32) {
    %c0_i32 = arith.constant 0 : i32
    %c0_i32_0 = arith.constant 0 : i32
    %c0_i32_1 = arith.constant 0 : i32
    %c0_i32_2 = arith.constant 0 : i32
    return %c0_i32, %c0_i32_0, %c0_i32_1 : i32, i32, i32
  }
  func.func @transform_4(%arg0: i32) -> (i32, i32, i32) {
    %c0_i32 = arith.constant 0 : i32
    %c0_i32_0 = arith.constant 0 : i32
    %c0_i32_1 = arith.constant 0 : i32
    %c0_i32_2 = arith.constant 0 : i32
    return %c0_i32, %c0_i32_0, %c0_i32_1 : i32, i32, i32
  }
  func.func @transform_5(%arg0: i32) -> (i32, i32, i32) {
    %c0_i32 = arith.constant 0 : i32
    %c0_i32_0 = arith.constant 0 : i32
    %c0_i32_1 = arith.constant 0 : i32
    %c0_i32_2 = arith.constant 0 : i32
    return %c0_i32, %c0_i32_0, %c0_i32_1 : i32, i32, i32
  }
  func.func @transform_6(%arg0: i32) -> (i32, i32, i32) {
    %c0_i32 = arith.constant 0 : i32
    %c0_i32_0 = arith.constant 0 : i32
    %c0_i32_1 = arith.constant 0 : i32
    %c0_i32_2 = arith.constant 0 : i32
    return %c0_i32, %c0_i32_0, %c0_i32_1 : i32, i32, i32
  }
  func.func @transform_7(%arg0: i32) -> (i32, i32, i32) {
    %c0_i32 = arith.constant 0 : i32
    %c0_i32_0 = arith.constant 0 : i32
    %c0_i32_1 = arith.constant 0 : i32
    %c0_i32_2 = arith.constant 0 : i32
    return %c0_i32, %c0_i32_0, %c0_i32_1 : i32, i32, i32
  }
  func.func @transform_8(%arg0: i32) -> (i32, i32, i32) {
    %c0_i32 = arith.constant 0 : i32
    %c0_i32_0 = arith.constant 0 : i32
    %c0_i32_1 = arith.constant 0 : i32
    %c0_i32_2 = arith.constant 0 : i32
    return %c0_i32, %c0_i32_0, %c0_i32_1 : i32, i32, i32
  }
  func.func @transform_9(%arg0: i32) -> (i32, i32) {
    %c0_i32 = arith.constant 0 : i32
    %c0_i32_0 = arith.constant 0 : i32
    %c0_i32_1 = arith.constant 0 : i32
    return %c0_i32, %c0_i32_0 : i32, i32
  }
  func.func @transform_10(%arg0: i32) -> (i32, i32) {
    %c0_i32 = arith.constant 0 : i32
    %c0_i32_0 = arith.constant 0 : i32
    %c0_i32_1 = arith.constant 0 : i32
    return %c0_i32, %c0_i32_0 : i32, i32
  }
  func.func @transform_11(%arg0: i32) -> (i32, i32) {
    %c0_i32 = arith.constant 0 : i32
    %c0_i32_0 = arith.constant 0 : i32
    return %arg0, %c0_i32 : i32, i32
  }
}

module attributes {stable_mosaic.version = 11 : i64} {
  func.func @downsample_kernel(%arg0: i32, %arg1: i32, %arg2: memref<1x1x9x128xf32, #tpu.memory_space<vmem>>, %arg3: memref<1x1x9x128xf32, #tpu.memory_space<vmem>>, %arg4: memref<2x2x128x64xbf16, #tpu.memory_space<vmem>>, %arg5: memref<1x64xf32, #tpu.memory_space<vmem>>, %arg6: memref<1x64xf32, #tpu.memory_space<vmem>>, %arg7: memref<1x1x8x64xf32, #tpu.memory_space<vmem>>) attributes {dimension_semantics = [#tpu.dimension_semantics<parallel>, #tpu.dimension_semantics<arbitrary>], iteration_bounds = array<i64: 2, 8>, scalar_prefetch = 0 : i64, scratch_operands = 0 : i64, tpu.core_type = #tpu.core_type<tc>, window_params = [{transform_indices = @transform_0, window_bounds = array<i64: 1, 1, 9, 128>}, {transform_indices = @transform_1, window_bounds = array<i64: 1, 1, 9, 128>}, {pipeline_mode = #tpu.pipeline_mode<synchronous>, transform_indices = @transform_2, window_bounds = array<i64: 2, 2, 128, 64>}, {pipeline_mode = #tpu.pipeline_mode<synchronous>, transform_indices = @transform_3, window_bounds = array<i64: 1, 64>}, {pipeline_mode = #tpu.pipeline_mode<synchronous>, transform_indices = @transform_4, window_bounds = array<i64: 1, 64>}, {transform_indices = @transform_5, window_bounds = array<i64: 1, 1, 8, 64>}]} {
    %c0 = arith.constant 0 : index
    %c0_0 = arith.constant 0 : index
    %c0_1 = arith.constant 0 : index
    %c0_2 = arith.constant 0 : index
    %0 = vector.load %arg4[%c0, %c0_0, %c0_1, %c0_2] : memref<2x2x128x64xbf16, #tpu.memory_space<vmem>>, vector<2x2x128x64xbf16>
    %cst = arith.constant 0.000000e+00 : f32
    %1 = vector.broadcast %cst : f32 to vector<8x64xf32>
    %c0_3 = arith.constant 0 : index
    %c0_4 = arith.constant 0 : index
    %c0_5 = arith.constant 0 : index
    %c0_6 = arith.constant 0 : index
    %2 = vector.load %arg2[%c0_3, %c0_4, %c0_5, %c0_6] : memref<1x1x9x128xf32, #tpu.memory_space<vmem>>, vector<1x1x9x128xf32>
    %3 = vector.shape_cast %2 : vector<1x1x9x128xf32> to vector<9x128xf32>
    %4 = vector.extract_strided_slice %3 {offsets = [0, 0], sizes = [8, 128], strides = [1, 1]} : vector<9x128xf32> to vector<8x128xf32>
    %5 = arith.truncf %4 : vector<8x128xf32> to vector<8x128xbf16>
    %6 = vector.extract_strided_slice %0 {offsets = [0, 0, 0, 0], sizes = [1, 1, 128, 64], strides = [1, 1, 1, 1]} : vector<2x2x128x64xbf16> to vector<1x1x128x64xbf16>
    %7 = vector.shape_cast %6 : vector<1x1x128x64xbf16> to vector<128x64xbf16>
    %cst_7 = arith.constant dense<0.000000e+00> : vector<8x64xf32>
    %8 = tpu.matmul %5, %7, %cst_7 {dimension_numbers = #tpu.dot_dimension_numbers<[1], [0], [0], [1], [0, 0, 1, 1], [], []>} : vector<8x128xbf16>, vector<128x64xbf16>, vector<8x64xf32> -> vector<8x64xf32>
    %9 = arith.addf %1, %8 : vector<8x64xf32>
    %10 = vector.extract_strided_slice %3 {offsets = [1, 0], sizes = [8, 128], strides = [1, 1]} : vector<9x128xf32> to vector<8x128xf32>
    %11 = arith.truncf %10 : vector<8x128xf32> to vector<8x128xbf16>
    %12 = vector.extract_strided_slice %0 {offsets = [0, 1, 0, 0], sizes = [1, 1, 128, 64], strides = [1, 1, 1, 1]} : vector<2x2x128x64xbf16> to vector<1x1x128x64xbf16>
    %13 = vector.shape_cast %12 : vector<1x1x128x64xbf16> to vector<128x64xbf16>
    %cst_8 = arith.constant dense<0.000000e+00> : vector<8x64xf32>
    %14 = tpu.matmul %11, %13, %cst_8 {dimension_numbers = #tpu.dot_dimension_numbers<[1], [0], [0], [1], [0, 0, 1, 1], [], []>} : vector<8x128xbf16>, vector<128x64xbf16>, vector<8x64xf32> -> vector<8x64xf32>
    %15 = arith.addf %9, %14 : vector<8x64xf32>
    %c0_9 = arith.constant 0 : index
    %c0_10 = arith.constant 0 : index
    %c0_11 = arith.constant 0 : index
    %c0_12 = arith.constant 0 : index
    %16 = vector.load %arg3[%c0_9, %c0_10, %c0_11, %c0_12] : memref<1x1x9x128xf32, #tpu.memory_space<vmem>>, vector<1x1x9x128xf32>
    %17 = vector.shape_cast %16 : vector<1x1x9x128xf32> to vector<9x128xf32>
    %18 = vector.extract_strided_slice %17 {offsets = [0, 0], sizes = [8, 128], strides = [1, 1]} : vector<9x128xf32> to vector<8x128xf32>
    %19 = arith.truncf %18 : vector<8x128xf32> to vector<8x128xbf16>
    %20 = vector.extract_strided_slice %0 {offsets = [1, 0, 0, 0], sizes = [1, 1, 128, 64], strides = [1, 1, 1, 1]} : vector<2x2x128x64xbf16> to vector<1x1x128x64xbf16>
    %21 = vector.shape_cast %20 : vector<1x1x128x64xbf16> to vector<128x64xbf16>
    %cst_13 = arith.constant dense<0.000000e+00> : vector<8x64xf32>
    %22 = tpu.matmul %19, %21, %cst_13 {dimension_numbers = #tpu.dot_dimension_numbers<[1], [0], [0], [1], [0, 0, 1, 1], [], []>} : vector<8x128xbf16>, vector<128x64xbf16>, vector<8x64xf32> -> vector<8x64xf32>
    %23 = arith.addf %15, %22 : vector<8x64xf32>
    %24 = vector.extract_strided_slice %17 {offsets = [1, 0], sizes = [8, 128], strides = [1, 1]} : vector<9x128xf32> to vector<8x128xf32>
    %25 = arith.truncf %24 : vector<8x128xf32> to vector<8x128xbf16>
    %26 = vector.extract_strided_slice %0 {offsets = [1, 1, 0, 0], sizes = [1, 1, 128, 64], strides = [1, 1, 1, 1]} : vector<2x2x128x64xbf16> to vector<1x1x128x64xbf16>
    %27 = vector.shape_cast %26 : vector<1x1x128x64xbf16> to vector<128x64xbf16>
    %cst_14 = arith.constant dense<0.000000e+00> : vector<8x64xf32>
    %28 = tpu.matmul %25, %27, %cst_14 {dimension_numbers = #tpu.dot_dimension_numbers<[1], [0], [0], [1], [0, 0, 1, 1], [], []>} : vector<8x128xbf16>, vector<128x64xbf16>, vector<8x64xf32> -> vector<8x64xf32>
    %29 = arith.addf %23, %28 : vector<8x64xf32>
    %c0_15 = arith.constant 0 : index
    %c0_16 = arith.constant 0 : index
    %30 = vector.load %arg5[%c0_15, %c0_16] : memref<1x64xf32, #tpu.memory_space<vmem>>, vector<1x64xf32>
    %c0_17 = arith.constant 0 : index
    %c0_18 = arith.constant 0 : index
    %31 = vector.load %arg6[%c0_17, %c0_18] : memref<1x64xf32, #tpu.memory_space<vmem>>, vector<1x64xf32>
    %cst_19 = arith.constant dense<0.000000e+00> : vector<8xf32>
    %32 = vector.multi_reduction <add>, %29, %cst_19 [1] : vector<8x64xf32> to vector<8xf32>
    %33 = vector.shape_cast %32 : vector<8xf32> to vector<8x1xf32>
    %cst_20 = arith.constant 6.400000e+01 : f32
    %34 = vector.broadcast %cst_20 : f32 to vector<8x1xf32>
    %35 = arith.divf %33, %34 : vector<8x1xf32>
    %36 = vector.broadcast %35 : vector<8x1xf32> to vector<8x64xf32>
    %37 = arith.subf %29, %36 : vector<8x64xf32>
    %38 = arith.mulf %37, %37 : vector<8x64xf32>
    %cst_21 = arith.constant dense<0.000000e+00> : vector<8xf32>
    %39 = vector.multi_reduction <add>, %38, %cst_21 [1] : vector<8x64xf32> to vector<8xf32>
    %40 = vector.shape_cast %39 : vector<8xf32> to vector<8x1xf32>
    %cst_22 = arith.constant 6.400000e+01 : f32
    %41 = vector.broadcast %cst_22 : f32 to vector<8x1xf32>
    %42 = arith.divf %40, %41 : vector<8x1xf32>
    %43 = vector.broadcast %35 : vector<8x1xf32> to vector<8x64xf32>
    %44 = arith.subf %29, %43 : vector<8x64xf32>
    %cst_23 = arith.constant 9.99999997E-7 : f32
    %45 = vector.broadcast %cst_23 : f32 to vector<8x1xf32>
    %46 = arith.addf %42, %45 : vector<8x1xf32>
    %47 = math.rsqrt %46 : vector<8x1xf32>
    %48 = vector.broadcast %47 : vector<8x1xf32> to vector<8x64xf32>
    %49 = arith.mulf %44, %48 : vector<8x64xf32>
    %50 = vector.broadcast %30 : vector<1x64xf32> to vector<8x64xf32>
    %51 = arith.mulf %49, %50 : vector<8x64xf32>
    %52 = vector.broadcast %31 : vector<1x64xf32> to vector<8x64xf32>
    %53 = arith.addf %51, %52 : vector<8x64xf32>
    %c0_24 = arith.constant 0 : index
    %c0_25 = arith.constant 0 : index
    %c0_26 = arith.constant 0 : index
    %c0_27 = arith.constant 0 : index
    %54 = vector.load %arg7[%c0_24, %c0_25, %c0_26, %c0_27] : memref<1x1x8x64xf32, #tpu.memory_space<vmem>>, vector<1x1x8x64xf32>
    %55 = vector.shape_cast %54 : vector<1x1x8x64xf32> to vector<8x64xf32>
    %56 = vector.shape_cast %53 : vector<8x64xf32> to vector<1x1x8x64xf32>
    tpu.vector_store %arg7[%c0_24, %c0_25, %c0_26, %c0_27], %56 {strides = array<i32>} : memref<1x1x8x64xf32, #tpu.memory_space<vmem>>, vector<1x1x8x64xf32>,
    return
  }
  func.func @transform_0(%arg0: i32, %arg1: i32) -> (i32, i32, i32, i32) {
    %c0_i32 = arith.constant 0 : i32
    %c0_i32_0 = arith.constant 0 : i32
    %c0_i32_1 = arith.constant 0 : i32
    return %arg0, %arg1, %c0_i32, %c0_i32_0 : i32, i32, i32, i32
  }
  func.func @transform_1(%arg0: i32, %arg1: i32) -> (i32, i32, i32, i32) {
    %c1_i32 = arith.constant 1 : i32
    %0 = arith.addi %arg1, %c1_i32 : i32
    %c0_i32 = arith.constant 0 : i32
    %c0_i32_0 = arith.constant 0 : i32
    %c0_i32_1 = arith.constant 0 : i32
    return %arg0, %0, %c0_i32, %c0_i32_0 : i32, i32, i32, i32
  }
  func.func @transform_2(%arg0: i32, %arg1: i32) -> (i32, i32, i32, i32) {
    %c0_i32 = arith.constant 0 : i32
    %c0_i32_0 = arith.constant 0 : i32
    %c0_i32_1 = arith.constant 0 : i32
    %c0_i32_2 = arith.constant 0 : i32
    %c0_i32_3 = arith.constant 0 : i32
    return %c0_i32, %c0_i32_0, %c0_i32_1, %c0_i32_2 : i32, i32, i32, i32
  }
  func.func @transform_3(%arg0: i32, %arg1: i32) -> (i32, i32) {
    %c0_i32 = arith.constant 0 : i32
    %c0_i32_0 = arith.constant 0 : i32
    %c0_i32_1 = arith.constant 0 : i32
    return %c0_i32, %c0_i32_0 : i32, i32
  }
  func.func @transform_4(%arg0: i32, %arg1: i32) -> (i32, i32) {
    %c0_i32 = arith.constant 0 : i32
    %c0_i32_0 = arith.constant 0 : i32
    %c0_i32_1 = arith.constant 0 : i32
    return %c0_i32, %c0_i32_0 : i32, i32
  }
  func.func @transform_5(%arg0: i32, %arg1: i32) -> (i32, i32, i32, i32) {
    %c0_i32 = arith.constant 0 : i32
    %c0_i32_0 = arith.constant 0 : i32
    %c0_i32_1 = arith.constant 0 : i32
    return %arg0, %arg1, %c0_i32, %c0_i32_0 : i32, i32, i32, i32
  }
}

</mosaic_0001>

<llo_original>
// kernel: ttm_block_forward.3
$region0: #{ttm_block_forward.3}
  #allocation0 [shape = 'u32[]', space=smem, size = 0x4, offset = 0x4, fixed_abs, tag = 'smem constant byte address 0x4 - core index']
  #allocation1 [shape = 'u32[72,128]{1,0:T(1,128)}', space=vmem, size = 0x9000, scoped, tag = 'internal scratch']
  %s0 = inlined_call_operand.vmem [shape: f32[2,9,9,128], index: 0, kind: input, shape index: {}, may-alias: {0,1}]
  %s1 = inlined_call_operand.vmem [shape: f32[2,9,9,128], index: 1, kind: input, shape index: {}, may-alias: {0,1}]
  %s2 = inlined_call_operand.vmem [shape: bf16[2,2,128,64], index: 2, kind: input, shape index: {}]
  %s3 = inlined_call_operand.vmem [shape: f32[1,64], index: 3, kind: input, shape index: {}]
  %s4 = inlined_call_operand.vmem [shape: f32[1,64], index: 4, kind: input, shape index: {}]
  %s5 = inlined_call_operand.hbm [shape: f32[2,8,8,64], index: 5, kind: output, shape index: {}]
  %s6 = sld [smem:[#allocation0]]
  $region53: #{ttm_block_forward.3} parent=0
    _
  %s8 = ssub.s32 1, %s6
  %s9 = scalar_select 0, %s8, %s6
  $region1: #{ttm_block_forward.3} parent=0
    #allocation2 [shape = 'u8[8192]{0}', space=vmem, size = 0x2000, scoped, tag = 'output window, operand 0']
    #allocation3 [shape = 's32[2]{0}', space=sflag, size = 0x8, scoped, tag = 'scoped memory for ttm_block_forward.3']
    %10 = vsyncpa [#allocation3], 0
    %s11 = scalar_lea.sflag [#allocation3], 1
    %12 = vsyncpa %s11, 0
    loop: start=0, step=1, limit=18
    $region2: #{ttm_block_forward.3} parent=1 // loop_pre_header
      _
    $region3: #{ttm_block_forward.3} parent=1 // loop_header
      %s14 = sphi 0, %s18
      %p15 = scmp.ge.s32.totalorder %s14, 18
      %s21 = sphi 0, %s33
      %s22 = sphi 0, %s29
      %s23 = sphi 0, %s21
      %s24 = sphi 0, %s22
      %s25 = sphi 0, %s23
      %s26 = sphi 0, %s24
      %s38 = sphi 0, %s40
      %s41 = sphi 0, %s38
      %s42 = sphi 0, %s41
      %s58 = sphi 0, %s42
      %s68 = sphi 0, %s70
      %s71 = sphi 0, %s68
      %s72 = sphi 0, %s71
      %s88 = sphi 0, %s72
      %s92 = sphi 0, %s92
      %s94 = sphi 0, %s92
      %s95 = sphi 0, %s94
      %s109 = sphi 0, %s95
      %s113 = sphi 0, %s113
      %s115 = sphi 0, %s113
      %s116 = sphi 0, %s115
      %s130 = sphi 0, %s116
      %s134 = sphi 0, %s134
      %s136 = sphi 0, %s134
      %s137 = sphi 0, %s136
      %s151 = sphi 0, %s137
      %s159 = sphi 0, %s161
      %s162 = sphi 0, %s159
      %s163 = sphi 0, %s162
      %s179 = sphi 0, %s163
    $region4: #{ttm_block_forward.3} parent=1 // loop_header_branch
      %17 = sbr.rel (%p15) target = $region8
    $region5: #{ttm_block_forward.3} parent=1 // loop_body
      %s19 = ssub.s32 %s14, 1
      %s20 = ssub.s32 %s14, 2
      %s27 = sadd.s32 1, %s22
      %p28 = scmp.ge.s32.totalorder %s27, 8
      %s29 = scalar_select %p28, 0, %s27
      %s30 = sadd.s32 1, %s21
      %s31 = scalar_select %p28, %s30, %s21
      %p32 = scmp.ge.s32.totalorder %s31, 2
      %s33 = scalar_select %p32, 0, %s31
      %s34 = ssub.s32 %s21, %s33
      %s35 = ssub.s32 %s22, %s29
      %s36 = sor.u32 %s34, %s35
      %p37 = scmp.eq.s32.totalorder %s36, 0
      %s39 = sadd.s32 %s38, 1
      %s40 = scalar_select %p37, %s38, %s39
      %p43 = pneg %p37
      %p44 = scmp.eq.s32.totalorder %s14, 15
      %p45 = por %p43, %p44
      %p46 = scmp.ne.s32.totalorder %s38, %s41
      %p47 = scmp.eq.s32.totalorder %s14, 0
      %p48 = por %p46, %p47
      %p49 = scmp.ne.s32.totalorder %s38, %s41
      %p50 = scmp.eq.s32.totalorder %s19, 15
      %p51 = por %p49, %p50
      %p52 = scmp.ne.s32.totalorder %s41, %s42
      %p53 = scmp.eq.s32.totalorder %s19, 0
      %p54 = por %p52, %p53
      %p55 = scmp.ne.s32.totalorder %s41, %s42
      %p56 = scmp.eq.s32.totalorder %s20, 15
      %p57 = por %p55, %p56
      %p59 = scmp.ne.s32.totalorder %s42, %s58
      %p60 = scmp.eq.s32.totalorder %s20, 0
      %p61 = por %p59, %p60
      %s62 = sadd.s32 %s22, 1
      %s63 = sadd.s32 %s29, 1
      %s64 = ssub.s32 %s21, %s33
      %s65 = ssub.s32 %s62, %s63
      %s66 = sor.u32 %s64, %s65
      %p67 = scmp.eq.s32.totalorder %s66, 0
      %s69 = sadd.s32 %s68, 1
      %s70 = scalar_select %p67, %s68, %s69
      %p73 = pneg %p67
      %p74 = scmp.eq.s32.totalorder %s14, 15
      %p75 = por %p73, %p74
      %p76 = scmp.ne.s32.totalorder %s68, %s71
      %p77 = scmp.eq.s32.totalorder %s14, 0
      %p78 = por %p76, %p77
      %p79 = scmp.ne.s32.totalorder %s68, %s71
      %p80 = scmp.eq.s32.totalorder %s19, 15
      %p81 = por %p79, %p80
      %p82 = scmp.ne.s32.totalorder %s71, %s72
      %p83 = scmp.eq.s32.totalorder %s19, 0
      %p84 = por %p82, %p83
      %p85 = scmp.ne.s32.totalorder %s71, %s72
      %p86 = scmp.eq.s32.totalorder %s20, 15
      %p87 = por %p85, %p86
      %p89 = scmp.ne.s32.totalorder %s72, %s88
      %p90 = scmp.eq.s32.totalorder %s20, 0
      %p91 = por %p89, %p90
      %s93 = sadd.s32 %s92, 1
      %p96 = scmp.eq.s32.totalorder %s14, 15
      %p97 = scmp.ne.s32.totalorder %s92, %s94
      %p98 = scmp.eq.s32.totalorder %s14, 0
      %p99 = por %p97, %p98
      %p100 = scmp.ne.s32.totalorder %s92, %s94
      %p101 = scmp.eq.s32.totalorder %s19, 15
      %p102 = por %p100, %p101
      %p103 = scmp.ne.s32.totalorder %s94, %s95
      %p104 = scmp.eq.s32.totalorder %s19, 0
      %p105 = por %p103, %p104
      %p106 = scmp.ne.s32.totalorder %s94, %s95
      %p107 = scmp.eq.s32.totalorder %s20, 15
      %p108 = por %p106, %p107
      %p110 = scmp.ne.s32.totalorder %s95, %s109
      %p111 = scmp.eq.s32.totalorder %s20, 0
      %p112 = por %p110, %p111
      %s114 = sadd.s32 %s113, 1
      %p117 = scmp.eq.s32.totalorder %s14, 15
      %p118 = scmp.ne.s32.totalorder %s113, %s115
      %p119 = scmp.eq.s32.totalorder %s14, 0
      %p120 = por %p118, %p119
      %p121 = scmp.ne.s32.totalorder %s113, %s115
      %p122 = scmp.eq.s32.totalorder %s19, 15
      %p123 = por %p121, %p122
      %p124 = scmp.ne.s32.totalorder %s115, %s116
      %p125 = scmp.eq.s32.totalorder %s19, 0
      %p126 = por %p124, %p125
      %p127 = scmp.ne.s32.totalorder %s115, %s116
      %p128 = scmp.eq.s32.totalorder %s20, 15
      %p129 = por %p127, %p128
      %p131 = scmp.ne.s32.totalorder %s116, %s130
      %p132 = scmp.eq.s32.totalorder %s20, 0
      %p133 = por %p131, %p132
      %s135 = sadd.s32 %s134, 1
      %p138 = scmp.eq.s32.totalorder %s14, 15
      %p139 = scmp.ne.s32.totalorder %s134, %s136
      %p140 = scmp.eq.s32.totalorder %s14, 0
      %p141 = por %p139, %p140
      %p142 = scmp.ne.s32.totalorder %s134, %s136
      %p143 = scmp.eq.s32.totalorder %s19, 15
      %p144 = por %p142, %p143
      %p145 = scmp.ne.s32.totalorder %s136, %s137
      %p146 = scmp.eq.s32.totalorder %s19, 0
      %p147 = por %p145, %p146
      %p148 = scmp.ne.s32.totalorder %s136, %s137
      %p149 = scmp.eq.s32.totalorder %s20, 15
      %p150 = por %p148, %p149
      %p152 = scmp.ne.s32.totalorder %s137, %s151
      %p153 = scmp.eq.s32.totalorder %s20, 0
      %p154 = por %p152, %p153
      %s155 = ssub.s32 %s21, %s33
      %s156 = ssub.s32 %s22, %s29
      %s157 = sor.u32 %s155, %s156
      %p158 = scmp.eq.s32.totalorder %s157, 0
      %s160 = sadd.s32 %s159, 1
      %s161 = scalar_select %p158, %s159, %s160
      %p164 = pneg %p158
      %p165 = scmp.eq.s32.totalorder %s14, 15
      %p166 = por %p164, %p165
      %p167 = scmp.ne.s32.totalorder %s159, %s162
      %p168 = scmp.eq.s32.totalorder %s14, 0
      %p169 = por %p167, %p168
      %p170 = scmp.ne.s32.totalorder %s159, %s162
      %p171 = scmp.eq.s32.totalorder %s19, 15
      %p172 = por %p170, %p171
      %p173 = scmp.ne.s32.totalorder %s162, %s163
      %p174 = scmp.eq.s32.totalorder %s19, 0
      %p175 = por %p173, %p174
      %p176 = scmp.ne.s32.totalorder %s162, %s163
      %p177 = scmp.eq.s32.totalorder %s20, 15
      %p178 = por %p176, %p177
      %p180 = scmp.ne.s32.totalorder %s163, %s179
      %p181 = scmp.eq.s32.totalorder %s20, 0
      %p182 = por %p180, %p181
      %p183 = scmp.le.s32.totalorder 1, %s14
      %p184 = scmp.lt.s32.totalorder %s14, 17
      %p185 = pnand %p183, %p184
      %p186 = pneg %p185
      // Predicated region
      $region9: #{ttm_block_forward.3} parent=5 // pred_check
        _
      $region10: #{ttm_block_forward.3} parent=5 // pred_check_branch
        %188 = sbr.rel (%p185) target = $region12
      $region11: #{ttm_block_forward.3} parent=5 // pred_region
        %s189 = ssub.s32 %s14, 1
        // Predicated region
        $region13: #{ttm_block_forward.3} parent=11 // pred_check
          %p190 = pneg %p105
        $region14: #{ttm_block_forward.3} parent=11 // pred_check_branch
          %192 = sbr.rel (%p190) target = $region16
        $region15: #{ttm_block_forward.3} parent=11 // pred_region
          _
        $region16: #{ttm_block_forward.3} parent=11 // pred_fallthru
          _
        // Predicated region
        $region17: #{ttm_block_forward.3} parent=11 // pred_check
          %p193 = pneg %p126
        $region18: #{ttm_block_forward.3} parent=11 // pred_check_branch
          %195 = sbr.rel (%p193) target = $region20
        $region19: #{ttm_block_forward.3} parent=11 // pred_region
          _
        $region20: #{ttm_block_forward.3} parent=11 // pred_fallthru
          _
        // Predicated region
        $region21: #{ttm_block_forward.3} parent=11 // pred_check
          %p196 = pneg %p147
        $region22: #{ttm_block_forward.3} parent=11 // pred_check_branch
          %198 = sbr.rel (%p196) target = $region24
        $region23: #{ttm_block_forward.3} parent=11 // pred_region
          _
        $region24: #{ttm_block_forward.3} parent=11 // pred_fallthru
          _
      $region12: #{ttm_block_forward.3} parent=5 // pred_fallthru
        _
      %p199 = scmp.lt.s32.totalorder %s14, 16
      // Predicated region
      $region25: #{ttm_block_forward.3} parent=5 // pred_check
        %p200 = pneg %p199
      $region26: #{ttm_block_forward.3} parent=5 // pred_check_branch
        %202 = sbr.rel (%p200) target = $region28
      $region27: #{ttm_block_forward.3} parent=5 // pred_region
        // Predicated region
        $region29: #{ttm_block_forward.3} parent=27 // pred_check
          %p203 = pneg %p48
        $region30: #{ttm_block_forward.3} parent=27 // pred_check_branch
          %205 = sbr.rel (%p203) target = $region32
        $region31: #{ttm_block_forward.3} parent=27 // pred_region
          %p206 = scmp.lt.s32.totalorder %s21, 1
          %s207 = scalar_select %p206, %s21, 1
          %p208 = scmp.lt.s32.totalorder %s22, 8
          %s209 = scalar_select %p208, %s22, 8
          %s210 = smul.addr %s209, 2
          %s211 = smul.addr %s207, 18
          %s212 = sadd.s32 %s210, %s211
          %s213 = smul.addr %s212, 8
          %s214 = scalar_lea.vmem %s0, %s213
        $region32: #{ttm_block_forward.3} parent=27 // pred_fallthru
          _
        // Predicated region
        $region33: #{ttm_block_forward.3} parent=27 // pred_check
          %p215 = pneg %p78
        $region34: #{ttm_block_forward.3} parent=27 // pred_check_branch
          %217 = sbr.rel (%p215) target = $region36
        $region35: #{ttm_block_forward.3} parent=27 // pred_region
          %s218 = sadd.s32 %s22, 1
          %p219 = scmp.lt.s32.totalorder %s21, 1
          %s220 = scalar_select %p219, %s21, 1
          %p221 = scmp.lt.s32.totalorder %s218, 8
          %s222 = scalar_select %p221, %s218, 8
          %s223 = smul.addr %s222, 2
          %s224 = smul.addr %s220, 18
          %s225 = sadd.s32 %s223, %s224
          %s226 = smul.addr %s225, 8
          %s227 = scalar_lea.vmem %s1, %s226
          %s228 = sadd.s32 %s22, 1
        $region36: #{ttm_block_forward.3} parent=27 // pred_fallthru
          _
      $region28: #{ttm_block_forward.3} parent=5 // pred_fallthru
        _
      %p229 = scmp.le.s32.totalorder 1, %s14
      %p230 = scmp.lt.s32.totalorder %s14, 17
      %p231 = pnand %p229, %p230
      %p232 = pneg %p231
      // Predicated region
      $region37: #{ttm_block_forward.3} parent=5 // pred_check
        _
      $region38: #{ttm_block_forward.3} parent=5 // pred_check_branch
        %234 = sbr.rel (%p231) target = $region40
      $region39: #{ttm_block_forward.3} parent=5 // pred_region
        %s235 = ssub.s32 %s14, 1
        %p236 = scmp.lt.s32.totalorder %s23, 1
        %s237 = scalar_select %p236, %s23, 1
        %p238 = scmp.lt.s32.totalorder %s24, 8
        %s239 = scalar_select %p238, %s24, 8
        %s240 = smul.addr %s239, 2
        %s241 = smul.addr %s237, 18
        %s242 = sadd.s32 %s240, %s241
        %s243 = smul.addr %s242, 8
        %s244 = scalar_lea.vmem %s0, %s243
        %p245 = pneg %p54
        %p246 = pneg %p51
        %s247 = sadd.s32 %s24, 1
        %p248 = scmp.lt.s32.totalorder %s23, 1
        %s249 = scalar_select %p248, %s23, 1
        %p250 = scmp.lt.s32.totalorder %s247, 8
        %s251 = scalar_select %p250, %s247, 8
        %s252 = smul.addr %s251, 2
        %s253 = smul.addr %s249, 18
        %s254 = sadd.s32 %s252, %s253
        %s255 = smul.addr %s254, 8
        %s256 = scalar_lea.vmem %s1, %s255
        %p257 = pneg %p84
        %p258 = pneg %p81
        %p259 = pneg %p105
        %p260 = pneg %p102
        %p261 = pneg %p126
        %p262 = pneg %p123
        %p263 = pneg %p147
        %p264 = pneg %p144
        %p265 = pneg %p175
        %p266 = pneg %p172
        %s267 = sand.u32 %s162, 1
        %s268 = scalar_lea.sflag [#allocation3], %s267
        %s269 = sand.u32 %s162, 1
        %s270 = smul.addr %s269, 8
        %s271 = scalar_lea.vmem [#allocation2], %s270
        %p272 = scmp.lt.s32.totalorder %s23, 1
        %s273 = scalar_select %p272, %s23, 1
        %p274 = scmp.lt.s32.totalorder %s24, 8
        %s275 = scalar_select %p274, %s24, 8
        %s276 = smul.addr %s275, 2
        %s277 = smul.addr %s273, 18
        %s278 = sadd.s32 %s276, %s277
        %s279 = smul.addr %s278, 8
        %s280 = scalar_lea.vmem %s0, %s279
        %s281 = sadd.s32 %s24, 1
        %p282 = scmp.lt.s32.totalorder %s23, 1
        %s283 = scalar_select %p282, %s23, 1
        %p284 = scmp.lt.s32.totalorder %s281, 8
        %s285 = scalar_select %p284, %s281, 8
        %s286 = smul.addr %s285, 2
        %s287 = smul.addr %s283, 18
        %s288 = sadd.s32 %s286, %s287
        %s289 = smul.addr %s288, 8
        %s290 = scalar_lea.vmem %s1, %s289
        %s291 = sadd.s32 %s24, 1
        %v292 = vld [vmem:[%s2] sm:$0xf]
        %v293 = vld [vmem:[%s2 + $0x4] sm:$0xf]
        %v294 = vld [vmem:[%s2 + $0x8] sm:$0xf]
        %v295 = vld [vmem:[%s2 + $0xc] sm:$0xf]
        %v296 = vld [vmem:[%s2 + $0x10] sm:$0xf]
        %v297 = vld [vmem:[%s2 + $0x14] sm:$0xf]
        %v298 = vld [vmem:[%s2 + $0x18] sm:$0xf]
        %v299 = vld [vmem:[%s2 + $0x1c] sm:$0xf]
        %v300 = vld [vmem:[%s2 + $0x20] sm:$0xf]
        %v301 = vld [vmem:[%s2 + $0x24] sm:$0xf]
        %v302 = vld [vmem:[%s2 + $0x28] sm:$0xf]
        %v303 = vld [vmem:[%s2 + $0x2c] sm:$0xf]
        %v304 = vld [vmem:[%s2 + $0x30] sm:$0xf]
        %v305 = vld [vmem:[%s2 + $0x34] sm:$0xf]
        %v306 = vld [vmem:[%s2 + $0x38] sm:$0xf]
        %v307 = vld [vmem:[%s2 + $0x3c] sm:$0xf]
        %v308 = vld [vmem:[%s2 + $0x40] sm:$0xf]
        %v309 = vld [vmem:[%s2 + $0x44] sm:$0xf]
        %v310 = vld [vmem:[%s2 + $0x48] sm:$0xf]
        %v311 = vld [vmem:[%s2 + $0x4c] sm:$0xf]
        %v312 = vld [vmem:[%s2 + $0x50] sm:$0xf]
        %v313 = vld [vmem:[%s2 + $0x54] sm:$0xf]
        %v314 = vld [vmem:[%s2 + $0x58] sm:$0xf]
        %v315 = vld [vmem:[%s2 + $0x5c] sm:$0xf]
        %v316 = vld [vmem:[%s2 + $0x60] sm:$0xf]
        %v317 = vld [vmem:[%s2 + $0x64] sm:$0xf]
        %v318 = vld [vmem:[%s2 + $0x68] sm:$0xf]
        %v319 = vld [vmem:[%s2 + $0x6c] sm:$0xf]
        %v320 = vld [vmem:[%s2 + $0x70] sm:$0xf]
        %v321 = vld [vmem:[%s2 + $0x74] sm:$0xf]
        %v322 = vld [vmem:[%s2 + $0x78] sm:$0xf]
        %v323 = vld [vmem:[%s2 + $0x7c] sm:$0xf]
        %v324 = vld [vmem:[%s2 + $0x80] sm:$0xf]
        %v325 = vld [vmem:[%s2 + $0x84] sm:$0xf]
        %v326 = vld [vmem:[%s2 + $0x88] sm:$0xf]
        %v327 = vld [vmem:[%s2 + $0x8c] sm:$0xf]
        %v328 = vld [vmem:[%s2 + $0x90] sm:$0xf]
        %v329 = vld [vmem:[%s2 + $0x94] sm:$0xf]
        %v330 = vld [vmem:[%s2 + $0x98] sm:$0xf]
        %v331 = vld [vmem:[%s2 + $0x9c] sm:$0xf]
        %v332 = vld [vmem:[%s2 + $0xa0] sm:$0xf]
        %v333 = vld [vmem:[%s2 + $0xa4] sm:$0xf]
        %v334 = vld [vmem:[%s2 + $0xa8] sm:$0xf]
        %v335 = vld [vmem:[%s2 + $0xac] sm:$0xf]
        %v336 = vld [vmem:[%s2 + $0xb0] sm:$0xf]
        %v337 = vld [vmem:[%s2 + $0xb4] sm:$0xf]
        %v338 = vld [vmem:[%s2 + $0xb8] sm:$0xf]
        %v339 = vld [vmem:[%s2 + $0xbc] sm:$0xf]
        %v340 = vld [vmem:[%s2 + $0xc0] sm:$0xf]
        %v341 = vld [vmem:[%s2 + $0xc4] sm:$0xf]
        %v342 = vld [vmem:[%s2 + $0xc8] sm:$0xf]
        %v343 = vld [vmem:[%s2 + $0xcc] sm:$0xf]
        %v344 = vld [vmem:[%s2 + $0xd0] sm:$0xf]
        %v345 = vld [vmem:[%s2 + $0xd4] sm:$0xf]
        %v346 = vld [vmem:[%s2 + $0xd8] sm:$0xf]
        %v347 = vld [vmem:[%s2 + $0xdc] sm:$0xf]
        %v348 = vld [vmem:[%s2 + $0xe0] sm:$0xf]
        %v349 = vld [vmem:[%s2 + $0xe4] sm:$0xf]
        %v350 = vld [vmem:[%s2 + $0xe8] sm:$0xf]
        %v351 = vld [vmem:[%s2 + $0xec] sm:$0xf]
        %v352 = vld [vmem:[%s2 + $0xf0] sm:$0xf]
        %v353 = vld [vmem:[%s2 + $0xf4] sm:$0xf]
        %v354 = vld [vmem:[%s2 + $0xf8] sm:$0xf]
        %v355 = vld [vmem:[%s2 + $0xfc] sm:$0xf]
        %v356 = vld [vmem:[%s280] sm:$0xff]
        %v357 = vld [vmem:[%s280 + $0x8] sm:$0x1]
        %v358 = vpack.c.bf16 %v356, %v356
        %v359 = vpack.c.bf16 %v357, %v356
        %v361 = vshrl.u32 %v359, 16
        %v363 = vshll.u32 %v359, 16
        %v365 = vrot.slane %v363, 1
        %v366 = vor.u32 %v361, %v365
        %v384 = vunpack.c.l.b16 %v308
        %v385 = vunpack.c.l.b16 %v309
        %v386 = vunpack.c.l.b16 %v310
        %v387 = vunpack.c.l.b16 %v311
        %v388 = vunpack.c.l.b16 %v312
        %v389 = vunpack.c.l.b16 %v313
        %v390 = vunpack.c.l.b16 %v314
        %v391 = vunpack.c.l.b16 %v315
        %v392 = vunpack.c.l.b16 %v316
        %v393 = vunpack.c.l.b16 %v317
        %v394 = vunpack.c.l.b16 %v318
        %v395 = vunpack.c.l.b16 %v319
        %v396 = vunpack.c.l.b16 %v320
        %v397 = vunpack.c.l.b16 %v321
        %v398 = vunpack.c.l.b16 %v322
        %v399 = vunpack.c.l.b16 %v323
        %v400 = vpack.c.b16 %v385, %v384
        %v401 = vpack.c.b16 %v387, %v386
        %v402 = vpack.c.b16 %v389, %v388
        %v403 = vpack.c.b16 %v391, %v390
        %v404 = vpack.c.b16 %v393, %v392
        %v405 = vpack.c.b16 %v395, %v394
        %v406 = vpack.c.b16 %v397, %v396
        %v407 = vpack.c.b16 %v399, %v398
        %416 = vmatpush.bf16.msra.mxu0 %v407
        %417 = vmatpush.bf16.msra.mxu0 %v406
        %418 = vmatpush.bf16.msra.mxu0 %v405
        %419 = vmatpush.bf16.msra.mxu0 %v404
        %420 = vmatpush.bf16.msra.mxu0 %v403
        %421 = vmatpush.bf16.msra.mxu0 %v402
        %422 = vmatpush.bf16.msra.mxu0 %v401
        %423 = vmatpush.bf16.msra.mxu0 %v400
        %424 = vmatmul.bf16.gmra.mxu0 %v366
        %v425 = vpop.f32.mrf.mxu0
        %v426 = vadd.f32 0.0, %v425
        %v427 = vpop.f32.mrf.mxu0
        %428 = vdwg.mxu0
        %v445 = vunpack.c.l.b16 %v292
        %v446 = vunpack.c.l.b16 %v293
        %v447 = vunpack.c.l.b16 %v294
        %v448 = vunpack.c.l.b16 %v295
        %v449 = vunpack.c.l.b16 %v296
        %v450 = vunpack.c.l.b16 %v297
        %v451 = vunpack.c.l.b16 %v298
        %v452 = vunpack.c.l.b16 %v299
        %v453 = vunpack.c.l.b16 %v300
        %v454 = vunpack.c.l.b16 %v301
        %v455 = vunpack.c.l.b16 %v302
        %v456 = vunpack.c.l.b16 %v303
        %v457 = vunpack.c.l.b16 %v304
        %v458 = vunpack.c.l.b16 %v305
        %v459 = vunpack.c.l.b16 %v306
        %v460 = vunpack.c.l.b16 %v307
        %v461 = vpack.c.b16 %v446, %v445
        %v462 = vpack.c.b16 %v448, %v447
        %v463 = vpack.c.b16 %v450, %v449
        %v464 = vpack.c.b16 %v452, %v451
        %v465 = vpack.c.b16 %v454, %v453
        %v466 = vpack.c.b16 %v456, %v455
        %v467 = vpack.c.b16 %v458, %v457
        %v468 = vpack.c.b16 %v460, %v459
        %477 = vmatpush.bf16.msra.mxu0 %v468
        %478 = vmatpush.bf16.msra.mxu0 %v467
        %479 = vmatpush.bf16.msra.mxu0 %v466
        %480 = vmatpush.bf16.msra.mxu0 %v465
        %481 = vmatpush.bf16.msra.mxu0 %v464
        %482 = vmatpush.bf16.msra.mxu0 %v463
        %483 = vmatpush.bf16.msra.mxu0 %v462
        %484 = vmatpush.bf16.msra.mxu0 %v461
        %485 = vmatmul.bf16.gmra.mxu0 %v358
        %v486 = vpop.f32.mrf.mxu0
        %v487 = vadd.f32 %v426, %v486
        %v488 = vpop.f32.mrf.mxu0
        %489 = vdwg.mxu0
        %v490 = vld [vmem:[%s290] sm:$0xff]
        %v491 = vld [vmem:[%s290 + $0x8] sm:$0x1]
        %v492 = vpack.c.bf16 %v490, %v490
        %v509 = vunpack.c.l.b16 %v324
        %v510 = vunpack.c.l.b16 %v325
        %v511 = vunpack.c.l.b16 %v326
        %v512 = vunpack.c.l.b16 %v327
        %v513 = vunpack.c.l.b16 %v328
        %v514 = vunpack.c.l.b16 %v329
        %v515 = vunpack.c.l.b16 %v330
        %v516 = vunpack.c.l.b16 %v331
        %v517 = vunpack.c.l.b16 %v332
        %v518 = vunpack.c.l.b16 %v333
        %v519 = vunpack.c.l.b16 %v334
        %v520 = vunpack.c.l.b16 %v335
        %v521 = vunpack.c.l.b16 %v336
        %v522 = vunpack.c.l.b16 %v337
        %v523 = vunpack.c.l.b16 %v338
        %v524 = vunpack.c.l.b16 %v339
        %v525 = vpack.c.b16 %v510, %v509
        %v526 = vpack.c.b16 %v512, %v511
        %v527 = vpack.c.b16 %v514, %v513
        %v528 = vpack.c.b16 %v516, %v515
        %v529 = vpack.c.b16 %v518, %v517
        %v530 = vpack.c.b16 %v520, %v519
        %v531 = vpack.c.b16 %v522, %v521
        %v532 = vpack.c.b16 %v524, %v523
        %541 = vmatpush.bf16.msra.mxu0 %v532
        %542 = vmatpush.bf16.msra.mxu0 %v531
        %543 = vmatpush.bf16.msra.mxu0 %v530
        %544 = vmatpush.bf16.msra.mxu0 %v529
        %545 = vmatpush.bf16.msra.mxu0 %v528
        %546 = vmatpush.bf16.msra.mxu0 %v527
        %547 = vmatpush.bf16.msra.mxu0 %v526
        %548 = vmatpush.bf16.msra.mxu0 %v525
        %549 = vmatmul.bf16.gmra.mxu0 %v492
        %v550 = vpop.f32.mrf.mxu0
        %v551 = vadd.f32 0.0, %v550
        %v552 = vpop.f32.mrf.mxu0
        %553 = vdwg.mxu0
        %v554 = vadd.f32 %v487, %v551
        %v555 = vpack.c.bf16 %v491, %v490
        %v557 = vshrl.u32 %v555, 16
        %v559 = vshll.u32 %v555, 16
        %v561 = vrot.slane %v559, 1
        %v562 = vor.u32 %v557, %v561
        %v580 = vunpack.c.l.b16 %v340
        %v581 = vunpack.c.l.b16 %v341
        %v582 = vunpack.c.l.b16 %v342
        %v583 = vunpack.c.l.b16 %v343
        %v584 = vunpack.c.l.b16 %v344
        %v585 = vunpack.c.l.b16 %v345
        %v586 = vunpack.c.l.b16 %v346
        %v587 = vunpack.c.l.b16 %v347
        %v588 = vunpack.c.l.b16 %v348
        %v589 = vunpack.c.l.b16 %v349
        %v590 = vunpack.c.l.b16 %v350
        %v591 = vunpack.c.l.b16 %v351
        %v592 = vunpack.c.l.b16 %v352
        %v593 = vunpack.c.l.b16 %v353
        %v594 = vunpack.c.l.b16 %v354
        %v595 = vunpack.c.l.b16 %v355
        %v596 = vpack.c.b16 %v581, %v580
        %v597 = vpack.c.b16 %v583, %v582
        %v598 = vpack.c.b16 %v585, %v584
        %v599 = vpack.c.b16 %v587, %v586
        %v600 = vpack.c.b16 %v589, %v588
        %v601 = vpack.c.b16 %v591, %v590
        %v602 = vpack.c.b16 %v593, %v592
        %v603 = vpack.c.b16 %v595, %v594
        %612 = vmatpush.bf16.msra.mxu0 %v603
        %613 = vmatpush.bf16.msra.mxu0 %v602
        %614 = vmatpush.bf16.msra.mxu0 %v601
        %615 = vmatpush.bf16.msra.mxu0 %v600
        %616 = vmatpush.bf16.msra.mxu0 %v599
        %617 = vmatpush.bf16.msra.mxu0 %v598
        %618 = vmatpush.bf16.msra.mxu0 %v597
        %619 = vmatpush.bf16.msra.mxu0 %v596
        %620 = vmatmul.bf16.gmra.mxu0 %v562
        %v621 = vpop.f32.mrf.mxu0
        %v622 = vadd.f32 0.0, %v621
        %v623 = vpop.f32.mrf.mxu0
        %624 = vdwg.mxu0
        %v625 = vadd.f32 %v554, %v622
        %v626 = vld [vmem:[%s3] sm:$0x1]
        %v627 = vld [vmem:[%s4] sm:$0x1]
        %vm628 = vcmask 523264
        %v629 = vsel %vm628, %v625, 0.0
        %630 = vadd.xlane.f32.xlu0 %v629
        %v631 = vpop.xlane.xlu0 %630
        %v632 = vrcp.pop 64.0
        %v633 = vmul.f32 64.0, %v632
        %v634 = vsub.f32 1.0, %v633
        %v635 = vmul.f32 %v632, %v634
        %v636 = vadd.f32 %v632, %v635
        %vm637 = vweird.f32 %v632
        %v638 = vsel %vm637, %v632, %v636
        %v639 = vmul.f32 %v631, %v638
        %v640 = vsub.f32 %v625, %v639
        %v641 = vmul.f32 %v640, %v640
        %v642 = vsel %vm628, %v641, 0.0
        %643 = vadd.xlane.f32.xlu0 %v642
        %v644 = vpop.xlane.xlu0 %643
        %v645 = vmul.f32 %v644, %v638
        %v646 = vadd.f32 %v645, 1e-06
        %v647 = vrsqrt.pop %v646
        %v648 = vmul.f32 %v647, %v646
        %v649 = vmul.f32 %v648, %v647
        %v650 = vmul.f32 0.5, %v649
        %v651 = vsub.f32 1.5, %v650
        %v652 = vmul.f32 %v647, %v651
        %vm653 = vweird.f32 %v646
        %vm654 = vweird.f32 %v647
        %vm655 = vmor %vm653, %vm654
        %v656 = vsel %vm655, %v647, %v652
        %v657 = vmul.f32 %v640, %v656
        %v659 = vperm.slane %v626, 0
        %v661 = vmul.f32 %v657, %v659
        %v663 = vperm.slane %v627, 0
        %v665 = vadd.f32 %v661, %v663
        %666 = vst.msk [vmem:[%s271] sm:$0xff] %vm628, %v665
        %s667 = sand.u32 %s162, 1
        %s668 = scalar_lea.sflag [#allocation3], %s667
        %s669 = sand.u32 %s162, 1
        %s670 = smul.addr %s669, 8
        %s671 = scalar_lea.vmem [#allocation2], %s670
        // Predicated region
        $region41: #{ttm_block_forward.3} parent=39 // pred_check
          %p672 = pneg %p172
        $region42: #{ttm_block_forward.3} parent=39 // pred_check_branch
          %674 = sbr.rel (%p672) target = $region44
        $region43: #{ttm_block_forward.3} parent=39 // pred_region
          %676 = vsyncadd %s668, 0
          %s677 = smul.addr %s23, 8
          %s678 = sadd.s32 %s24, %s677
          %s679 = smul.addr %s678, 8
          %s680 = scalar_lea.hbm %s5, %s679
          %s682 = sshll.u32 %s671, 4
          %s683 = int_to_ptr.vmem [resolvable:$true] %s682
          %s684 = sshll.u32 %s680, 4
          %s685 = int_to_ptr.hbm [resolvable:$true] %s684
          %687 = dma.vmem_to_hbm [thread:$0]  %s683, 128, %s685, %s668
        $region44: #{ttm_block_forward.3} parent=39 // pred_fallthru
          _
      $region40: #{ttm_block_forward.3} parent=5 // pred_fallthru
        _
      %p688 = scmp.le.s32.totalorder 2, %s14
      // Predicated region
      $region45: #{ttm_block_forward.3} parent=5 // pred_check
        %p689 = pneg %p688
      $region46: #{ttm_block_forward.3} parent=5 // pred_check_branch
        %691 = sbr.rel (%p689) target = $region48
      $region47: #{ttm_block_forward.3} parent=5 // pred_region
        %s692 = ssub.s32 %s14, 2
        // Predicated region
        $region49: #{ttm_block_forward.3} parent=47 // pred_check
          %p693 = pneg %p178
        $region50: #{ttm_block_forward.3} parent=47 // pred_check_branch
          %695 = sbr.rel (%p693) target = $region52
        $region51: #{ttm_block_forward.3} parent=47 // pred_region
          %s696 = sand.u32 %s163, 1
          %s697 = scalar_lea.sflag [#allocation3], %s696
          %s698 = sand.u32 %s163, 1
          %s699 = smul.addr %s698, 8
          %s700 = scalar_lea.vmem [#allocation2], %s699
          %702 = dma.done %s697, 128
        $region52: #{ttm_block_forward.3} parent=47 // pred_fallthru
          _
      $region48: #{ttm_block_forward.3} parent=5 // pred_fallthru
        _
    $region6: #{ttm_block_forward.3} parent=1 // loop_footer
      %s18 = sadd.s32 1, %s14
    $region7: #{ttm_block_forward.3} parent=1 // loop_footer_branch
      %13 = sbr.rel target = $region3
    $region8: #{ttm_block_forward.3} parent=1 // loop_exit
      _
    %703 = vsyncpa [#allocation3], 1
    %s704 = scalar_lea.sflag [#allocation3], 1
    %705 = vsyncpa %s704, 1

// kernel: ttm_block_forward.2
$region0: #{ttm_block_forward.2}
  #allocation0 [shape = 'u32[]', space=smem, size = 0x4, offset = 0x4, fixed_abs, tag = 'smem constant byte address 0x4 - core index']
  #allocation1 [shape = 'u32[72,128]{1,0:T(1,128)}', space=vmem, size = 0x9000, scoped, tag = 'internal scratch']
  %s0 = inlined_call_operand.hbm [shape: f32[512,32], index: 0, kind: input, shape index: {}]
  %s1 = inlined_call_operand.vmem [shape: f32[2,1,32], index: 1, kind: input, shape index: {}]
  %s2 = inlined_call_operand.vmem [shape: f32[2,1,32], index: 2, kind: input, shape index: {}]
  %s3 = inlined_call_operand.vmem [shape: f32[2,1,32], index: 3, kind: input, shape index: {}]
  %s4 = inlined_call_operand.vmem [shape: f32[2,1,32], index: 4, kind: input, shape index: {}]
  %s5 = inlined_call_operand.vmem [shape: bf16[2,32,128], index: 5, kind: input, shape index: {}]
  %s6 = inlined_call_operand.vmem [shape: f32[2,1,128], index: 6, kind: input, shape index: {}]
  %s7 = inlined_call_operand.vmem [shape: bf16[2,128,32], index: 7, kind: input, shape index: {}]
  %s8 = inlined_call_operand.vmem [shape: f32[2,1,32], index: 8, kind: input, shape index: {}]
  %s9 = inlined_call_operand.vmem [shape: f32[1,32], index: 9, kind: input, shape index: {}]
  %s10 = inlined_call_operand.vmem [shape: f32[1,32], index: 10, kind: input, shape index: {}]
  %s11 = inlined_call_operand.vmem [shape: f32[512,32], index: 11, kind: output, shape index: {}]
  %s12 = sld [smem:[#allocation0]]
  $region81: #{ttm_block_forward.2} parent=0
    _
  %s14 = ssub.s32 1, %s12
  %s15 = scalar_select 0, %s14, %s12
  $region1: #{ttm_block_forward.2} parent=0
    #allocation2 [shape = 'u8[262144]{0}', space=vmem, size = 0x40000, scoped, tag = 'input window, operand 0']
    #allocation3 [shape = 's32[2]{0}', space=sflag, size = 0x8, scoped, tag = 'scoped memory for ttm_block_forward.2']
    %16 = vsyncpa [#allocation3], 0
    %s17 = scalar_lea.sflag [#allocation3], 1
    %18 = vsyncpa %s17, 0
    loop: start=0, step=1, limit=4
    $region2: #{ttm_block_forward.2} parent=1 // loop_pre_header
      _
    $region3: #{ttm_block_forward.2} parent=1 // loop_header
      %s20 = sphi 0, %s24
      %p21 = scmp.ge.s32.totalorder %s20, 4
      %s30 = sphi 0, %s32
      %s33 = sphi 0, %s30
      %s34 = sphi 0, %s33
      %s50 = sphi 0, %s34
      %s54 = sphi 0, %s54
      %s56 = sphi 0, %s54
      %s57 = sphi 0, %s56
      %s71 = sphi 0, %s57
      %s75 = sphi 0, %s75
      %s77 = sphi 0, %s75
      %s78 = sphi 0, %s77
      %s92 = sphi 0, %s78
      %s96 = sphi 0, %s96
      %s98 = sphi 0, %s96
      %s99 = sphi 0, %s98
      %s113 = sphi 0, %s99
      %s117 = sphi 0, %s117
      %s119 = sphi 0, %s117
      %s120 = sphi 0, %s119
      %s134 = sphi 0, %s120
      %s138 = sphi 0, %s138
      %s140 = sphi 0, %s138
      %s141 = sphi 0, %s140
      %s155 = sphi 0, %s141
      %s159 = sphi 0, %s159
      %s161 = sphi 0, %s159
      %s162 = sphi 0, %s161
      %s176 = sphi 0, %s162
      %s180 = sphi 0, %s180
      %s182 = sphi 0, %s180
      %s183 = sphi 0, %s182
      %s197 = sphi 0, %s183
      %s201 = sphi 0, %s201
      %s203 = sphi 0, %s201
      %s204 = sphi 0, %s203
      %s218 = sphi 0, %s204
      %s222 = sphi 0, %s222
      %s224 = sphi 0, %s222
      %s225 = sphi 0, %s224
      %s239 = sphi 0, %s225
      %s243 = sphi 0, %s243
      %s245 = sphi 0, %s243
      %s246 = sphi 0, %s245
      %s260 = sphi 0, %s246
      %s266 = sphi 0, %s268
      %s269 = sphi 0, %s266
      %s270 = sphi 0, %s269
      %s286 = sphi 0, %s270
    $region4: #{ttm_block_forward.2} parent=1 // loop_header_branch
      %23 = sbr.rel (%p21) target = $region8
    $region5: #{ttm_block_forward.2} parent=1 // loop_body
      %s25 = ssub.s32 %s20, 1
      %s26 = ssub.s32 %s20, 2
      %s27 = sadd.s32 %s20, 1
      %s28 = ssub.s32 %s20, %s27
      %p29 = scmp.eq.s32.totalorder %s28, 0
      %s31 = sadd.s32 %s30, 1
      %s32 = scalar_select %p29, %s30, %s31
      %p35 = pneg %p29
      %p36 = scmp.eq.s32.totalorder %s20, 1
      %p37 = por %p35, %p36
      %p38 = scmp.ne.s32.totalorder %s30, %s33
      %p39 = scmp.eq.s32.totalorder %s20, 0
      %p40 = por %p38, %p39
      %p41 = scmp.ne.s32.totalorder %s30, %s33
      %p42 = scmp.eq.s32.totalorder %s25, 1
      %p43 = por %p41, %p42
      %p44 = scmp.ne.s32.totalorder %s33, %s34
      %p45 = scmp.eq.s32.totalorder %s25, 0
      %p46 = por %p44, %p45
      %p47 = scmp.ne.s32.totalorder %s33, %s34
      %p48 = scmp.eq.s32.totalorder %s26, 1
      %p49 = por %p47, %p48
      %p51 = scmp.ne.s32.totalorder %s34, %s50
      %p52 = scmp.eq.s32.totalorder %s26, 0
      %p53 = por %p51, %p52
      %s55 = sadd.s32 %s54, 1
      %p58 = scmp.eq.s32.totalorder %s20, 1
      %p59 = scmp.ne.s32.totalorder %s54, %s56
      %p60 = scmp.eq.s32.totalorder %s20, 0
      %p61 = por %p59, %p60
      %p62 = scmp.ne.s32.totalorder %s54, %s56
      %p63 = scmp.eq.s32.totalorder %s25, 1
      %p64 = por %p62, %p63
      %p65 = scmp.ne.s32.totalorder %s56, %s57
      %p66 = scmp.eq.s32.totalorder %s25, 0
      %p67 = por %p65, %p66
      %p68 = scmp.ne.s32.totalorder %s56, %s57
      %p69 = scmp.eq.s32.totalorder %s26, 1
      %p70 = por %p68, %p69
      %p72 = scmp.ne.s32.totalorder %s57, %s71
      %p73 = scmp.eq.s32.totalorder %s26, 0
      %p74 = por %p72, %p73
      %s76 = sadd.s32 %s75, 1
      %p79 = scmp.eq.s32.totalorder %s20, 1
      %p80 = scmp.ne.s32.totalorder %s75, %s77
      %p81 = scmp.eq.s32.totalorder %s20, 0
      %p82 = por %p80, %p81
      %p83 = scmp.ne.s32.totalorder %s75, %s77
      %p84 = scmp.eq.s32.totalorder %s25, 1
      %p85 = por %p83, %p84
      %p86 = scmp.ne.s32.totalorder %s77, %s78
      %p87 = scmp.eq.s32.totalorder %s25, 0
      %p88 = por %p86, %p87
      %p89 = scmp.ne.s32.totalorder %s77, %s78
      %p90 = scmp.eq.s32.totalorder %s26, 1
      %p91 = por %p89, %p90
      %p93 = scmp.ne.s32.totalorder %s78, %s92
      %p94 = scmp.eq.s32.totalorder %s26, 0
      %p95 = por %p93, %p94
      %s97 = sadd.s32 %s96, 1
      %p100 = scmp.eq.s32.totalorder %s20, 1
      %p101 = scmp.ne.s32.totalorder %s96, %s98
      %p102 = scmp.eq.s32.totalorder %s20, 0
      %p103 = por %p101, %p102
      %p104 = scmp.ne.s32.totalorder %s96, %s98
      %p105 = scmp.eq.s32.totalorder %s25, 1
      %p106 = por %p104, %p105
      %p107 = scmp.ne.s32.totalorder %s98, %s99
      %p108 = scmp.eq.s32.totalorder %s25, 0
      %p109 = por %p107, %p108
      %p110 = scmp.ne.s32.totalorder %s98, %s99
      %p111 = scmp.eq.s32.totalorder %s26, 1
      %p112 = por %p110, %p111
      %p114 = scmp.ne.s32.totalorder %s99, %s113
      %p115 = scmp.eq.s32.totalorder %s26, 0
      %p116 = por %p114, %p115
      %s118 = sadd.s32 %s117, 1
      %p121 = scmp.eq.s32.totalorder %s20, 1
      %p122 = scmp.ne.s32.totalorder %s117, %s119
      %p123 = scmp.eq.s32.totalorder %s20, 0
      %p124 = por %p122, %p123
      %p125 = scmp.ne.s32.totalorder %s117, %s119
      %p126 = scmp.eq.s32.totalorder %s25, 1
      %p127 = por %p125, %p126
      %p128 = scmp.ne.s32.totalorder %s119, %s120
      %p129 = scmp.eq.s32.totalorder %s25, 0
      %p130 = por %p128, %p129
      %p131 = scmp.ne.s32.totalorder %s119, %s120
      %p132 = scmp.eq.s32.totalorder %s26, 1
      %p133 = por %p131, %p132
      %p135 = scmp.ne.s32.totalorder %s120, %s134
      %p136 = scmp.eq.s32.totalorder %s26, 0
      %p137 = por %p135, %p136
      %s139 = sadd.s32 %s138, 1
      %p142 = scmp.eq.s32.totalorder %s20, 1
      %p143 = scmp.ne.s32.totalorder %s138, %s140
      %p144 = scmp.eq.s32.totalorder %s20, 0
      %p145 = por %p143, %p144
      %p146 = scmp.ne.s32.totalorder %s138, %s140
      %p147 = scmp.eq.s32.totalorder %s25, 1
      %p148 = por %p146, %p147
      %p149 = scmp.ne.s32.totalorder %s140, %s141
      %p150 = scmp.eq.s32.totalorder %s25, 0
      %p151 = por %p149, %p150
      %p152 = scmp.ne.s32.totalorder %s140, %s141
      %p153 = scmp.eq.s32.totalorder %s26, 1
      %p154 = por %p152, %p153
      %p156 = scmp.ne.s32.totalorder %s141, %s155
      %p157 = scmp.eq.s32.totalorder %s26, 0
      %p158 = por %p156, %p157
      %s160 = sadd.s32 %s159, 1
      %p163 = scmp.eq.s32.totalorder %s20, 1
      %p164 = scmp.ne.s32.totalorder %s159, %s161
      %p165 = scmp.eq.s32.totalorder %s20, 0
      %p166 = por %p164, %p165
      %p167 = scmp.ne.s32.totalorder %s159, %s161
      %p168 = scmp.eq.s32.totalorder %s25, 1
      %p169 = por %p167, %p168
      %p170 = scmp.ne.s32.totalorder %s161, %s162
      %p171 = scmp.eq.s32.totalorder %s25, 0
      %p172 = por %p170, %p171
      %p173 = scmp.ne.s32.totalorder %s161, %s162
      %p174 = scmp.eq.s32.totalorder %s26, 1
      %p175 = por %p173, %p174
      %p177 = scmp.ne.s32.totalorder %s162, %s176
      %p178 = scmp.eq.s32.totalorder %s26, 0
      %p179 = por %p177, %p178
      %s181 = sadd.s32 %s180, 1
      %p184 = scmp.eq.s32.totalorder %s20, 1
      %p185 = scmp.ne.s32.totalorder %s180, %s182
      %p186 = scmp.eq.s32.totalorder %s20, 0
      %p187 = por %p185, %p186
      %p188 = scmp.ne.s32.totalorder %s180, %s182
      %p189 = scmp.eq.s32.totalorder %s25, 1
      %p190 = por %p188, %p189
      %p191 = scmp.ne.s32.totalorder %s182, %s183
      %p192 = scmp.eq.s32.totalorder %s25, 0
      %p193 = por %p191, %p192
      %p194 = scmp.ne.s32.totalorder %s182, %s183
      %p195 = scmp.eq.s32.totalorder %s26, 1
      %p196 = por %p194, %p195
      %p198 = scmp.ne.s32.totalorder %s183, %s197
      %p199 = scmp.eq.s32.totalorder %s26, 0
      %p200 = por %p198, %p199
      %s202 = sadd.s32 %s201, 1
      %p205 = scmp.eq.s32.totalorder %s20, 1
      %p206 = scmp.ne.s32.totalorder %s201, %s203
      %p207 = scmp.eq.s32.totalorder %s20, 0
      %p208 = por %p206, %p207
      %p209 = scmp.ne.s32.totalorder %s201, %s203
      %p210 = scmp.eq.s32.totalorder %s25, 1
      %p211 = por %p209, %p210
      %p212 = scmp.ne.s32.totalorder %s203, %s204
      %p213 = scmp.eq.s32.totalorder %s25, 0
      %p214 = por %p212, %p213
      %p215 = scmp.ne.s32.totalorder %s203, %s204
      %p216 = scmp.eq.s32.totalorder %s26, 1
      %p217 = por %p215, %p216
      %p219 = scmp.ne.s32.totalorder %s204, %s218
      %p220 = scmp.eq.s32.totalorder %s26, 0
      %p221 = por %p219, %p220
      %s223 = sadd.s32 %s222, 1
      %p226 = scmp.eq.s32.totalorder %s20, 1
      %p227 = scmp.ne.s32.totalorder %s222, %s224
      %p228 = scmp.eq.s32.totalorder %s20, 0
      %p229 = por %p227, %p228
      %p230 = scmp.ne.s32.totalorder %s222, %s224
      %p231 = scmp.eq.s32.totalorder %s25, 1
      %p232 = por %p230, %p231
      %p233 = scmp.ne.s32.totalorder %s224, %s225
      %p234 = scmp.eq.s32.totalorder %s25, 0
      %p235 = por %p233, %p234
      %p236 = scmp.ne.s32.totalorder %s224, %s225
      %p237 = scmp.eq.s32.totalorder %s26, 1
      %p238 = por %p236, %p237
      %p240 = scmp.ne.s32.totalorder %s225, %s239
      %p241 = scmp.eq.s32.totalorder %s26, 0
      %p242 = por %p240, %p241
      %s244 = sadd.s32 %s243, 1
      %p247 = scmp.eq.s32.totalorder %s20, 1
      %p248 = scmp.ne.s32.totalorder %s243, %s245
      %p249 = scmp.eq.s32.totalorder %s20, 0
      %p250 = por %p248, %p249
      %p251 = scmp.ne.s32.totalorder %s243, %s245
      %p252 = scmp.eq.s32.totalorder %s25, 1
      %p253 = por %p251, %p252
      %p254 = scmp.ne.s32.totalorder %s245, %s246
      %p255 = scmp.eq.s32.totalorder %s25, 0
      %p256 = por %p254, %p255
      %p257 = scmp.ne.s32.totalorder %s245, %s246
      %p258 = scmp.eq.s32.totalorder %s26, 1
      %p259 = por %p257, %p258
      %p261 = scmp.ne.s32.totalorder %s246, %s260
      %p262 = scmp.eq.s32.totalorder %s26, 0
      %p263 = por %p261, %p262
      %s264 = ssub.s32 %s20, %s27
      %p265 = scmp.eq.s32.totalorder %s264, 0
      %s267 = sadd.s32 %s266, 1
      %s268 = scalar_select %p265, %s266, %s267
      %p271 = pneg %p265
      %p272 = scmp.eq.s32.totalorder %s20, 1
      %p273 = por %p271, %p272
      %p274 = scmp.ne.s32.totalorder %s266, %s269
      %p275 = scmp.eq.s32.totalorder %s20, 0
      %p276 = por %p274, %p275
      %p277 = scmp.ne.s32.totalorder %s266, %s269
      %p278 = scmp.eq.s32.totalorder %s25, 1
      %p279 = por %p277, %p278
      %p280 = scmp.ne.s32.totalorder %s269, %s270
      %p281 = scmp.eq.s32.totalorder %s25, 0
      %p282 = por %p280, %p281
      %p283 = scmp.ne.s32.totalorder %s269, %s270
      %p284 = scmp.eq.s32.totalorder %s26, 1
      %p285 = por %p283, %p284
      %p287 = scmp.ne.s32.totalorder %s270, %s286
      %p288 = scmp.eq.s32.totalorder %s26, 0
      %p289 = por %p287, %p288
      %p290 = scmp.le.s32.totalorder 1, %s20
      %p291 = scmp.lt.s32.totalorder %s20, 3
      %p292 = pnand %p290, %p291
      %p293 = pneg %p292
      // Predicated region
      $region9: #{ttm_block_forward.2} parent=5 // pred_check
        _
      $region10: #{ttm_block_forward.2} parent=5 // pred_check_branch
        %295 = sbr.rel (%p292) target = $region12
      $region11: #{ttm_block_forward.2} parent=5 // pred_region
        %s296 = ssub.s32 %s20, 1
        // Predicated region
        $region13: #{ttm_block_forward.2} parent=11 // pred_check
          %p297 = pneg %p67
        $region14: #{ttm_block_forward.2} parent=11 // pred_check_branch
          %299 = sbr.rel (%p297) target = $region16
        $region15: #{ttm_block_forward.2} parent=11 // pred_region
          _
        $region16: #{ttm_block_forward.2} parent=11 // pred_fallthru
          _
        // Predicated region
        $region17: #{ttm_block_forward.2} parent=11 // pred_check
          %p300 = pneg %p88
        $region18: #{ttm_block_forward.2} parent=11 // pred_check_branch
          %302 = sbr.rel (%p300) target = $region20
        $region19: #{ttm_block_forward.2} parent=11 // pred_region
          _
        $region20: #{ttm_block_forward.2} parent=11 // pred_fallthru
          _
        // Predicated region
        $region21: #{ttm_block_forward.2} parent=11 // pred_check
          %p303 = pneg %p109
        $region22: #{ttm_block_forward.2} parent=11 // pred_check_branch
          %305 = sbr.rel (%p303) target = $region24
        $region23: #{ttm_block_forward.2} parent=11 // pred_region
          _
        $region24: #{ttm_block_forward.2} parent=11 // pred_fallthru
          _
        // Predicated region
        $region25: #{ttm_block_forward.2} parent=11 // pred_check
          %p306 = pneg %p130
        $region26: #{ttm_block_forward.2} parent=11 // pred_check_branch
          %308 = sbr.rel (%p306) target = $region28
        $region27: #{ttm_block_forward.2} parent=11 // pred_region
          _
        $region28: #{ttm_block_forward.2} parent=11 // pred_fallthru
          _
        // Predicated region
        $region29: #{ttm_block_forward.2} parent=11 // pred_check
          %p309 = pneg %p151
        $region30: #{ttm_block_forward.2} parent=11 // pred_check_branch
          %311 = sbr.rel (%p309) target = $region32
        $region31: #{ttm_block_forward.2} parent=11 // pred_region
          _
        $region32: #{ttm_block_forward.2} parent=11 // pred_fallthru
          _
        // Predicated region
        $region33: #{ttm_block_forward.2} parent=11 // pred_check
          %p312 = pneg %p172
        $region34: #{ttm_block_forward.2} parent=11 // pred_check_branch
          %314 = sbr.rel (%p312) target = $region36
        $region35: #{ttm_block_forward.2} parent=11 // pred_region
          _
        $region36: #{ttm_block_forward.2} parent=11 // pred_fallthru
          _
        // Predicated region
        $region37: #{ttm_block_forward.2} parent=11 // pred_check
          %p315 = pneg %p193
        $region38: #{ttm_block_forward.2} parent=11 // pred_check_branch
          %317 = sbr.rel (%p315) target = $region40
        $region39: #{ttm_block_forward.2} parent=11 // pred_region
          _
        $region40: #{ttm_block_forward.2} parent=11 // pred_fallthru
          _
        // Predicated region
        $region41: #{ttm_block_forward.2} parent=11 // pred_check
          %p318 = pneg %p214
        $region42: #{ttm_block_forward.2} parent=11 // pred_check_branch
          %320 = sbr.rel (%p318) target = $region44
        $region43: #{ttm_block_forward.2} parent=11 // pred_region
          _
        $region44: #{ttm_block_forward.2} parent=11 // pred_fallthru
          _
        // Predicated region
        $region45: #{ttm_block_forward.2} parent=11 // pred_check
          %p321 = pneg %p235
        $region46: #{ttm_block_forward.2} parent=11 // pred_check_branch
          %323 = sbr.rel (%p321) target = $region48
        $region47: #{ttm_block_forward.2} parent=11 // pred_region
          _
        $region48: #{ttm_block_forward.2} parent=11 // pred_fallthru
          _
        // Predicated region
        $region49: #{ttm_block_forward.2} parent=11 // pred_check
          %p324 = pneg %p256
        $region50: #{ttm_block_forward.2} parent=11 // pred_check_branch
          %326 = sbr.rel (%p324) target = $region52
        $region51: #{ttm_block_forward.2} parent=11 // pred_region
          _
        $region52: #{ttm_block_forward.2} parent=11 // pred_fallthru
          _
      $region12: #{ttm_block_forward.2} parent=5 // pred_fallthru
        _
      %p327 = scmp.lt.s32.totalorder %s20, 2
      // Predicated region
      $region53: #{ttm_block_forward.2} parent=5 // pred_check
        %p328 = pneg %p327
      $region54: #{ttm_block_forward.2} parent=5 // pred_check_branch
        %330 = sbr.rel (%p328) target = $region56
      $region55: #{ttm_block_forward.2} parent=5 // pred_region
        // Predicated region
        $region57: #{ttm_block_forward.2} parent=55 // pred_check
          %p331 = pneg %p40
        $region58: #{ttm_block_forward.2} parent=55 // pred_check_branch
          %333 = sbr.rel (%p331) target = $region60
        $region59: #{ttm_block_forward.2} parent=55 // pred_region
          %s334 = sand.u32 %s30, 1
          %s335 = scalar_lea.sflag [#allocation3], %s334
          %s336 = sand.u32 %s30, 1
          %s337 = smul.addr %s336, 256
          %s338 = scalar_lea.vmem [#allocation2], %s337
          %s339 = smul.u32 32, %s20
          %341 = vsyncadd %s335, 0
          %s342 = smul.addr %s339, 8
          %s343 = scalar_lea.hbm %s0, %s342
          %s344 = sshll.u32 %s343, 4
          %s345 = int_to_ptr.hbm [resolvable:$true] %s344
          %s346 = sshll.u32 %s338, 4
          %s347 = int_to_ptr.vmem [resolvable:$true] %s346
          %352 = dma.hbm_to_vmem [thread:$0]  %s345, 4096, %s347, %s335, 128, 128, 8
        $region60: #{ttm_block_forward.2} parent=55 // pred_fallthru
          _
      $region56: #{ttm_block_forward.2} parent=5 // pred_fallthru
        _
      %p353 = scmp.le.s32.totalorder 1, %s20
      %p354 = scmp.lt.s32.totalorder %s20, 3
      %p355 = pnand %p353, %p354
      %p356 = pneg %p355
      // Predicated region
      $region61: #{ttm_block_forward.2} parent=5 // pred_check
        _
      $region62: #{ttm_block_forward.2} parent=5 // pred_check_branch
        %358 = sbr.rel (%p355) target = $region64
      $region63: #{ttm_block_forward.2} parent=5 // pred_region
        %s359 = ssub.s32 %s20, 1
        %s360 = sand.u32 %s33, 1
        %s361 = scalar_lea.sflag [#allocation3], %s360
        %s362 = sand.u32 %s33, 1
        %s363 = smul.addr %s362, 256
        %s364 = scalar_lea.vmem [#allocation2], %s363
        // Predicated region
        $region65: #{ttm_block_forward.2} parent=63 // pred_check
          %p365 = pneg %p46
        $region66: #{ttm_block_forward.2} parent=63 // pred_check_branch
          %367 = sbr.rel (%p365) target = $region68
        $region67: #{ttm_block_forward.2} parent=63 // pred_region
          %369 = dma.done %s361, 4096
        $region68: #{ttm_block_forward.2} parent=63 // pred_fallthru
          _
        %s370 = sand.u32 %s33, 1
        %s371 = scalar_lea.sflag [#allocation3], %s370
        %s372 = sand.u32 %s33, 1
        %s373 = smul.addr %s372, 256
        %s374 = scalar_lea.vmem [#allocation2], %s373
        %p375 = pneg %p46
        %p376 = pneg %p43
        %p377 = pneg %p67
        %p378 = pneg %p64
        %p379 = pneg %p88
        %p380 = pneg %p85
        %p381 = pneg %p109
        %p382 = pneg %p106
        %p383 = pneg %p130
        %p384 = pneg %p127
        %p385 = pneg %p151
        %p386 = pneg %p148
        %p387 = pneg %p172
        %p388 = pneg %p169
        %p389 = pneg %p193
        %p390 = pneg %p190
        %p391 = pneg %p214
        %p392 = pneg %p211
        %p393 = pneg %p235
        %p394 = pneg %p232
        %p395 = pneg %p256
        %p396 = pneg %p253
        %p397 = pneg %p282
        %p398 = pneg %p279
        %s399 = smul.u32 32, %s25
        %p400 = scmp.lt.s32.totalorder %s399, 63
        %s401 = scalar_select %p400, %s399, 63
        %s402 = smul.addr %s401, 8
        %s403 = scalar_lea.vmem %s11, %s402
        %s404 = smul.u32 32, %s25
        %s405 = smul.u32 32, %s25
        %p406 = scmp.lt.s32.totalorder %s405, 63
        %s407 = scalar_select %p406, %s405, 63
        %s408 = smul.addr %s407, 8
        %s409 = scalar_lea.vmem %s11, %s408
        %s410 = smul.u32 32, %s25
        %v412 = vld [vmem:[%s364] sm:$0xff]
        %v413 = vld [vmem:[%s364 + $0x8] sm:$0xff]
        %v414 = vld [vmem:[%s364 + $0x10] sm:$0xff]
        %v415 = vld [vmem:[%s364 + $0x18] sm:$0xff]
        %v416 = vld [vmem:[%s364 + $0x20] sm:$0xff]
        %v417 = vld [vmem:[%s364 + $0x28] sm:$0xff]
        %v418 = vld [vmem:[%s364 + $0x30] sm:$0xff]
        %v419 = vld [vmem:[%s364 + $0x38] sm:$0xff]
        %v420 = vld [vmem:[%s364 + $0x40] sm:$0xff]
        %v421 = vld [vmem:[%s364 + $0x48] sm:$0xff]
        %v422 = vld [vmem:[%s364 + $0x50] sm:$0xff]
        %v423 = vld [vmem:[%s364 + $0x58] sm:$0xff]
        %v424 = vld [vmem:[%s364 + $0x60] sm:$0xff]
        %v425 = vld [vmem:[%s364 + $0x68] sm:$0xff]
        %v426 = vld [vmem:[%s364 + $0x70] sm:$0xff]
        %v427 = vld [vmem:[%s364 + $0x78] sm:$0xff]
        %v428 = vld [vmem:[%s364 + $0x80] sm:$0xff]
        %v429 = vld [vmem:[%s364 + $0x88] sm:$0xff]
        %v430 = vld [vmem:[%s364 + $0x90] sm:$0xff]
        %v431 = vld [vmem:[%s364 + $0x98] sm:$0xff]
        %v432 = vld [vmem:[%s364 + $0xa0] sm:$0xff]
        %v433 = vld [vmem:[%s364 + $0xa8] sm:$0xff]
        %v434 = vld [vmem:[%s364 + $0xb0] sm:$0xff]
        %v435 = vld [vmem:[%s364 + $0xb8] sm:$0xff]
        %v436 = vld [vmem:[%s364 + $0xc0] sm:$0xff]
        %v437 = vld [vmem:[%s364 + $0xc8] sm:$0xff]
        %v438 = vld [vmem:[%s364 + $0xd0] sm:$0xff]
        %v439 = vld [vmem:[%s364 + $0xd8] sm:$0xff]
        %v440 = vld [vmem:[%s364 + $0xe0] sm:$0xff]
        %v441 = vld [vmem:[%s364 + $0xe8] sm:$0xff]
        %v442 = vld [vmem:[%s364 + $0xf0] sm:$0xff]
        %v443 = vld [vmem:[%s364 + $0xf8] sm:$0xff]
        %v444 = vld [vmem:[%s1] sm:$0x1]
        %v445 = vld [vmem:[%s1 + $0x1] sm:$0x1]
        %v446 = vld [vmem:[%s2] sm:$0x1]
        %v447 = vld [vmem:[%s2 + $0x1] sm:$0x1]
        %v448 = vld [vmem:[%s3] sm:$0x1]
        %v449 = vld [vmem:[%s3 + $0x1] sm:$0x1]
        %v450 = vld [vmem:[%s4] sm:$0x1]
        %v451 = vld [vmem:[%s4 + $0x1] sm:$0x1]
        %v452 = vld [vmem:[%s5] sm:$0xf]
        %v453 = vld [vmem:[%s5 + $0x4] sm:$0xf]
        %v454 = vld [vmem:[%s5 + $0x8] sm:$0xf]
        %v455 = vld [vmem:[%s5 + $0xc] sm:$0xf]
        %v456 = vld [vmem:[%s5 + $0x10] sm:$0xf]
        %v457 = vld [vmem:[%s5 + $0x14] sm:$0xf]
        %v458 = vld [vmem:[%s5 + $0x18] sm:$0xf]
        %v459 = vld [vmem:[%s5 + $0x1c] sm:$0xf]
        %v460 = vld [vmem:[%s6] sm:$0x1]
        %v461 = vld [vmem:[%s6 + $0x1] sm:$0x1]
        %v462 = vld [vmem:[%s7] sm:$0xf]
        %v463 = vld [vmem:[%s7 + $0x4] sm:$0xf]
        %v464 = vld [vmem:[%s7 + $0x8] sm:$0xf]
        %v465 = vld [vmem:[%s7 + $0xc] sm:$0xf]
        %v466 = vld [vmem:[%s7 + $0x10] sm:$0xf]
        %v467 = vld [vmem:[%s7 + $0x14] sm:$0xf]
        %v468 = vld [vmem:[%s7 + $0x18] sm:$0xf]
        %v469 = vld [vmem:[%s7 + $0x1c] sm:$0xf]
        %v470 = vld [vmem:[%s7 + $0x20] sm:$0xf]
        %v471 = vld [vmem:[%s7 + $0x24] sm:$0xf]
        %v472 = vld [vmem:[%s7 + $0x28] sm:$0xf]
        %v473 = vld [vmem:[%s7 + $0x2c] sm:$0xf]
        %v474 = vld [vmem:[%s7 + $0x30] sm:$0xf]
        %v475 = vld [vmem:[%s7 + $0x34] sm:$0xf]
        %v476 = vld [vmem:[%s7 + $0x38] sm:$0xf]
        %v477 = vld [vmem:[%s7 + $0x3c] sm:$0xf]
        %v478 = vld [vmem:[%s7 + $0x40] sm:$0xf]
        %v479 = vld [vmem:[%s7 + $0x44] sm:$0xf]
        %v480 = vld [vmem:[%s7 + $0x48] sm:$0xf]
        %v481 = vld [vmem:[%s7 + $0x4c] sm:$0xf]
        %v482 = vld [vmem:[%s7 + $0x50] sm:$0xf]
        %v483 = vld [vmem:[%s7 + $0x54] sm:$0xf]
        %v484 = vld [vmem:[%s7 + $0x58] sm:$0xf]
        %v485 = vld [vmem:[%s7 + $0x5c] sm:$0xf]
        %v486 = vld [vmem:[%s7 + $0x60] sm:$0xf]
        %v487 = vld [vmem:[%s7 + $0x64] sm:$0xf]
        %v488 = vld [vmem:[%s7 + $0x68] sm:$0xf]
        %v489 = vld [vmem:[%s7 + $0x6c] sm:$0xf]
        %v490 = vld [vmem:[%s7 + $0x70] sm:$0xf]
        %v491 = vld [vmem:[%s7 + $0x74] sm:$0xf]
        %v492 = vld [vmem:[%s7 + $0x78] sm:$0xf]
        %v493 = vld [vmem:[%s7 + $0x7c] sm:$0xf]
        %v494 = vld [vmem:[%s8] sm:$0x1]
        %v495 = vld [vmem:[%s8 + $0x1] sm:$0x1]
        %vm496 = vcmask 261120
        %v497 = vsel %vm496, %v412, 0.0
        %498 = vadd.xlane.f32.xlu0 %v497
        %v499 = vpop.xlane.xlu0 %498
        %v500 = vsel %vm496, %v413, 0.0
        %501 = vadd.xlane.f32.xlu0 %v500
        %v502 = vpop.xlane.xlu0 %501
        %v503 = vsel %vm496, %v414, 0.0
        %504 = vadd.xlane.f32.xlu0 %v503
        %v505 = vpop.xlane.xlu0 %504
        %v506 = vsel %vm496, %v415, 0.0
        %507 = vadd.xlane.f32.xlu0 %v506
        %v508 = vpop.xlane.xlu0 %507
        %v509 = vsel %vm496, %v416, 0.0
        %510 = vadd.xlane.f32.xlu0 %v509
        %v511 = vpop.xlane.xlu0 %510
        %v512 = vsel %vm496, %v417, 0.0
        %513 = vadd.xlane.f32.xlu0 %v512
        %v514 = vpop.xlane.xlu0 %513
        %v515 = vsel %vm496, %v418, 0.0
        %516 = vadd.xlane.f32.xlu0 %v515
        %v517 = vpop.xlane.xlu0 %516
        %v518 = vsel %vm496, %v419, 0.0
        %519 = vadd.xlane.f32.xlu0 %v518
        %v520 = vpop.xlane.xlu0 %519
        %v521 = vsel %vm496, %v420, 0.0
        %522 = vadd.xlane.f32.xlu0 %v521
        %v523 = vpop.xlane.xlu0 %522
        %v524 = vsel %vm496, %v421, 0.0
        %525 = vadd.xlane.f32.xlu0 %v524
        %v526 = vpop.xlane.xlu0 %525
        %v527 = vsel %vm496, %v422, 0.0
        %528 = vadd.xlane.f32.xlu0 %v527
        %v529 = vpop.xlane.xlu0 %528
        %v530 = vsel %vm496, %v423, 0.0
        %531 = vadd.xlane.f32.xlu0 %v530
        %v532 = vpop.xlane.xlu0 %531
        %v533 = vsel %vm496, %v424, 0.0
        %534 = vadd.xlane.f32.xlu0 %v533
        %v535 = vpop.xlane.xlu0 %534
        %v536 = vsel %vm496, %v425, 0.0
        %537 = vadd.xlane.f32.xlu0 %v536
        %v538 = vpop.xlane.xlu0 %537
        %v539 = vsel %vm496, %v426, 0.0
        %540 = vadd.xlane.f32.xlu0 %v539
        %v541 = vpop.xlane.xlu0 %540
        %v542 = vsel %vm496, %v427, 0.0
        %543 = vadd.xlane.f32.xlu0 %v542
        %v544 = vpop.xlane.xlu0 %543
        %v545 = vsel %vm496, %v428, 0.0
        %546 = vadd.xlane.f32.xlu0 %v545
        %v547 = vpop.xlane.xlu0 %546
        %v548 = vsel %vm496, %v429, 0.0
        %549 = vadd.xlane.f32.xlu0 %v548
        %v550 = vpop.xlane.xlu0 %549
        %v551 = vsel %vm496, %v430, 0.0
        %552 = vadd.xlane.f32.xlu0 %v551
        %v553 = vpop.xlane.xlu0 %552
        %v554 = vsel %vm496, %v431, 0.0
        %555 = vadd.xlane.f32.xlu0 %v554
        %v556 = vpop.xlane.xlu0 %555
        %v557 = vsel %vm496, %v432, 0.0
        %558 = vadd.xlane.f32.xlu0 %v557
        %v559 = vpop.xlane.xlu0 %558
        %v560 = vsel %vm496, %v433, 0.0
        %561 = vadd.xlane.f32.xlu0 %v560
        %v562 = vpop.xlane.xlu0 %561
        %v563 = vsel %vm496, %v434, 0.0
        %564 = vadd.xlane.f32.xlu0 %v563
        %v565 = vpop.xlane.xlu0 %564
        %v566 = vsel %vm496, %v435, 0.0
        %567 = vadd.xlane.f32.xlu0 %v566
        %v568 = vpop.xlane.xlu0 %567
        %v569 = vsel %vm496, %v436, 0.0
        %570 = vadd.xlane.f32.xlu0 %v569
        %v571 = vpop.xlane.xlu0 %570
        %v572 = vsel %vm496, %v437, 0.0
        %573 = vadd.xlane.f32.xlu0 %v572
        %v574 = vpop.xlane.xlu0 %573
        %v575 = vsel %vm496, %v438, 0.0
        %576 = vadd.xlane.f32.xlu0 %v575
        %v577 = vpop.xlane.xlu0 %576
        %v578 = vsel %vm496, %v439, 0.0
        %579 = vadd.xlane.f32.xlu0 %v578
        %v580 = vpop.xlane.xlu0 %579
        %v581 = vsel %vm496, %v440, 0.0
        %582 = vadd.xlane.f32.xlu0 %v581
        %v583 = vpop.xlane.xlu0 %582
        %v584 = vsel %vm496, %v441, 0.0
        %585 = vadd.xlane.f32.xlu0 %v584
        %v586 = vpop.xlane.xlu0 %585
        %v587 = vsel %vm496, %v442, 0.0
        %588 = vadd.xlane.f32.xlu0 %v587
        %v589 = vpop.xlane.xlu0 %588
        %v590 = vsel %vm496, %v443, 0.0
        %591 = vadd.xlane.f32.xlu0 %v590
        %v592 = vpop.xlane.xlu0 %591
        %v593 = vrcp.pop 32.0
        %v594 = vmul.f32 32.0, %v593
        %v595 = vsub.f32 1.0, %v594
        %v596 = vmul.f32 %v593, %v595
        %v597 = vadd.f32 %v593, %v596
        %vm598 = vweird.f32 %v593
        %v599 = vsel %vm598, %v593, %v597
        %v600 = vmul.f32 %v499, %v599
        %v601 = vmul.f32 %v502, %v599
        %v602 = vmul.f32 %v505, %v599
        %v603 = vmul.f32 %v508, %v599
        %v604 = vmul.f32 %v511, %v599
        %v605 = vmul.f32 %v514, %v599
        %v606 = vmul.f32 %v517, %v599
        %v607 = vmul.f32 %v520, %v599
        %v608 = vmul.f32 %v523, %v599
        %v609 = vmul.f32 %v526, %v599
        %v610 = vmul.f32 %v529, %v599
        %v611 = vmul.f32 %v532, %v599
        %v612 = vmul.f32 %v535, %v599
        %v613 = vmul.f32 %v538, %v599
        %v614 = vmul.f32 %v541, %v599
        %v615 = vmul.f32 %v544, %v599
        %v616 = vmul.f32 %v547, %v599
        %v617 = vmul.f32 %v550, %v599
        %v618 = vmul.f32 %v553, %v599
        %v619 = vmul.f32 %v556, %v599
        %v620 = vmul.f32 %v559, %v599
        %v621 = vmul.f32 %v562, %v599
        %v622 = vmul.f32 %v565, %v599
        %v623 = vmul.f32 %v568, %v599
        %v624 = vmul.f32 %v571, %v599
        %v625 = vmul.f32 %v574, %v599
        %v626 = vmul.f32 %v577, %v599
        %v627 = vmul.f32 %v580, %v599
        %v628 = vmul.f32 %v583, %v599
        %v629 = vmul.f32 %v586, %v599
        %v630 = vmul.f32 %v589, %v599
        %v631 = vmul.f32 %v592, %v599
        %v632 = vsub.f32 %v412, %v600
        %v633 = vsub.f32 %v413, %v601
        %v634 = vsub.f32 %v414, %v602
        %v635 = vsub.f32 %v415, %v603
        %v636 = vsub.f32 %v416, %v604
        %v637 = vsub.f32 %v417, %v605
        %v638 = vsub.f32 %v418, %v606
        %v639 = vsub.f32 %v419, %v607
        %v640 = vsub.f32 %v420, %v608
        %v641 = vsub.f32 %v421, %v609
        %v642 = vsub.f32 %v422, %v610
        %v643 = vsub.f32 %v423, %v611
        %v644 = vsub.f32 %v424, %v612
        %v645 = vsub.f32 %v425, %v613
        %v646 = vsub.f32 %v426, %v614
        %v647 = vsub.f32 %v427, %v615
        %v648 = vsub.f32 %v428, %v616
        %v649 = vsub.f32 %v429, %v617
        %v650 = vsub.f32 %v430, %v618
        %v651 = vsub.f32 %v431, %v619
        %v652 = vsub.f32 %v432, %v620
        %v653 = vsub.f32 %v433, %v621
        %v654 = vsub.f32 %v434, %v622
        %v655 = vsub.f32 %v435, %v623
        %v656 = vsub.f32 %v436, %v624
        %v657 = vsub.f32 %v437, %v625
        %v658 = vsub.f32 %v438, %v626
        %v659 = vsub.f32 %v439, %v627
        %v660 = vsub.f32 %v440, %v628
        %v661 = vsub.f32 %v441, %v629
        %v662 = vsub.f32 %v442, %v630
        %v663 = vsub.f32 %v443, %v631
        %v664 = vmul.f32 %v632, %v632
        %v665 = vmul.f32 %v633, %v633
        %v666 = vmul.f32 %v634, %v634
        %v667 = vmul.f32 %v635, %v635
        %v668 = vmul.f32 %v636, %v636
        %v669 = vmul.f32 %v637, %v637
        %v670 = vmul.f32 %v638, %v638
        %v671 = vmul.f32 %v639, %v639
        %v672 = vmul.f32 %v640, %v640
        %v673 = vmul.f32 %v641, %v641
        %v674 = vmul.f32 %v642, %v642
        %v675 = vmul.f32 %v643, %v643
        %v676 = vmul.f32 %v644, %v644
        %v677 = vmul.f32 %v645, %v645
        %v678 = vmul.f32 %v646, %v646
        %v679 = vmul.f32 %v647, %v647
        %v680 = vmul.f32 %v648, %v648
        %v681 = vmul.f32 %v649, %v649
        %v682 = vmul.f32 %v650, %v650
        %v683 = vmul.f32 %v651, %v651
        %v684 = vmul.f32 %v652, %v652
        %v685 = vmul.f32 %v653, %v653
        %v686 = vmul.f32 %v654, %v654
        %v687 = vmul.f32 %v655, %v655
        %v688 = vmul.f32 %v656, %v656
        %v689 = vmul.f32 %v657, %v657
        %v690 = vmul.f32 %v658, %v658
        %v691 = vmul.f32 %v659, %v659
        %v692 = vmul.f32 %v660, %v660
        %v693 = vmul.f32 %v661, %v661
        %v694 = vmul.f32 %v662, %v662
        %v695 = vmul.f32 %v663, %v663
        %v696 = vsel %vm496, %v664, 0.0
        %697 = vadd.xlane.f32.xlu0 %v696
        %v698 = vpop.xlane.xlu0 %697
        %v699 = vsel %vm496, %v665, 0.0
        %700 = vadd.xlane.f32.xlu0 %v699
        %v701 = vpop.xlane.xlu0 %700
        %v702 = vsel %vm496, %v666, 0.0
        %703 = vadd.xlane.f32.xlu0 %v702
        %v704 = vpop.xlane.xlu0 %703
        %v705 = vsel %vm496, %v667, 0.0
        %706 = vadd.xlane.f32.xlu0 %v705
        %v707 = vpop.xlane.xlu0 %706
        %v708 = vsel %vm496, %v668, 0.0
        %709 = vadd.xlane.f32.xlu0 %v708
        %v710 = vpop.xlane.xlu0 %709
        %v711 = vsel %vm496, %v669, 0.0
        %712 = vadd.xlane.f32.xlu0 %v711
        %v713 = vpop.xlane.xlu0 %712
        %v714 = vsel %vm496, %v670, 0.0
        %715 = vadd.xlane.f32.xlu0 %v714
        %v716 = vpop.xlane.xlu0 %715
        %v717 = vsel %vm496, %v671, 0.0
        %718 = vadd.xlane.f32.xlu0 %v717
        %v719 = vpop.xlane.xlu0 %718
        %v720 = vsel %vm496, %v672, 0.0
        %721 = vadd.xlane.f32.xlu0 %v720
        %v722 = vpop.xlane.xlu0 %721
        %v723 = vsel %vm496, %v673, 0.0
        %724 = vadd.xlane.f32.xlu0 %v723
        %v725 = vpop.xlane.xlu0 %724
        %v726 = vsel %vm496, %v674, 0.0
        %727 = vadd.xlane.f32.xlu0 %v726
        %v728 = vpop.xlane.xlu0 %727
        %v729 = vsel %vm496, %v675, 0.0
        %730 = vadd.xlane.f32.xlu0 %v729
        %v731 = vpop.xlane.xlu0 %730
        %v732 = vsel %vm496, %v676, 0.0
        %733 = vadd.xlane.f32.xlu0 %v732
        %v734 = vpop.xlane.xlu0 %733
        %v735 = vsel %vm496, %v677, 0.0
        %736 = vadd.xlane.f32.xlu0 %v735
        %v737 = vpop.xlane.xlu0 %736
        %v738 = vsel %vm496, %v678, 0.0
        %739 = vadd.xlane.f32.xlu0 %v738
        %v740 = vpop.xlane.xlu0 %739
        %v741 = vsel %vm496, %v679, 0.0
        %742 = vadd.xlane.f32.xlu0 %v741
        %v743 = vpop.xlane.xlu0 %742
        %v744 = vsel %vm496, %v680, 0.0
        %745 = vadd.xlane.f32.xlu0 %v744
        %v746 = vpop.xlane.xlu0 %745
        %v747 = vsel %vm496, %v681, 0.0
        %748 = vadd.xlane.f32.xlu0 %v747
        %v749 = vpop.xlane.xlu0 %748
        %v750 = vsel %vm496, %v682, 0.0
        %751 = vadd.xlane.f32.xlu0 %v750
        %v752 = vpop.xlane.xlu0 %751
        %v753 = vsel %vm496, %v683, 0.0
        %754 = vadd.xlane.f32.xlu0 %v753
        %v755 = vpop.xlane.xlu0 %754
        %v756 = vsel %vm496, %v684, 0.0
        %757 = vadd.xlane.f32.xlu0 %v756
        %v758 = vpop.xlane.xlu0 %757
        %v759 = vsel %vm496, %v685, 0.0
        %760 = vadd.xlane.f32.xlu0 %v759
        %v761 = vpop.xlane.xlu0 %760
        %v762 = vsel %vm496, %v686, 0.0
        %763 = vadd.xlane.f32.xlu0 %v762
        %v764 = vpop.xlane.xlu0 %763
        %v765 = vsel %vm496, %v687, 0.0
        %766 = vadd.xlane.f32.xlu0 %v765
        %v767 = vpop.xlane.xlu0 %766
        %v768 = vsel %vm496, %v688, 0.0
        %769 = vadd.xlane.f32.xlu0 %v768
        %v770 = vpop.xlane.xlu0 %769
        %v771 = vsel %vm496, %v689, 0.0
        %772 = vadd.xlane.f32.xlu0 %v771
        %v773 = vpop.xlane.xlu0 %772
        %v774 = vsel %vm496, %v690, 0.0
        %775 = vadd.xlane.f32.xlu0 %v774
        %v776 = vpop.xlane.xlu0 %775
        %v777 = vsel %vm496, %v691, 0.0
        %778 = vadd.xlane.f32.xlu0 %v777
        %v779 = vpop.xlane.xlu0 %778
        %v780 = vsel %vm496, %v692, 0.0
        %781 = vadd.xlane.f32.xlu0 %v780
        %v782 = vpop.xlane.xlu0 %781
        %v783 = vsel %vm496, %v693, 0.0
        %784 = vadd.xlane.f32.xlu0 %v783
        %v785 = vpop.xlane.xlu0 %784
        %v786 = vsel %vm496, %v694, 0.0
        %787 = vadd.xlane.f32.xlu0 %v786
        %v788 = vpop.xlane.xlu0 %787
        %v789 = vsel %vm496, %v695, 0.0
        %790 = vadd.xlane.f32.xlu0 %v789
        %v791 = vpop.xlane.xlu0 %790
        %v792 = vmul.f32 %v698, %v599
        %v793 = vmul.f32 %v701, %v599
        %v794 = vmul.f32 %v704, %v599
        %v795 = vmul.f32 %v707, %v599
        %v796 = vmul.f32 %v710, %v599
        %v797 = vmul.f32 %v713, %v599
        %v798 = vmul.f32 %v716, %v599
        %v799 = vmul.f32 %v719, %v599
        %v800 = vmul.f32 %v722, %v599
        %v801 = vmul.f32 %v725, %v599
        %v802 = vmul.f32 %v728, %v599
        %v803 = vmul.f32 %v731, %v599
        %v804 = vmul.f32 %v734, %v599
        %v805 = vmul.f32 %v737, %v599
        %v806 = vmul.f32 %v740, %v599
        %v807 = vmul.f32 %v743, %v599
        %v808 = vmul.f32 %v746, %v599
        %v809 = vmul.f32 %v749, %v599
        %v810 = vmul.f32 %v752, %v599
        %v811 = vmul.f32 %v755, %v599
        %v812 = vmul.f32 %v758, %v599
        %v813 = vmul.f32 %v761, %v599
        %v814 = vmul.f32 %v764, %v599
        %v815 = vmul.f32 %v767, %v599
        %v816 = vmul.f32 %v770, %v599
        %v817 = vmul.f32 %v773, %v599
        %v818 = vmul.f32 %v776, %v599
        %v819 = vmul.f32 %v779, %v599
        %v820 = vmul.f32 %v782, %v599
        %v821 = vmul.f32 %v785, %v599
        %v822 = vmul.f32 %v788, %v599
        %v823 = vmul.f32 %v791, %v599
        %v824 = vadd.f32 %v792, 1e-06
        %v825 = vadd.f32 %v793, 1e-06
        %v826 = vadd.f32 %v794, 1e-06
        %v827 = vadd.f32 %v795, 1e-06
        %v828 = vadd.f32 %v796, 1e-06
        %v829 = vadd.f32 %v797, 1e-06
        %v830 = vadd.f32 %v798, 1e-06
        %v831 = vadd.f32 %v799, 1e-06
        %v832 = vadd.f32 %v800, 1e-06
        %v833 = vadd.f32 %v801, 1e-06
        %v834 = vadd.f32 %v802, 1e-06
        %v835 = vadd.f32 %v803, 1e-06
        %v836 = vadd.f32 %v804, 1e-06
        %v837 = vadd.f32 %v805, 1e-06
        %v838 = vadd.f32 %v806, 1e-06
        %v839 = vadd.f32 %v807, 1e-06
        %v840 = vadd.f32 %v808, 1e-06
        %v841 = vadd.f32 %v809, 1e-06
        %v842 = vadd.f32 %v810, 1e-06
        %v843 = vadd.f32 %v811, 1e-06
        %v844 = vadd.f32 %v812, 1e-06
        %v845 = vadd.f32 %v813, 1e-06
        %v846 = vadd.f32 %v814, 1e-06
        %v847 = vadd.f32 %v815, 1e-06
        %v848 = vadd.f32 %v816, 1e-06
        %v849 = vadd.f32 %v817, 1e-06
        %v850 = vadd.f32 %v818, 1e-06
        %v851 = vadd.f32 %v819, 1e-06
        %v852 = vadd.f32 %v820, 1e-06
        %v853 = vadd.f32 %v821, 1e-06
        %v854 = vadd.f32 %v822, 1e-06
        %v855 = vadd.f32 %v823, 1e-06
        %v856 = vrsqrt.pop %v824
        %v857 = vmul.f32 %v856, %v824
        %v858 = vmul.f32 %v857, %v856
        %v859 = vmul.f32 0.5, %v858
        %v860 = vsub.f32 1.5, %v859
        %v861 = vmul.f32 %v856, %v860
        %vm862 = vweird.f32 %v824
        %vm863 = vweird.f32 %v856
        %vm864 = vmor %vm862, %vm863
        %v865 = vsel %vm864, %v856, %v861
        %v866 = vrsqrt.pop %v825
        %v867 = vmul.f32 %v866, %v825
        %v868 = vmul.f32 %v867, %v866
        %v869 = vmul.f32 0.5, %v868
        %v870 = vsub.f32 1.5, %v869
        %v871 = vmul.f32 %v866, %v870
        %vm872 = vweird.f32 %v825
        %vm873 = vweird.f32 %v866
        %vm874 = vmor %vm872, %vm873
        %v875 = vsel %vm874, %v866, %v871
        %v876 = vrsqrt.pop %v826
        %v877 = vmul.f32 %v876, %v826
        %v878 = vmul.f32 %v877, %v876
        %v879 = vmul.f32 0.5, %v878
        %v880 = vsub.f32 1.5, %v879
        %v881 = vmul.f32 %v876, %v880
        %vm882 = vweird.f32 %v826
        %vm883 = vweird.f32 %v876
        %vm884 = vmor %vm882, %vm883
        %v885 = vsel %vm884, %v876, %v881
        %v886 = vrsqrt.pop %v827
        %v887 = vmul.f32 %v886, %v827
        %v888 = vmul.f32 %v887, %v886
        %v889 = vmul.f32 0.5, %v888
        %v890 = vsub.f32 1.5, %v889
        %v891 = vmul.f32 %v886, %v890
        %vm892 = vweird.f32 %v827
        %vm893 = vweird.f32 %v886
        %vm894 = vmor %vm892, %vm893
        %v895 = vsel %vm894, %v886, %v891
        %v896 = vrsqrt.pop %v828
        %v897 = vmul.f32 %v896, %v828
        %v898 = vmul.f32 %v897, %v896
        %v899 = vmul.f32 0.5, %v898
        %v900 = vsub.f32 1.5, %v899
        %v901 = vmul.f32 %v896, %v900
        %vm902 = vweird.f32 %v828
        %vm903 = vweird.f32 %v896
        %vm904 = vmor %vm902, %vm903
        %v905 = vsel %vm904, %v896, %v901
        %v906 = vrsqrt.pop %v829
        %v907 = vmul.f32 %v906, %v829
        %v908 = vmul.f32 %v907, %v906
        %v909 = vmul.f32 0.5, %v908
        %v910 = vsub.f32 1.5, %v909
        %v911 = vmul.f32 %v906, %v910
        %vm912 = vweird.f32 %v829
        %vm913 = vweird.f32 %v906
        %vm914 = vmor %vm912, %vm913
        %v915 = vsel %vm914, %v906, %v911
        %v916 = vrsqrt.pop %v830
        %v917 = vmul.f32 %v916, %v830
        %v918 = vmul.f32 %v917, %v916
        %v919 = vmul.f32 0.5, %v918
        %v920 = vsub.f32 1.5, %v919
        %v921 = vmul.f32 %v916, %v920
        %vm922 = vweird.f32 %v830
        %vm923 = vweird.f32 %v916
        %vm924 = vmor %vm922, %vm923
        %v925 = vsel %vm924, %v916, %v921
        %v926 = vrsqrt.pop %v831
        %v927 = vmul.f32 %v926, %v831
        %v928 = vmul.f32 %v927, %v926
        %v929 = vmul.f32 0.5, %v928
        %v930 = vsub.f32 1.5, %v929
        %v931 = vmul.f32 %v926, %v930
        %vm932 = vweird.f32 %v831
        %vm933 = vweird.f32 %v926
        %vm934 = vmor %vm932, %vm933
        %v935 = vsel %vm934, %v926, %v931
        %v936 = vrsqrt.pop %v832
        %v937 = vmul.f32 %v936, %v832
        %v938 = vmul.f32 %v937, %v936
        %v939 = vmul.f32 0.5, %v938
        %v940 = vsub.f32 1.5, %v939
        %v941 = vmul.f32 %v936, %v940
        %vm942 = vweird.f32 %v832
        %vm943 = vweird.f32 %v936
        %vm944 = vmor %vm942, %vm943
        %v945 = vsel %vm944, %v936, %v941
        %v946 = vrsqrt.pop %v833
        %v947 = vmul.f32 %v946, %v833
        %v948 = vmul.f32 %v947, %v946
        %v949 = vmul.f32 0.5, %v948
        %v950 = vsub.f32 1.5, %v949
        %v951 = vmul.f32 %v946, %v950
        %vm952 = vweird.f32 %v833
        %vm953 = vweird.f32 %v946
        %vm954 = vmor %vm952, %vm953
        %v955 = vsel %vm954, %v946, %v951
        %v956 = vrsqrt.pop %v834
        %v957 = vmul.f32 %v956, %v834
        %v958 = vmul.f32 %v957, %v956
        %v959 = vmul.f32 0.5, %v958
        %v960 = vsub.f32 1.5, %v959
        %v961 = vmul.f32 %v956, %v960
        %vm962 = vweird.f32 %v834
        %vm963 = vweird.f32 %v956
        %vm964 = vmor %vm962, %vm963
        %v965 = vsel %vm964, %v956, %v961
        %v966 = vrsqrt.pop %v835
        %v967 = vmul.f32 %v966, %v835
        %v968 = vmul.f32 %v967, %v966
        %v969 = vmul.f32 0.5, %v968
        %v970 = vsub.f32 1.5, %v969
        %v971 = vmul.f32 %v966, %v970
        %vm972 = vweird.f32 %v835
        %vm973 = vweird.f32 %v966
        %vm974 = vmor %vm972, %vm973
        %v975 = vsel %vm974, %v966, %v971
        %v976 = vrsqrt.pop %v836
        %v977 = vmul.f32 %v976, %v836
        %v978 = vmul.f32 %v977, %v976
        %v979 = vmul.f32 0.5, %v978
        %v980 = vsub.f32 1.5, %v979
        %v981 = vmul.f32 %v976, %v980
        %vm982 = vweird.f32 %v836
        %vm983 = vweird.f32 %v976
        %vm984 = vmor %vm982, %vm983
        %v985 = vsel %vm984, %v976, %v981
        %v986 = vrsqrt.pop %v837
        %v987 = vmul.f32 %v986, %v837
        %v988 = vmul.f32 %v987, %v986
        %v989 = vmul.f32 0.5, %v988
        %v990 = vsub.f32 1.5, %v989
        %v991 = vmul.f32 %v986, %v990
        %vm992 = vweird.f32 %v837
        %vm993 = vweird.f32 %v986
        %vm994 = vmor %vm992, %vm993
        %v995 = vsel %vm994, %v986, %v991
        %v996 = vrsqrt.pop %v838
        %v997 = vmul.f32 %v996, %v838
        %v998 = vmul.f32 %v997, %v996
        %v999 = vmul.f32 0.5, %v998
        %v1000 = vsub.f32 1.5, %v999
        %v1001 = vmul.f32 %v996, %v1000
        %vm1002 = vweird.f32 %v838
        %vm1003 = vweird.f32 %v996
        %vm1004 = vmor %vm1002, %vm1003
        %v1005 = vsel %vm1004, %v996, %v1001
        %v1006 = vrsqrt.pop %v839
        %v1007 = vmul.f32 %v1006, %v839
        %v1008 = vmul.f32 %v1007, %v1006
        %v1009 = vmul.f32 0.5, %v1008
        %v1010 = vsub.f32 1.5, %v1009
        %v1011 = vmul.f32 %v1006, %v1010
        %vm1012 = vweird.f32 %v839
        %vm1013 = vweird.f32 %v1006
        %vm1014 = vmor %vm1012, %vm1013
        %v1015 = vsel %vm1014, %v1006, %v1011
        %v1016 = vrsqrt.pop %v840
        %v1017 = vmul.f32 %v1016, %v840
        %v1018 = vmul.f32 %v1017, %v1016
        %v1019 = vmul.f32 0.5, %v1018
        %v1020 = vsub.f32 1.5, %v1019
        %v1021 = vmul.f32 %v1016, %v1020
        %vm1022 = vweird.f32 %v840
        %vm1023 = vweird.f32 %v1016
        %vm1024 = vmor %vm1022, %vm1023
        %v1025 = vsel %vm1024, %v1016, %v1021
        %v1026 = vrsqrt.pop %v841
        %v1027 = vmul.f32 %v1026, %v841
        %v1028 = vmul.f32 %v1027, %v1026
        %v1029 = vmul.f32 0.5, %v1028
        %v1030 = vsub.f32 1.5, %v1029
        %v1031 = vmul.f32 %v1026, %v1030
        %vm1032 = vweird.f32 %v841
        %vm1033 = vweird.f32 %v1026
        %vm1034 = vmor %vm1032, %vm1033
        %v1035 = vsel %vm1034, %v1026, %v1031
        %v1036 = vrsqrt.pop %v842
        %v1037 = vmul.f32 %v1036, %v842
        %v1038 = vmul.f32 %v1037, %v1036
        %v1039 = vmul.f32 0.5, %v1038
        %v1040 = vsub.f32 1.5, %v1039
        %v1041 = vmul.f32 %v1036, %v1040
        %vm1042 = vweird.f32 %v842
        %vm1043 = vweird.f32 %v1036
        %vm1044 = vmor %vm1042, %vm1043
        %v1045 = vsel %vm1044, %v1036, %v1041
        %v1046 = vrsqrt.pop %v843
        %v1047 = vmul.f32 %v1046, %v843
        %v1048 = vmul.f32 %v1047, %v1046
        %v1049 = vmul.f32 0.5, %v1048
        %v1050 = vsub.f32 1.5, %v1049
        %v1051 = vmul.f32 %v1046, %v1050
        %vm1052 = vweird.f32 %v843
        %vm1053 = vweird.f32 %v1046
        %vm1054 = vmor %vm1052, %vm1053
        %v1055 = vsel %vm1054, %v1046, %v1051
        %v1056 = vrsqrt.pop %v844
        %v1057 = vmul.f32 %v1056, %v844
        %v1058 = vmul.f32 %v1057, %v1056
        %v1059 = vmul.f32 0.5, %v1058
        %v1060 = vsub.f32 1.5, %v1059
        %v1061 = vmul.f32 %v1056, %v1060
        %vm1062 = vweird.f32 %v844
        %vm1063 = vweird.f32 %v1056
        %vm1064 = vmor %vm1062, %vm1063
        %v1065 = vsel %vm1064, %v1056, %v1061
        %v1066 = vrsqrt.pop %v845
        %v1067 = vmul.f32 %v1066, %v845
        %v1068 = vmul.f32 %v1067, %v1066
        %v1069 = vmul.f32 0.5, %v1068
        %v1070 = vsub.f32 1.5, %v1069
        %v1071 = vmul.f32 %v1066, %v1070
        %vm1072 = vweird.f32 %v845
        %vm1073 = vweird.f32 %v1066
        %vm1074 = vmor %vm1072, %vm1073
        %v1075 = vsel %vm1074, %v1066, %v1071
        %v1076 = vrsqrt.pop %v846
        %v1077 = vmul.f32 %v1076, %v846
        %v1078 = vmul.f32 %v1077, %v1076
        %v1079 = vmul.f32 0.5, %v1078
        %v1080 = vsub.f32 1.5, %v1079
        %v1081 = vmul.f32 %v1076, %v1080
        %vm1082 = vweird.f32 %v846
        %vm1083 = vweird.f32 %v1076
        %vm1084 = vmor %vm1082, %vm1083
        %v1085 = vsel %vm1084, %v1076, %v1081
        %v1086 = vrsqrt.pop %v847
        %v1087 = vmul.f32 %v1086, %v847
        %v1088 = vmul.f32 %v1087, %v1086
        %v1089 = vmul.f32 0.5, %v1088
        %v1090 = vsub.f32 1.5, %v1089
        %v1091 = vmul.f32 %v1086, %v1090
        %vm1092 = vweird.f32 %v847
        %vm1093 = vweird.f32 %v1086
        %vm1094 = vmor %vm1092, %vm1093
        %v1095 = vsel %vm1094, %v1086, %v1091
        %v1096 = vrsqrt.pop %v848
        %v1097 = vmul.f32 %v1096, %v848
        %v1098 = vmul.f32 %v1097, %v1096
        %v1099 = vmul.f32 0.5, %v1098
        %v1100 = vsub.f32 1.5, %v1099
        %v1101 = vmul.f32 %v1096, %v1100
        %vm1102 = vweird.f32 %v848
        %vm1103 = vweird.f32 %v1096
        %vm1104 = vmor %vm1102, %vm1103
        %v1105 = vsel %vm1104, %v1096, %v1101
        %v1106 = vrsqrt.pop %v849
        %v1107 = vmul.f32 %v1106, %v849
        %v1108 = vmul.f32 %v1107, %v1106
        %v1109 = vmul.f32 0.5, %v1108
        %v1110 = vsub.f32 1.5, %v1109
        %v1111 = vmul.f32 %v1106, %v1110
        %vm1112 = vweird.f32 %v849
        %vm1113 = vweird.f32 %v1106
        %vm1114 = vmor %vm1112, %vm1113
        %v1115 = vsel %vm1114, %v1106, %v1111
        %v1116 = vrsqrt.pop %v850
        %v1117 = vmul.f32 %v1116, %v850
        %v1118 = vmul.f32 %v1117, %v1116
        %v1119 = vmul.f32 0.5, %v1118
        %v1120 = vsub.f32 1.5, %v1119
        %v1121 = vmul.f32 %v1116, %v1120
        %vm1122 = vweird.f32 %v850
        %vm1123 = vweird.f32 %v1116
        %vm1124 = vmor %vm1122, %vm1123
        %v1125 = vsel %vm1124, %v1116, %v1121
        %v1126 = vrsqrt.pop %v851
        %v1127 = vmul.f32 %v1126, %v851
        %v1128 = vmul.f32 %v1127, %v1126
        %v1129 = vmul.f32 0.5, %v1128
        %v1130 = vsub.f32 1.5, %v1129
        %v1131 = vmul.f32 %v1126, %v1130
        %vm1132 = vweird.f32 %v851
        %vm1133 = vweird.f32 %v1126
        %vm1134 = vmor %vm1132, %vm1133
        %v1135 = vsel %vm1134, %v1126, %v1131
        %v1136 = vrsqrt.pop %v852
        %v1137 = vmul.f32 %v1136, %v852
        %v1138 = vmul.f32 %v1137, %v1136
        %v1139 = vmul.f32 0.5, %v1138
        %v1140 = vsub.f32 1.5, %v1139
        %v1141 = vmul.f32 %v1136, %v1140
        %vm1142 = vweird.f32 %v852
        %vm1143 = vweird.f32 %v1136
        %vm1144 = vmor %vm1142, %vm1143
        %v1145 = vsel %vm1144, %v1136, %v1141
        %v1146 = vrsqrt.pop %v853
        %v1147 = vmul.f32 %v1146, %v853
        %v1148 = vmul.f32 %v1147, %v1146
        %v1149 = vmul.f32 0.5, %v1148
        %v1150 = vsub.f32 1.5, %v1149
        %v1151 = vmul.f32 %v1146, %v1150
        %vm1152 = vweird.f32 %v853
        %vm1153 = vweird.f32 %v1146
        %vm1154 = vmor %vm1152, %vm1153
        %v1155 = vsel %vm1154, %v1146, %v1151
        %v1156 = vrsqrt.pop %v854
        %v1157 = vmul.f32 %v1156, %v854
        %v1158 = vmul.f32 %v1157, %v1156
        %v1159 = vmul.f32 0.5, %v1158
        %v1160 = vsub.f32 1.5, %v1159
        %v1161 = vmul.f32 %v1156, %v1160
        %vm1162 = vweird.f32 %v854
        %vm1163 = vweird.f32 %v1156
        %vm1164 = vmor %vm1162, %vm1163
        %v1165 = vsel %vm1164, %v1156, %v1161
        %v1166 = vrsqrt.pop %v855
        %v1167 = vmul.f32 %v1166, %v855
        %v1168 = vmul.f32 %v1167, %v1166
        %v1169 = vmul.f32 0.5, %v1168
        %v1170 = vsub.f32 1.5, %v1169
        %v1171 = vmul.f32 %v1166, %v1170
        %vm1172 = vweird.f32 %v855
        %vm1173 = vweird.f32 %v1166
        %vm1174 = vmor %vm1172, %vm1173
        %v1175 = vsel %vm1174, %v1166, %v1171
        %v1176 = vmul.f32 %v632, %v865
        %v1177 = vmul.f32 %v633, %v875
        %v1178 = vmul.f32 %v634, %v885
        %v1179 = vmul.f32 %v635, %v895
        %v1180 = vmul.f32 %v636, %v905
        %v1181 = vmul.f32 %v637, %v915
        %v1182 = vmul.f32 %v638, %v925
        %v1183 = vmul.f32 %v639, %v935
        %v1184 = vmul.f32 %v640, %v945
        %v1185 = vmul.f32 %v641, %v955
        %v1186 = vmul.f32 %v642, %v965
        %v1187 = vmul.f32 %v643, %v975
        %v1188 = vmul.f32 %v644, %v985
        %v1189 = vmul.f32 %v645, %v995
        %v1190 = vmul.f32 %v646, %v1005
        %v1191 = vmul.f32 %v647, %v1015
        %v1192 = vmul.f32 %v648, %v1025
        %v1193 = vmul.f32 %v649, %v1035
        %v1194 = vmul.f32 %v650, %v1045
        %v1195 = vmul.f32 %v651, %v1055
        %v1196 = vmul.f32 %v652, %v1065
        %v1197 = vmul.f32 %v653, %v1075
        %v1198 = vmul.f32 %v654, %v1085
        %v1199 = vmul.f32 %v655, %v1095
        %v1200 = vmul.f32 %v656, %v1105
        %v1201 = vmul.f32 %v657, %v1115
        %v1202 = vmul.f32 %v658, %v1125
        %v1203 = vmul.f32 %v659, %v1135
        %v1204 = vmul.f32 %v660, %v1145
        %v1205 = vmul.f32 %v661, %v1155
        %v1206 = vmul.f32 %v662, %v1165
        %v1207 = vmul.f32 %v663, %v1175
        %v1209 = vperm.slane %v444, 0
        %v1211 = vmul.f32 %v1176, %v1209
        %v1212 = vmul.f32 %v1177, %v1209
        %v1213 = vmul.f32 %v1178, %v1209
        %v1214 = vmul.f32 %v1179, %v1209
        %v1215 = vmul.f32 %v1180, %v1209
        %v1216 = vmul.f32 %v1181, %v1209
        %v1217 = vmul.f32 %v1182, %v1209
        %v1218 = vmul.f32 %v1183, %v1209
        %v1219 = vmul.f32 %v1184, %v1209
        %v1220 = vmul.f32 %v1185, %v1209
        %v1221 = vmul.f32 %v1186, %v1209
        %v1222 = vmul.f32 %v1187, %v1209
        %v1223 = vmul.f32 %v1188, %v1209
        %v1224 = vmul.f32 %v1189, %v1209
        %v1225 = vmul.f32 %v1190, %v1209
        %v1226 = vmul.f32 %v1191, %v1209
        %v1227 = vmul.f32 %v1192, %v1209
        %v1228 = vmul.f32 %v1193, %v1209
        %v1229 = vmul.f32 %v1194, %v1209
        %v1230 = vmul.f32 %v1195, %v1209
        %v1231 = vmul.f32 %v1196, %v1209
        %v1232 = vmul.f32 %v1197, %v1209
        %v1233 = vmul.f32 %v1198, %v1209
        %v1234 = vmul.f32 %v1199, %v1209
        %v1235 = vmul.f32 %v1200, %v1209
        %v1236 = vmul.f32 %v1201, %v1209
        %v1237 = vmul.f32 %v1202, %v1209
        %v1238 = vmul.f32 %v1203, %v1209
        %v1239 = vmul.f32 %v1204, %v1209
        %v1240 = vmul.f32 %v1205, %v1209
        %v1241 = vmul.f32 %v1206, %v1209
        %v1242 = vmul.f32 %v1207, %v1209
        %v1244 = vperm.slane %v446, 0
        %v1246 = vadd.f32 %v1211, %v1244
        %v1247 = vadd.f32 %v1212, %v1244
        %v1248 = vadd.f32 %v1213, %v1244
        %v1249 = vadd.f32 %v1214, %v1244
        %v1250 = vadd.f32 %v1215, %v1244
        %v1251 = vadd.f32 %v1216, %v1244
        %v1252 = vadd.f32 %v1217, %v1244
        %v1253 = vadd.f32 %v1218, %v1244
        %v1254 = vadd.f32 %v1219, %v1244
        %v1255 = vadd.f32 %v1220, %v1244
        %v1256 = vadd.f32 %v1221, %v1244
        %v1257 = vadd.f32 %v1222, %v1244
        %v1258 = vadd.f32 %v1223, %v1244
        %v1259 = vadd.f32 %v1224, %v1244
        %v1260 = vadd.f32 %v1225, %v1244
        %v1261 = vadd.f32 %v1226, %v1244
        %v1262 = vadd.f32 %v1227, %v1244
        %v1263 = vadd.f32 %v1228, %v1244
        %v1264 = vadd.f32 %v1229, %v1244
        %v1265 = vadd.f32 %v1230, %v1244
        %v1266 = vadd.f32 %v1231, %v1244
        %v1267 = vadd.f32 %v1232, %v1244
        %v1268 = vadd.f32 %v1233, %v1244
        %v1269 = vadd.f32 %v1234, %v1244
        %v1270 = vadd.f32 %v1235, %v1244
        %v1271 = vadd.f32 %v1236, %v1244
        %v1272 = vadd.f32 %v1237, %v1244
        %v1273 = vadd.f32 %v1238, %v1244
        %v1274 = vadd.f32 %v1239, %v1244
        %v1275 = vadd.f32 %v1240, %v1244
        %v1276 = vadd.f32 %v1241, %v1244
        %v1277 = vadd.f32 %v1242, %v1244
        %v1278 = vadd.f32 %v412, %v1246
        %v1279 = vadd.f32 %v413, %v1247
        %v1280 = vadd.f32 %v414, %v1248
        %v1281 = vadd.f32 %v415, %v1249
        %v1282 = vadd.f32 %v416, %v1250
        %v1283 = vadd.f32 %v417, %v1251
        %v1284 = vadd.f32 %v418, %v1252
        %v1285 = vadd.f32 %v419, %v1253
        %v1286 = vadd.f32 %v420, %v1254
        %v1287 = vadd.f32 %v421, %v1255
        %v1288 = vadd.f32 %v422, %v1256
        %v1289 = vadd.f32 %v423, %v1257
        %v1290 = vadd.f32 %v424, %v1258
        %v1291 = vadd.f32 %v425, %v1259
        %v1292 = vadd.f32 %v426, %v1260
        %v1293 = vadd.f32 %v427, %v1261
        %v1294 = vadd.f32 %v428, %v1262
        %v1295 = vadd.f32 %v429, %v1263
        %v1296 = vadd.f32 %v430, %v1264
        %v1297 = vadd.f32 %v431, %v1265
        %v1298 = vadd.f32 %v432, %v1266
        %v1299 = vadd.f32 %v433, %v1267
        %v1300 = vadd.f32 %v434, %v1268
        %v1301 = vadd.f32 %v435, %v1269
        %v1302 = vadd.f32 %v436, %v1270
        %v1303 = vadd.f32 %v437, %v1271
        %v1304 = vadd.f32 %v438, %v1272
        %v1305 = vadd.f32 %v439, %v1273
        %v1306 = vadd.f32 %v440, %v1274
        %v1307 = vadd.f32 %v441, %v1275
        %v1308 = vadd.f32 %v442, %v1276
        %v1309 = vadd.f32 %v443, %v1277
        %v1310 = vsel %vm496, %v1278, 0.0
        %1311 = vadd.xlane.f32.xlu0 %v1310
        %v1312 = vpop.xlane.xlu0 %1311
        %v1313 = vsel %vm496, %v1279, 0.0
        %1314 = vadd.xlane.f32.xlu0 %v1313
        %v1315 = vpop.xlane.xlu0 %1314
        %v1316 = vsel %vm496, %v1280, 0.0
        %1317 = vadd.xlane.f32.xlu0 %v1316
        %v1318 = vpop.xlane.xlu0 %1317
        %v1319 = vsel %vm496, %v1281, 0.0
        %1320 = vadd.xlane.f32.xlu0 %v1319
        %v1321 = vpop.xlane.xlu0 %1320
        %v1322 = vsel %vm496, %v1282, 0.0
        %1323 = vadd.xlane.f32.xlu0 %v1322
        %v1324 = vpop.xlane.xlu0 %1323
        %v1325 = vsel %vm496, %v1283, 0.0
        %1326 = vadd.xlane.f32.xlu0 %v1325
        %v1327 = vpop.xlane.xlu0 %1326
        %v1328 = vsel %vm496, %v1284, 0.0
        %1329 = vadd.xlane.f32.xlu0 %v1328
        %v1330 = vpop.xlane.xlu0 %1329
        %v1331 = vsel %vm496, %v1285, 0.0
        %1332 = vadd.xlane.f32.xlu0 %v1331
        %v1333 = vpop.xlane.xlu0 %1332
        %v1334 = vsel %vm496, %v1286, 0.0
        %1335 = vadd.xlane.f32.xlu0 %v1334
        %v1336 = vpop.xlane.xlu0 %1335
        %v1337 = vsel %vm496, %v1287, 0.0
        %1338 = vadd.xlane.f32.xlu0 %v1337
        %v1339 = vpop.xlane.xlu0 %1338
        %v1340 = vsel %vm496, %v1288, 0.0
        %1341 = vadd.xlane.f32.xlu0 %v1340
        %v1342 = vpop.xlane.xlu0 %1341
        %v1343 = vsel %vm496, %v1289, 0.0
        %1344 = vadd.xlane.f32.xlu0 %v1343
        %v1345 = vpop.xlane.xlu0 %1344
        %v1346 = vsel %vm496, %v1290, 0.0
        %1347 = vadd.xlane.f32.xlu0 %v1346
        %v1348 = vpop.xlane.xlu0 %1347
        %v1349 = vsel %vm496, %v1291, 0.0
        %1350 = vadd.xlane.f32.xlu0 %v1349
        %v1351 = vpop.xlane.xlu0 %1350
        %v1352 = vsel %vm496, %v1292, 0.0
        %1353 = vadd.xlane.f32.xlu0 %v1352
        %v1354 = vpop.xlane.xlu0 %1353
        %v1355 = vsel %vm496, %v1293, 0.0
        %1356 = vadd.xlane.f32.xlu0 %v1355
        %v1357 = vpop.xlane.xlu0 %1356
        %v1358 = vsel %vm496, %v1294, 0.0
        %1359 = vadd.xlane.f32.xlu0 %v1358
        %v1360 = vpop.xlane.xlu0 %1359
        %v1361 = vsel %vm496, %v1295, 0.0
        %1362 = vadd.xlane.f32.xlu0 %v1361
        %v1363 = vpop.xlane.xlu0 %1362
        %v1364 = vsel %vm496, %v1296, 0.0
        %1365 = vadd.xlane.f32.xlu0 %v1364
        %v1366 = vpop.xlane.xlu0 %1365
        %v1367 = vsel %vm496, %v1297, 0.0
        %1368 = vadd.xlane.f32.xlu0 %v1367
        %v1369 = vpop.xlane.xlu0 %1368
        %v1370 = vsel %vm496, %v1298, 0.0
        %1371 = vadd.xlane.f32.xlu0 %v1370
        %v1372 = vpop.xlane.xlu0 %1371
        %v1373 = vsel %vm496, %v1299, 0.0
        %1374 = vadd.xlane.f32.xlu0 %v1373
        %v1375 = vpop.xlane.xlu0 %1374
        %v1376 = vsel %vm496, %v1300, 0.0
        %1377 = vadd.xlane.f32.xlu0 %v1376
        %v1378 = vpop.xlane.xlu0 %1377
        %v1379 = vsel %vm496, %v1301, 0.0
        %1380 = vadd.xlane.f32.xlu0 %v1379
        %v1381 = vpop.xlane.xlu0 %1380
        %v1382 = vsel %vm496, %v1302, 0.0
        %1383 = vadd.xlane.f32.xlu0 %v1382
        %v1384 = vpop.xlane.xlu0 %1383
        %v1385 = vsel %vm496, %v1303, 0.0
        %1386 = vadd.xlane.f32.xlu0 %v1385
        %v1387 = vpop.xlane.xlu0 %1386
        %v1388 = vsel %vm496, %v1304, 0.0
        %1389 = vadd.xlane.f32.xlu0 %v1388
        %v1390 = vpop.xlane.xlu0 %1389
        %v1391 = vsel %vm496, %v1305, 0.0
        %1392 = vadd.xlane.f32.xlu0 %v1391
        %v1393 = vpop.xlane.xlu0 %1392
        %v1394 = vsel %vm496, %v1306, 0.0
        %1395 = vadd.xlane.f32.xlu0 %v1394
        %v1396 = vpop.xlane.xlu0 %1395
        %v1397 = vsel %vm496, %v1307, 0.0
        %1398 = vadd.xlane.f32.xlu0 %v1397
        %v1399 = vpop.xlane.xlu0 %1398
        %v1400 = vsel %vm496, %v1308, 0.0
        %1401 = vadd.xlane.f32.xlu0 %v1400
        %v1402 = vpop.xlane.xlu0 %1401
        %v1403 = vsel %vm496, %v1309, 0.0
        %1404 = vadd.xlane.f32.xlu0 %v1403
        %v1405 = vpop.xlane.xlu0 %1404
        %v1406 = vmul.f32 %v1312, %v599
        %v1407 = vmul.f32 %v1315, %v599
        %v1408 = vmul.f32 %v1318, %v599
        %v1409 = vmul.f32 %v1321, %v599
        %v1410 = vmul.f32 %v1324, %v599
        %v1411 = vmul.f32 %v1327, %v599
        %v1412 = vmul.f32 %v1330, %v599
        %v1413 = vmul.f32 %v1333, %v599
        %v1414 = vmul.f32 %v1336, %v599
        %v1415 = vmul.f32 %v1339, %v599
        %v1416 = vmul.f32 %v1342, %v599
        %v1417 = vmul.f32 %v1345, %v599
        %v1418 = vmul.f32 %v1348, %v599
        %v1419 = vmul.f32 %v1351, %v599
        %v1420 = vmul.f32 %v1354, %v599
        %v1421 = vmul.f32 %v1357, %v599
        %v1422 = vmul.f32 %v1360, %v599
        %v1423 = vmul.f32 %v1363, %v599
        %v1424 = vmul.f32 %v1366, %v599
        %v1425 = vmul.f32 %v1369, %v599
        %v1426 = vmul.f32 %v1372, %v599
        %v1427 = vmul.f32 %v1375, %v599
        %v1428 = vmul.f32 %v1378, %v599
        %v1429 = vmul.f32 %v1381, %v599
        %v1430 = vmul.f32 %v1384, %v599
        %v1431 = vmul.f32 %v1387, %v599
        %v1432 = vmul.f32 %v1390, %v599
        %v1433 = vmul.f32 %v1393, %v599
        %v1434 = vmul.f32 %v1396, %v599
        %v1435 = vmul.f32 %v1399, %v599
        %v1436 = vmul.f32 %v1402, %v599
        %v1437 = vmul.f32 %v1405, %v599
        %v1438 = vsub.f32 %v1278, %v1406
        %v1439 = vsub.f32 %v1279, %v1407
        %v1440 = vsub.f32 %v1280, %v1408
        %v1441 = vsub.f32 %v1281, %v1409
        %v1442 = vsub.f32 %v1282, %v1410
        %v1443 = vsub.f32 %v1283, %v1411
        %v1444 = vsub.f32 %v1284, %v1412
        %v1445 = vsub.f32 %v1285, %v1413
        %v1446 = vsub.f32 %v1286, %v1414
        %v1447 = vsub.f32 %v1287, %v1415
        %v1448 = vsub.f32 %v1288, %v1416
        %v1449 = vsub.f32 %v1289, %v1417
        %v1450 = vsub.f32 %v1290, %v1418
        %v1451 = vsub.f32 %v1291, %v1419
        %v1452 = vsub.f32 %v1292, %v1420
        %v1453 = vsub.f32 %v1293, %v1421
        %v1454 = vsub.f32 %v1294, %v1422
        %v1455 = vsub.f32 %v1295, %v1423
        %v1456 = vsub.f32 %v1296, %v1424
        %v1457 = vsub.f32 %v1297, %v1425
        %v1458 = vsub.f32 %v1298, %v1426
        %v1459 = vsub.f32 %v1299, %v1427
        %v1460 = vsub.f32 %v1300, %v1428
        %v1461 = vsub.f32 %v1301, %v1429
        %v1462 = vsub.f32 %v1302, %v1430
        %v1463 = vsub.f32 %v1303, %v1431
        %v1464 = vsub.f32 %v1304, %v1432
        %v1465 = vsub.f32 %v1305, %v1433
        %v1466 = vsub.f32 %v1306, %v1434
        %v1467 = vsub.f32 %v1307, %v1435
        %v1468 = vsub.f32 %v1308, %v1436
        %v1469 = vsub.f32 %v1309, %v1437
        %v1470 = vmul.f32 %v1438, %v1438
        %v1471 = vmul.f32 %v1439, %v1439
        %v1472 = vmul.f32 %v1440, %v1440
        %v1473 = vmul.f32 %v1441, %v1441
        %v1474 = vmul.f32 %v1442, %v1442
        %v1475 = vmul.f32 %v1443, %v1443
        %v1476 = vmul.f32 %v1444, %v1444
        %v1477 = vmul.f32 %v1445, %v1445
        %v1478 = vmul.f32 %v1446, %v1446
        %v1479 = vmul.f32 %v1447, %v1447
        %v1480 = vmul.f32 %v1448, %v1448
        %v1481 = vmul.f32 %v1449, %v1449
        %v1482 = vmul.f32 %v1450, %v1450
        %v1483 = vmul.f32 %v1451, %v1451
        %v1484 = vmul.f32 %v1452, %v1452
        %v1485 = vmul.f32 %v1453, %v1453
        %v1486 = vmul.f32 %v1454, %v1454
        %v1487 = vmul.f32 %v1455, %v1455
        %v1488 = vmul.f32 %v1456, %v1456
        %v1489 = vmul.f32 %v1457, %v1457
        %v1490 = vmul.f32 %v1458, %v1458
        %v1491 = vmul.f32 %v1459, %v1459
        %v1492 = vmul.f32 %v1460, %v1460
        %v1493 = vmul.f32 %v1461, %v1461
        %v1494 = vmul.f32 %v1462, %v1462
        %v1495 = vmul.f32 %v1463, %v1463
        %v1496 = vmul.f32 %v1464, %v1464
        %v1497 = vmul.f32 %v1465, %v1465
        %v1498 = vmul.f32 %v1466, %v1466
        %v1499 = vmul.f32 %v1467, %v1467
        %v1500 = vmul.f32 %v1468, %v1468
        %v1501 = vmul.f32 %v1469, %v1469
        %v1502 = vsel %vm496, %v1470, 0.0
        %1503 = vadd.xlane.f32.xlu0 %v1502
        %v1504 = vpop.xlane.xlu0 %1503
        %v1505 = vsel %vm496, %v1471, 0.0
        %1506 = vadd.xlane.f32.xlu0 %v1505
        %v1507 = vpop.xlane.xlu0 %1506
        %v1508 = vsel %vm496, %v1472, 0.0
        %1509 = vadd.xlane.f32.xlu0 %v1508
        %v1510 = vpop.xlane.xlu0 %1509
        %v1511 = vsel %vm496, %v1473, 0.0
        %1512 = vadd.xlane.f32.xlu0 %v1511
        %v1513 = vpop.xlane.xlu0 %1512
        %v1514 = vsel %vm496, %v1474, 0.0
        %1515 = vadd.xlane.f32.xlu0 %v1514
        %v1516 = vpop.xlane.xlu0 %1515
        %v1517 = vsel %vm496, %v1475, 0.0
        %1518 = vadd.xlane.f32.xlu0 %v1517
        %v1519 = vpop.xlane.xlu0 %1518
        %v1520 = vsel %vm496, %v1476, 0.0
        %1521 = vadd.xlane.f32.xlu0 %v1520
        %v1522 = vpop.xlane.xlu0 %1521
        %v1523 = vsel %vm496, %v1477, 0.0
        %1524 = vadd.xlane.f32.xlu0 %v1523
        %v1525 = vpop.xlane.xlu0 %1524
        %v1526 = vsel %vm496, %v1478, 0.0
        %1527 = vadd.xlane.f32.xlu0 %v1526
        %v1528 = vpop.xlane.xlu0 %1527
        %v1529 = vsel %vm496, %v1479, 0.0
        %1530 = vadd.xlane.f32.xlu0 %v1529
        %v1531 = vpop.xlane.xlu0 %1530
        %v1532 = vsel %vm496, %v1480, 0.0
        %1533 = vadd.xlane.f32.xlu0 %v1532
        %v1534 = vpop.xlane.xlu0 %1533
        %v1535 = vsel %vm496, %v1481, 0.0
        %1536 = vadd.xlane.f32.xlu0 %v1535
        %v1537 = vpop.xlane.xlu0 %1536
        %v1538 = vsel %vm496, %v1482, 0.0
        %1539 = vadd.xlane.f32.xlu0 %v1538
        %v1540 = vpop.xlane.xlu0 %1539
        %v1541 = vsel %vm496, %v1483, 0.0
        %1542 = vadd.xlane.f32.xlu0 %v1541
        %v1543 = vpop.xlane.xlu0 %1542
        %v1544 = vsel %vm496, %v1484, 0.0
        %1545 = vadd.xlane.f32.xlu0 %v1544
        %v1546 = vpop.xlane.xlu0 %1545
        %v1547 = vsel %vm496, %v1485, 0.0
        %1548 = vadd.xlane.f32.xlu0 %v1547
        %v1549 = vpop.xlane.xlu0 %1548
        %v1550 = vsel %vm496, %v1486, 0.0
        %1551 = vadd.xlane.f32.xlu0 %v1550
        %v1552 = vpop.xlane.xlu0 %1551
        %v1553 = vsel %vm496, %v1487, 0.0
        %1554 = vadd.xlane.f32.xlu0 %v1553
        %v1555 = vpop.xlane.xlu0 %1554
        %v1556 = vsel %vm496, %v1488, 0.0
        %1557 = vadd.xlane.f32.xlu0 %v1556
        %v1558 = vpop.xlane.xlu0 %1557
        %v1559 = vsel %vm496, %v1489, 0.0
        %1560 = vadd.xlane.f32.xlu0 %v1559
        %v1561 = vpop.xlane.xlu0 %1560
        %v1562 = vsel %vm496, %v1490, 0.0
        %1563 = vadd.xlane.f32.xlu0 %v1562
        %v1564 = vpop.xlane.xlu0 %1563
        %v1565 = vsel %vm496, %v1491, 0.0
        %1566 = vadd.xlane.f32.xlu0 %v1565
        %v1567 = vpop.xlane.xlu0 %1566
        %v1568 = vsel %vm496, %v1492, 0.0
        %1569 = vadd.xlane.f32.xlu0 %v1568
        %v1570 = vpop.xlane.xlu0 %1569
        %v1571 = vsel %vm496, %v1493, 0.0
        %1572 = vadd.xlane.f32.xlu0 %v1571
        %v1573 = vpop.xlane.xlu0 %1572
        %v1574 = vsel %vm496, %v1494, 0.0
        %1575 = vadd.xlane.f32.xlu0 %v1574
        %v1576 = vpop.xlane.xlu0 %1575
        %v1577 = vsel %vm496, %v1495, 0.0
        %1578 = vadd.xlane.f32.xlu0 %v1577
        %v1579 = vpop.xlane.xlu0 %1578
        %v1580 = vsel %vm496, %v1496, 0.0
        %1581 = vadd.xlane.f32.xlu0 %v1580
        %v1582 = vpop.xlane.xlu0 %1581
        %v1583 = vsel %vm496, %v1497, 0.0
        %1584 = vadd.xlane.f32.xlu0 %v1583
        %v1585 = vpop.xlane.xlu0 %1584
        %v1586 = vsel %vm496, %v1498, 0.0
        %1587 = vadd.xlane.f32.xlu0 %v1586
        %v1588 = vpop.xlane.xlu0 %1587
        %v1589 = vsel %vm496, %v1499, 0.0
        %1590 = vadd.xlane.f32.xlu0 %v1589
        %v1591 = vpop.xlane.xlu0 %1590
        %v1592 = vsel %vm496, %v1500, 0.0
        %1593 = vadd.xlane.f32.xlu0 %v1592
        %v1594 = vpop.xlane.xlu0 %1593
        %v1595 = vsel %vm496, %v1501, 0.0
        %1596 = vadd.xlane.f32.xlu0 %v1595
        %v1597 = vpop.xlane.xlu0 %1596
        %v1598 = vmul.f32 %v1504, %v599
        %v1599 = vmul.f32 %v1507, %v599
        %v1600 = vmul.f32 %v1510, %v599
        %v1601 = vmul.f32 %v1513, %v599
        %v1602 = vmul.f32 %v1516, %v599
        %v1603 = vmul.f32 %v1519, %v599
        %v1604 = vmul.f32 %v1522, %v599
        %v1605 = vmul.f32 %v1525, %v599
        %v1606 = vmul.f32 %v1528, %v599
        %v1607 = vmul.f32 %v1531, %v599
        %v1608 = vmul.f32 %v1534, %v599
        %v1609 = vmul.f32 %v1537, %v599
        %v1610 = vmul.f32 %v1540, %v599
        %v1611 = vmul.f32 %v1543, %v599
        %v1612 = vmul.f32 %v1546, %v599
        %v1613 = vmul.f32 %v1549, %v599
        %v1614 = vmul.f32 %v1552, %v599
        %v1615 = vmul.f32 %v1555, %v599
        %v1616 = vmul.f32 %v1558, %v599
        %v1617 = vmul.f32 %v1561, %v599
        %v1618 = vmul.f32 %v1564, %v599
        %v1619 = vmul.f32 %v1567, %v599
        %v1620 = vmul.f32 %v1570, %v599
        %v1621 = vmul.f32 %v1573, %v599
        %v1622 = vmul.f32 %v1576, %v599
        %v1623 = vmul.f32 %v1579, %v599
        %v1624 = vmul.f32 %v1582, %v599
        %v1625 = vmul.f32 %v1585, %v599
        %v1626 = vmul.f32 %v1588, %v599
        %v1627 = vmul.f32 %v1591, %v599
        %v1628 = vmul.f32 %v1594, %v599
        %v1629 = vmul.f32 %v1597, %v599
        %v1630 = vadd.f32 %v1598, 1e-06
        %v1631 = vadd.f32 %v1599, 1e-06
        %v1632 = vadd.f32 %v1600, 1e-06
        %v1633 = vadd.f32 %v1601, 1e-06
        %v1634 = vadd.f32 %v1602, 1e-06
        %v1635 = vadd.f32 %v1603, 1e-06
        %v1636 = vadd.f32 %v1604, 1e-06
        %v1637 = vadd.f32 %v1605, 1e-06
        %v1638 = vadd.f32 %v1606, 1e-06
        %v1639 = vadd.f32 %v1607, 1e-06
        %v1640 = vadd.f32 %v1608, 1e-06
        %v1641 = vadd.f32 %v1609, 1e-06
        %v1642 = vadd.f32 %v1610, 1e-06
        %v1643 = vadd.f32 %v1611, 1e-06
        %v1644 = vadd.f32 %v1612, 1e-06
        %v1645 = vadd.f32 %v1613, 1e-06
        %v1646 = vadd.f32 %v1614, 1e-06
        %v1647 = vadd.f32 %v1615, 1e-06
        %v1648 = vadd.f32 %v1616, 1e-06
        %v1649 = vadd.f32 %v1617, 1e-06
        %v1650 = vadd.f32 %v1618, 1e-06
        %v1651 = vadd.f32 %v1619, 1e-06
        %v1652 = vadd.f32 %v1620, 1e-06
        %v1653 = vadd.f32 %v1621, 1e-06
        %v1654 = vadd.f32 %v1622, 1e-06
        %v1655 = vadd.f32 %v1623, 1e-06
        %v1656 = vadd.f32 %v1624, 1e-06
        %v1657 = vadd.f32 %v1625, 1e-06
        %v1658 = vadd.f32 %v1626, 1e-06
        %v1659 = vadd.f32 %v1627, 1e-06
        %v1660 = vadd.f32 %v1628, 1e-06
        %v1661 = vadd.f32 %v1629, 1e-06
        %v1662 = vrsqrt.pop %v1630
        %v1663 = vmul.f32 %v1662, %v1630
        %v1664 = vmul.f32 %v1663, %v1662
        %v1665 = vmul.f32 0.5, %v1664
        %v1666 = vsub.f32 1.5, %v1665
        %v1667 = vmul.f32 %v1662, %v1666
        %vm1668 = vweird.f32 %v1630
        %vm1669 = vweird.f32 %v1662
        %vm1670 = vmor %vm1668, %vm1669
        %v1671 = vsel %vm1670, %v1662, %v1667
        %v1672 = vrsqrt.pop %v1631
        %v1673 = vmul.f32 %v1672, %v1631
        %v1674 = vmul.f32 %v1673, %v1672
        %v1675 = vmul.f32 0.5, %v1674
        %v1676 = vsub.f32 1.5, %v1675
        %v1677 = vmul.f32 %v1672, %v1676
        %vm1678 = vweird.f32 %v1631
        %vm1679 = vweird.f32 %v1672
        %vm1680 = vmor %vm1678, %vm1679
        %v1681 = vsel %vm1680, %v1672, %v1677
        %v1682 = vrsqrt.pop %v1632
        %v1683 = vmul.f32 %v1682, %v1632
        %v1684 = vmul.f32 %v1683, %v1682
        %v1685 = vmul.f32 0.5, %v1684
        %v1686 = vsub.f32 1.5, %v1685
        %v1687 = vmul.f32 %v1682, %v1686
        %vm1688 = vweird.f32 %v1632
        %vm1689 = vweird.f32 %v1682
        %vm1690 = vmor %vm1688, %vm1689
        %v1691 = vsel %vm1690, %v1682, %v1687
        %v1692 = vrsqrt.pop %v1633
        %v1693 = vmul.f32 %v1692, %v1633
        %v1694 = vmul.f32 %v1693, %v1692
        %v1695 = vmul.f32 0.5, %v1694
        %v1696 = vsub.f32 1.5, %v1695
        %v1697 = vmul.f32 %v1692, %v1696
        %vm1698 = vweird.f32 %v1633
        %vm1699 = vweird.f32 %v1692
        %vm1700 = vmor %vm1698, %vm1699
        %v1701 = vsel %vm1700, %v1692, %v1697
        %v1702 = vrsqrt.pop %v1634
        %v1703 = vmul.f32 %v1702, %v1634
        %v1704 = vmul.f32 %v1703, %v1702
        %v1705 = vmul.f32 0.5, %v1704
        %v1706 = vsub.f32 1.5, %v1705
        %v1707 = vmul.f32 %v1702, %v1706
        %vm1708 = vweird.f32 %v1634
        %vm1709 = vweird.f32 %v1702
        %vm1710 = vmor %vm1708, %vm1709
        %v1711 = vsel %vm1710, %v1702, %v1707
        %v1712 = vrsqrt.pop %v1635
        %v1713 = vmul.f32 %v1712, %v1635
        %v1714 = vmul.f32 %v1713, %v1712
        %v1715 = vmul.f32 0.5, %v1714
        %v1716 = vsub.f32 1.5, %v1715
        %v1717 = vmul.f32 %v1712, %v1716
        %vm1718 = vweird.f32 %v1635
        %vm1719 = vweird.f32 %v1712
        %vm1720 = vmor %vm1718, %vm1719
        %v1721 = vsel %vm1720, %v1712, %v1717
        %v1722 = vrsqrt.pop %v1636
        %v1723 = vmul.f32 %v1722, %v1636
        %v1724 = vmul.f32 %v1723, %v1722
        %v1725 = vmul.f32 0.5, %v1724
        %v1726 = vsub.f32 1.5, %v1725
        %v1727 = vmul.f32 %v1722, %v1726
        %vm1728 = vweird.f32 %v1636
        %vm1729 = vweird.f32 %v1722
        %vm1730 = vmor %vm1728, %vm1729
        %v1731 = vsel %vm1730, %v1722, %v1727
        %v1732 = vrsqrt.pop %v1637
        %v1733 = vmul.f32 %v1732, %v1637
        %v1734 = vmul.f32 %v1733, %v1732
        %v1735 = vmul.f32 0.5, %v1734
        %v1736 = vsub.f32 1.5, %v1735
        %v1737 = vmul.f32 %v1732, %v1736
        %vm1738 = vweird.f32 %v1637
        %vm1739 = vweird.f32 %v1732
        %vm1740 = vmor %vm1738, %vm1739
        %v1741 = vsel %vm1740, %v1732, %v1737
        %v1742 = vrsqrt.pop %v1638
        %v1743 = vmul.f32 %v1742, %v1638
        %v1744 = vmul.f32 %v1743, %v1742
        %v1745 = vmul.f32 0.5, %v1744
        %v1746 = vsub.f32 1.5, %v1745
        %v1747 = vmul.f32 %v1742, %v1746
        %vm1748 = vweird.f32 %v1638
        %vm1749 = vweird.f32 %v1742
        %vm1750 = vmor %vm1748, %vm1749
        %v1751 = vsel %vm1750, %v1742, %v1747
        %v1752 = vrsqrt.pop %v1639
        %v1753 = vmul.f32 %v1752, %v1639
        %v1754 = vmul.f32 %v1753, %v1752
        %v1755 = vmul.f32 0.5, %v1754
        %v1756 = vsub.f32 1.5, %v1755
        %v1757 = vmul.f32 %v1752, %v1756
        %vm1758 = vweird.f32 %v1639
        %vm1759 = vweird.f32 %v1752
        %vm1760 = vmor %vm1758, %vm1759
        %v1761 = vsel %vm1760, %v1752, %v1757
        %v1762 = vrsqrt.pop %v1640
        %v1763 = vmul.f32 %v1762, %v1640
        %v1764 = vmul.f32 %v1763, %v1762
        %v1765 = vmul.f32 0.5, %v1764
        %v1766 = vsub.f32 1.5, %v1765
        %v1767 = vmul.f32 %v1762, %v1766
        %vm1768 = vweird.f32 %v1640
        %vm1769 = vweird.f32 %v1762
        %vm1770 = vmor %vm1768, %vm1769
        %v1771 = vsel %vm1770, %v1762, %v1767
        %v1772 = vrsqrt.pop %v1641
        %v1773 = vmul.f32 %v1772, %v1641
        %v1774 = vmul.f32 %v1773, %v1772
        %v1775 = vmul.f32 0.5, %v1774
        %v1776 = vsub.f32 1.5, %v1775
        %v1777 = vmul.f32 %v1772, %v1776
        %vm1778 = vweird.f32 %v1641
        %vm1779 = vweird.f32 %v1772
        %vm1780 = vmor %vm1778, %vm1779
        %v1781 = vsel %vm1780, %v1772, %v1777
        %v1782 = vrsqrt.pop %v1642
        %v1783 = vmul.f32 %v1782, %v1642
        %v1784 = vmul.f32 %v1783, %v1782
        %v1785 = vmul.f32 0.5, %v1784
        %v1786 = vsub.f32 1.5, %v1785
        %v1787 = vmul.f32 %v1782, %v1786
        %vm1788 = vweird.f32 %v1642
        %vm1789 = vweird.f32 %v1782
        %vm1790 = vmor %vm1788, %vm1789
        %v1791 = vsel %vm1790, %v1782, %v1787
        %v1792 = vrsqrt.pop %v1643
        %v1793 = vmul.f32 %v1792, %v1643
        %v1794 = vmul.f32 %v1793, %v1792
        %v1795 = vmul.f32 0.5, %v1794
        %v1796 = vsub.f32 1.5, %v1795
        %v1797 = vmul.f32 %v1792, %v1796
        %vm1798 = vweird.f32 %v1643
        %vm1799 = vweird.f32 %v1792
        %vm1800 = vmor %vm1798, %vm1799
        %v1801 = vsel %vm1800, %v1792, %v1797
        %v1802 = vrsqrt.pop %v1644
        %v1803 = vmul.f32 %v1802, %v1644
        %v1804 = vmul.f32 %v1803, %v1802
        %v1805 = vmul.f32 0.5, %v1804
        %v1806 = vsub.f32 1.5, %v1805
        %v1807 = vmul.f32 %v1802, %v1806
        %vm1808 = vweird.f32 %v1644
        %vm1809 = vweird.f32 %v1802
        %vm1810 = vmor %vm1808, %vm1809
        %v1811 = vsel %vm1810, %v1802, %v1807
        %v1812 = vrsqrt.pop %v1645
        %v1813 = vmul.f32 %v1812, %v1645
        %v1814 = vmul.f32 %v1813, %v1812
        %v1815 = vmul.f32 0.5, %v1814
        %v1816 = vsub.f32 1.5, %v1815
        %v1817 = vmul.f32 %v1812, %v1816
        %vm1818 = vweird.f32 %v1645
        %vm1819 = vweird.f32 %v1812
        %vm1820 = vmor %vm1818, %vm1819
        %v1821 = vsel %vm1820, %v1812, %v1817
        %v1822 = vrsqrt.pop %v1646
        %v1823 = vmul.f32 %v1822, %v1646
        %v1824 = vmul.f32 %v1823, %v1822
        %v1825 = vmul.f32 0.5, %v1824
        %v1826 = vsub.f32 1.5, %v1825
        %v1827 = vmul.f32 %v1822, %v1826
        %vm1828 = vweird.f32 %v1646
        %vm1829 = vweird.f32 %v1822
        %vm1830 = vmor %vm1828, %vm1829
        %v1831 = vsel %vm1830, %v1822, %v1827
        %v1832 = vrsqrt.pop %v1647
        %v1833 = vmul.f32 %v1832, %v1647
        %v1834 = vmul.f32 %v1833, %v1832
        %v1835 = vmul.f32 0.5, %v1834
        %v1836 = vsub.f32 1.5, %v1835
        %v1837 = vmul.f32 %v1832, %v1836
        %vm1838 = vweird.f32 %v1647
        %vm1839 = vweird.f32 %v1832
        %vm1840 = vmor %vm1838, %vm1839
        %v1841 = vsel %vm1840, %v1832, %v1837
        %v1842 = vrsqrt.pop %v1648
        %v1843 = vmul.f32 %v1842, %v1648
        %v1844 = vmul.f32 %v1843, %v1842
        %v1845 = vmul.f32 0.5, %v1844
        %v1846 = vsub.f32 1.5, %v1845
        %v1847 = vmul.f32 %v1842, %v1846
        %vm1848 = vweird.f32 %v1648
        %vm1849 = vweird.f32 %v1842
        %vm1850 = vmor %vm1848, %vm1849
        %v1851 = vsel %vm1850, %v1842, %v1847
        %v1852 = vrsqrt.pop %v1649
        %v1853 = vmul.f32 %v1852, %v1649
        %v1854 = vmul.f32 %v1853, %v1852
        %v1855 = vmul.f32 0.5, %v1854
        %v1856 = vsub.f32 1.5, %v1855
        %v1857 = vmul.f32 %v1852, %v1856
        %vm1858 = vweird.f32 %v1649
        %vm1859 = vweird.f32 %v1852
        %vm1860 = vmor %vm1858, %vm1859
        %v1861 = vsel %vm1860, %v1852, %v1857
        %v1862 = vrsqrt.pop %v1650
        %v1863 = vmul.f32 %v1862, %v1650
        %v1864 = vmul.f32 %v1863, %v1862
        %v1865 = vmul.f32 0.5, %v1864
        %v1866 = vsub.f32 1.5, %v1865
        %v1867 = vmul.f32 %v1862, %v1866
        %vm1868 = vweird.f32 %v1650
        %vm1869 = vweird.f32 %v1862
        %vm1870 = vmor %vm1868, %vm1869
        %v1871 = vsel %vm1870, %v1862, %v1867
        %v1872 = vrsqrt.pop %v1651
        %v1873 = vmul.f32 %v1872, %v1651
        %v1874 = vmul.f32 %v1873, %v1872
        %v1875 = vmul.f32 0.5, %v1874
        %v1876 = vsub.f32 1.5, %v1875
        %v1877 = vmul.f32 %v1872, %v1876
        %vm1878 = vweird.f32 %v1651
        %vm1879 = vweird.f32 %v1872
        %vm1880 = vmor %vm1878, %vm1879
        %v1881 = vsel %vm1880, %v1872, %v1877
        %v1882 = vrsqrt.pop %v1652
        %v1883 = vmul.f32 %v1882, %v1652
        %v1884 = vmul.f32 %v1883, %v1882
        %v1885 = vmul.f32 0.5, %v1884
        %v1886 = vsub.f32 1.5, %v1885
        %v1887 = vmul.f32 %v1882, %v1886
        %vm1888 = vweird.f32 %v1652
        %vm1889 = vweird.f32 %v1882
        %vm1890 = vmor %vm1888, %vm1889
        %v1891 = vsel %vm1890, %v1882, %v1887
        %v1892 = vrsqrt.pop %v1653
        %v1893 = vmul.f32 %v1892, %v1653
        %v1894 = vmul.f32 %v1893, %v1892
        %v1895 = vmul.f32 0.5, %v1894
        %v1896 = vsub.f32 1.5, %v1895
        %v1897 = vmul.f32 %v1892, %v1896
        %vm1898 = vweird.f32 %v1653
        %vm1899 = vweird.f32 %v1892
        %vm1900 = vmor %vm1898, %vm1899
        %v1901 = vsel %vm1900, %v1892, %v1897
        %v1902 = vrsqrt.pop %v1654
        %v1903 = vmul.f32 %v1902, %v1654
        %v1904 = vmul.f32 %v1903, %v1902
        %v1905 = vmul.f32 0.5, %v1904
        %v1906 = vsub.f32 1.5, %v1905
        %v1907 = vmul.f32 %v1902, %v1906
        %vm1908 = vweird.f32 %v1654
        %vm1909 = vweird.f32 %v1902
        %vm1910 = vmor %vm1908, %vm1909
        %v1911 = vsel %vm1910, %v1902, %v1907
        %v1912 = vrsqrt.pop %v1655
        %v1913 = vmul.f32 %v1912, %v1655
        %v1914 = vmul.f32 %v1913, %v1912
        %v1915 = vmul.f32 0.5, %v1914
        %v1916 = vsub.f32 1.5, %v1915
        %v1917 = vmul.f32 %v1912, %v1916
        %vm1918 = vweird.f32 %v1655
        %vm1919 = vweird.f32 %v1912
        %vm1920 = vmor %vm1918, %vm1919
        %v1921 = vsel %vm1920, %v1912, %v1917
        %v1922 = vrsqrt.pop %v1656
        %v1923 = vmul.f32 %v1922, %v1656
        %v1924 = vmul.f32 %v1923, %v1922
        %v1925 = vmul.f32 0.5, %v1924
        %v1926 = vsub.f32 1.5, %v1925
        %v1927 = vmul.f32 %v1922, %v1926
        %vm1928 = vweird.f32 %v1656
        %vm1929 = vweird.f32 %v1922
        %vm1930 = vmor %vm1928, %vm1929
        %v1931 = vsel %vm1930, %v1922, %v1927
        %v1932 = vrsqrt.pop %v1657
        %v1933 = vmul.f32 %v1932, %v1657
        %v1934 = vmul.f32 %v1933, %v1932
        %v1935 = vmul.f32 0.5, %v1934
        %v1936 = vsub.f32 1.5, %v1935
        %v1937 = vmul.f32 %v1932, %v1936
        %vm1938 = vweird.f32 %v1657
        %vm1939 = vweird.f32 %v1932
        %vm1940 = vmor %vm1938, %vm1939
        %v1941 = vsel %vm1940, %v1932, %v1937
        %v1942 = vrsqrt.pop %v1658
        %v1943 = vmul.f32 %v1942, %v1658
        %v1944 = vmul.f32 %v1943, %v1942
        %v1945 = vmul.f32 0.5, %v1944
        %v1946 = vsub.f32 1.5, %v1945
        %v1947 = vmul.f32 %v1942, %v1946
        %vm1948 = vweird.f32 %v1658
        %vm1949 = vweird.f32 %v1942
        %vm1950 = vmor %vm1948, %vm1949
        %v1951 = vsel %vm1950, %v1942, %v1947
        %v1952 = vrsqrt.pop %v1659
        %v1953 = vmul.f32 %v1952, %v1659
        %v1954 = vmul.f32 %v1953, %v1952
        %v1955 = vmul.f32 0.5, %v1954
        %v1956 = vsub.f32 1.5, %v1955
        %v1957 = vmul.f32 %v1952, %v1956
        %vm1958 = vweird.f32 %v1659
        %vm1959 = vweird.f32 %v1952
        %vm1960 = vmor %vm1958, %vm1959
        %v1961 = vsel %vm1960, %v1952, %v1957
        %v1962 = vrsqrt.pop %v1660
        %v1963 = vmul.f32 %v1962, %v1660
        %v1964 = vmul.f32 %v1963, %v1962
        %v1965 = vmul.f32 0.5, %v1964
        %v1966 = vsub.f32 1.5, %v1965
        %v1967 = vmul.f32 %v1962, %v1966
        %vm1968 = vweird.f32 %v1660
        %vm1969 = vweird.f32 %v1962
        %vm1970 = vmor %vm1968, %vm1969
        %v1971 = vsel %vm1970, %v1962, %v1967
        %v1972 = vrsqrt.pop %v1661
        %v1973 = vmul.f32 %v1972, %v1661
        %v1974 = vmul.f32 %v1973, %v1972
        %v1975 = vmul.f32 0.5, %v1974
        %v1976 = vsub.f32 1.5, %v1975
        %v1977 = vmul.f32 %v1972, %v1976
        %vm1978 = vweird.f32 %v1661
        %vm1979 = vweird.f32 %v1972
        %vm1980 = vmor %vm1978, %vm1979
        %v1981 = vsel %vm1980, %v1972, %v1977
        %v1982 = vmul.f32 %v1438, %v1671
        %v1983 = vmul.f32 %v1439, %v1681
        %v1984 = vmul.f32 %v1440, %v1691
        %v1985 = vmul.f32 %v1441, %v1701
        %v1986 = vmul.f32 %v1442, %v1711
        %v1987 = vmul.f32 %v1443, %v1721
        %v1988 = vmul.f32 %v1444, %v1731
        %v1989 = vmul.f32 %v1445, %v1741
        %v1990 = vmul.f32 %v1446, %v1751
        %v1991 = vmul.f32 %v1447, %v1761
        %v1992 = vmul.f32 %v1448, %v1771
        %v1993 = vmul.f32 %v1449, %v1781
        %v1994 = vmul.f32 %v1450, %v1791
        %v1995 = vmul.f32 %v1451, %v1801
        %v1996 = vmul.f32 %v1452, %v1811
        %v1997 = vmul.f32 %v1453, %v1821
        %v1998 = vmul.f32 %v1454, %v1831
        %v1999 = vmul.f32 %v1455, %v1841
        %v2000 = vmul.f32 %v1456, %v1851
        %v2001 = vmul.f32 %v1457, %v1861
        %v2002 = vmul.f32 %v1458, %v1871
        %v2003 = vmul.f32 %v1459, %v1881
        %v2004 = vmul.f32 %v1460, %v1891
        %v2005 = vmul.f32 %v1461, %v1901
        %v2006 = vmul.f32 %v1462, %v1911
        %v2007 = vmul.f32 %v1463, %v1921
        %v2008 = vmul.f32 %v1464, %v1931
        %v2009 = vmul.f32 %v1465, %v1941
        %v2010 = vmul.f32 %v1466, %v1951
        %v2011 = vmul.f32 %v1467, %v1961
        %v2012 = vmul.f32 %v1468, %v1971
        %v2013 = vmul.f32 %v1469, %v1981
        %v2015 = vperm.slane %v448, 0
        %v2017 = vmul.f32 %v1982, %v2015
        %v2018 = vmul.f32 %v1983, %v2015
        %v2019 = vmul.f32 %v1984, %v2015
        %v2020 = vmul.f32 %v1985, %v2015
        %v2021 = vmul.f32 %v1986, %v2015
        %v2022 = vmul.f32 %v1987, %v2015
        %v2023 = vmul.f32 %v1988, %v2015
        %v2024 = vmul.f32 %v1989, %v2015
        %v2025 = vmul.f32 %v1990, %v2015
        %v2026 = vmul.f32 %v1991, %v2015
        %v2027 = vmul.f32 %v1992, %v2015
        %v2028 = vmul.f32 %v1993, %v2015
        %v2029 = vmul.f32 %v1994, %v2015
        %v2030 = vmul.f32 %v1995, %v2015
        %v2031 = vmul.f32 %v1996, %v2015
        %v2032 = vmul.f32 %v1997, %v2015
        %v2033 = vmul.f32 %v1998, %v2015
        %v2034 = vmul.f32 %v1999, %v2015
        %v2035 = vmul.f32 %v2000, %v2015
        %v2036 = vmul.f32 %v2001, %v2015
        %v2037 = vmul.f32 %v2002, %v2015
        %v2038 = vmul.f32 %v2003, %v2015
        %v2039 = vmul.f32 %v2004, %v2015
        %v2040 = vmul.f32 %v2005, %v2015
        %v2041 = vmul.f32 %v2006, %v2015
        %v2042 = vmul.f32 %v2007, %v2015
        %v2043 = vmul.f32 %v2008, %v2015
        %v2044 = vmul.f32 %v2009, %v2015
        %v2045 = vmul.f32 %v2010, %v2015
        %v2046 = vmul.f32 %v2011, %v2015
        %v2047 = vmul.f32 %v2012, %v2015
        %v2048 = vmul.f32 %v2013, %v2015
        %v2050 = vperm.slane %v450, 0
        %v2052 = vadd.f32 %v2017, %v2050
        %v2053 = vadd.f32 %v2018, %v2050
        %v2054 = vadd.f32 %v2019, %v2050
        %v2055 = vadd.f32 %v2020, %v2050
        %v2056 = vadd.f32 %v2021, %v2050
        %v2057 = vadd.f32 %v2022, %v2050
        %v2058 = vadd.f32 %v2023, %v2050
        %v2059 = vadd.f32 %v2024, %v2050
        %v2060 = vadd.f32 %v2025, %v2050
        %v2061 = vadd.f32 %v2026, %v2050
        %v2062 = vadd.f32 %v2027, %v2050
        %v2063 = vadd.f32 %v2028, %v2050
        %v2064 = vadd.f32 %v2029, %v2050
        %v2065 = vadd.f32 %v2030, %v2050
        %v2066 = vadd.f32 %v2031, %v2050
        %v2067 = vadd.f32 %v2032, %v2050
        %v2068 = vadd.f32 %v2033, %v2050
        %v2069 = vadd.f32 %v2034, %v2050
        %v2070 = vadd.f32 %v2035, %v2050
        %v2071 = vadd.f32 %v2036, %v2050
        %v2072 = vadd.f32 %v2037, %v2050
        %v2073 = vadd.f32 %v2038, %v2050
        %v2074 = vadd.f32 %v2039, %v2050
        %v2075 = vadd.f32 %v2040, %v2050
        %v2076 = vadd.f32 %v2041, %v2050
        %v2077 = vadd.f32 %v2042, %v2050
        %v2078 = vadd.f32 %v2043, %v2050
        %v2079 = vadd.f32 %v2044, %v2050
        %v2080 = vadd.f32 %v2045, %v2050
        %v2081 = vadd.f32 %v2046, %v2050
        %v2082 = vadd.f32 %v2047, %v2050
        %v2083 = vadd.f32 %v2048, %v2050
        %v2084 = vpack.c.bf16 %v2053, %v2052
        %v2085 = vpack.c.bf16 %v2055, %v2054
        %v2086 = vpack.c.bf16 %v2057, %v2056
        %v2087 = vpack.c.bf16 %v2059, %v2058
        %v2088 = vpack.c.bf16 %v2061, %v2060
        %v2089 = vpack.c.bf16 %v2063, %v2062
        %v2090 = vpack.c.bf16 %v2065, %v2064
        %v2091 = vpack.c.bf16 %v2067, %v2066
        %v2092 = vpack.c.bf16 %v2069, %v2068
        %v2093 = vpack.c.bf16 %v2071, %v2070
        %v2094 = vpack.c.bf16 %v2073, %v2072
        %v2095 = vpack.c.bf16 %v2075, %v2074
        %v2096 = vpack.c.bf16 %v2077, %v2076
        %v2097 = vpack.c.bf16 %v2079, %v2078
        %v2098 = vpack.c.bf16 %v2081, %v2080
        %v2099 = vpack.c.bf16 %v2083, %v2082
        %v2101 = vperm.slane %v460, 0
        %v2107 = vunpack.c.l.b16 %v452
        %v2108 = vunpack.c.l.b16 %v453
        %v2109 = vunpack.c.l.b16 %v454
        %v2110 = vunpack.c.l.b16 %v455
        %v2111 = vpack.c.b16 %v2108, %v2107
        %v2112 = vpack.c.b16 %v2110, %v2109
        %v2116 = vsel %vm496, %v2084, 0
        %v2119 = vsel %vm496, %v2085, 0
        %v2122 = vsel %vm496, %v2086, 0
        %v2125 = vsel %vm496, %v2087, 0
        %v2128 = vsel %vm496, %v2088, 0
        %v2131 = vsel %vm496, %v2089, 0
        %v2134 = vsel %vm496, %v2090, 0
        %v2137 = vsel %vm496, %v2091, 0
        %v2140 = vsel %vm496, %v2092, 0
        %v2143 = vsel %vm496, %v2093, 0
        %v2146 = vsel %vm496, %v2094, 0
        %v2149 = vsel %vm496, %v2095, 0
        %v2152 = vsel %vm496, %v2096, 0
        %v2155 = vsel %vm496, %v2097, 0
        %v2158 = vsel %vm496, %v2098, 0
        %v2161 = vsel %vm496, %v2099, 0
        %2163 = vmatpush.bf16.msra.mxu0 0
        %2164 = vmatpush.bf16.msra.mxu0 0
        %2165 = vmatpush.bf16.msra.mxu0 0
        %2166 = vmatpush.bf16.msra.mxu0 0
        %2167 = vmatpush.bf16.msra.mxu0 0
        %2168 = vmatpush.bf16.msra.mxu0 0
        %2169 = vmatpush.bf16.msra.mxu0 %v2112
        %2170 = vmatpush.bf16.msra.mxu0 %v2111
        %2171 = vmatmul.bf16.gmra.mxu0 %v2116
        %v2172 = vpop.f32.mrf.mxu0
        %v2173 = vadd.f32 %v2101, %v2172
        %v2174 = vpop.f32.mrf.mxu0
        %v2175 = vadd.f32 %v2101, %v2174
        %2176 = vmatmul.bf16.gmra.mxu0 %v2119
        %v2177 = vpop.f32.mrf.mxu0
        %v2178 = vadd.f32 %v2101, %v2177
        %v2179 = vpop.f32.mrf.mxu0
        %v2180 = vadd.f32 %v2101, %v2179
        %2181 = vmatmul.bf16.gmra.mxu0 %v2122
        %v2182 = vpop.f32.mrf.mxu0
        %v2183 = vadd.f32 %v2101, %v2182
        %v2184 = vpop.f32.mrf.mxu0
        %v2185 = vadd.f32 %v2101, %v2184
        %2186 = vmatmul.bf16.gmra.mxu0 %v2125
        %v2187 = vpop.f32.mrf.mxu0
        %v2188 = vadd.f32 %v2101, %v2187
        %v2189 = vpop.f32.mrf.mxu0
        %v2190 = vadd.f32 %v2101, %v2189
        %2191 = vmatmul.bf16.gmra.mxu0 %v2128
        %v2192 = vpop.f32.mrf.mxu0
        %v2193 = vadd.f32 %v2101, %v2192
        %v2194 = vpop.f32.mrf.mxu0
        %v2195 = vadd.f32 %v2101, %v2194
        %2196 = vmatmul.bf16.gmra.mxu0 %v2131
        %v2197 = vpop.f32.mrf.mxu0
        %v2198 = vadd.f32 %v2101, %v2197
        %v2199 = vpop.f32.mrf.mxu0
        %v2200 = vadd.f32 %v2101, %v2199
        %2201 = vmatmul.bf16.gmra.mxu0 %v2134
        %v2202 = vpop.f32.mrf.mxu0
        %v2203 = vadd.f32 %v2101, %v2202
        %v2204 = vpop.f32.mrf.mxu0
        %v2205 = vadd.f32 %v2101, %v2204
        %2206 = vmatmul.bf16.gmra.mxu0 %v2137
        %v2207 = vpop.f32.mrf.mxu0
        %v2208 = vadd.f32 %v2101, %v2207
        %v2209 = vpop.f32.mrf.mxu0
        %v2210 = vadd.f32 %v2101, %v2209
        %2211 = vmatmul.bf16.gmra.mxu0 %v2140
        %v2212 = vpop.f32.mrf.mxu0
        %v2213 = vadd.f32 %v2101, %v2212
        %v2214 = vpop.f32.mrf.mxu0
        %v2215 = vadd.f32 %v2101, %v2214
        %2216 = vmatmul.bf16.gmra.mxu0 %v2143
        %v2217 = vpop.f32.mrf.mxu0
        %v2218 = vadd.f32 %v2101, %v2217
        %v2219 = vpop.f32.mrf.mxu0
        %v2220 = vadd.f32 %v2101, %v2219
        %2221 = vmatmul.bf16.gmra.mxu0 %v2146
        %v2222 = vpop.f32.mrf.mxu0
        %v2223 = vadd.f32 %v2101, %v2222
        %v2224 = vpop.f32.mrf.mxu0
        %v2225 = vadd.f32 %v2101, %v2224
        %2226 = vmatmul.bf16.gmra.mxu0 %v2149
        %v2227 = vpop.f32.mrf.mxu0
        %v2228 = vadd.f32 %v2101, %v2227
        %v2229 = vpop.f32.mrf.mxu0
        %v2230 = vadd.f32 %v2101, %v2229
        %2231 = vmatmul.bf16.gmra.mxu0 %v2152
        %v2232 = vpop.f32.mrf.mxu0
        %v2233 = vadd.f32 %v2101, %v2232
        %v2234 = vpop.f32.mrf.mxu0
        %v2235 = vadd.f32 %v2101, %v2234
        %2236 = vmatmul.bf16.gmra.mxu0 %v2155
        %v2237 = vpop.f32.mrf.mxu0
        %v2238 = vadd.f32 %v2101, %v2237
        %v2239 = vpop.f32.mrf.mxu0
        %v2240 = vadd.f32 %v2101, %v2239
        %2241 = vmatmul.bf16.gmra.mxu0 %v2158
        %v2242 = vpop.f32.mrf.mxu0
        %v2243 = vadd.f32 %v2101, %v2242
        %v2244 = vpop.f32.mrf.mxu0
        %v2245 = vadd.f32 %v2101, %v2244
        %2246 = vmatmul.bf16.gmra.mxu0 %v2161
        %v2247 = vpop.f32.mrf.mxu0
        %v2248 = vadd.f32 %v2101, %v2247
        %v2249 = vpop.f32.mrf.mxu0
        %v2250 = vadd.f32 %v2101, %v2249
        %2251 = vdwg.mxu0
        %v2252 = vmul.f32 %v2173, 0.5
        %v2253 = vmul.f32 %v2175, 0.5
        %v2254 = vmul.f32 %v2178, 0.5
        %v2255 = vmul.f32 %v2180, 0.5
        %v2256 = vmul.f32 %v2183, 0.5
        %v2257 = vmul.f32 %v2185, 0.5
        %v2258 = vmul.f32 %v2188, 0.5
        %v2259 = vmul.f32 %v2190, 0.5
        %v2260 = vmul.f32 %v2193, 0.5
        %v2261 = vmul.f32 %v2195, 0.5
        %v2262 = vmul.f32 %v2198, 0.5
        %v2263 = vmul.f32 %v2200, 0.5
        %v2264 = vmul.f32 %v2203, 0.5
        %v2265 = vmul.f32 %v2205, 0.5
        %v2266 = vmul.f32 %v2208, 0.5
        %v2267 = vmul.f32 %v2210, 0.5
        %v2268 = vmul.f32 %v2213, 0.5
        %v2269 = vmul.f32 %v2215, 0.5
        %v2270 = vmul.f32 %v2218, 0.5
        %v2271 = vmul.f32 %v2220, 0.5
        %v2272 = vmul.f32 %v2223, 0.5
        %v2273 = vmul.f32 %v2225, 0.5
        %v2274 = vmul.f32 %v2228, 0.5
        %v2275 = vmul.f32 %v2230, 0.5
        %v2276 = vmul.f32 %v2233, 0.5
        %v2277 = vmul.f32 %v2235, 0.5
        %v2278 = vmul.f32 %v2238, 0.5
        %v2279 = vmul.f32 %v2240, 0.5
        %v2280 = vmul.f32 %v2243, 0.5
        %v2281 = vmul.f32 %v2245, 0.5
        %v2282 = vmul.f32 %v2248, 0.5
        %v2283 = vmul.f32 %v2250, 0.5
        %v2284 = vmul.f32 %v2173, 0.70710677
        %v2285 = vmul.f32 %v2175, 0.70710677
        %v2286 = vmul.f32 %v2178, 0.70710677
        %v2287 = vmul.f32 %v2180, 0.70710677
        %v2288 = vmul.f32 %v2183, 0.70710677
        %v2289 = vmul.f32 %v2185, 0.70710677
        %v2290 = vmul.f32 %v2188, 0.70710677
        %v2291 = vmul.f32 %v2190, 0.70710677
        %v2292 = vmul.f32 %v2193, 0.70710677
        %v2293 = vmul.f32 %v2195, 0.70710677
        %v2294 = vmul.f32 %v2198, 0.70710677
        %v2295 = vmul.f32 %v2200, 0.70710677
        %v2296 = vmul.f32 %v2203, 0.70710677
        %v2297 = vmul.f32 %v2205, 0.70710677
        %v2298 = vmul.f32 %v2208, 0.70710677
        %v2299 = vmul.f32 %v2210, 0.70710677
        %v2300 = vmul.f32 %v2213, 0.70710677
        %v2301 = vmul.f32 %v2215, 0.70710677
        %v2302 = vmul.f32 %v2218, 0.70710677
        %v2303 = vmul.f32 %v2220, 0.70710677
        %v2304 = vmul.f32 %v2223, 0.70710677
        %v2305 = vmul.f32 %v2225, 0.70710677
        %v2306 = vmul.f32 %v2228, 0.70710677
        %v2307 = vmul.f32 %v2230, 0.70710677
        %v2308 = vmul.f32 %v2233, 0.70710677
        %v2309 = vmul.f32 %v2235, 0.70710677
        %v2310 = vmul.f32 %v2238, 0.70710677
        %v2311 = vmul.f32 %v2240, 0.70710677
        %v2312 = vmul.f32 %v2243, 0.70710677
        %v2313 = vmul.f32 %v2245, 0.70710677
        %v2314 = vmul.f32 %v2248, 0.70710677
        %v2315 = vmul.f32 %v2250, 0.70710677
        %v2316 = vmul.f32 %v2284, %v2284
        %v2317 = vmin.f32 16.0, %v2316
        %v2318 = vmul.f32 %v2317, 2.1237322e-06
        %v2319 = vadd.f32 %v2318, 0.00028619796
        %v2320 = vmul.f32 %v2317, %v2319
        %v2321 = vadd.f32 %v2320, 0.0036580483
        %v2322 = vmul.f32 %v2317, %v2321
        %v2323 = vadd.f32 %v2322, 0.05243302
        %v2324 = vmul.f32 %v2317, %v2323
        %v2325 = vadd.f32 %v2324, 0.18741608
        %v2326 = vmul.f32 %v2317, %v2325
        %v2327 = vadd.f32 %v2326, 1.1283791
        %v2328 = vmul.f32 %v2284, %v2327
        %v2329 = vmul.f32 %v2317, 3.8918573e-05
        %v2330 = vadd.f32 %v2329, 0.001143296
        %v2331 = vmul.f32 %v2317, %v2330
        %v2332 = vadd.f32 %v2331, 0.014752088
        %v2333 = vmul.f32 %v2317, %v2332
        %v2334 = vadd.f32 %v2333, 0.112945676
        %v2335 = vmul.f32 %v2317, %v2334
        %v2336 = vadd.f32 %v2335, 0.4994258
        %v2337 = vmul.f32 %v2317, %v2336
        %v2338 = vadd.f32 %v2337, 1.0
        %v2339 = vrcp.pop %v2338
        %v2340 = vmul.f32 %v2338, %v2339
        %v2341 = vsub.f32 1.0, %v2340
        %v2342 = vmul.f32 %v2339, %v2341
        %v2343 = vadd.f32 %v2339, %v2342
        %vm2344 = vweird.f32 %v2338
        %vm2345 = vweird.f32 %v2339
        %vm2346 = vmor %vm2344, %vm2345
        %v2347 = vsel %vm2346, %v2339, %v2343
        %v2348 = vand.u32 2147483647, %v2338
        %vm2349 = vcmp.eq.f32.partialorder %v2348, 8.507059e+37
        %v2350 = vand.u32 %v2338, 2147483648
        %v2351 = vor.u32 1.1754944e-38, %v2350
        %v2352 = vsel %vm2349, %v2351, %v2347
        %v2353 = vmul.f32 %v2328, %v2352
        %v2354 = vmin.f32 %v2353, 1.0
        %v2355 = vmax.f32 %v2354, -1.0
        %v2356 = vmul.f32 %v2285, %v2285
        %v2357 = vmin.f32 16.0, %v2356
        %v2358 = vmul.f32 %v2357, 2.1237322e-06
        %v2359 = vadd.f32 %v2358, 0.00028619796
        %v2360 = vmul.f32 %v2357, %v2359
        %v2361 = vadd.f32 %v2360, 0.0036580483
        %v2362 = vmul.f32 %v2357, %v2361
        %v2363 = vadd.f32 %v2362, 0.05243302
        %v2364 = vmul.f32 %v2357, %v2363
        %v2365 = vadd.f32 %v2364, 0.18741608
        %v2366 = vmul.f32 %v2357, %v2365
        %v2367 = vadd.f32 %v2366, 1.1283791
        %v2368 = vmul.f32 %v2285, %v2367
        %v2369 = vmul.f32 %v2357, 3.8918573e-05
        %v2370 = vadd.f32 %v2369, 0.001143296
        %v2371 = vmul.f32 %v2357, %v2370
        %v2372 = vadd.f32 %v2371, 0.014752088
        %v2373 = vmul.f32 %v2357, %v2372
        %v2374 = vadd.f32 %v2373, 0.112945676
        %v2375 = vmul.f32 %v2357, %v2374
        %v2376 = vadd.f32 %v2375, 0.4994258
        %v2377 = vmul.f32 %v2357, %v2376
        %v2378 = vadd.f32 %v2377, 1.0
        %v2379 = vrcp.pop %v2378
        %v2380 = vmul.f32 %v2378, %v2379
        %v2381 = vsub.f32 1.0, %v2380
        %v2382 = vmul.f32 %v2379, %v2381
        %v2383 = vadd.f32 %v2379, %v2382
        %vm2384 = vweird.f32 %v2378
        %vm2385 = vweird.f32 %v2379
        %vm2386 = vmor %vm2384, %vm2385
        %v2387 = vsel %vm2386, %v2379, %v2383
        %v2388 = vand.u32 2147483647, %v2378
        %vm2389 = vcmp.eq.f32.partialorder %v2388, 8.507059e+37
        %v2390 = vand.u32 %v2378, 2147483648
        %v2391 = vor.u32 1.1754944e-38, %v2390
        %v2392 = vsel %vm2389, %v2391, %v2387
        %v2393 = vmul.f32 %v2368, %v2392
        %v2394 = vmin.f32 %v2393, 1.0
        %v2395 = vmax.f32 %v2394, -1.0
        %v2396 = vmul.f32 %v2286, %v2286
        %v2397 = vmin.f32 16.0, %v2396
        %v2398 = vmul.f32 %v2397, 2.1237322e-06
        %v2399 = vadd.f32 %v2398, 0.00028619796
        %v2400 = vmul.f32 %v2397, %v2399
        %v2401 = vadd.f32 %v2400, 0.0036580483
        %v2402 = vmul.f32 %v2397, %v2401
        %v2403 = vadd.f32 %v2402, 0.05243302
        %v2404 = vmul.f32 %v2397, %v2403
        %v2405 = vadd.f32 %v2404, 0.18741608
        %v2406 = vmul.f32 %v2397, %v2405
        %v2407 = vadd.f32 %v2406, 1.1283791
        %v2408 = vmul.f32 %v2286, %v2407
        %v2409 = vmul.f32 %v2397, 3.8918573e-05
        %v2410 = vadd.f32 %v2409, 0.001143296
        %v2411 = vmul.f32 %v2397, %v2410
        %v2412 = vadd.f32 %v2411, 0.014752088
        %v2413 = vmul.f32 %v2397, %v2412
        %v2414 = vadd.f32 %v2413, 0.112945676
        %v2415 = vmul.f32 %v2397, %v2414
        %v2416 = vadd.f32 %v2415, 0.4994258
        %v2417 = vmul.f32 %v2397, %v2416
        %v2418 = vadd.f32 %v2417, 1.0
        %v2419 = vrcp.pop %v2418
        %v2420 = vmul.f32 %v2418, %v2419
        %v2421 = vsub.f32 1.0, %v2420
        %v2422 = vmul.f32 %v2419, %v2421
        %v2423 = vadd.f32 %v2419, %v2422
        %vm2424 = vweird.f32 %v2418
        %vm2425 = vweird.f32 %v2419
        %vm2426 = vmor %vm2424, %vm2425
        %v2427 = vsel %vm2426, %v2419, %v2423
        %v2428 = vand.u32 2147483647, %v2418
        %vm2429 = vcmp.eq.f32.partialorder %v2428, 8.507059e+37
        %v2430 = vand.u32 %v2418, 2147483648
        %v2431 = vor.u32 1.1754944e-38, %v2430
        %v2432 = vsel %vm2429, %v2431, %v2427
        %v2433 = vmul.f32 %v2408, %v2432
        %v2434 = vmin.f32 %v2433, 1.0
        %v2435 = vmax.f32 %v2434, -1.0
        %v2436 = vmul.f32 %v2287, %v2287
        %v2437 = vmin.f32 16.0, %v2436
        %v2438 = vmul.f32 %v2437, 2.1237322e-06
        %v2439 = vadd.f32 %v2438, 0.00028619796
        %v2440 = vmul.f32 %v2437, %v2439
        %v2441 = vadd.f32 %v2440, 0.0036580483
        %v2442 = vmul.f32 %v2437, %v2441
        %v2443 = vadd.f32 %v2442, 0.05243302
        %v2444 = vmul.f32 %v2437, %v2443
        %v2445 = vadd.f32 %v2444, 0.18741608
        %v2446 = vmul.f32 %v2437, %v2445
        %v2447 = vadd.f32 %v2446, 1.1283791
        %v2448 = vmul.f32 %v2287, %v2447
        %v2449 = vmul.f32 %v2437, 3.8918573e-05
        %v2450 = vadd.f32 %v2449, 0.001143296
        %v2451 = vmul.f32 %v2437, %v2450
        %v2452 = vadd.f32 %v2451, 0.014752088
        %v2453 = vmul.f32 %v2437, %v2452
        %v2454 = vadd.f32 %v2453, 0.112945676
        %v2455 = vmul.f32 %v2437, %v2454
        %v2456 = vadd.f32 %v2455, 0.4994258
        %v2457 = vmul.f32 %v2437, %v2456
        %v2458 = vadd.f32 %v2457, 1.0
        %v2459 = vrcp.pop %v2458
        %v2460 = vmul.f32 %v2458, %v2459
        %v2461 = vsub.f32 1.0, %v2460
        %v2462 = vmul.f32 %v2459, %v2461
        %v2463 = vadd.f32 %v2459, %v2462
        %vm2464 = vweird.f32 %v2458
        %vm2465 = vweird.f32 %v2459
        %vm2466 = vmor %vm2464, %vm2465
        %v2467 = vsel %vm2466, %v2459, %v2463
        %v2468 = vand.u32 2147483647, %v2458
        %vm2469 = vcmp.eq.f32.partialorder %v2468, 8.507059e+37
        %v2470 = vand.u32 %v2458, 2147483648
        %v2471 = vor.u32 1.1754944e-38, %v2470
        %v2472 = vsel %vm2469, %v2471, %v2467
        %v2473 = vmul.f32 %v2448, %v2472
        %v2474 = vmin.f32 %v2473, 1.0
        %v2475 = vmax.f32 %v2474, -1.0
        %v2476 = vmul.f32 %v2288, %v2288
        %v2477 = vmin.f32 16.0, %v2476
        %v2478 = vmul.f32 %v2477, 2.1237322e-06
        %v2479 = vadd.f32 %v2478, 0.00028619796
        %v2480 = vmul.f32 %v2477, %v2479
        %v2481 = vadd.f32 %v2480, 0.0036580483
        %v2482 = vmul.f32 %v2477, %v2481
        %v2483 = vadd.f32 %v2482, 0.05243302
        %v2484 = vmul.f32 %v2477, %v2483
        %v2485 = vadd.f32 %v2484, 0.18741608
        %v2486 = vmul.f32 %v2477, %v2485
        %v2487 = vadd.f32 %v2486, 1.1283791
        %v2488 = vmul.f32 %v2288, %v2487
        %v2489 = vmul.f32 %v2477, 3.8918573e-05
        %v2490 = vadd.f32 %v2489, 0.001143296
        %v2491 = vmul.f32 %v2477, %v2490
        %v2492 = vadd.f32 %v2491, 0.014752088
        %v2493 = vmul.f32 %v2477, %v2492
        %v2494 = vadd.f32 %v2493, 0.112945676
        %v2495 = vmul.f32 %v2477, %v2494
        %v2496 = vadd.f32 %v2495, 0.4994258
        %v2497 = vmul.f32 %v2477, %v2496
        %v2498 = vadd.f32 %v2497, 1.0
        %v2499 = vrcp.pop %v2498
        %v2500 = vmul.f32 %v2498, %v2499
        %v2501 = vsub.f32 1.0, %v2500
        %v2502 = vmul.f32 %v2499, %v2501
        %v2503 = vadd.f32 %v2499, %v2502
        %vm2504 = vweird.f32 %v2498
        %vm2505 = vweird.f32 %v2499
        %vm2506 = vmor %vm2504, %vm2505
        %v2507 = vsel %vm2506, %v2499, %v2503
        %v2508 = vand.u32 2147483647, %v2498
        %vm2509 = vcmp.eq.f32.partialorder %v2508, 8.507059e+37
        %v2510 = vand.u32 %v2498, 2147483648
        %v2511 = vor.u32 1.1754944e-38, %v2510
        %v2512 = vsel %vm2509, %v2511, %v2507
        %v2513 = vmul.f32 %v2488, %v2512
        %v2514 = vmin.f32 %v2513, 1.0
        %v2515 = vmax.f32 %v2514, -1.0
        %v2516 = vmul.f32 %v2289, %v2289
        %v2517 = vmin.f32 16.0, %v2516
        %v2518 = vmul.f32 %v2517, 2.1237322e-06
        %v2519 = vadd.f32 %v2518, 0.00028619796
        %v2520 = vmul.f32 %v2517, %v2519
        %v2521 = vadd.f32 %v2520, 0.0036580483
        %v2522 = vmul.f32 %v2517, %v2521
        %v2523 = vadd.f32 %v2522, 0.05243302
        %v2524 = vmul.f32 %v2517, %v2523
        %v2525 = vadd.f32 %v2524, 0.18741608
        %v2526 = vmul.f32 %v2517, %v2525
        %v2527 = vadd.f32 %v2526, 1.1283791
        %v2528 = vmul.f32 %v2289, %v2527
        %v2529 = vmul.f32 %v2517, 3.8918573e-05
        %v2530 = vadd.f32 %v2529, 0.001143296
        %v2531 = vmul.f32 %v2517, %v2530
        %v2532 = vadd.f32 %v2531, 0.014752088
        %v2533 = vmul.f32 %v2517, %v2532
        %v2534 = vadd.f32 %v2533, 0.112945676
        %v2535 = vmul.f32 %v2517, %v2534
        %v2536 = vadd.f32 %v2535, 0.4994258
        %v2537 = vmul.f32 %v2517, %v2536
        %v2538 = vadd.f32 %v2537, 1.0
        %v2539 = vrcp.pop %v2538
        %v2540 = vmul.f32 %v2538, %v2539
        %v2541 = vsub.f32 1.0, %v2540
        %v2542 = vmul.f32 %v2539, %v2541
        %v2543 = vadd.f32 %v2539, %v2542
        %vm2544 = vweird.f32 %v2538
        %vm2545 = vweird.f32 %v2539
        %vm2546 = vmor %vm2544, %vm2545
        %v2547 = vsel %vm2546, %v2539, %v2543
        %v2548 = vand.u32 2147483647, %v2538
        %vm2549 = vcmp.eq.f32.partialorder %v2548, 8.507059e+37
        %v2550 = vand.u32 %v2538, 2147483648
        %v2551 = vor.u32 1.1754944e-38, %v2550
        %v2552 = vsel %vm2549, %v2551, %v2547
        %v2553 = vmul.f32 %v2528, %v2552
        %v2554 = vmin.f32 %v2553, 1.0
        %v2555 = vmax.f32 %v2554, -1.0
        %v2556 = vmul.f32 %v2290, %v2290
        %v2557 = vmin.f32 16.0, %v2556
        %v2558 = vmul.f32 %v2557, 2.1237322e-06
        %v2559 = vadd.f32 %v2558, 0.00028619796
        %v2560 = vmul.f32 %v2557, %v2559
        %v2561 = vadd.f32 %v2560, 0.0036580483
        %v2562 = vmul.f32 %v2557, %v2561
        %v2563 = vadd.f32 %v2562, 0.05243302
        %v2564 = vmul.f32 %v2557, %v2563
        %v2565 = vadd.f32 %v2564, 0.18741608
        %v2566 = vmul.f32 %v2557, %v2565
        %v2567 = vadd.f32 %v2566, 1.1283791
        %v2568 = vmul.f32 %v2290, %v2567
        %v2569 = vmul.f32 %v2557, 3.8918573e-05
        %v2570 = vadd.f32 %v2569, 0.001143296
        %v2571 = vmul.f32 %v2557, %v2570
        %v2572 = vadd.f32 %v2571, 0.014752088
        %v2573 = vmul.f32 %v2557, %v2572
        %v2574 = vadd.f32 %v2573, 0.112945676
        %v2575 = vmul.f32 %v2557, %v2574
        %v2576 = vadd.f32 %v2575, 0.4994258
        %v2577 = vmul.f32 %v2557, %v2576
        %v2578 = vadd.f32 %v2577, 1.0
        %v2579 = vrcp.pop %v2578
        %v2580 = vmul.f32 %v2578, %v2579
        %v2581 = vsub.f32 1.0, %v2580
        %v2582 = vmul.f32 %v2579, %v2581
        %v2583 = vadd.f32 %v2579, %v2582
        %vm2584 = vweird.f32 %v2578
        %vm2585 = vweird.f32 %v2579
        %vm2586 = vmor %vm2584, %vm2585
        %v2587 = vsel %vm2586, %v2579, %v2583
        %v2588 = vand.u32 2147483647, %v2578
        %vm2589 = vcmp.eq.f32.partialorder %v2588, 8.507059e+37
        %v2590 = vand.u32 %v2578, 2147483648
        %v2591 = vor.u32 1.1754944e-38, %v2590
        %v2592 = vsel %vm2589, %v2591, %v2587
        %v2593 = vmul.f32 %v2568, %v2592
        %v2594 = vmin.f32 %v2593, 1.0
        %v2595 = vmax.f32 %v2594, -1.0
        %v2596 = vmul.f32 %v2291, %v2291
        %v2597 = vmin.f32 16.0, %v2596
        %v2598 = vmul.f32 %v2597, 2.1237322e-06
        %v2599 = vadd.f32 %v2598, 0.00028619796
        %v2600 = vmul.f32 %v2597, %v2599
        %v2601 = vadd.f32 %v2600, 0.0036580483
        %v2602 = vmul.f32 %v2597, %v2601
        %v2603 = vadd.f32 %v2602, 0.05243302
        %v2604 = vmul.f32 %v2597, %v2603
        %v2605 = vadd.f32 %v2604, 0.18741608
        %v2606 = vmul.f32 %v2597, %v2605
        %v2607 = vadd.f32 %v2606, 1.1283791
        %v2608 = vmul.f32 %v2291, %v2607
        %v2609 = vmul.f32 %v2597, 3.8918573e-05
        %v2610 = vadd.f32 %v2609, 0.001143296
        %v2611 = vmul.f32 %v2597, %v2610
        %v2612 = vadd.f32 %v2611, 0.014752088
        %v2613 = vmul.f32 %v2597, %v2612
        %v2614 = vadd.f32 %v2613, 0.112945676
        %v2615 = vmul.f32 %v2597, %v2614
        %v2616 = vadd.f32 %v2615, 0.4994258
        %v2617 = vmul.f32 %v2597, %v2616
        %v2618 = vadd.f32 %v2617, 1.0
        %v2619 = vrcp.pop %v2618
        %v2620 = vmul.f32 %v2618, %v2619
        %v2621 = vsub.f32 1.0, %v2620
        %v2622 = vmul.f32 %v2619, %v2621
        %v2623 = vadd.f32 %v2619, %v2622
        %vm2624 = vweird.f32 %v2618
        %vm2625 = vweird.f32 %v2619
        %vm2626 = vmor %vm2624, %vm2625
        %v2627 = vsel %vm2626, %v2619, %v2623
        %v2628 = vand.u32 2147483647, %v2618
        %vm2629 = vcmp.eq.f32.partialorder %v2628, 8.507059e+37
        %v2630 = vand.u32 %v2618, 2147483648
        %v2631 = vor.u32 1.1754944e-38, %v2630
        %v2632 = vsel %vm2629, %v2631, %v2627
        %v2633 = vmul.f32 %v2608, %v2632
        %v2634 = vmin.f32 %v2633, 1.0
        %v2635 = vmax.f32 %v2634, -1.0
        %v2636 = vmul.f32 %v2292, %v2292
        %v2637 = vmin.f32 16.0, %v2636
        %v2638 = vmul.f32 %v2637, 2.1237322e-06
        %v2639 = vadd.f32 %v2638, 0.00028619796
        %v2640 = vmul.f32 %v2637, %v2639
        %v2641 = vadd.f32 %v2640, 0.0036580483
        %v2642 = vmul.f32 %v2637, %v2641
        %v2643 = vadd.f32 %v2642, 0.05243302
        %v2644 = vmul.f32 %v2637, %v2643
        %v2645 = vadd.f32 %v2644, 0.18741608
        %v2646 = vmul.f32 %v2637, %v2645
        %v2647 = vadd.f32 %v2646, 1.1283791
        %v2648 = vmul.f32 %v2292, %v2647
        %v2649 = vmul.f32 %v2637, 3.8918573e-05
        %v2650 = vadd.f32 %v2649, 0.001143296
        %v2651 = vmul.f32 %v2637, %v2650
        %v2652 = vadd.f32 %v2651, 0.014752088
        %v2653 = vmul.f32 %v2637, %v2652
        %v2654 = vadd.f32 %v2653, 0.112945676
        %v2655 = vmul.f32 %v2637, %v2654
        %v2656 = vadd.f32 %v2655, 0.4994258
        %v2657 = vmul.f32 %v2637, %v2656
        %v2658 = vadd.f32 %v2657, 1.0
        %v2659 = vrcp.pop %v2658
        %v2660 = vmul.f32 %v2658, %v2659
        %v2661 = vsub.f32 1.0, %v2660
        %v2662 = vmul.f32 %v2659, %v2661
        %v2663 = vadd.f32 %v2659, %v2662
        %vm2664 = vweird.f32 %v2658
        %vm2665 = vweird.f32 %v2659
        %vm2666 = vmor %vm2664, %vm2665
        %v2667 = vsel %vm2666, %v2659, %v2663
        %v2668 = vand.u32 2147483647, %v2658
        %vm2669 = vcmp.eq.f32.partialorder %v2668, 8.507059e+37
        %v2670 = vand.u32 %v2658, 2147483648
        %v2671 = vor.u32 1.1754944e-38, %v2670
        %v2672 = vsel %vm2669, %v2671, %v2667
        %v2673 = vmul.f32 %v2648, %v2672
        %v2674 = vmin.f32 %v2673, 1.0
        %v2675 = vmax.f32 %v2674, -1.0
        %v2676 = vmul.f32 %v2293, %v2293
        %v2677 = vmin.f32 16.0, %v2676
        %v2678 = vmul.f32 %v2677, 2.1237322e-06
        %v2679 = vadd.f32 %v2678, 0.00028619796
        %v2680 = vmul.f32 %v2677, %v2679
        %v2681 = vadd.f32 %v2680, 0.0036580483
        %v2682 = vmul.f32 %v2677, %v2681
        %v2683 = vadd.f32 %v2682, 0.05243302
        %v2684 = vmul.f32 %v2677, %v2683
        %v2685 = vadd.f32 %v2684, 0.18741608
        %v2686 = vmul.f32 %v2677, %v2685
        %v2687 = vadd.f32 %v2686, 1.1283791
        %v2688 = vmul.f32 %v2293, %v2687
        %v2689 = vmul.f32 %v2677, 3.8918573e-05
        %v2690 = vadd.f32 %v2689, 0.001143296
        %v2691 = vmul.f32 %v2677, %v2690
        %v2692 = vadd.f32 %v2691, 0.014752088
        %v2693 = vmul.f32 %v2677, %v2692
        %v2694 = vadd.f32 %v2693, 0.112945676
        %v2695 = vmul.f32 %v2677, %v2694
        %v2696 = vadd.f32 %v2695, 0.4994258
        %v2697 = vmul.f32 %v2677, %v2696
        %v2698 = vadd.f32 %v2697, 1.0
        %v2699 = vrcp.pop %v2698
        %v2700 = vmul.f32 %v2698, %v2699
        %v2701 = vsub.f32 1.0, %v2700
        %v2702 = vmul.f32 %v2699, %v2701
        %v2703 = vadd.f32 %v2699, %v2702
        %vm2704 = vweird.f32 %v2698
        %vm2705 = vweird.f32 %v2699
        %vm2706 = vmor %vm2704, %vm2705
        %v2707 = vsel %vm2706, %v2699, %v2703
        %v2708 = vand.u32 2147483647, %v2698
        %vm2709 = vcmp.eq.f32.partialorder %v2708, 8.507059e+37
        %v2710 = vand.u32 %v2698, 2147483648
        %v2711 = vor.u32 1.1754944e-38, %v2710
        %v2712 = vsel %vm2709, %v2711, %v2707
        %v2713 = vmul.f32 %v2688, %v2712
        %v2714 = vmin.f32 %v2713, 1.0
        %v2715 = vmax.f32 %v2714, -1.0
        %v2716 = vmul.f32 %v2294, %v2294
        %v2717 = vmin.f32 16.0, %v2716
        %v2718 = vmul.f32 %v2717, 2.1237322e-06
        %v2719 = vadd.f32 %v2718, 0.00028619796
        %v2720 = vmul.f32 %v2717, %v2719
        %v2721 = vadd.f32 %v2720, 0.0036580483
        %v2722 = vmul.f32 %v2717, %v2721
        %v2723 = vadd.f32 %v2722, 0.05243302
        %v2724 = vmul.f32 %v2717, %v2723
        %v2725 = vadd.f32 %v2724, 0.18741608
        %v2726 = vmul.f32 %v2717, %v2725
        %v2727 = vadd.f32 %v2726, 1.1283791
        %v2728 = vmul.f32 %v2294, %v2727
        %v2729 = vmul.f32 %v2717, 3.8918573e-05
        %v2730 = vadd.f32 %v2729, 0.001143296
        %v2731 = vmul.f32 %v2717, %v2730
        %v2732 = vadd.f32 %v2731, 0.014752088
        %v2733 = vmul.f32 %v2717, %v2732
        %v2734 = vadd.f32 %v2733, 0.112945676
        %v2735 = vmul.f32 %v2717, %v2734
        %v2736 = vadd.f32 %v2735, 0.4994258
        %v2737 = vmul.f32 %v2717, %v2736
        %v2738 = vadd.f32 %v2737, 1.0
        %v2739 = vrcp.pop %v2738
        %v2740 = vmul.f32 %v2738, %v2739
        %v2741 = vsub.f32 1.0, %v2740
        %v2742 = vmul.f32 %v2739, %v2741
        %v2743 = vadd.f32 %v2739, %v2742
        %vm2744 = vweird.f32 %v2738
        %vm2745 = vweird.f32 %v2739
        %vm2746 = vmor %vm2744, %vm2745
        %v2747 = vsel %vm2746, %v2739, %v2743
        %v2748 = vand.u32 2147483647, %v2738
        %vm2749 = vcmp.eq.f32.partialorder %v2748, 8.507059e+37
        %v2750 = vand.u32 %v2738, 2147483648
        %v2751 = vor.u32 1.1754944e-38, %v2750
        %v2752 = vsel %vm2749, %v2751, %v2747
        %v2753 = vmul.f32 %v2728, %v2752
        %v2754 = vmin.f32 %v2753, 1.0
        %v2755 = vmax.f32 %v2754, -1.0
        %v2756 = vmul.f32 %v2295, %v2295
        %v2757 = vmin.f32 16.0, %v2756
        %v2758 = vmul.f32 %v2757, 2.1237322e-06
        %v2759 = vadd.f32 %v2758, 0.00028619796
        %v2760 = vmul.f32 %v2757, %v2759
        %v2761 = vadd.f32 %v2760, 0.0036580483
        %v2762 = vmul.f32 %v2757, %v2761
        %v2763 = vadd.f32 %v2762, 0.05243302
        %v2764 = vmul.f32 %v2757, %v2763
        %v2765 = vadd.f32 %v2764, 0.18741608
        %v2766 = vmul.f32 %v2757, %v2765
        %v2767 = vadd.f32 %v2766, 1.1283791
        %v2768 = vmul.f32 %v2295, %v2767
        %v2769 = vmul.f32 %v2757, 3.8918573e-05
        %v2770 = vadd.f32 %v2769, 0.001143296
        %v2771 = vmul.f32 %v2757, %v2770
        %v2772 = vadd.f32 %v2771, 0.014752088
        %v2773 = vmul.f32 %v2757, %v2772
        %v2774 = vadd.f32 %v2773, 0.112945676
        %v2775 = vmul.f32 %v2757, %v2774
        %v2776 = vadd.f32 %v2775, 0.4994258
        %v2777 = vmul.f32 %v2757, %v2776
        %v2778 = vadd.f32 %v2777, 1.0
        %v2779 = vrcp.pop %v2778
        %v2780 = vmul.f32 %v2778, %v2779
        %v2781 = vsub.f32 1.0, %v2780
        %v2782 = vmul.f32 %v2779, %v2781
        %v2783 = vadd.f32 %v2779, %v2782
        %vm2784 = vweird.f32 %v2778
        %vm2785 = vweird.f32 %v2779
        %vm2786 = vmor %vm2784, %vm2785
        %v2787 = vsel %vm2786, %v2779, %v2783
        %v2788 = vand.u32 2147483647, %v2778
        %vm2789 = vcmp.eq.f32.partialorder %v2788, 8.507059e+37
        %v2790 = vand.u32 %v2778, 2147483648
        %v2791 = vor.u32 1.1754944e-38, %v2790
        %v2792 = vsel %vm2789, %v2791, %v2787
        %v2793 = vmul.f32 %v2768, %v2792
        %v2794 = vmin.f32 %v2793, 1.0
        %v2795 = vmax.f32 %v2794, -1.0
        %v2796 = vmul.f32 %v2296, %v2296
        %v2797 = vmin.f32 16.0, %v2796
        %v2798 = vmul.f32 %v2797, 2.1237322e-06
        %v2799 = vadd.f32 %v2798, 0.00028619796
        %v2800 = vmul.f32 %v2797, %v2799
        %v2801 = vadd.f32 %v2800, 0.0036580483
        %v2802 = vmul.f32 %v2797, %v2801
        %v2803 = vadd.f32 %v2802, 0.05243302
        %v2804 = vmul.f32 %v2797, %v2803
        %v2805 = vadd.f32 %v2804, 0.18741608
        %v2806 = vmul.f32 %v2797, %v2805
        %v2807 = vadd.f32 %v2806, 1.1283791
        %v2808 = vmul.f32 %v2296, %v2807
        %v2809 = vmul.f32 %v2797, 3.8918573e-05
        %v2810 = vadd.f32 %v2809, 0.001143296
        %v2811 = vmul.f32 %v2797, %v2810
        %v2812 = vadd.f32 %v2811, 0.014752088
        %v2813 = vmul.f32 %v2797, %v2812
        %v2814 = vadd.f32 %v2813, 0.112945676
        %v2815 = vmul.f32 %v2797, %v2814
        %v2816 = vadd.f32 %v2815, 0.4994258
        %v2817 = vmul.f32 %v2797, %v2816
        %v2818 = vadd.f32 %v2817, 1.0
        %v2819 = vrcp.pop %v2818
        %v2820 = vmul.f32 %v2818, %v2819
        %v2821 = vsub.f32 1.0, %v2820
        %v2822 = vmul.f32 %v2819, %v2821
        %v2823 = vadd.f32 %v2819, %v2822
        %vm2824 = vweird.f32 %v2818
        %vm2825 = vweird.f32 %v2819
        %vm2826 = vmor %vm2824, %vm2825
        %v2827 = vsel %vm2826, %v2819, %v2823
        %v2828 = vand.u32 2147483647, %v2818
        %vm2829 = vcmp.eq.f32.partialorder %v2828, 8.507059e+37
        %v2830 = vand.u32 %v2818, 2147483648
        %v2831 = vor.u32 1.1754944e-38, %v2830
        %v2832 = vsel %vm2829, %v2831, %v2827
        %v2833 = vmul.f32 %v2808, %v2832
        %v2834 = vmin.f32 %v2833, 1.0
        %v2835 = vmax.f32 %v2834, -1.0
        %v2836 = vmul.f32 %v2297, %v2297
        %v2837 = vmin.f32 16.0, %v2836
        %v2838 = vmul.f32 %v2837, 2.1237322e-06
        %v2839 = vadd.f32 %v2838, 0.00028619796
        %v2840 = vmul.f32 %v2837, %v2839
        %v2841 = vadd.f32 %v2840, 0.0036580483
        %v2842 = vmul.f32 %v2837, %v2841
        %v2843 = vadd.f32 %v2842, 0.05243302
        %v2844 = vmul.f32 %v2837, %v2843
        %v2845 = vadd.f32 %v2844, 0.18741608
        %v2846 = vmul.f32 %v2837, %v2845
        %v2847 = vadd.f32 %v2846, 1.1283791
        %v2848 = vmul.f32 %v2297, %v2847
        %v2849 = vmul.f32 %v2837, 3.8918573e-05
        %v2850 = vadd.f32 %v2849, 0.001143296
        %v2851 = vmul.f32 %v2837, %v2850
        %v2852 = vadd.f32 %v2851, 0.014752088
        %v2853 = vmul.f32 %v2837, %v2852
        %v2854 = vadd.f32 %v2853, 0.112945676
        %v2855 = vmul.f32 %v2837, %v2854
        %v2856 = vadd.f32 %v2855, 0.4994258
        %v2857 = vmul.f32 %v2837, %v2856
        %v2858 = vadd.f32 %v2857, 1.0
        %v2859 = vrcp.pop %v2858
        %v2860 = vmul.f32 %v2858, %v2859
        %v2861 = vsub.f32 1.0, %v2860
        %v2862 = vmul.f32 %v2859, %v2861
        %v2863 = vadd.f32 %v2859, %v2862
        %vm2864 = vweird.f32 %v2858
        %vm2865 = vweird.f32 %v2859
        %vm2866 = vmor %vm2864, %vm2865
        %v2867 = vsel %vm2866, %v2859, %v2863
        %v2868 = vand.u32 2147483647, %v2858
        %vm2869 = vcmp.eq.f32.partialorder %v2868, 8.507059e+37
        %v2870 = vand.u32 %v2858, 2147483648
        %v2871 = vor.u32 1.1754944e-38, %v2870
        %v2872 = vsel %vm2869, %v2871, %v2867
        %v2873 = vmul.f32 %v2848, %v2872
        %v2874 = vmin.f32 %v2873, 1.0
        %v2875 = vmax.f32 %v2874, -1.0
        %v2876 = vmul.f32 %v2298, %v2298
        %v2877 = vmin.f32 16.0, %v2876
        %v2878 = vmul.f32 %v2877, 2.1237322e-06
        %v2879 = vadd.f32 %v2878, 0.00028619796
        %v2880 = vmul.f32 %v2877, %v2879
        %v2881 = vadd.f32 %v2880, 0.0036580483
        %v2882 = vmul.f32 %v2877, %v2881
        %v2883 = vadd.f32 %v2882, 0.05243302
        %v2884 = vmul.f32 %v2877, %v2883
        %v2885 = vadd.f32 %v2884, 0.18741608
        %v2886 = vmul.f32 %v2877, %v2885
        %v2887 = vadd.f32 %v2886, 1.1283791
        %v2888 = vmul.f32 %v2298, %v2887
        %v2889 = vmul.f32 %v2877, 3.8918573e-05
        %v2890 = vadd.f32 %v2889, 0.001143296
        %v2891 = vmul.f32 %v2877, %v2890
        %v2892 = vadd.f32 %v2891, 0.014752088
        %v2893 = vmul.f32 %v2877, %v2892
        %v2894 = vadd.f32 %v2893, 0.112945676
        %v2895 = vmul.f32 %v2877, %v2894
        %v2896 = vadd.f32 %v2895, 0.4994258
        %v2897 = vmul.f32 %v2877, %v2896
        %v2898 = vadd.f32 %v2897, 1.0
        %v2899 = vrcp.pop %v2898
        %v2900 = vmul.f32 %v2898, %v2899
        %v2901 = vsub.f32 1.0, %v2900
        %v2902 = vmul.f32 %v2899, %v2901
        %v2903 = vadd.f32 %v2899, %v2902
        %vm2904 = vweird.f32 %v2898
        %vm2905 = vweird.f32 %v2899
        %vm2906 = vmor %vm2904, %vm2905
        %v2907 = vsel %vm2906, %v2899, %v2903
        %v2908 = vand.u32 2147483647, %v2898
        %vm2909 = vcmp.eq.f32.partialorder %v2908, 8.507059e+37
        %v2910 = vand.u32 %v2898, 2147483648
        %v2911 = vor.u32 1.1754944e-38, %v2910
        %v2912 = vsel %vm2909, %v2911, %v2907
        %v2913 = vmul.f32 %v2888, %v2912
        %v2914 = vmin.f32 %v2913, 1.0
        %v2915 = vmax.f32 %v2914, -1.0
        %v2916 = vmul.f32 %v2299, %v2299
        %v2917 = vmin.f32 16.0, %v2916
        %v2918 = vmul.f32 %v2917, 2.1237322e-06
        %v2919 = vadd.f32 %v2918, 0.00028619796
        %v2920 = vmul.f32 %v2917, %v2919
        %v2921 = vadd.f32 %v2920, 0.0036580483
        %v2922 = vmul.f32 %v2917, %v2921
        %v2923 = vadd.f32 %v2922, 0.05243302
        %v2924 = vmul.f32 %v2917, %v2923
        %v2925 = vadd.f32 %v2924, 0.18741608
        %v2926 = vmul.f32 %v2917, %v2925
        %v2927 = vadd.f32 %v2926, 1.1283791
        %v2928 = vmul.f32 %v2299, %v2927
        %v2929 = vmul.f32 %v2917, 3.8918573e-05
        %v2930 = vadd.f32 %v2929, 0.001143296
        %v2931 = vmul.f32 %v2917, %v2930
        %v2932 = vadd.f32 %v2931, 0.014752088
        %v2933 = vmul.f32 %v2917, %v2932
        %v2934 = vadd.f32 %v2933, 0.112945676
        %v2935 = vmul.f32 %v2917, %v2934
        %v2936 = vadd.f32 %v2935, 0.4994258
        %v2937 = vmul.f32 %v2917, %v2936
        %v2938 = vadd.f32 %v2937, 1.0
        %v2939 = vrcp.pop %v2938
        %v2940 = vmul.f32 %v2938, %v2939
        %v2941 = vsub.f32 1.0, %v2940
        %v2942 = vmul.f32 %v2939, %v2941
        %v2943 = vadd.f32 %v2939, %v2942
        %vm2944 = vweird.f32 %v2938
        %vm2945 = vweird.f32 %v2939
        %vm2946 = vmor %vm2944, %vm2945
        %v2947 = vsel %vm2946, %v2939, %v2943
        %v2948 = vand.u32 2147483647, %v2938
        %vm2949 = vcmp.eq.f32.partialorder %v2948, 8.507059e+37
        %v2950 = vand.u32 %v2938, 2147483648
        %v2951 = vor.u32 1.1754944e-38, %v2950
        %v2952 = vsel %vm2949, %v2951, %v2947
        %v2953 = vmul.f32 %v2928, %v2952
        %v2954 = vmin.f32 %v2953, 1.0
        %v2955 = vmax.f32 %v2954, -1.0
        %v2956 = vmul.f32 %v2300, %v2300
        %v2957 = vmin.f32 16.0, %v2956
        %v2958 = vmul.f32 %v2957, 2.1237322e-06
        %v2959 = vadd.f32 %v2958, 0.00028619796
        %v2960 = vmul.f32 %v2957, %v2959
        %v2961 = vadd.f32 %v2960, 0.0036580483
        %v2962 = vmul.f32 %v2957, %v2961
        %v2963 = vadd.f32 %v2962, 0.05243302
        %v2964 = vmul.f32 %v2957, %v2963
        %v2965 = vadd.f32 %v2964, 0.18741608
        %v2966 = vmul.f32 %v2957, %v2965
        %v2967 = vadd.f32 %v2966, 1.1283791
        %v2968 = vmul.f32 %v2300, %v2967
        %v2969 = vmul.f32 %v2957, 3.8918573e-05
        %v2970 = vadd.f32 %v2969, 0.001143296
        %v2971 = vmul.f32 %v2957, %v2970
        %v2972 = vadd.f32 %v2971, 0.014752088
        %v2973 = vmul.f32 %v2957, %v2972
        %v2974 = vadd.f32 %v2973, 0.112945676
        %v2975 = vmul.f32 %v2957, %v2974
        %v2976 = vadd.f32 %v2975, 0.4994258
        %v2977 = vmul.f32 %v2957, %v2976
        %v2978 = vadd.f32 %v2977, 1.0
        %v2979 = vrcp.pop %v2978
        %v2980 = vmul.f32 %v2978, %v2979
        %v2981 = vsub.f32 1.0, %v2980
        %v2982 = vmul.f32 %v2979, %v2981
        %v2983 = vadd.f32 %v2979, %v2982
        %vm2984 = vweird.f32 %v2978
        %vm2985 = vweird.f32 %v2979
        %vm2986 = vmor %vm2984, %vm2985
        %v2987 = vsel %vm2986, %v2979, %v2983
        %v2988 = vand.u32 2147483647, %v2978
        %vm2989 = vcmp.eq.f32.partialorder %v2988, 8.507059e+37
        %v2990 = vand.u32 %v2978, 2147483648
        %v2991 = vor.u32 1.1754944e-38, %v2990
        %v2992 = vsel %vm2989, %v2991, %v2987
        %v2993 = vmul.f32 %v2968, %v2992
        %v2994 = vmin.f32 %v2993, 1.0
        %v2995 = vmax.f32 %v2994, -1.0
        %v2996 = vmul.f32 %v2301, %v2301
        %v2997 = vmin.f32 16.0, %v2996
        %v2998 = vmul.f32 %v2997, 2.1237322e-06
        %v2999 = vadd.f32 %v2998, 0.00028619796
        %v3000 = vmul.f32 %v2997, %v2999
        %v3001 = vadd.f32 %v3000, 0.0036580483
        %v3002 = vmul.f32 %v2997, %v3001
        %v3003 = vadd.f32 %v3002, 0.05243302
        %v3004 = vmul.f32 %v2997, %v3003
        %v3005 = vadd.f32 %v3004, 0.18741608
        %v3006 = vmul.f32 %v2997, %v3005
        %v3007 = vadd.f32 %v3006, 1.1283791
        %v3008 = vmul.f32 %v2301, %v3007
        %v3009 = vmul.f32 %v2997, 3.8918573e-05
        %v3010 = vadd.f32 %v3009, 0.001143296
        %v3011 = vmul.f32 %v2997, %v3010
        %v3012 = vadd.f32 %v3011, 0.014752088
        %v3013 = vmul.f32 %v2997, %v3012
        %v3014 = vadd.f32 %v3013, 0.112945676
        %v3015 = vmul.f32 %v2997, %v3014
        %v3016 = vadd.f32 %v3015, 0.4994258
        %v3017 = vmul.f32 %v2997, %v3016
        %v3018 = vadd.f32 %v3017, 1.0
        %v3019 = vrcp.pop %v3018
        %v3020 = vmul.f32 %v3018, %v3019
        %v3021 = vsub.f32 1.0, %v3020
        %v3022 = vmul.f32 %v3019, %v3021
        %v3023 = vadd.f32 %v3019, %v3022
        %vm3024 = vweird.f32 %v3018
        %vm3025 = vweird.f32 %v3019
        %vm3026 = vmor %vm3024, %vm3025
        %v3027 = vsel %vm3026, %v3019, %v3023
        %v3028 = vand.u32 2147483647, %v3018
        %vm3029 = vcmp.eq.f32.partialorder %v3028, 8.507059e+37
        %v3030 = vand.u32 %v3018, 2147483648
        %v3031 = vor.u32 1.1754944e-38, %v3030
        %v3032 = vsel %vm3029, %v3031, %v3027
        %v3033 = vmul.f32 %v3008, %v3032
        %v3034 = vmin.f32 %v3033, 1.0
        %v3035 = vmax.f32 %v3034, -1.0
        %v3036 = vmul.f32 %v2302, %v2302
        %v3037 = vmin.f32 16.0, %v3036
        %v3038 = vmul.f32 %v3037, 2.1237322e-06
        %v3039 = vadd.f32 %v3038, 0.00028619796
        %v3040 = vmul.f32 %v3037, %v3039
        %v3041 = vadd.f32 %v3040, 0.0036580483
        %v3042 = vmul.f32 %v3037, %v3041
        %v3043 = vadd.f32 %v3042, 0.05243302
        %v3044 = vmul.f32 %v3037, %v3043
        %v3045 = vadd.f32 %v3044, 0.18741608
        %v3046 = vmul.f32 %v3037, %v3045
        %v3047 = vadd.f32 %v3046, 1.1283791
        %v3048 = vmul.f32 %v2302, %v3047
        %v3049 = vmul.f32 %v3037, 3.8918573e-05
        %v3050 = vadd.f32 %v3049, 0.001143296
        %v3051 = vmul.f32 %v3037, %v3050
        %v3052 = vadd.f32 %v3051, 0.014752088
        %v3053 = vmul.f32 %v3037, %v3052
        %v3054 = vadd.f32 %v3053, 0.112945676
        %v3055 = vmul.f32 %v3037, %v3054
        %v3056 = vadd.f32 %v3055, 0.4994258
        %v3057 = vmul.f32 %v3037, %v3056
        %v3058 = vadd.f32 %v3057, 1.0
        %v3059 = vrcp.pop %v3058
        %v3060 = vmul.f32 %v3058, %v3059
        %v3061 = vsub.f32 1.0, %v3060
        %v3062 = vmul.f32 %v3059, %v3061
        %v3063 = vadd.f32 %v3059, %v3062
        %vm3064 = vweird.f32 %v3058
        %vm3065 = vweird.f32 %v3059
        %vm3066 = vmor %vm3064, %vm3065
        %v3067 = vsel %vm3066, %v3059, %v3063
        %v3068 = vand.u32 2147483647, %v3058
        %vm3069 = vcmp.eq.f32.partialorder %v3068, 8.507059e+37
        %v3070 = vand.u32 %v3058, 2147483648
        %v3071 = vor.u32 1.1754944e-38, %v3070
        %v3072 = vsel %vm3069, %v3071, %v3067
        %v3073 = vmul.f32 %v3048, %v3072
        %v3074 = vmin.f32 %v3073, 1.0
        %v3075 = vmax.f32 %v3074, -1.0
        %v3076 = vmul.f32 %v2303, %v2303
        %v3077 = vmin.f32 16.0, %v3076
        %v3078 = vmul.f32 %v3077, 2.1237322e-06
        %v3079 = vadd.f32 %v3078, 0.00028619796
        %v3080 = vmul.f32 %v3077, %v3079
        %v3081 = vadd.f32 %v3080, 0.0036580483
        %v3082 = vmul.f32 %v3077, %v3081
        %v3083 = vadd.f32 %v3082, 0.05243302
        %v3084 = vmul.f32 %v3077, %v3083
        %v3085 = vadd.f32 %v3084, 0.18741608
        %v3086 = vmul.f32 %v3077, %v3085
        %v3087 = vadd.f32 %v3086, 1.1283791
        %v3088 = vmul.f32 %v2303, %v3087
        %v3089 = vmul.f32 %v3077, 3.8918573e-05
        %v3090 = vadd.f32 %v3089, 0.001143296
        %v3091 = vmul.f32 %v3077, %v3090
        %v3092 = vadd.f32 %v3091, 0.014752088
        %v3093 = vmul.f32 %v3077, %v3092
        %v3094 = vadd.f32 %v3093, 0.112945676
        %v3095 = vmul.f32 %v3077, %v3094
        %v3096 = vadd.f32 %v3095, 0.4994258
        %v3097 = vmul.f32 %v3077, %v3096
        %v3098 = vadd.f32 %v3097, 1.0
        %v3099 = vrcp.pop %v3098
        %v3100 = vmul.f32 %v3098, %v3099
        %v3101 = vsub.f32 1.0, %v3100
        %v3102 = vmul.f32 %v3099, %v3101
        %v3103 = vadd.f32 %v3099, %v3102
        %vm3104 = vweird.f32 %v3098
        %vm3105 = vweird.f32 %v3099
        %vm3106 = vmor %vm3104, %vm3105
        %v3107 = vsel %vm3106, %v3099, %v3103
        %v3108 = vand.u32 2147483647, %v3098
        %vm3109 = vcmp.eq.f32.partialorder %v3108, 8.507059e+37
        %v3110 = vand.u32 %v3098, 2147483648
        %v3111 = vor.u32 1.1754944e-38, %v3110
        %v3112 = vsel %vm3109, %v3111, %v3107
        %v3113 = vmul.f32 %v3088, %v3112
        %v3114 = vmin.f32 %v3113, 1.0
        %v3115 = vmax.f32 %v3114, -1.0
        %v3116 = vmul.f32 %v2304, %v2304
        %v3117 = vmin.f32 16.0, %v3116
        %v3118 = vmul.f32 %v3117, 2.1237322e-06
        %v3119 = vadd.f32 %v3118, 0.00028619796
        %v3120 = vmul.f32 %v3117, %v3119
        %v3121 = vadd.f32 %v3120, 0.0036580483
        %v3122 = vmul.f32 %v3117, %v3121
        %v3123 = vadd.f32 %v3122, 0.05243302
        %v3124 = vmul.f32 %v3117, %v3123
        %v3125 = vadd.f32 %v3124, 0.18741608
        %v3126 = vmul.f32 %v3117, %v3125
        %v3127 = vadd.f32 %v3126, 1.1283791
        %v3128 = vmul.f32 %v2304, %v3127
        %v3129 = vmul.f32 %v3117, 3.8918573e-05
        %v3130 = vadd.f32 %v3129, 0.001143296
        %v3131 = vmul.f32 %v3117, %v3130
        %v3132 = vadd.f32 %v3131, 0.014752088
        %v3133 = vmul.f32 %v3117, %v3132
        %v3134 = vadd.f32 %v3133, 0.112945676
        %v3135 = vmul.f32 %v3117, %v3134
        %v3136 = vadd.f32 %v3135, 0.4994258
        %v3137 = vmul.f32 %v3117, %v3136
        %v3138 = vadd.f32 %v3137, 1.0
        %v3139 = vrcp.pop %v3138
        %v3140 = vmul.f32 %v3138, %v3139
        %v3141 = vsub.f32 1.0, %v3140
        %v3142 = vmul.f32 %v3139, %v3141
        %v3143 = vadd.f32 %v3139, %v3142
        %vm3144 = vweird.f32 %v3138
        %vm3145 = vweird.f32 %v3139
        %vm3146 = vmor %vm3144, %vm3145
        %v3147 = vsel %vm3146, %v3139, %v3143
        %v3148 = vand.u32 2147483647, %v3138
        %vm3149 = vcmp.eq.f32.partialorder %v3148, 8.507059e+37
        %v3150 = vand.u32 %v3138, 2147483648
        %v3151 = vor.u32 1.1754944e-38, %v3150
        %v3152 = vsel %vm3149, %v3151, %v3147
        %v3153 = vmul.f32 %v3128, %v3152
        %v3154 = vmin.f32 %v3153, 1.0
        %v3155 = vmax.f32 %v3154, -1.0
        %v3156 = vmul.f32 %v2305, %v2305
        %v3157 = vmin.f32 16.0, %v3156
        %v3158 = vmul.f32 %v3157, 2.1237322e-06
        %v3159 = vadd.f32 %v3158, 0.00028619796
        %v3160 = vmul.f32 %v3157, %v3159
        %v3161 = vadd.f32 %v3160, 0.0036580483
        %v3162 = vmul.f32 %v3157, %v3161
        %v3163 = vadd.f32 %v3162, 0.05243302
        %v3164 = vmul.f32 %v3157, %v3163
        %v3165 = vadd.f32 %v3164, 0.18741608
        %v3166 = vmul.f32 %v3157, %v3165
        %v3167 = vadd.f32 %v3166, 1.1283791
        %v3168 = vmul.f32 %v2305, %v3167
        %v3169 = vmul.f32 %v3157, 3.8918573e-05
        %v3170 = vadd.f32 %v3169, 0.001143296
        %v3171 = vmul.f32 %v3157, %v3170
        %v3172 = vadd.f32 %v3171, 0.014752088
        %v3173 = vmul.f32 %v3157, %v3172
        %v3174 = vadd.f32 %v3173, 0.112945676
        %v3175 = vmul.f32 %v3157, %v3174
        %v3176 = vadd.f32 %v3175, 0.4994258
        %v3177 = vmul.f32 %v3157, %v3176
        %v3178 = vadd.f32 %v3177, 1.0
        %v3179 = vrcp.pop %v3178
        %v3180 = vmul.f32 %v3178, %v3179
        %v3181 = vsub.f32 1.0, %v3180
        %v3182 = vmul.f32 %v3179, %v3181
        %v3183 = vadd.f32 %v3179, %v3182
        %vm3184 = vweird.f32 %v3178
        %vm3185 = vweird.f32 %v3179
        %vm3186 = vmor %vm3184, %vm3185
        %v3187 = vsel %vm3186, %v3179, %v3183
        %v3188 = vand.u32 2147483647, %v3178
        %vm3189 = vcmp.eq.f32.partialorder %v3188, 8.507059e+37
        %v3190 = vand.u32 %v3178, 2147483648
        %v3191 = vor.u32 1.1754944e-38, %v3190
        %v3192 = vsel %vm3189, %v3191, %v3187
        %v3193 = vmul.f32 %v3168, %v3192
        %v3194 = vmin.f32 %v3193, 1.0
        %v3195 = vmax.f32 %v3194, -1.0
        %v3196 = vmul.f32 %v2306, %v2306
        %v3197 = vmin.f32 16.0, %v3196
        %v3198 = vmul.f32 %v3197, 2.1237322e-06
        %v3199 = vadd.f32 %v3198, 0.00028619796
        %v3200 = vmul.f32 %v3197, %v3199
        %v3201 = vadd.f32 %v3200, 0.0036580483
        %v3202 = vmul.f32 %v3197, %v3201
        %v3203 = vadd.f32 %v3202, 0.05243302
        %v3204 = vmul.f32 %v3197, %v3203
        %v3205 = vadd.f32 %v3204, 0.18741608
        %v3206 = vmul.f32 %v3197, %v3205
        %v3207 = vadd.f32 %v3206, 1.1283791
        %v3208 = vmul.f32 %v2306, %v3207
        %v3209 = vmul.f32 %v3197, 3.8918573e-05
        %v3210 = vadd.f32 %v3209, 0.001143296
        %v3211 = vmul.f32 %v3197, %v3210
        %v3212 = vadd.f32 %v3211, 0.014752088
        %v3213 = vmul.f32 %v3197, %v3212
        %v3214 = vadd.f32 %v3213, 0.112945676
        %v3215 = vmul.f32 %v3197, %v3214
        %v3216 = vadd.f32 %v3215, 0.4994258
        %v3217 = vmul.f32 %v3197, %v3216
        %v3218 = vadd.f32 %v3217, 1.0
        %v3219 = vrcp.pop %v3218
        %v3220 = vmul.f32 %v3218, %v3219
        %v3221 = vsub.f32 1.0, %v3220
        %v3222 = vmul.f32 %v3219, %v3221
        %v3223 = vadd.f32 %v3219, %v3222
        %vm3224 = vweird.f32 %v3218
        %vm3225 = vweird.f32 %v3219
        %vm3226 = vmor %vm3224, %vm3225
        %v3227 = vsel %vm3226, %v3219, %v3223
        %v3228 = vand.u32 2147483647, %v3218
        %vm3229 = vcmp.eq.f32.partialorder %v3228, 8.507059e+37
        %v3230 = vand.u32 %v3218, 2147483648
        %v3231 = vor.u32 1.1754944e-38, %v3230
        %v3232 = vsel %vm3229, %v3231, %v3227
        %v3233 = vmul.f32 %v3208, %v3232
        %v3234 = vmin.f32 %v3233, 1.0
        %v3235 = vmax.f32 %v3234, -1.0
        %v3236 = vmul.f32 %v2307, %v2307
        %v3237 = vmin.f32 16.0, %v3236
        %v3238 = vmul.f32 %v3237, 2.1237322e-06
        %v3239 = vadd.f32 %v3238, 0.00028619796
        %v3240 = vmul.f32 %v3237, %v3239
        %v3241 = vadd.f32 %v3240, 0.0036580483
        %v3242 = vmul.f32 %v3237, %v3241
        %v3243 = vadd.f32 %v3242, 0.05243302
        %v3244 = vmul.f32 %v3237, %v3243
        %v3245 = vadd.f32 %v3244, 0.18741608
        %v3246 = vmul.f32 %v3237, %v3245
        %v3247 = vadd.f32 %v3246, 1.1283791
        %v3248 = vmul.f32 %v2307, %v3247
        %v3249 = vmul.f32 %v3237, 3.8918573e-05
        %v3250 = vadd.f32 %v3249, 0.001143296
        %v3251 = vmul.f32 %v3237, %v3250
        %v3252 = vadd.f32 %v3251, 0.014752088
        %v3253 = vmul.f32 %v3237, %v3252
        %v3254 = vadd.f32 %v3253, 0.112945676
        %v3255 = vmul.f32 %v3237, %v3254
        %v3256 = vadd.f32 %v3255, 0.4994258
        %v3257 = vmul.f32 %v3237, %v3256
        %v3258 = vadd.f32 %v3257, 1.0
        %v3259 = vrcp.pop %v3258
        %v3260 = vmul.f32 %v3258, %v3259
        %v3261 = vsub.f32 1.0, %v3260
        %v3262 = vmul.f32 %v3259, %v3261
        %v3263 = vadd.f32 %v3259, %v3262
        %vm3264 = vweird.f32 %v3258
        %vm3265 = vweird.f32 %v3259
        %vm3266 = vmor %vm3264, %vm3265
        %v3267 = vsel %vm3266, %v3259, %v3263
        %v3268 = vand.u32 2147483647, %v3258
        %vm3269 = vcmp.eq.f32.partialorder %v3268, 8.507059e+37
        %v3270 = vand.u32 %v3258, 2147483648
        %v3271 = vor.u32 1.1754944e-38, %v3270
        %v3272 = vsel %vm3269, %v3271, %v3267
        %v3273 = vmul.f32 %v3248, %v3272
        %v3274 = vmin.f32 %v3273, 1.0
        %v3275 = vmax.f32 %v3274, -1.0
        %v3276 = vmul.f32 %v2308, %v2308
        %v3277 = vmin.f32 16.0, %v3276
        %v3278 = vmul.f32 %v3277, 2.1237322e-06
        %v3279 = vadd.f32 %v3278, 0.00028619796
        %v3280 = vmul.f32 %v3277, %v3279
        %v3281 = vadd.f32 %v3280, 0.0036580483
        %v3282 = vmul.f32 %v3277, %v3281
        %v3283 = vadd.f32 %v3282, 0.05243302
        %v3284 = vmul.f32 %v3277, %v3283
        %v3285 = vadd.f32 %v3284, 0.18741608
        %v3286 = vmul.f32 %v3277, %v3285
        %v3287 = vadd.f32 %v3286, 1.1283791
        %v3288 = vmul.f32 %v2308, %v3287
        %v3289 = vmul.f32 %v3277, 3.8918573e-05
        %v3290 = vadd.f32 %v3289, 0.001143296
        %v3291 = vmul.f32 %v3277, %v3290
        %v3292 = vadd.f32 %v3291, 0.014752088
        %v3293 = vmul.f32 %v3277, %v3292
        %v3294 = vadd.f32 %v3293, 0.112945676
        %v3295 = vmul.f32 %v3277, %v3294
        %v3296 = vadd.f32 %v3295, 0.4994258
        %v3297 = vmul.f32 %v3277, %v3296
        %v3298 = vadd.f32 %v3297, 1.0
        %v3299 = vrcp.pop %v3298
        %v3300 = vmul.f32 %v3298, %v3299
        %v3301 = vsub.f32 1.0, %v3300
        %v3302 = vmul.f32 %v3299, %v3301
        %v3303 = vadd.f32 %v3299, %v3302
        %vm3304 = vweird.f32 %v3298
        %vm3305 = vweird.f32 %v3299
        %vm3306 = vmor %vm3304, %vm3305
        %v3307 = vsel %vm3306, %v3299, %v3303
        %v3308 = vand.u32 2147483647, %v3298
        %vm3309 = vcmp.eq.f32.partialorder %v3308, 8.507059e+37
        %v3310 = vand.u32 %v3298, 2147483648
        %v3311 = vor.u32 1.1754944e-38, %v3310
        %v3312 = vsel %vm3309, %v3311, %v3307
        %v3313 = vmul.f32 %v3288, %v3312
        %v3314 = vmin.f32 %v3313, 1.0
        %v3315 = vmax.f32 %v3314, -1.0
        %v3316 = vmul.f32 %v2309, %v2309
        %v3317 = vmin.f32 16.0, %v3316
        %v3318 = vmul.f32 %v3317, 2.1237322e-06
        %v3319 = vadd.f32 %v3318, 0.00028619796
        %v3320 = vmul.f32 %v3317, %v3319
        %v3321 = vadd.f32 %v3320, 0.0036580483
        %v3322 = vmul.f32 %v3317, %v3321
        %v3323 = vadd.f32 %v3322, 0.05243302
        %v3324 = vmul.f32 %v3317, %v3323
        %v3325 = vadd.f32 %v3324, 0.18741608
        %v3326 = vmul.f32 %v3317, %v3325
        %v3327 = vadd.f32 %v3326, 1.1283791
        %v3328 = vmul.f32 %v2309, %v3327
        %v3329 = vmul.f32 %v3317, 3.8918573e-05
        %v3330 = vadd.f32 %v3329, 0.001143296
        %v3331 = vmul.f32 %v3317, %v3330
        %v3332 = vadd.f32 %v3331, 0.014752088
        %v3333 = vmul.f32 %v3317, %v3332
        %v3334 = vadd.f32 %v3333, 0.112945676
        %v3335 = vmul.f32 %v3317, %v3334
        %v3336 = vadd.f32 %v3335, 0.4994258
        %v3337 = vmul.f32 %v3317, %v3336
        %v3338 = vadd.f32 %v3337, 1.0
        %v3339 = vrcp.pop %v3338
        %v3340 = vmul.f32 %v3338, %v3339
        %v3341 = vsub.f32 1.0, %v3340
        %v3342 = vmul.f32 %v3339, %v3341
        %v3343 = vadd.f32 %v3339, %v3342
        %vm3344 = vweird.f32 %v3338
        %vm3345 = vweird.f32 %v3339
        %vm3346 = vmor %vm3344, %vm3345
        %v3347 = vsel %vm3346, %v3339, %v3343
        %v3348 = vand.u32 2147483647, %v3338
        %vm3349 = vcmp.eq.f32.partialorder %v3348, 8.507059e+37
        %v3350 = vand.u32 %v3338, 2147483648
        %v3351 = vor.u32 1.1754944e-38, %v3350
        %v3352 = vsel %vm3349, %v3351, %v3347
        %v3353 = vmul.f32 %v3328, %v3352
        %v3354 = vmin.f32 %v3353, 1.0
        %v3355 = vmax.f32 %v3354, -1.0
        %v3356 = vmul.f32 %v2310, %v2310
        %v3357 = vmin.f32 16.0, %v3356
        %v3358 = vmul.f32 %v3357, 2.1237322e-06
        %v3359 = vadd.f32 %v3358, 0.00028619796
        %v3360 = vmul.f32 %v3357, %v3359
        %v3361 = vadd.f32 %v3360, 0.0036580483
        %v3362 = vmul.f32 %v3357, %v3361
        %v3363 = vadd.f32 %v3362, 0.05243302
        %v3364 = vmul.f32 %v3357, %v3363
        %v3365 = vadd.f32 %v3364, 0.18741608
        %v3366 = vmul.f32 %v3357, %v3365
        %v3367 = vadd.f32 %v3366, 1.1283791
        %v3368 = vmul.f32 %v2310, %v3367
        %v3369 = vmul.f32 %v3357, 3.8918573e-05
        %v3370 = vadd.f32 %v3369, 0.001143296
        %v3371 = vmul.f32 %v3357, %v3370
        %v3372 = vadd.f32 %v3371, 0.014752088
        %v3373 = vmul.f32 %v3357, %v3372
        %v3374 = vadd.f32 %v3373, 0.112945676
        %v3375 = vmul.f32 %v3357, %v3374
        %v3376 = vadd.f32 %v3375, 0.4994258
        %v3377 = vmul.f32 %v3357, %v3376
        %v3378 = vadd.f32 %v3377, 1.0
        %v3379 = vrcp.pop %v3378
        %v3380 = vmul.f32 %v3378, %v3379
        %v3381 = vsub.f32 1.0, %v3380
        %v3382 = vmul.f32 %v3379, %v3381
        %v3383 = vadd.f32 %v3379, %v3382
        %vm3384 = vweird.f32 %v3378
        %vm3385 = vweird.f32 %v3379
        %vm3386 = vmor %vm3384, %vm3385
        %v3387 = vsel %vm3386, %v3379, %v3383
        %v3388 = vand.u32 2147483647, %v3378
        %vm3389 = vcmp.eq.f32.partialorder %v3388, 8.507059e+37
        %v3390 = vand.u32 %v3378, 2147483648
        %v3391 = vor.u32 1.1754944e-38, %v3390
        %v3392 = vsel %vm3389, %v3391, %v3387
        %v3393 = vmul.f32 %v3368, %v3392
        %v3394 = vmin.f32 %v3393, 1.0
        %v3395 = vmax.f32 %v3394, -1.0
        %v3396 = vmul.f32 %v2311, %v2311
        %v3397 = vmin.f32 16.0, %v3396
        %v3398 = vmul.f32 %v3397, 2.1237322e-06
        %v3399 = vadd.f32 %v3398, 0.00028619796
        %v3400 = vmul.f32 %v3397, %v3399
        %v3401 = vadd.f32 %v3400, 0.0036580483
        %v3402 = vmul.f32 %v3397, %v3401
        %v3403 = vadd.f32 %v3402, 0.05243302
        %v3404 = vmul.f32 %v3397, %v3403
        %v3405 = vadd.f32 %v3404, 0.18741608
        %v3406 = vmul.f32 %v3397, %v3405
        %v3407 = vadd.f32 %v3406, 1.1283791
        %v3408 = vmul.f32 %v2311, %v3407
        %v3409 = vmul.f32 %v3397, 3.8918573e-05
        %v3410 = vadd.f32 %v3409, 0.001143296
        %v3411 = vmul.f32 %v3397, %v3410
        %v3412 = vadd.f32 %v3411, 0.014752088
        %v3413 = vmul.f32 %v3397, %v3412
        %v3414 = vadd.f32 %v3413, 0.112945676
        %v3415 = vmul.f32 %v3397, %v3414
        %v3416 = vadd.f32 %v3415, 0.4994258
        %v3417 = vmul.f32 %v3397, %v3416
        %v3418 = vadd.f32 %v3417, 1.0
        %v3419 = vrcp.pop %v3418
        %v3420 = vmul.f32 %v3418, %v3419
        %v3421 = vsub.f32 1.0, %v3420
        %v3422 = vmul.f32 %v3419, %v3421
        %v3423 = vadd.f32 %v3419, %v3422
        %vm3424 = vweird.f32 %v3418
        %vm3425 = vweird.f32 %v3419
        %vm3426 = vmor %vm3424, %vm3425
        %v3427 = vsel %vm3426, %v3419, %v3423
        %v3428 = vand.u32 2147483647, %v3418
        %vm3429 = vcmp.eq.f32.partialorder %v3428, 8.507059e+37
        %v3430 = vand.u32 %v3418, 2147483648
        %v3431 = vor.u32 1.1754944e-38, %v3430
        %v3432 = vsel %vm3429, %v3431, %v3427
        %v3433 = vmul.f32 %v3408, %v3432
        %v3434 = vmin.f32 %v3433, 1.0
        %v3435 = vmax.f32 %v3434, -1.0
        %v3436 = vmul.f32 %v2312, %v2312
        %v3437 = vmin.f32 16.0, %v3436
        %v3438 = vmul.f32 %v3437, 2.1237322e-06
        %v3439 = vadd.f32 %v3438, 0.00028619796
        %v3440 = vmul.f32 %v3437, %v3439
        %v3441 = vadd.f32 %v3440, 0.0036580483
        %v3442 = vmul.f32 %v3437, %v3441
        %v3443 = vadd.f32 %v3442, 0.05243302
        %v3444 = vmul.f32 %v3437, %v3443
        %v3445 = vadd.f32 %v3444, 0.18741608
        %v3446 = vmul.f32 %v3437, %v3445
        %v3447 = vadd.f32 %v3446, 1.1283791
        %v3448 = vmul.f32 %v2312, %v3447
        %v3449 = vmul.f32 %v3437, 3.8918573e-05
        %v3450 = vadd.f32 %v3449, 0.001143296
        %v3451 = vmul.f32 %v3437, %v3450
        %v3452 = vadd.f32 %v3451, 0.014752088
        %v3453 = vmul.f32 %v3437, %v3452
        %v3454 = vadd.f32 %v3453, 0.112945676
        %v3455 = vmul.f32 %v3437, %v3454
        %v3456 = vadd.f32 %v3455, 0.4994258
        %v3457 = vmul.f32 %v3437, %v3456
        %v3458 = vadd.f32 %v3457, 1.0
        %v3459 = vrcp.pop %v3458
        %v3460 = vmul.f32 %v3458, %v3459
        %v3461 = vsub.f32 1.0, %v3460
        %v3462 = vmul.f32 %v3459, %v3461
        %v3463 = vadd.f32 %v3459, %v3462
        %vm3464 = vweird.f32 %v3458
        %vm3465 = vweird.f32 %v3459
        %vm3466 = vmor %vm3464, %vm3465
        %v3467 = vsel %vm3466, %v3459, %v3463
        %v3468 = vand.u32 2147483647, %v3458
        %vm3469 = vcmp.eq.f32.partialorder %v3468, 8.507059e+37
        %v3470 = vand.u32 %v3458, 2147483648
        %v3471 = vor.u32 1.1754944e-38, %v3470
        %v3472 = vsel %vm3469, %v3471, %v3467
        %v3473 = vmul.f32 %v3448, %v3472
        %v3474 = vmin.f32 %v3473, 1.0
        %v3475 = vmax.f32 %v3474, -1.0
        %v3476 = vmul.f32 %v2313, %v2313
        %v3477 = vmin.f32 16.0, %v3476
        %v3478 = vmul.f32 %v3477, 2.1237322e-06
        %v3479 = vadd.f32 %v3478, 0.00028619796
        %v3480 = vmul.f32 %v3477, %v3479
        %v3481 = vadd.f32 %v3480, 0.0036580483
        %v3482 = vmul.f32 %v3477, %v3481
        %v3483 = vadd.f32 %v3482, 0.05243302
        %v3484 = vmul.f32 %v3477, %v3483
        %v3485 = vadd.f32 %v3484, 0.18741608
        %v3486 = vmul.f32 %v3477, %v3485
        %v3487 = vadd.f32 %v3486, 1.1283791
        %v3488 = vmul.f32 %v2313, %v3487
        %v3489 = vmul.f32 %v3477, 3.8918573e-05
        %v3490 = vadd.f32 %v3489, 0.001143296
        %v3491 = vmul.f32 %v3477, %v3490
        %v3492 = vadd.f32 %v3491, 0.014752088
        %v3493 = vmul.f32 %v3477, %v3492
        %v3494 = vadd.f32 %v3493, 0.112945676
        %v3495 = vmul.f32 %v3477, %v3494
        %v3496 = vadd.f32 %v3495, 0.4994258
        %v3497 = vmul.f32 %v3477, %v3496
        %v3498 = vadd.f32 %v3497, 1.0
        %v3499 = vrcp.pop %v3498
        %v3500 = vmul.f32 %v3498, %v3499
        %v3501 = vsub.f32 1.0, %v3500
        %v3502 = vmul.f32 %v3499, %v3501
        %v3503 = vadd.f32 %v3499, %v3502
        %vm3504 = vweird.f32 %v3498
        %vm3505 = vweird.f32 %v3499
        %vm3506 = vmor %vm3504, %vm3505
        %v3507 = vsel %vm3506, %v3499, %v3503
        %v3508 = vand.u32 2147483647, %v3498
        %vm3509 = vcmp.eq.f32.partialorder %v3508, 8.507059e+37
        %v3510 = vand.u32 %v3498, 2147483648
        %v3511 = vor.u32 1.1754944e-38, %v3510
        %v3512 = vsel %vm3509, %v3511, %v3507
        %v3513 = vmul.f32 %v3488, %v3512
        %v3514 = vmin.f32 %v3513, 1.0
        %v3515 = vmax.f32 %v3514, -1.0
        %v3516 = vmul.f32 %v2314, %v2314
        %v3517 = vmin.f32 16.0, %v3516
        %v3518 = vmul.f32 %v3517, 2.1237322e-06
        %v3519 = vadd.f32 %v3518, 0.00028619796
        %v3520 = vmul.f32 %v3517, %v3519
        %v3521 = vadd.f32 %v3520, 0.0036580483
        %v3522 = vmul.f32 %v3517, %v3521
        %v3523 = vadd.f32 %v3522, 0.05243302
        %v3524 = vmul.f32 %v3517, %v3523
        %v3525 = vadd.f32 %v3524, 0.18741608
        %v3526 = vmul.f32 %v3517, %v3525
        %v3527 = vadd.f32 %v3526, 1.1283791
        %v3528 = vmul.f32 %v2314, %v3527
        %v3529 = vmul.f32 %v3517, 3.8918573e-05
        %v3530 = vadd.f32 %v3529, 0.001143296
        %v3531 = vmul.f32 %v3517, %v3530
        %v3532 = vadd.f32 %v3531, 0.014752088
        %v3533 = vmul.f32 %v3517, %v3532
        %v3534 = vadd.f32 %v3533, 0.112945676
        %v3535 = vmul.f32 %v3517, %v3534
        %v3536 = vadd.f32 %v3535, 0.4994258
        %v3537 = vmul.f32 %v3517, %v3536
        %v3538 = vadd.f32 %v3537, 1.0
        %v3539 = vrcp.pop %v3538
        %v3540 = vmul.f32 %v3538, %v3539
        %v3541 = vsub.f32 1.0, %v3540
        %v3542 = vmul.f32 %v3539, %v3541
        %v3543 = vadd.f32 %v3539, %v3542
        %vm3544 = vweird.f32 %v3538
        %vm3545 = vweird.f32 %v3539
        %vm3546 = vmor %vm3544, %vm3545
        %v3547 = vsel %vm3546, %v3539, %v3543
        %v3548 = vand.u32 2147483647, %v3538
        %vm3549 = vcmp.eq.f32.partialorder %v3548, 8.507059e+37
        %v3550 = vand.u32 %v3538, 2147483648
        %v3551 = vor.u32 1.1754944e-38, %v3550
        %v3552 = vsel %vm3549, %v3551, %v3547
        %v3553 = vmul.f32 %v3528, %v3552
        %v3554 = vmin.f32 %v3553, 1.0
        %v3555 = vmax.f32 %v3554, -1.0
        %v3556 = vmul.f32 %v2315, %v2315
        %v3557 = vmin.f32 16.0, %v3556
        %v3558 = vmul.f32 %v3557, 2.1237322e-06
        %v3559 = vadd.f32 %v3558, 0.00028619796
        %v3560 = vmul.f32 %v3557, %v3559
        %v3561 = vadd.f32 %v3560, 0.0036580483
        %v3562 = vmul.f32 %v3557, %v3561
        %v3563 = vadd.f32 %v3562, 0.05243302
        %v3564 = vmul.f32 %v3557, %v3563
        %v3565 = vadd.f32 %v3564, 0.18741608
        %v3566 = vmul.f32 %v3557, %v3565
        %v3567 = vadd.f32 %v3566, 1.1283791
        %v3568 = vmul.f32 %v2315, %v3567
        %v3569 = vmul.f32 %v3557, 3.8918573e-05
        %v3570 = vadd.f32 %v3569, 0.001143296
        %v3571 = vmul.f32 %v3557, %v3570
        %v3572 = vadd.f32 %v3571, 0.014752088
        %v3573 = vmul.f32 %v3557, %v3572
        %v3574 = vadd.f32 %v3573, 0.112945676
        %v3575 = vmul.f32 %v3557, %v3574
        %v3576 = vadd.f32 %v3575, 0.4994258
        %v3577 = vmul.f32 %v3557, %v3576
        %v3578 = vadd.f32 %v3577, 1.0
        %v3579 = vrcp.pop %v3578
        %v3580 = vmul.f32 %v3578, %v3579
        %v3581 = vsub.f32 1.0, %v3580
        %v3582 = vmul.f32 %v3579, %v3581
        %v3583 = vadd.f32 %v3579, %v3582
        %vm3584 = vweird.f32 %v3578
        %vm3585 = vweird.f32 %v3579
        %vm3586 = vmor %vm3584, %vm3585
        %v3587 = vsel %vm3586, %v3579, %v3583
        %v3588 = vand.u32 2147483647, %v3578
        %vm3589 = vcmp.eq.f32.partialorder %v3588, 8.507059e+37
        %v3590 = vand.u32 %v3578, 2147483648
        %v3591 = vor.u32 1.1754944e-38, %v3590
        %v3592 = vsel %vm3589, %v3591, %v3587
        %v3593 = vmul.f32 %v3568, %v3592
        %v3594 = vmin.f32 %v3593, 1.0
        %v3595 = vmax.f32 %v3594, -1.0
        %v3596 = vadd.f32 %v2355, 1.0
        %v3597 = vadd.f32 %v2395, 1.0
        %v3598 = vadd.f32 %v2435, 1.0
        %v3599 = vadd.f32 %v2475, 1.0
        %v3600 = vadd.f32 %v2515, 1.0
        %v3601 = vadd.f32 %v2555, 1.0
        %v3602 = vadd.f32 %v2595, 1.0
        %v3603 = vadd.f32 %v2635, 1.0
        %v3604 = vadd.f32 %v2675, 1.0
        %v3605 = vadd.f32 %v2715, 1.0
        %v3606 = vadd.f32 %v2755, 1.0
        %v3607 = vadd.f32 %v2795, 1.0
        %v3608 = vadd.f32 %v2835, 1.0
        %v3609 = vadd.f32 %v2875, 1.0
        %v3610 = vadd.f32 %v2915, 1.0
        %v3611 = vadd.f32 %v2955, 1.0
        %v3612 = vadd.f32 %v2995, 1.0
        %v3613 = vadd.f32 %v3035, 1.0
        %v3614 = vadd.f32 %v3075, 1.0
        %v3615 = vadd.f32 %v3115, 1.0
        %v3616 = vadd.f32 %v3155, 1.0
        %v3617 = vadd.f32 %v3195, 1.0
        %v3618 = vadd.f32 %v3235, 1.0
        %v3619 = vadd.f32 %v3275, 1.0
        %v3620 = vadd.f32 %v3315, 1.0
        %v3621 = vadd.f32 %v3355, 1.0
        %v3622 = vadd.f32 %v3395, 1.0
        %v3623 = vadd.f32 %v3435, 1.0
        %v3624 = vadd.f32 %v3475, 1.0
        %v3625 = vadd.f32 %v3515, 1.0
        %v3626 = vadd.f32 %v3555, 1.0
        %v3627 = vadd.f32 %v3595, 1.0
        %v3628 = vmul.f32 %v2252, %v3596
        %v3629 = vmul.f32 %v2253, %v3597
        %v3630 = vmul.f32 %v2254, %v3598
        %v3631 = vmul.f32 %v2255, %v3599
        %v3632 = vmul.f32 %v2256, %v3600
        %v3633 = vmul.f32 %v2257, %v3601
        %v3634 = vmul.f32 %v2258, %v3602
        %v3635 = vmul.f32 %v2259, %v3603
        %v3636 = vmul.f32 %v2260, %v3604
        %v3637 = vmul.f32 %v2261, %v3605
        %v3638 = vmul.f32 %v2262, %v3606
        %v3639 = vmul.f32 %v2263, %v3607
        %v3640 = vmul.f32 %v2264, %v3608
        %v3641 = vmul.f32 %v2265, %v3609
        %v3642 = vmul.f32 %v2266, %v3610
        %v3643 = vmul.f32 %v2267, %v3611
        %v3644 = vmul.f32 %v2268, %v3612
        %v3645 = vmul.f32 %v2269, %v3613
        %v3646 = vmul.f32 %v2270, %v3614
        %v3647 = vmul.f32 %v2271, %v3615
        %v3648 = vmul.f32 %v2272, %v3616
        %v3649 = vmul.f32 %v2273, %v3617
        %v3650 = vmul.f32 %v2274, %v3618
        %v3651 = vmul.f32 %v2275, %v3619
        %v3652 = vmul.f32 %v2276, %v3620
        %v3653 = vmul.f32 %v2277, %v3621
        %v3654 = vmul.f32 %v2278, %v3622
        %v3655 = vmul.f32 %v2279, %v3623
        %v3656 = vmul.f32 %v2280, %v3624
        %v3657 = vmul.f32 %v2281, %v3625
        %v3658 = vmul.f32 %v2282, %v3626
        %v3659 = vmul.f32 %v2283, %v3627
        %v3660 = vpack.c.bf16 %v3629, %v3628
        %v3661 = vpack.c.bf16 %v3631, %v3630
        %v3662 = vpack.c.bf16 %v3633, %v3632
        %v3663 = vpack.c.bf16 %v3635, %v3634
        %v3664 = vpack.c.bf16 %v3637, %v3636
        %v3665 = vpack.c.bf16 %v3639, %v3638
        %v3666 = vpack.c.bf16 %v3641, %v3640
        %v3667 = vpack.c.bf16 %v3643, %v3642
        %v3668 = vpack.c.bf16 %v3645, %v3644
        %v3669 = vpack.c.bf16 %v3647, %v3646
        %v3670 = vpack.c.bf16 %v3649, %v3648
        %v3671 = vpack.c.bf16 %v3651, %v3650
        %v3672 = vpack.c.bf16 %v3653, %v3652
        %v3673 = vpack.c.bf16 %v3655, %v3654
        %v3674 = vpack.c.bf16 %v3657, %v3656
        %v3675 = vpack.c.bf16 %v3659, %v3658
        %v3677 = vperm.slane %v494, 0
        %v3695 = vunpack.c.l.b16 %v462
        %v3696 = vunpack.c.l.b16 %v463
        %v3697 = vunpack.c.l.b16 %v464
        %v3698 = vunpack.c.l.b16 %v465
        %v3699 = vunpack.c.l.b16 %v466
        %v3700 = vunpack.c.l.b16 %v467
        %v3701 = vunpack.c.l.b16 %v468
        %v3702 = vunpack.c.l.b16 %v469
        %v3703 = vunpack.c.l.b16 %v470
        %v3704 = vunpack.c.l.b16 %v471
        %v3705 = vunpack.c.l.b16 %v472
        %v3706 = vunpack.c.l.b16 %v473
        %v3707 = vunpack.c.l.b16 %v474
        %v3708 = vunpack.c.l.b16 %v475
        %v3709 = vunpack.c.l.b16 %v476
        %v3710 = vunpack.c.l.b16 %v477
        %v3711 = vpack.c.b16 %v3696, %v3695
        %v3712 = vpack.c.b16 %v3698, %v3697
        %v3713 = vpack.c.b16 %v3700, %v3699
        %v3714 = vpack.c.b16 %v3702, %v3701
        %v3715 = vpack.c.b16 %v3704, %v3703
        %v3716 = vpack.c.b16 %v3706, %v3705
        %v3717 = vpack.c.b16 %v3708, %v3707
        %v3718 = vpack.c.b16 %v3710, %v3709
        %3727 = vmatpush.bf16.msra.mxu0 %v3718
        %3728 = vmatpush.bf16.msra.mxu0 %v3717
        %3729 = vmatpush.bf16.msra.mxu0 %v3716
        %3730 = vmatpush.bf16.msra.mxu0 %v3715
        %3731 = vmatpush.bf16.msra.mxu0 %v3714
        %3732 = vmatpush.bf16.msra.mxu0 %v3713
        %3733 = vmatpush.bf16.msra.mxu0 %v3712
        %3734 = vmatpush.bf16.msra.mxu0 %v3711
        %3735 = vmatmul.bf16.gmra.mxu0 %v3660
        %v3736 = vpop.f32.mrf.mxu0
        %v3737 = vadd.f32 %v3677, %v3736
        %v3738 = vpop.f32.mrf.mxu0
        %v3739 = vadd.f32 %v3677, %v3738
        %3740 = vmatmul.bf16.gmra.mxu0 %v3661
        %v3741 = vpop.f32.mrf.mxu0
        %v3742 = vadd.f32 %v3677, %v3741
        %v3743 = vpop.f32.mrf.mxu0
        %v3744 = vadd.f32 %v3677, %v3743
        %3745 = vmatmul.bf16.gmra.mxu0 %v3662
        %v3746 = vpop.f32.mrf.mxu0
        %v3747 = vadd.f32 %v3677, %v3746
        %v3748 = vpop.f32.mrf.mxu0
        %v3749 = vadd.f32 %v3677, %v3748
        %3750 = vmatmul.bf16.gmra.mxu0 %v3663
        %v3751 = vpop.f32.mrf.mxu0
        %v3752 = vadd.f32 %v3677, %v3751
        %v3753 = vpop.f32.mrf.mxu0
        %v3754 = vadd.f32 %v3677, %v3753
        %3755 = vmatmul.bf16.gmra.mxu0 %v3664
        %v3756 = vpop.f32.mrf.mxu0
        %v3757 = vadd.f32 %v3677, %v3756
        %v3758 = vpop.f32.mrf.mxu0
        %v3759 = vadd.f32 %v3677, %v3758
        %3760 = vmatmul.bf16.gmra.mxu0 %v3665
        %v3761 = vpop.f32.mrf.mxu0
        %v3762 = vadd.f32 %v3677, %v3761
        %v3763 = vpop.f32.mrf.mxu0
        %v3764 = vadd.f32 %v3677, %v3763
        %3765 = vmatmul.bf16.gmra.mxu0 %v3666
        %v3766 = vpop.f32.mrf.mxu0
        %v3767 = vadd.f32 %v3677, %v3766
        %v3768 = vpop.f32.mrf.mxu0
        %v3769 = vadd.f32 %v3677, %v3768
        %3770 = vmatmul.bf16.gmra.mxu0 %v3667
        %v3771 = vpop.f32.mrf.mxu0
        %v3772 = vadd.f32 %v3677, %v3771
        %v3773 = vpop.f32.mrf.mxu0
        %v3774 = vadd.f32 %v3677, %v3773
        %3775 = vmatmul.bf16.gmra.mxu0 %v3668
        %v3776 = vpop.f32.mrf.mxu0
        %v3777 = vadd.f32 %v3677, %v3776
        %v3778 = vpop.f32.mrf.mxu0
        %v3779 = vadd.f32 %v3677, %v3778
        %3780 = vmatmul.bf16.gmra.mxu0 %v3669
        %v3781 = vpop.f32.mrf.mxu0
        %v3782 = vadd.f32 %v3677, %v3781
        %v3783 = vpop.f32.mrf.mxu0
        %v3784 = vadd.f32 %v3677, %v3783
        %3785 = vmatmul.bf16.gmra.mxu0 %v3670
        %v3786 = vpop.f32.mrf.mxu0
        %v3787 = vadd.f32 %v3677, %v3786
        %v3788 = vpop.f32.mrf.mxu0
        %v3789 = vadd.f32 %v3677, %v3788
        %3790 = vmatmul.bf16.gmra.mxu0 %v3671
        %v3791 = vpop.f32.mrf.mxu0
        %v3792 = vadd.f32 %v3677, %v3791
        %v3793 = vpop.f32.mrf.mxu0
        %v3794 = vadd.f32 %v3677, %v3793
        %3795 = vmatmul.bf16.gmra.mxu0 %v3672
        %v3796 = vpop.f32.mrf.mxu0
        %v3797 = vadd.f32 %v3677, %v3796
        %v3798 = vpop.f32.mrf.mxu0
        %v3799 = vadd.f32 %v3677, %v3798
        %3800 = vmatmul.bf16.gmra.mxu0 %v3673
        %v3801 = vpop.f32.mrf.mxu0
        %v3802 = vadd.f32 %v3677, %v3801
        %v3803 = vpop.f32.mrf.mxu0
        %v3804 = vadd.f32 %v3677, %v3803
        %3805 = vmatmul.bf16.gmra.mxu0 %v3674
        %v3806 = vpop.f32.mrf.mxu0
        %v3807 = vadd.f32 %v3677, %v3806
        %v3808 = vpop.f32.mrf.mxu0
        %v3809 = vadd.f32 %v3677, %v3808
        %3810 = vmatmul.bf16.gmra.mxu0 %v3675
        %v3811 = vpop.f32.mrf.mxu0
        %v3812 = vadd.f32 %v3677, %v3811
        %v3813 = vpop.f32.mrf.mxu0
        %v3814 = vadd.f32 %v3677, %v3813
        %3815 = vdwg.mxu0
        %v3816 = vadd.f32 %v1278, %v3737
        %v3817 = vadd.f32 %v1279, %v3739
        %v3818 = vadd.f32 %v1280, %v3742
        %v3819 = vadd.f32 %v1281, %v3744
        %v3820 = vadd.f32 %v1282, %v3747
        %v3821 = vadd.f32 %v1283, %v3749
        %v3822 = vadd.f32 %v1284, %v3752
        %v3823 = vadd.f32 %v1285, %v3754
        %v3824 = vadd.f32 %v1286, %v3757
        %v3825 = vadd.f32 %v1287, %v3759
        %v3826 = vadd.f32 %v1288, %v3762
        %v3827 = vadd.f32 %v1289, %v3764
        %v3828 = vadd.f32 %v1290, %v3767
        %v3829 = vadd.f32 %v1291, %v3769
        %v3830 = vadd.f32 %v1292, %v3772
        %v3831 = vadd.f32 %v1293, %v3774
        %v3832 = vadd.f32 %v1294, %v3777
        %v3833 = vadd.f32 %v1295, %v3779
        %v3834 = vadd.f32 %v1296, %v3782
        %v3835 = vadd.f32 %v1297, %v3784
        %v3836 = vadd.f32 %v1298, %v3787
        %v3837 = vadd.f32 %v1299, %v3789
        %v3838 = vadd.f32 %v1300, %v3792
        %v3839 = vadd.f32 %v1301, %v3794
        %v3840 = vadd.f32 %v1302, %v3797
        %v3841 = vadd.f32 %v1303, %v3799
        %v3842 = vadd.f32 %v1304, %v3802
        %v3843 = vadd.f32 %v1305, %v3804
        %v3844 = vadd.f32 %v1306, %v3807
        %v3845 = vadd.f32 %v1307, %v3809
        %v3846 = vadd.f32 %v1308, %v3812
        %v3847 = vadd.f32 %v1309, %v3814
        %v3848 = vsel %vm496, %v3816, 0.0
        %3849 = vadd.xlane.f32.xlu0 %v3848
        %v3850 = vpop.xlane.xlu0 %3849
        %v3851 = vsel %vm496, %v3817, 0.0
        %3852 = vadd.xlane.f32.xlu0 %v3851
        %v3853 = vpop.xlane.xlu0 %3852
        %v3854 = vsel %vm496, %v3818, 0.0
        %3855 = vadd.xlane.f32.xlu0 %v3854
        %v3856 = vpop.xlane.xlu0 %3855
        %v3857 = vsel %vm496, %v3819, 0.0
        %3858 = vadd.xlane.f32.xlu0 %v3857
        %v3859 = vpop.xlane.xlu0 %3858
        %v3860 = vsel %vm496, %v3820, 0.0
        %3861 = vadd.xlane.f32.xlu0 %v3860
        %v3862 = vpop.xlane.xlu0 %3861
        %v3863 = vsel %vm496, %v3821, 0.0
        %3864 = vadd.xlane.f32.xlu0 %v3863
        %v3865 = vpop.xlane.xlu0 %3864
        %v3866 = vsel %vm496, %v3822, 0.0
        %3867 = vadd.xlane.f32.xlu0 %v3866
        %v3868 = vpop.xlane.xlu0 %3867
        %v3869 = vsel %vm496, %v3823, 0.0
        %3870 = vadd.xlane.f32.xlu0 %v3869
        %v3871 = vpop.xlane.xlu0 %3870
        %v3872 = vsel %vm496, %v3824, 0.0
        %3873 = vadd.xlane.f32.xlu0 %v3872
        %v3874 = vpop.xlane.xlu0 %3873
        %v3875 = vsel %vm496, %v3825, 0.0
        %3876 = vadd.xlane.f32.xlu0 %v3875
        %v3877 = vpop.xlane.xlu0 %3876
        %v3878 = vsel %vm496, %v3826, 0.0
        %3879 = vadd.xlane.f32.xlu0 %v3878
        %v3880 = vpop.xlane.xlu0 %3879
        %v3881 = vsel %vm496, %v3827, 0.0
        %3882 = vadd.xlane.f32.xlu0 %v3881
        %v3883 = vpop.xlane.xlu0 %3882
        %v3884 = vsel %vm496, %v3828, 0.0
        %3885 = vadd.xlane.f32.xlu0 %v3884
        %v3886 = vpop.xlane.xlu0 %3885
        %v3887 = vsel %vm496, %v3829, 0.0
        %3888 = vadd.xlane.f32.xlu0 %v3887
        %v3889 = vpop.xlane.xlu0 %3888
        %v3890 = vsel %vm496, %v3830, 0.0
        %3891 = vadd.xlane.f32.xlu0 %v3890
        %v3892 = vpop.xlane.xlu0 %3891
        %v3893 = vsel %vm496, %v3831, 0.0
        %3894 = vadd.xlane.f32.xlu0 %v3893
        %v3895 = vpop.xlane.xlu0 %3894
        %v3896 = vsel %vm496, %v3832, 0.0
        %3897 = vadd.xlane.f32.xlu0 %v3896
        %v3898 = vpop.xlane.xlu0 %3897
        %v3899 = vsel %vm496, %v3833, 0.0
        %3900 = vadd.xlane.f32.xlu0 %v3899
        %v3901 = vpop.xlane.xlu0 %3900
        %v3902 = vsel %vm496, %v3834, 0.0
        %3903 = vadd.xlane.f32.xlu0 %v3902
        %v3904 = vpop.xlane.xlu0 %3903
        %v3905 = vsel %vm496, %v3835, 0.0
        %3906 = vadd.xlane.f32.xlu0 %v3905
        %v3907 = vpop.xlane.xlu0 %3906
        %v3908 = vsel %vm496, %v3836, 0.0
        %3909 = vadd.xlane.f32.xlu0 %v3908
        %v3910 = vpop.xlane.xlu0 %3909
        %v3911 = vsel %vm496, %v3837, 0.0
        %3912 = vadd.xlane.f32.xlu0 %v3911
        %v3913 = vpop.xlane.xlu0 %3912
        %v3914 = vsel %vm496, %v3838, 0.0
        %3915 = vadd.xlane.f32.xlu0 %v3914
        %v3916 = vpop.xlane.xlu0 %3915
        %v3917 = vsel %vm496, %v3839, 0.0
        %3918 = vadd.xlane.f32.xlu0 %v3917
        %v3919 = vpop.xlane.xlu0 %3918
        %v3920 = vsel %vm496, %v3840, 0.0
        %3921 = vadd.xlane.f32.xlu0 %v3920
        %v3922 = vpop.xlane.xlu0 %3921
        %v3923 = vsel %vm496, %v3841, 0.0
        %3924 = vadd.xlane.f32.xlu0 %v3923
        %v3925 = vpop.xlane.xlu0 %3924
        %v3926 = vsel %vm496, %v3842, 0.0
        %3927 = vadd.xlane.f32.xlu0 %v3926
        %v3928 = vpop.xlane.xlu0 %3927
        %v3929 = vsel %vm496, %v3843, 0.0
        %3930 = vadd.xlane.f32.xlu0 %v3929
        %v3931 = vpop.xlane.xlu0 %3930
        %v3932 = vsel %vm496, %v3844, 0.0
        %3933 = vadd.xlane.f32.xlu0 %v3932
        %v3934 = vpop.xlane.xlu0 %3933
        %v3935 = vsel %vm496, %v3845, 0.0
        %3936 = vadd.xlane.f32.xlu0 %v3935
        %v3937 = vpop.xlane.xlu0 %3936
        %v3938 = vsel %vm496, %v3846, 0.0
        %3939 = vadd.xlane.f32.xlu0 %v3938
        %v3940 = vpop.xlane.xlu0 %3939
        %v3941 = vsel %vm496, %v3847, 0.0
        %3942 = vadd.xlane.f32.xlu0 %v3941
        %v3943 = vpop.xlane.xlu0 %3942
        %v3944 = vmul.f32 %v3850, %v599
        %v3945 = vmul.f32 %v3853, %v599
        %v3946 = vmul.f32 %v3856, %v599
        %v3947 = vmul.f32 %v3859, %v599
        %v3948 = vmul.f32 %v3862, %v599
        %v3949 = vmul.f32 %v3865, %v599
        %v3950 = vmul.f32 %v3868, %v599
        %v3951 = vmul.f32 %v3871, %v599
        %v3952 = vmul.f32 %v3874, %v599
        %v3953 = vmul.f32 %v3877, %v599
        %v3954 = vmul.f32 %v3880, %v599
        %v3955 = vmul.f32 %v3883, %v599
        %v3956 = vmul.f32 %v3886, %v599
        %v3957 = vmul.f32 %v3889, %v599
        %v3958 = vmul.f32 %v3892, %v599
        %v3959 = vmul.f32 %v3895, %v599
        %v3960 = vmul.f32 %v3898, %v599
        %v3961 = vmul.f32 %v3901, %v599
        %v3962 = vmul.f32 %v3904, %v599
        %v3963 = vmul.f32 %v3907, %v599
        %v3964 = vmul.f32 %v3910, %v599
        %v3965 = vmul.f32 %v3913, %v599
        %v3966 = vmul.f32 %v3916, %v599
        %v3967 = vmul.f32 %v3919, %v599
        %v3968 = vmul.f32 %v3922, %v599
        %v3969 = vmul.f32 %v3925, %v599
        %v3970 = vmul.f32 %v3928, %v599
        %v3971 = vmul.f32 %v3931, %v599
        %v3972 = vmul.f32 %v3934, %v599
        %v3973 = vmul.f32 %v3937, %v599
        %v3974 = vmul.f32 %v3940, %v599
        %v3975 = vmul.f32 %v3943, %v599
        %v3976 = vsub.f32 %v3816, %v3944
        %v3977 = vsub.f32 %v3817, %v3945
        %v3978 = vsub.f32 %v3818, %v3946
        %v3979 = vsub.f32 %v3819, %v3947
        %v3980 = vsub.f32 %v3820, %v3948
        %v3981 = vsub.f32 %v3821, %v3949
        %v3982 = vsub.f32 %v3822, %v3950
        %v3983 = vsub.f32 %v3823, %v3951
        %v3984 = vsub.f32 %v3824, %v3952
        %v3985 = vsub.f32 %v3825, %v3953
        %v3986 = vsub.f32 %v3826, %v3954
        %v3987 = vsub.f32 %v3827, %v3955
        %v3988 = vsub.f32 %v3828, %v3956
        %v3989 = vsub.f32 %v3829, %v3957
        %v3990 = vsub.f32 %v3830, %v3958
        %v3991 = vsub.f32 %v3831, %v3959
        %v3992 = vsub.f32 %v3832, %v3960
        %v3993 = vsub.f32 %v3833, %v3961
        %v3994 = vsub.f32 %v3834, %v3962
        %v3995 = vsub.f32 %v3835, %v3963
        %v3996 = vsub.f32 %v3836, %v3964
        %v3997 = vsub.f32 %v3837, %v3965
        %v3998 = vsub.f32 %v3838, %v3966
        %v3999 = vsub.f32 %v3839, %v3967
        %v4000 = vsub.f32 %v3840, %v3968
        %v4001 = vsub.f32 %v3841, %v3969
        %v4002 = vsub.f32 %v3842, %v3970
        %v4003 = vsub.f32 %v3843, %v3971
        %v4004 = vsub.f32 %v3844, %v3972
        %v4005 = vsub.f32 %v3845, %v3973
        %v4006 = vsub.f32 %v3846, %v3974
        %v4007 = vsub.f32 %v3847, %v3975
        %v4008 = vmul.f32 %v3976, %v3976
        %v4009 = vmul.f32 %v3977, %v3977
        %v4010 = vmul.f32 %v3978, %v3978
        %v4011 = vmul.f32 %v3979, %v3979
        %v4012 = vmul.f32 %v3980, %v3980
        %v4013 = vmul.f32 %v3981, %v3981
        %v4014 = vmul.f32 %v3982, %v3982
        %v4015 = vmul.f32 %v3983, %v3983
        %v4016 = vmul.f32 %v3984, %v3984
        %v4017 = vmul.f32 %v3985, %v3985
        %v4018 = vmul.f32 %v3986, %v3986
        %v4019 = vmul.f32 %v3987, %v3987
        %v4020 = vmul.f32 %v3988, %v3988
        %v4021 = vmul.f32 %v3989, %v3989
        %v4022 = vmul.f32 %v3990, %v3990
        %v4023 = vmul.f32 %v3991, %v3991
        %v4024 = vmul.f32 %v3992, %v3992
        %v4025 = vmul.f32 %v3993, %v3993
        %v4026 = vmul.f32 %v3994, %v3994
        %v4027 = vmul.f32 %v3995, %v3995
        %v4028 = vmul.f32 %v3996, %v3996
        %v4029 = vmul.f32 %v3997, %v3997
        %v4030 = vmul.f32 %v3998, %v3998
        %v4031 = vmul.f32 %v3999, %v3999
        %v4032 = vmul.f32 %v4000, %v4000
        %v4033 = vmul.f32 %v4001, %v4001
        %v4034 = vmul.f32 %v4002, %v4002
        %v4035 = vmul.f32 %v4003, %v4003
        %v4036 = vmul.f32 %v4004, %v4004
        %v4037 = vmul.f32 %v4005, %v4005
        %v4038 = vmul.f32 %v4006, %v4006
        %v4039 = vmul.f32 %v4007, %v4007
        %v4040 = vsel %vm496, %v4008, 0.0
        %4041 = vadd.xlane.f32.xlu0 %v4040
        %v4042 = vpop.xlane.xlu0 %4041
        %v4043 = vsel %vm496, %v4009, 0.0
        %4044 = vadd.xlane.f32.xlu0 %v4043
        %v4045 = vpop.xlane.xlu0 %4044
        %v4046 = vsel %vm496, %v4010, 0.0
        %4047 = vadd.xlane.f32.xlu0 %v4046
        %v4048 = vpop.xlane.xlu0 %4047
        %v4049 = vsel %vm496, %v4011, 0.0
        %4050 = vadd.xlane.f32.xlu0 %v4049
        %v4051 = vpop.xlane.xlu0 %4050
        %v4052 = vsel %vm496, %v4012, 0.0
        %4053 = vadd.xlane.f32.xlu0 %v4052
        %v4054 = vpop.xlane.xlu0 %4053
        %v4055 = vsel %vm496, %v4013, 0.0
        %4056 = vadd.xlane.f32.xlu0 %v4055
        %v4057 = vpop.xlane.xlu0 %4056
        %v4058 = vsel %vm496, %v4014, 0.0
        %4059 = vadd.xlane.f32.xlu0 %v4058
        %v4060 = vpop.xlane.xlu0 %4059
        %v4061 = vsel %vm496, %v4015, 0.0
        %4062 = vadd.xlane.f32.xlu0 %v4061
        %v4063 = vpop.xlane.xlu0 %4062
        %v4064 = vsel %vm496, %v4016, 0.0
        %4065 = vadd.xlane.f32.xlu0 %v4064
        %v4066 = vpop.xlane.xlu0 %4065
        %v4067 = vsel %vm496, %v4017, 0.0
        %4068 = vadd.xlane.f32.xlu0 %v4067
        %v4069 = vpop.xlane.xlu0 %4068
        %v4070 = vsel %vm496, %v4018, 0.0
        %4071 = vadd.xlane.f32.xlu0 %v4070
        %v4072 = vpop.xlane.xlu0 %4071
        %v4073 = vsel %vm496, %v4019, 0.0
        %4074 = vadd.xlane.f32.xlu0 %v4073
        %v4075 = vpop.xlane.xlu0 %4074
        %v4076 = vsel %vm496, %v4020, 0.0
        %4077 = vadd.xlane.f32.xlu0 %v4076
        %v4078 = vpop.xlane.xlu0 %4077
        %v4079 = vsel %vm496, %v4021, 0.0
        %4080 = vadd.xlane.f32.xlu0 %v4079
        %v4081 = vpop.xlane.xlu0 %4080
        %v4082 = vsel %vm496, %v4022, 0.0
        %4083 = vadd.xlane.f32.xlu0 %v4082
        %v4084 = vpop.xlane.xlu0 %4083
        %v4085 = vsel %vm496, %v4023, 0.0
        %4086 = vadd.xlane.f32.xlu0 %v4085
        %v4087 = vpop.xlane.xlu0 %4086
        %v4088 = vsel %vm496, %v4024, 0.0
        %4089 = vadd.xlane.f32.xlu0 %v4088
        %v4090 = vpop.xlane.xlu0 %4089
        %v4091 = vsel %vm496, %v4025, 0.0
        %4092 = vadd.xlane.f32.xlu0 %v4091
        %v4093 = vpop.xlane.xlu0 %4092
        %v4094 = vsel %vm496, %v4026, 0.0
        %4095 = vadd.xlane.f32.xlu0 %v4094
        %v4096 = vpop.xlane.xlu0 %4095
        %v4097 = vsel %vm496, %v4027, 0.0
        %4098 = vadd.xlane.f32.xlu0 %v4097
        %v4099 = vpop.xlane.xlu0 %4098
        %v4100 = vsel %vm496, %v4028, 0.0
        %4101 = vadd.xlane.f32.xlu0 %v4100
        %v4102 = vpop.xlane.xlu0 %4101
        %v4103 = vsel %vm496, %v4029, 0.0
        %4104 = vadd.xlane.f32.xlu0 %v4103
        %v4105 = vpop.xlane.xlu0 %4104
        %v4106 = vsel %vm496, %v4030, 0.0
        %4107 = vadd.xlane.f32.xlu0 %v4106
        %v4108 = vpop.xlane.xlu0 %4107
        %v4109 = vsel %vm496, %v4031, 0.0
        %4110 = vadd.xlane.f32.xlu0 %v4109
        %v4111 = vpop.xlane.xlu0 %4110
        %v4112 = vsel %vm496, %v4032, 0.0
        %4113 = vadd.xlane.f32.xlu0 %v4112
        %v4114 = vpop.xlane.xlu0 %4113
        %v4115 = vsel %vm496, %v4033, 0.0
        %4116 = vadd.xlane.f32.xlu0 %v4115
        %v4117 = vpop.xlane.xlu0 %4116
        %v4118 = vsel %vm496, %v4034, 0.0
        %4119 = vadd.xlane.f32.xlu0 %v4118
        %v4120 = vpop.xlane.xlu0 %4119
        %v4121 = vsel %vm496, %v4035, 0.0
        %4122 = vadd.xlane.f32.xlu0 %v4121
        %v4123 = vpop.xlane.xlu0 %4122
        %v4124 = vsel %vm496, %v4036, 0.0
        %4125 = vadd.xlane.f32.xlu0 %v4124
        %v4126 = vpop.xlane.xlu0 %4125
        %v4127 = vsel %vm496, %v4037, 0.0
        %4128 = vadd.xlane.f32.xlu0 %v4127
        %v4129 = vpop.xlane.xlu0 %4128
        %v4130 = vsel %vm496, %v4038, 0.0
        %4131 = vadd.xlane.f32.xlu0 %v4130
        %v4132 = vpop.xlane.xlu0 %4131
        %v4133 = vsel %vm496, %v4039, 0.0
        %4134 = vadd.xlane.f32.xlu0 %v4133
        %v4135 = vpop.xlane.xlu0 %4134
        %v4136 = vmul.f32 %v4042, %v599
        %v4137 = vmul.f32 %v4045, %v599
        %v4138 = vmul.f32 %v4048, %v599
        %v4139 = vmul.f32 %v4051, %v599
        %v4140 = vmul.f32 %v4054, %v599
        %v4141 = vmul.f32 %v4057, %v599
        %v4142 = vmul.f32 %v4060, %v599
        %v4143 = vmul.f32 %v4063, %v599
        %v4144 = vmul.f32 %v4066, %v599
        %v4145 = vmul.f32 %v4069, %v599
        %v4146 = vmul.f32 %v4072, %v599
        %v4147 = vmul.f32 %v4075, %v599
        %v4148 = vmul.f32 %v4078, %v599
        %v4149 = vmul.f32 %v4081, %v599
        %v4150 = vmul.f32 %v4084, %v599
        %v4151 = vmul.f32 %v4087, %v599
        %v4152 = vmul.f32 %v4090, %v599
        %v4153 = vmul.f32 %v4093, %v599
        %v4154 = vmul.f32 %v4096, %v599
        %v4155 = vmul.f32 %v4099, %v599
        %v4156 = vmul.f32 %v4102, %v599
        %v4157 = vmul.f32 %v4105, %v599
        %v4158 = vmul.f32 %v4108, %v599
        %v4159 = vmul.f32 %v4111, %v599
        %v4160 = vmul.f32 %v4114, %v599
        %v4161 = vmul.f32 %v4117, %v599
        %v4162 = vmul.f32 %v4120, %v599
        %v4163 = vmul.f32 %v4123, %v599
        %v4164 = vmul.f32 %v4126, %v599
        %v4165 = vmul.f32 %v4129, %v599
        %v4166 = vmul.f32 %v4132, %v599
        %v4167 = vmul.f32 %v4135, %v599
        %v4168 = vadd.f32 %v4136, 1e-06
        %v4169 = vadd.f32 %v4137, 1e-06
        %v4170 = vadd.f32 %v4138, 1e-06
        %v4171 = vadd.f32 %v4139, 1e-06
        %v4172 = vadd.f32 %v4140, 1e-06
        %v4173 = vadd.f32 %v4141, 1e-06
        %v4174 = vadd.f32 %v4142, 1e-06
        %v4175 = vadd.f32 %v4143, 1e-06
        %v4176 = vadd.f32 %v4144, 1e-06
        %v4177 = vadd.f32 %v4145, 1e-06
        %v4178 = vadd.f32 %v4146, 1e-06
        %v4179 = vadd.f32 %v4147, 1e-06
        %v4180 = vadd.f32 %v4148, 1e-06
        %v4181 = vadd.f32 %v4149, 1e-06
        %v4182 = vadd.f32 %v4150, 1e-06
        %v4183 = vadd.f32 %v4151, 1e-06
        %v4184 = vadd.f32 %v4152, 1e-06
        %v4185 = vadd.f32 %v4153, 1e-06
        %v4186 = vadd.f32 %v4154, 1e-06
        %v4187 = vadd.f32 %v4155, 1e-06
        %v4188 = vadd.f32 %v4156, 1e-06
        %v4189 = vadd.f32 %v4157, 1e-06
        %v4190 = vadd.f32 %v4158, 1e-06
        %v4191 = vadd.f32 %v4159, 1e-06
        %v4192 = vadd.f32 %v4160, 1e-06
        %v4193 = vadd.f32 %v4161, 1e-06
        %v4194 = vadd.f32 %v4162, 1e-06
        %v4195 = vadd.f32 %v4163, 1e-06
        %v4196 = vadd.f32 %v4164, 1e-06
        %v4197 = vadd.f32 %v4165, 1e-06
        %v4198 = vadd.f32 %v4166, 1e-06
        %v4199 = vadd.f32 %v4167, 1e-06
        %v4200 = vrsqrt.pop %v4168
        %v4201 = vmul.f32 %v4200, %v4168
        %v4202 = vmul.f32 %v4201, %v4200
        %v4203 = vmul.f32 0.5, %v4202
        %v4204 = vsub.f32 1.5, %v4203
        %v4205 = vmul.f32 %v4200, %v4204
        %vm4206 = vweird.f32 %v4168
        %vm4207 = vweird.f32 %v4200
        %vm4208 = vmor %vm4206, %vm4207
        %v4209 = vsel %vm4208, %v4200, %v4205
        %v4210 = vrsqrt.pop %v4169
        %v4211 = vmul.f32 %v4210, %v4169
        %v4212 = vmul.f32 %v4211, %v4210
        %v4213 = vmul.f32 0.5, %v4212
        %v4214 = vsub.f32 1.5, %v4213
        %v4215 = vmul.f32 %v4210, %v4214
        %vm4216 = vweird.f32 %v4169
        %vm4217 = vweird.f32 %v4210
        %vm4218 = vmor %vm4216, %vm4217
        %v4219 = vsel %vm4218, %v4210, %v4215
        %v4220 = vrsqrt.pop %v4170
        %v4221 = vmul.f32 %v4220, %v4170
        %v4222 = vmul.f32 %v4221, %v4220
        %v4223 = vmul.f32 0.5, %v4222
        %v4224 = vsub.f32 1.5, %v4223
        %v4225 = vmul.f32 %v4220, %v4224
        %vm4226 = vweird.f32 %v4170
        %vm4227 = vweird.f32 %v4220
        %vm4228 = vmor %vm4226, %vm4227
        %v4229 = vsel %vm4228, %v4220, %v4225
        %v4230 = vrsqrt.pop %v4171
        %v4231 = vmul.f32 %v4230, %v4171
        %v4232 = vmul.f32 %v4231, %v4230
        %v4233 = vmul.f32 0.5, %v4232
        %v4234 = vsub.f32 1.5, %v4233
        %v4235 = vmul.f32 %v4230, %v4234
        %vm4236 = vweird.f32 %v4171
        %vm4237 = vweird.f32 %v4230
        %vm4238 = vmor %vm4236, %vm4237
        %v4239 = vsel %vm4238, %v4230, %v4235
        %v4240 = vrsqrt.pop %v4172
        %v4241 = vmul.f32 %v4240, %v4172
        %v4242 = vmul.f32 %v4241, %v4240
        %v4243 = vmul.f32 0.5, %v4242
        %v4244 = vsub.f32 1.5, %v4243
        %v4245 = vmul.f32 %v4240, %v4244
        %vm4246 = vweird.f32 %v4172
        %vm4247 = vweird.f32 %v4240
        %vm4248 = vmor %vm4246, %vm4247
        %v4249 = vsel %vm4248, %v4240, %v4245
        %v4250 = vrsqrt.pop %v4173
        %v4251 = vmul.f32 %v4250, %v4173
        %v4252 = vmul.f32 %v4251, %v4250
        %v4253 = vmul.f32 0.5, %v4252
        %v4254 = vsub.f32 1.5, %v4253
        %v4255 = vmul.f32 %v4250, %v4254
        %vm4256 = vweird.f32 %v4173
        %vm4257 = vweird.f32 %v4250
        %vm4258 = vmor %vm4256, %vm4257
        %v4259 = vsel %vm4258, %v4250, %v4255
        %v4260 = vrsqrt.pop %v4174
        %v4261 = vmul.f32 %v4260, %v4174
        %v4262 = vmul.f32 %v4261, %v4260
        %v4263 = vmul.f32 0.5, %v4262
        %v4264 = vsub.f32 1.5, %v4263
        %v4265 = vmul.f32 %v4260, %v4264
        %vm4266 = vweird.f32 %v4174
        %vm4267 = vweird.f32 %v4260
        %vm4268 = vmor %vm4266, %vm4267
        %v4269 = vsel %vm4268, %v4260, %v4265
        %v4270 = vrsqrt.pop %v4175
        %v4271 = vmul.f32 %v4270, %v4175
        %v4272 = vmul.f32 %v4271, %v4270
        %v4273 = vmul.f32 0.5, %v4272
        %v4274 = vsub.f32 1.5, %v4273
        %v4275 = vmul.f32 %v4270, %v4274
        %vm4276 = vweird.f32 %v4175
        %vm4277 = vweird.f32 %v4270
        %vm4278 = vmor %vm4276, %vm4277
        %v4279 = vsel %vm4278, %v4270, %v4275
        %v4280 = vrsqrt.pop %v4176
        %v4281 = vmul.f32 %v4280, %v4176
        %v4282 = vmul.f32 %v4281, %v4280
        %v4283 = vmul.f32 0.5, %v4282
        %v4284 = vsub.f32 1.5, %v4283
        %v4285 = vmul.f32 %v4280, %v4284
        %vm4286 = vweird.f32 %v4176
        %vm4287 = vweird.f32 %v4280
        %vm4288 = vmor %vm4286, %vm4287
        %v4289 = vsel %vm4288, %v4280, %v4285
        %v4290 = vrsqrt.pop %v4177
        %v4291 = vmul.f32 %v4290, %v4177
        %v4292 = vmul.f32 %v4291, %v4290
        %v4293 = vmul.f32 0.5, %v4292
        %v4294 = vsub.f32 1.5, %v4293
        %v4295 = vmul.f32 %v4290, %v4294
        %vm4296 = vweird.f32 %v4177
        %vm4297 = vweird.f32 %v4290
        %vm4298 = vmor %vm4296, %vm4297
        %v4299 = vsel %vm4298, %v4290, %v4295
        %v4300 = vrsqrt.pop %v4178
        %v4301 = vmul.f32 %v4300, %v4178
        %v4302 = vmul.f32 %v4301, %v4300
        %v4303 = vmul.f32 0.5, %v4302
        %v4304 = vsub.f32 1.5, %v4303
        %v4305 = vmul.f32 %v4300, %v4304
        %vm4306 = vweird.f32 %v4178
        %vm4307 = vweird.f32 %v4300
        %vm4308 = vmor %vm4306, %vm4307
        %v4309 = vsel %vm4308, %v4300, %v4305
        %v4310 = vrsqrt.pop %v4179
        %v4311 = vmul.f32 %v4310, %v4179
        %v4312 = vmul.f32 %v4311, %v4310
        %v4313 = vmul.f32 0.5, %v4312
        %v4314 = vsub.f32 1.5, %v4313
        %v4315 = vmul.f32 %v4310, %v4314
        %vm4316 = vweird.f32 %v4179
        %vm4317 = vweird.f32 %v4310
        %vm4318 = vmor %vm4316, %vm4317
        %v4319 = vsel %vm4318, %v4310, %v4315
        %v4320 = vrsqrt.pop %v4180
        %v4321 = vmul.f32 %v4320, %v4180
        %v4322 = vmul.f32 %v4321, %v4320
        %v4323 = vmul.f32 0.5, %v4322
        %v4324 = vsub.f32 1.5, %v4323
        %v4325 = vmul.f32 %v4320, %v4324
        %vm4326 = vweird.f32 %v4180
        %vm4327 = vweird.f32 %v4320
        %vm4328 = vmor %vm4326, %vm4327
        %v4329 = vsel %vm4328, %v4320, %v4325
        %v4330 = vrsqrt.pop %v4181
        %v4331 = vmul.f32 %v4330, %v4181
        %v4332 = vmul.f32 %v4331, %v4330
        %v4333 = vmul.f32 0.5, %v4332
        %v4334 = vsub.f32 1.5, %v4333
        %v4335 = vmul.f32 %v4330, %v4334
        %vm4336 = vweird.f32 %v4181
        %vm4337 = vweird.f32 %v4330
        %vm4338 = vmor %vm4336, %vm4337
        %v4339 = vsel %vm4338, %v4330, %v4335
        %v4340 = vrsqrt.pop %v4182
        %v4341 = vmul.f32 %v4340, %v4182
        %v4342 = vmul.f32 %v4341, %v4340
        %v4343 = vmul.f32 0.5, %v4342
        %v4344 = vsub.f32 1.5, %v4343
        %v4345 = vmul.f32 %v4340, %v4344
        %vm4346 = vweird.f32 %v4182
        %vm4347 = vweird.f32 %v4340
        %vm4348 = vmor %vm4346, %vm4347
        %v4349 = vsel %vm4348, %v4340, %v4345
        %v4350 = vrsqrt.pop %v4183
        %v4351 = vmul.f32 %v4350, %v4183
        %v4352 = vmul.f32 %v4351, %v4350
        %v4353 = vmul.f32 0.5, %v4352
        %v4354 = vsub.f32 1.5, %v4353
        %v4355 = vmul.f32 %v4350, %v4354
        %vm4356 = vweird.f32 %v4183
        %vm4357 = vweird.f32 %v4350
        %vm4358 = vmor %vm4356, %vm4357
        %v4359 = vsel %vm4358, %v4350, %v4355
        %v4360 = vrsqrt.pop %v4184
        %v4361 = vmul.f32 %v4360, %v4184
        %v4362 = vmul.f32 %v4361, %v4360
        %v4363 = vmul.f32 0.5, %v4362
        %v4364 = vsub.f32 1.5, %v4363
        %v4365 = vmul.f32 %v4360, %v4364
        %vm4366 = vweird.f32 %v4184
        %vm4367 = vweird.f32 %v4360
        %vm4368 = vmor %vm4366, %vm4367
        %v4369 = vsel %vm4368, %v4360, %v4365
        %v4370 = vrsqrt.pop %v4185
        %v4371 = vmul.f32 %v4370, %v4185
        %v4372 = vmul.f32 %v4371, %v4370
        %v4373 = vmul.f32 0.5, %v4372
        %v4374 = vsub.f32 1.5, %v4373
        %v4375 = vmul.f32 %v4370, %v4374
        %vm4376 = vweird.f32 %v4185
        %vm4377 = vweird.f32 %v4370
        %vm4378 = vmor %vm4376, %vm4377
        %v4379 = vsel %vm4378, %v4370, %v4375
        %v4380 = vrsqrt.pop %v4186
        %v4381 = vmul.f32 %v4380, %v4186
        %v4382 = vmul.f32 %v4381, %v4380
        %v4383 = vmul.f32 0.5, %v4382
        %v4384 = vsub.f32 1.5, %v4383
        %v4385 = vmul.f32 %v4380, %v4384
        %vm4386 = vweird.f32 %v4186
        %vm4387 = vweird.f32 %v4380
        %vm4388 = vmor %vm4386, %vm4387
        %v4389 = vsel %vm4388, %v4380, %v4385
        %v4390 = vrsqrt.pop %v4187
        %v4391 = vmul.f32 %v4390, %v4187
        %v4392 = vmul.f32 %v4391, %v4390
        %v4393 = vmul.f32 0.5, %v4392
        %v4394 = vsub.f32 1.5, %v4393
        %v4395 = vmul.f32 %v4390, %v4394
        %vm4396 = vweird.f32 %v4187
        %vm4397 = vweird.f32 %v4390
        %vm4398 = vmor %vm4396, %vm4397
        %v4399 = vsel %vm4398, %v4390, %v4395
        %v4400 = vrsqrt.pop %v4188
        %v4401 = vmul.f32 %v4400, %v4188
        %v4402 = vmul.f32 %v4401, %v4400
        %v4403 = vmul.f32 0.5, %v4402
        %v4404 = vsub.f32 1.5, %v4403
        %v4405 = vmul.f32 %v4400, %v4404
        %vm4406 = vweird.f32 %v4188
        %vm4407 = vweird.f32 %v4400
        %vm4408 = vmor %vm4406, %vm4407
        %v4409 = vsel %vm4408, %v4400, %v4405
        %v4410 = vrsqrt.pop %v4189
        %v4411 = vmul.f32 %v4410, %v4189
        %v4412 = vmul.f32 %v4411, %v4410
        %v4413 = vmul.f32 0.5, %v4412
        %v4414 = vsub.f32 1.5, %v4413
        %v4415 = vmul.f32 %v4410, %v4414
        %vm4416 = vweird.f32 %v4189
        %vm4417 = vweird.f32 %v4410
        %vm4418 = vmor %vm4416, %vm4417
        %v4419 = vsel %vm4418, %v4410, %v4415
        %v4420 = vrsqrt.pop %v4190
        %v4421 = vmul.f32 %v4420, %v4190
        %v4422 = vmul.f32 %v4421, %v4420
        %v4423 = vmul.f32 0.5, %v4422
        %v4424 = vsub.f32 1.5, %v4423
        %v4425 = vmul.f32 %v4420, %v4424
        %vm4426 = vweird.f32 %v4190
        %vm4427 = vweird.f32 %v4420
        %vm4428 = vmor %vm4426, %vm4427
        %v4429 = vsel %vm4428, %v4420, %v4425
        %v4430 = vrsqrt.pop %v4191
        %v4431 = vmul.f32 %v4430, %v4191
        %v4432 = vmul.f32 %v4431, %v4430
        %v4433 = vmul.f32 0.5, %v4432
        %v4434 = vsub.f32 1.5, %v4433
        %v4435 = vmul.f32 %v4430, %v4434
        %vm4436 = vweird.f32 %v4191
        %vm4437 = vweird.f32 %v4430
        %vm4438 = vmor %vm4436, %vm4437
        %v4439 = vsel %vm4438, %v4430, %v4435
        %v4440 = vrsqrt.pop %v4192
        %v4441 = vmul.f32 %v4440, %v4192
        %v4442 = vmul.f32 %v4441, %v4440
        %v4443 = vmul.f32 0.5, %v4442
        %v4444 = vsub.f32 1.5, %v4443
        %v4445 = vmul.f32 %v4440, %v4444
        %vm4446 = vweird.f32 %v4192
        %vm4447 = vweird.f32 %v4440
        %vm4448 = vmor %vm4446, %vm4447
        %v4449 = vsel %vm4448, %v4440, %v4445
        %v4450 = vrsqrt.pop %v4193
        %v4451 = vmul.f32 %v4450, %v4193
        %v4452 = vmul.f32 %v4451, %v4450
        %v4453 = vmul.f32 0.5, %v4452
        %v4454 = vsub.f32 1.5, %v4453
        %v4455 = vmul.f32 %v4450, %v4454
        %vm4456 = vweird.f32 %v4193
        %vm4457 = vweird.f32 %v4450
        %vm4458 = vmor %vm4456, %vm4457
        %v4459 = vsel %vm4458, %v4450, %v4455
        %v4460 = vrsqrt.pop %v4194
        %v4461 = vmul.f32 %v4460, %v4194
        %v4462 = vmul.f32 %v4461, %v4460
        %v4463 = vmul.f32 0.5, %v4462
        %v4464 = vsub.f32 1.5, %v4463
        %v4465 = vmul.f32 %v4460, %v4464
        %vm4466 = vweird.f32 %v4194
        %vm4467 = vweird.f32 %v4460
        %vm4468 = vmor %vm4466, %vm4467
        %v4469 = vsel %vm4468, %v4460, %v4465
        %v4470 = vrsqrt.pop %v4195
        %v4471 = vmul.f32 %v4470, %v4195
        %v4472 = vmul.f32 %v4471, %v4470
        %v4473 = vmul.f32 0.5, %v4472
        %v4474 = vsub.f32 1.5, %v4473
        %v4475 = vmul.f32 %v4470, %v4474
        %vm4476 = vweird.f32 %v4195
        %vm4477 = vweird.f32 %v4470
        %vm4478 = vmor %vm4476, %vm4477
        %v4479 = vsel %vm4478, %v4470, %v4475
        %v4480 = vrsqrt.pop %v4196
        %v4481 = vmul.f32 %v4480, %v4196
        %v4482 = vmul.f32 %v4481, %v4480
        %v4483 = vmul.f32 0.5, %v4482
        %v4484 = vsub.f32 1.5, %v4483
        %v4485 = vmul.f32 %v4480, %v4484
        %vm4486 = vweird.f32 %v4196
        %vm4487 = vweird.f32 %v4480
        %vm4488 = vmor %vm4486, %vm4487
        %v4489 = vsel %vm4488, %v4480, %v4485
        %v4490 = vrsqrt.pop %v4197
        %v4491 = vmul.f32 %v4490, %v4197
        %v4492 = vmul.f32 %v4491, %v4490
        %v4493 = vmul.f32 0.5, %v4492
        %v4494 = vsub.f32 1.5, %v4493
        %v4495 = vmul.f32 %v4490, %v4494
        %vm4496 = vweird.f32 %v4197
        %vm4497 = vweird.f32 %v4490
        %vm4498 = vmor %vm4496, %vm4497
        %v4499 = vsel %vm4498, %v4490, %v4495
        %v4500 = vrsqrt.pop %v4198
        %v4501 = vmul.f32 %v4500, %v4198
        %v4502 = vmul.f32 %v4501, %v4500
        %v4503 = vmul.f32 0.5, %v4502
        %v4504 = vsub.f32 1.5, %v4503
        %v4505 = vmul.f32 %v4500, %v4504
        %vm4506 = vweird.f32 %v4198
        %vm4507 = vweird.f32 %v4500
        %vm4508 = vmor %vm4506, %vm4507
        %v4509 = vsel %vm4508, %v4500, %v4505
        %v4510 = vrsqrt.pop %v4199
        %v4511 = vmul.f32 %v4510, %v4199
        %v4512 = vmul.f32 %v4511, %v4510
        %v4513 = vmul.f32 0.5, %v4512
        %v4514 = vsub.f32 1.5, %v4513
        %v4515 = vmul.f32 %v4510, %v4514
        %vm4516 = vweird.f32 %v4199
        %vm4517 = vweird.f32 %v4510
        %vm4518 = vmor %vm4516, %vm4517
        %v4519 = vsel %vm4518, %v4510, %v4515
        %v4520 = vmul.f32 %v3976, %v4209
        %v4521 = vmul.f32 %v3977, %v4219
        %v4522 = vmul.f32 %v3978, %v4229
        %v4523 = vmul.f32 %v3979, %v4239
        %v4524 = vmul.f32 %v3980, %v4249
        %v4525 = vmul.f32 %v3981, %v4259
        %v4526 = vmul.f32 %v3982, %v4269
        %v4527 = vmul.f32 %v3983, %v4279
        %v4528 = vmul.f32 %v3984, %v4289
        %v4529 = vmul.f32 %v3985, %v4299
        %v4530 = vmul.f32 %v3986, %v4309
        %v4531 = vmul.f32 %v3987, %v4319
        %v4532 = vmul.f32 %v3988, %v4329
        %v4533 = vmul.f32 %v3989, %v4339
        %v4534 = vmul.f32 %v3990, %v4349
        %v4535 = vmul.f32 %v3991, %v4359
        %v4536 = vmul.f32 %v3992, %v4369
        %v4537 = vmul.f32 %v3993, %v4379
        %v4538 = vmul.f32 %v3994, %v4389
        %v4539 = vmul.f32 %v3995, %v4399
        %v4540 = vmul.f32 %v3996, %v4409
        %v4541 = vmul.f32 %v3997, %v4419
        %v4542 = vmul.f32 %v3998, %v4429
        %v4543 = vmul.f32 %v3999, %v4439
        %v4544 = vmul.f32 %v4000, %v4449
        %v4545 = vmul.f32 %v4001, %v4459
        %v4546 = vmul.f32 %v4002, %v4469
        %v4547 = vmul.f32 %v4003, %v4479
        %v4548 = vmul.f32 %v4004, %v4489
        %v4549 = vmul.f32 %v4005, %v4499
        %v4550 = vmul.f32 %v4006, %v4509
        %v4551 = vmul.f32 %v4007, %v4519
        %v4553 = vperm.slane %v445, 0
        %v4555 = vmul.f32 %v4520, %v4553
        %v4556 = vmul.f32 %v4521, %v4553
        %v4557 = vmul.f32 %v4522, %v4553
        %v4558 = vmul.f32 %v4523, %v4553
        %v4559 = vmul.f32 %v4524, %v4553
        %v4560 = vmul.f32 %v4525, %v4553
        %v4561 = vmul.f32 %v4526, %v4553
        %v4562 = vmul.f32 %v4527, %v4553
        %v4563 = vmul.f32 %v4528, %v4553
        %v4564 = vmul.f32 %v4529, %v4553
        %v4565 = vmul.f32 %v4530, %v4553
        %v4566 = vmul.f32 %v4531, %v4553
        %v4567 = vmul.f32 %v4532, %v4553
        %v4568 = vmul.f32 %v4533, %v4553
        %v4569 = vmul.f32 %v4534, %v4553
        %v4570 = vmul.f32 %v4535, %v4553
        %v4571 = vmul.f32 %v4536, %v4553
        %v4572 = vmul.f32 %v4537, %v4553
        %v4573 = vmul.f32 %v4538, %v4553
        %v4574 = vmul.f32 %v4539, %v4553
        %v4575 = vmul.f32 %v4540, %v4553
        %v4576 = vmul.f32 %v4541, %v4553
        %v4577 = vmul.f32 %v4542, %v4553
        %v4578 = vmul.f32 %v4543, %v4553
        %v4579 = vmul.f32 %v4544, %v4553
        %v4580 = vmul.f32 %v4545, %v4553
        %v4581 = vmul.f32 %v4546, %v4553
        %v4582 = vmul.f32 %v4547, %v4553
        %v4583 = vmul.f32 %v4548, %v4553
        %v4584 = vmul.f32 %v4549, %v4553
        %v4585 = vmul.f32 %v4550, %v4553
        %v4586 = vmul.f32 %v4551, %v4553
        %v4588 = vperm.slane %v447, 0
        %v4590 = vadd.f32 %v4555, %v4588
        %v4591 = vadd.f32 %v4556, %v4588
        %v4592 = vadd.f32 %v4557, %v4588
        %v4593 = vadd.f32 %v4558, %v4588
        %v4594 = vadd.f32 %v4559, %v4588
        %v4595 = vadd.f32 %v4560, %v4588
        %v4596 = vadd.f32 %v4561, %v4588
        %v4597 = vadd.f32 %v4562, %v4588
        %v4598 = vadd.f32 %v4563, %v4588
        %v4599 = vadd.f32 %v4564, %v4588
        %v4600 = vadd.f32 %v4565, %v4588
        %v4601 = vadd.f32 %v4566, %v4588
        %v4602 = vadd.f32 %v4567, %v4588
        %v4603 = vadd.f32 %v4568, %v4588
        %v4604 = vadd.f32 %v4569, %v4588
        %v4605 = vadd.f32 %v4570, %v4588
        %v4606 = vadd.f32 %v4571, %v4588
        %v4607 = vadd.f32 %v4572, %v4588
        %v4608 = vadd.f32 %v4573, %v4588
        %v4609 = vadd.f32 %v4574, %v4588
        %v4610 = vadd.f32 %v4575, %v4588
        %v4611 = vadd.f32 %v4576, %v4588
        %v4612 = vadd.f32 %v4577, %v4588
        %v4613 = vadd.f32 %v4578, %v4588
        %v4614 = vadd.f32 %v4579, %v4588
        %v4615 = vadd.f32 %v4580, %v4588
        %v4616 = vadd.f32 %v4581, %v4588
        %v4617 = vadd.f32 %v4582, %v4588
        %v4618 = vadd.f32 %v4583, %v4588
        %v4619 = vadd.f32 %v4584, %v4588
        %v4620 = vadd.f32 %v4585, %v4588
        %v4621 = vadd.f32 %v4586, %v4588
        %v4622 = vadd.f32 %v3816, %v4590
        %v4623 = vadd.f32 %v3817, %v4591
        %v4624 = vadd.f32 %v3818, %v4592
        %v4625 = vadd.f32 %v3819, %v4593
        %v4626 = vadd.f32 %v3820, %v4594
        %v4627 = vadd.f32 %v3821, %v4595
        %v4628 = vadd.f32 %v3822, %v4596
        %v4629 = vadd.f32 %v3823, %v4597
        %v4630 = vadd.f32 %v3824, %v4598
        %v4631 = vadd.f32 %v3825, %v4599
        %v4632 = vadd.f32 %v3826, %v4600
        %v4633 = vadd.f32 %v3827, %v4601
        %v4634 = vadd.f32 %v3828, %v4602
        %v4635 = vadd.f32 %v3829, %v4603
        %v4636 = vadd.f32 %v3830, %v4604
        %v4637 = vadd.f32 %v3831, %v4605
        %v4638 = vadd.f32 %v3832, %v4606
        %v4639 = vadd.f32 %v3833, %v4607
        %v4640 = vadd.f32 %v3834, %v4608
        %v4641 = vadd.f32 %v3835, %v4609
        %v4642 = vadd.f32 %v3836, %v4610
        %v4643 = vadd.f32 %v3837, %v4611
        %v4644 = vadd.f32 %v3838, %v4612
        %v4645 = vadd.f32 %v3839, %v4613
        %v4646 = vadd.f32 %v3840, %v4614
        %v4647 = vadd.f32 %v3841, %v4615
        %v4648 = vadd.f32 %v3842, %v4616
        %v4649 = vadd.f32 %v3843, %v4617
        %v4650 = vadd.f32 %v3844, %v4618
        %v4651 = vadd.f32 %v3845, %v4619
        %v4652 = vadd.f32 %v3846, %v4620
        %v4653 = vadd.f32 %v3847, %v4621
        %v4654 = vsel %vm496, %v4622, 0.0
        %4655 = vadd.xlane.f32.xlu0 %v4654
        %v4656 = vpop.xlane.xlu0 %4655
        %v4657 = vsel %vm496, %v4623, 0.0
        %4658 = vadd.xlane.f32.xlu0 %v4657
        %v4659 = vpop.xlane.xlu0 %4658
        %v4660 = vsel %vm496, %v4624, 0.0
        %4661 = vadd.xlane.f32.xlu0 %v4660
        %v4662 = vpop.xlane.xlu0 %4661
        %v4663 = vsel %vm496, %v4625, 0.0
        %4664 = vadd.xlane.f32.xlu0 %v4663
        %v4665 = vpop.xlane.xlu0 %4664
        %v4666 = vsel %vm496, %v4626, 0.0
        %4667 = vadd.xlane.f32.xlu0 %v4666
        %v4668 = vpop.xlane.xlu0 %4667
        %v4669 = vsel %vm496, %v4627, 0.0
        %4670 = vadd.xlane.f32.xlu0 %v4669
        %v4671 = vpop.xlane.xlu0 %4670
        %v4672 = vsel %vm496, %v4628, 0.0
        %4673 = vadd.xlane.f32.xlu0 %v4672
        %v4674 = vpop.xlane.xlu0 %4673
        %v4675 = vsel %vm496, %v4629, 0.0
        %4676 = vadd.xlane.f32.xlu0 %v4675
        %v4677 = vpop.xlane.xlu0 %4676
        %v4678 = vsel %vm496, %v4630, 0.0
        %4679 = vadd.xlane.f32.xlu0 %v4678
        %v4680 = vpop.xlane.xlu0 %4679
        %v4681 = vsel %vm496, %v4631, 0.0
        %4682 = vadd.xlane.f32.xlu0 %v4681
        %v4683 = vpop.xlane.xlu0 %4682
        %v4684 = vsel %vm496, %v4632, 0.0
        %4685 = vadd.xlane.f32.xlu0 %v4684
        %v4686 = vpop.xlane.xlu0 %4685
        %v4687 = vsel %vm496, %v4633, 0.0
        %4688 = vadd.xlane.f32.xlu0 %v4687
        %v4689 = vpop.xlane.xlu0 %4688
        %v4690 = vsel %vm496, %v4634, 0.0
        %4691 = vadd.xlane.f32.xlu0 %v4690
        %v4692 = vpop.xlane.xlu0 %4691
        %v4693 = vsel %vm496, %v4635, 0.0
        %4694 = vadd.xlane.f32.xlu0 %v4693
        %v4695 = vpop.xlane.xlu0 %4694
        %v4696 = vsel %vm496, %v4636, 0.0
        %4697 = vadd.xlane.f32.xlu0 %v4696
        %v4698 = vpop.xlane.xlu0 %4697
        %v4699 = vsel %vm496, %v4637, 0.0
        %4700 = vadd.xlane.f32.xlu0 %v4699
        %v4701 = vpop.xlane.xlu0 %4700
        %v4702 = vsel %vm496, %v4638, 0.0
        %4703 = vadd.xlane.f32.xlu0 %v4702
        %v4704 = vpop.xlane.xlu0 %4703
        %v4705 = vsel %vm496, %v4639, 0.0
        %4706 = vadd.xlane.f32.xlu0 %v4705
        %v4707 = vpop.xlane.xlu0 %4706
        %v4708 = vsel %vm496, %v4640, 0.0
        %4709 = vadd.xlane.f32.xlu0 %v4708
        %v4710 = vpop.xlane.xlu0 %4709
        %v4711 = vsel %vm496, %v4641, 0.0
        %4712 = vadd.xlane.f32.xlu0 %v4711
        %v4713 = vpop.xlane.xlu0 %4712
        %v4714 = vsel %vm496, %v4642, 0.0
        %4715 = vadd.xlane.f32.xlu0 %v4714
        %v4716 = vpop.xlane.xlu0 %4715
        %v4717 = vsel %vm496, %v4643, 0.0
        %4718 = vadd.xlane.f32.xlu0 %v4717
        %v4719 = vpop.xlane.xlu0 %4718
        %v4720 = vsel %vm496, %v4644, 0.0
        %4721 = vadd.xlane.f32.xlu0 %v4720
        %v4722 = vpop.xlane.xlu0 %4721
        %v4723 = vsel %vm496, %v4645, 0.0
        %4724 = vadd.xlane.f32.xlu0 %v4723
        %v4725 = vpop.xlane.xlu0 %4724
        %v4726 = vsel %vm496, %v4646, 0.0
        %4727 = vadd.xlane.f32.xlu0 %v4726
        %v4728 = vpop.xlane.xlu0 %4727
        %v4729 = vsel %vm496, %v4647, 0.0
        %4730 = vadd.xlane.f32.xlu0 %v4729
        %v4731 = vpop.xlane.xlu0 %4730
        %v4732 = vsel %vm496, %v4648, 0.0
        %4733 = vadd.xlane.f32.xlu0 %v4732
        %v4734 = vpop.xlane.xlu0 %4733
        %v4735 = vsel %vm496, %v4649, 0.0
        %4736 = vadd.xlane.f32.xlu0 %v4735
        %v4737 = vpop.xlane.xlu0 %4736
        %v4738 = vsel %vm496, %v4650, 0.0
        %4739 = vadd.xlane.f32.xlu0 %v4738
        %v4740 = vpop.xlane.xlu0 %4739
        %v4741 = vsel %vm496, %v4651, 0.0
        %4742 = vadd.xlane.f32.xlu0 %v4741
        %v4743 = vpop.xlane.xlu0 %4742
        %v4744 = vsel %vm496, %v4652, 0.0
        %4745 = vadd.xlane.f32.xlu0 %v4744
        %v4746 = vpop.xlane.xlu0 %4745
        %v4747 = vsel %vm496, %v4653, 0.0
        %4748 = vadd.xlane.f32.xlu0 %v4747
        %v4749 = vpop.xlane.xlu0 %4748
        %v4750 = vmul.f32 %v4656, %v599
        %v4751 = vmul.f32 %v4659, %v599
        %v4752 = vmul.f32 %v4662, %v599
        %v4753 = vmul.f32 %v4665, %v599
        %v4754 = vmul.f32 %v4668, %v599
        %v4755 = vmul.f32 %v4671, %v599
        %v4756 = vmul.f32 %v4674, %v599
        %v4757 = vmul.f32 %v4677, %v599
        %v4758 = vmul.f32 %v4680, %v599
        %v4759 = vmul.f32 %v4683, %v599
        %v4760 = vmul.f32 %v4686, %v599
        %v4761 = vmul.f32 %v4689, %v599
        %v4762 = vmul.f32 %v4692, %v599
        %v4763 = vmul.f32 %v4695, %v599
        %v4764 = vmul.f32 %v4698, %v599
        %v4765 = vmul.f32 %v4701, %v599
        %v4766 = vmul.f32 %v4704, %v599
        %v4767 = vmul.f32 %v4707, %v599
        %v4768 = vmul.f32 %v4710, %v599
        %v4769 = vmul.f32 %v4713, %v599
        %v4770 = vmul.f32 %v4716, %v599
        %v4771 = vmul.f32 %v4719, %v599
        %v4772 = vmul.f32 %v4722, %v599
        %v4773 = vmul.f32 %v4725, %v599
        %v4774 = vmul.f32 %v4728, %v599
        %v4775 = vmul.f32 %v4731, %v599
        %v4776 = vmul.f32 %v4734, %v599
        %v4777 = vmul.f32 %v4737, %v599
        %v4778 = vmul.f32 %v4740, %v599
        %v4779 = vmul.f32 %v4743, %v599
        %v4780 = vmul.f32 %v4746, %v599
        %v4781 = vmul.f32 %v4749, %v599
        %v4782 = vsub.f32 %v4622, %v4750
        %v4783 = vsub.f32 %v4623, %v4751
        %v4784 = vsub.f32 %v4624, %v4752
        %v4785 = vsub.f32 %v4625, %v4753
        %v4786 = vsub.f32 %v4626, %v4754
        %v4787 = vsub.f32 %v4627, %v4755
        %v4788 = vsub.f32 %v4628, %v4756
        %v4789 = vsub.f32 %v4629, %v4757
        %v4790 = vsub.f32 %v4630, %v4758
        %v4791 = vsub.f32 %v4631, %v4759
        %v4792 = vsub.f32 %v4632, %v4760
        %v4793 = vsub.f32 %v4633, %v4761
        %v4794 = vsub.f32 %v4634, %v4762
        %v4795 = vsub.f32 %v4635, %v4763
        %v4796 = vsub.f32 %v4636, %v4764
        %v4797 = vsub.f32 %v4637, %v4765
        %v4798 = vsub.f32 %v4638, %v4766
        %v4799 = vsub.f32 %v4639, %v4767
        %v4800 = vsub.f32 %v4640, %v4768
        %v4801 = vsub.f32 %v4641, %v4769
        %v4802 = vsub.f32 %v4642, %v4770
        %v4803 = vsub.f32 %v4643, %v4771
        %v4804 = vsub.f32 %v4644, %v4772
        %v4805 = vsub.f32 %v4645, %v4773
        %v4806 = vsub.f32 %v4646, %v4774
        %v4807 = vsub.f32 %v4647, %v4775
        %v4808 = vsub.f32 %v4648, %v4776
        %v4809 = vsub.f32 %v4649, %v4777
        %v4810 = vsub.f32 %v4650, %v4778
        %v4811 = vsub.f32 %v4651, %v4779
        %v4812 = vsub.f32 %v4652, %v4780
        %v4813 = vsub.f32 %v4653, %v4781
        %v4814 = vmul.f32 %v4782, %v4782
        %v4815 = vmul.f32 %v4783, %v4783
        %v4816 = vmul.f32 %v4784, %v4784
        %v4817 = vmul.f32 %v4785, %v4785
        %v4818 = vmul.f32 %v4786, %v4786
        %v4819 = vmul.f32 %v4787, %v4787
        %v4820 = vmul.f32 %v4788, %v4788
        %v4821 = vmul.f32 %v4789, %v4789
        %v4822 = vmul.f32 %v4790, %v4790
        %v4823 = vmul.f32 %v4791, %v4791
        %v4824 = vmul.f32 %v4792, %v4792
        %v4825 = vmul.f32 %v4793, %v4793
        %v4826 = vmul.f32 %v4794, %v4794
        %v4827 = vmul.f32 %v4795, %v4795
        %v4828 = vmul.f32 %v4796, %v4796
        %v4829 = vmul.f32 %v4797, %v4797
        %v4830 = vmul.f32 %v4798, %v4798
        %v4831 = vmul.f32 %v4799, %v4799
        %v4832 = vmul.f32 %v4800, %v4800
        %v4833 = vmul.f32 %v4801, %v4801
        %v4834 = vmul.f32 %v4802, %v4802
        %v4835 = vmul.f32 %v4803, %v4803
        %v4836 = vmul.f32 %v4804, %v4804
        %v4837 = vmul.f32 %v4805, %v4805
        %v4838 = vmul.f32 %v4806, %v4806
        %v4839 = vmul.f32 %v4807, %v4807
        %v4840 = vmul.f32 %v4808, %v4808
        %v4841 = vmul.f32 %v4809, %v4809
        %v4842 = vmul.f32 %v4810, %v4810
        %v4843 = vmul.f32 %v4811, %v4811
        %v4844 = vmul.f32 %v4812, %v4812
        %v4845 = vmul.f32 %v4813, %v4813
        %v4846 = vsel %vm496, %v4814, 0.0
        %4847 = vadd.xlane.f32.xlu0 %v4846
        %v4848 = vpop.xlane.xlu0 %4847
        %v4849 = vsel %vm496, %v4815, 0.0
        %4850 = vadd.xlane.f32.xlu0 %v4849
        %v4851 = vpop.xlane.xlu0 %4850
        %v4852 = vsel %vm496, %v4816, 0.0
        %4853 = vadd.xlane.f32.xlu0 %v4852
        %v4854 = vpop.xlane.xlu0 %4853
        %v4855 = vsel %vm496, %v4817, 0.0
        %4856 = vadd.xlane.f32.xlu0 %v4855
        %v4857 = vpop.xlane.xlu0 %4856
        %v4858 = vsel %vm496, %v4818, 0.0
        %4859 = vadd.xlane.f32.xlu0 %v4858
        %v4860 = vpop.xlane.xlu0 %4859
        %v4861 = vsel %vm496, %v4819, 0.0
        %4862 = vadd.xlane.f32.xlu0 %v4861
        %v4863 = vpop.xlane.xlu0 %4862
        %v4864 = vsel %vm496, %v4820, 0.0
        %4865 = vadd.xlane.f32.xlu0 %v4864
        %v4866 = vpop.xlane.xlu0 %4865
        %v4867 = vsel %vm496, %v4821, 0.0
        %4868 = vadd.xlane.f32.xlu0 %v4867
        %v4869 = vpop.xlane.xlu0 %4868
        %v4870 = vsel %vm496, %v4822, 0.0
        %4871 = vadd.xlane.f32.xlu0 %v4870
        %v4872 = vpop.xlane.xlu0 %4871
        %v4873 = vsel %vm496, %v4823, 0.0
        %4874 = vadd.xlane.f32.xlu0 %v4873
        %v4875 = vpop.xlane.xlu0 %4874
        %v4876 = vsel %vm496, %v4824, 0.0
        %4877 = vadd.xlane.f32.xlu0 %v4876
        %v4878 = vpop.xlane.xlu0 %4877
        %v4879 = vsel %vm496, %v4825, 0.0
        %4880 = vadd.xlane.f32.xlu0 %v4879
        %v4881 = vpop.xlane.xlu0 %4880
        %v4882 = vsel %vm496, %v4826, 0.0
        %4883 = vadd.xlane.f32.xlu0 %v4882
        %v4884 = vpop.xlane.xlu0 %4883
        %v4885 = vsel %vm496, %v4827, 0.0
        %4886 = vadd.xlane.f32.xlu0 %v4885
        %v4887 = vpop.xlane.xlu0 %4886
        %v4888 = vsel %vm496, %v4828, 0.0
        %4889 = vadd.xlane.f32.xlu0 %v4888
        %v4890 = vpop.xlane.xlu0 %4889
        %v4891 = vsel %vm496, %v4829, 0.0
        %4892 = vadd.xlane.f32.xlu0 %v4891
        %v4893 = vpop.xlane.xlu0 %4892
        %v4894 = vsel %vm496, %v4830, 0.0
        %4895 = vadd.xlane.f32.xlu0 %v4894
        %v4896 = vpop.xlane.xlu0 %4895
        %v4897 = vsel %vm496, %v4831, 0.0
        %4898 = vadd.xlane.f32.xlu0 %v4897
        %v4899 = vpop.xlane.xlu0 %4898
        %v4900 = vsel %vm496, %v4832, 0.0
        %4901 = vadd.xlane.f32.xlu0 %v4900
        %v4902 = vpop.xlane.xlu0 %4901
        %v4903 = vsel %vm496, %v4833, 0.0
        %4904 = vadd.xlane.f32.xlu0 %v4903
        %v4905 = vpop.xlane.xlu0 %4904
        %v4906 = vsel %vm496, %v4834, 0.0
        %4907 = vadd.xlane.f32.xlu0 %v4906
        %v4908 = vpop.xlane.xlu0 %4907
        %v4909 = vsel %vm496, %v4835, 0.0
        %4910 = vadd.xlane.f32.xlu0 %v4909
        %v4911 = vpop.xlane.xlu0 %4910
        %v4912 = vsel %vm496, %v4836, 0.0
        %4913 = vadd.xlane.f32.xlu0 %v4912
        %v4914 = vpop.xlane.xlu0 %4913
        %v4915 = vsel %vm496, %v4837, 0.0
        %4916 = vadd.xlane.f32.xlu0 %v4915
        %v4917 = vpop.xlane.xlu0 %4916
        %v4918 = vsel %vm496, %v4838, 0.0
        %4919 = vadd.xlane.f32.xlu0 %v4918
        %v4920 = vpop.xlane.xlu0 %4919
        %v4921 = vsel %vm496, %v4839, 0.0
        %4922 = vadd.xlane.f32.xlu0 %v4921
        %v4923 = vpop.xlane.xlu0 %4922
        %v4924 = vsel %vm496, %v4840, 0.0
        %4925 = vadd.xlane.f32.xlu0 %v4924
        %v4926 = vpop.xlane.xlu0 %4925
        %v4927 = vsel %vm496, %v4841, 0.0
        %4928 = vadd.xlane.f32.xlu0 %v4927
        %v4929 = vpop.xlane.xlu0 %4928
        %v4930 = vsel %vm496, %v4842, 0.0
        %4931 = vadd.xlane.f32.xlu0 %v4930
        %v4932 = vpop.xlane.xlu0 %4931
        %v4933 = vsel %vm496, %v4843, 0.0
        %4934 = vadd.xlane.f32.xlu0 %v4933
        %v4935 = vpop.xlane.xlu0 %4934
        %v4936 = vsel %vm496, %v4844, 0.0
        %4937 = vadd.xlane.f32.xlu0 %v4936
        %v4938 = vpop.xlane.xlu0 %4937
        %v4939 = vsel %vm496, %v4845, 0.0
        %4940 = vadd.xlane.f32.xlu0 %v4939
        %v4941 = vpop.xlane.xlu0 %4940
        %v4942 = vmul.f32 %v4848, %v599
        %v4943 = vmul.f32 %v4851, %v599
        %v4944 = vmul.f32 %v4854, %v599
        %v4945 = vmul.f32 %v4857, %v599
        %v4946 = vmul.f32 %v4860, %v599
        %v4947 = vmul.f32 %v4863, %v599
        %v4948 = vmul.f32 %v4866, %v599
        %v4949 = vmul.f32 %v4869, %v599
        %v4950 = vmul.f32 %v4872, %v599
        %v4951 = vmul.f32 %v4875, %v599
        %v4952 = vmul.f32 %v4878, %v599
        %v4953 = vmul.f32 %v4881, %v599
        %v4954 = vmul.f32 %v4884, %v599
        %v4955 = vmul.f32 %v4887, %v599
        %v4956 = vmul.f32 %v4890, %v599
        %v4957 = vmul.f32 %v4893, %v599
        %v4958 = vmul.f32 %v4896, %v599
        %v4959 = vmul.f32 %v4899, %v599
        %v4960 = vmul.f32 %v4902, %v599
        %v4961 = vmul.f32 %v4905, %v599
        %v4962 = vmul.f32 %v4908, %v599
        %v4963 = vmul.f32 %v4911, %v599
        %v4964 = vmul.f32 %v4914, %v599
        %v4965 = vmul.f32 %v4917, %v599
        %v4966 = vmul.f32 %v4920, %v599
        %v4967 = vmul.f32 %v4923, %v599
        %v4968 = vmul.f32 %v4926, %v599
        %v4969 = vmul.f32 %v4929, %v599
        %v4970 = vmul.f32 %v4932, %v599
        %v4971 = vmul.f32 %v4935, %v599
        %v4972 = vmul.f32 %v4938, %v599
        %v4973 = vmul.f32 %v4941, %v599
        %v4974 = vadd.f32 %v4942, 1e-06
        %v4975 = vadd.f32 %v4943, 1e-06
        %v4976 = vadd.f32 %v4944, 1e-06
        %v4977 = vadd.f32 %v4945, 1e-06
        %v4978 = vadd.f32 %v4946, 1e-06
        %v4979 = vadd.f32 %v4947, 1e-06
        %v4980 = vadd.f32 %v4948, 1e-06
        %v4981 = vadd.f32 %v4949, 1e-06
        %v4982 = vadd.f32 %v4950, 1e-06
        %v4983 = vadd.f32 %v4951, 1e-06
        %v4984 = vadd.f32 %v4952, 1e-06
        %v4985 = vadd.f32 %v4953, 1e-06
        %v4986 = vadd.f32 %v4954, 1e-06
        %v4987 = vadd.f32 %v4955, 1e-06
        %v4988 = vadd.f32 %v4956, 1e-06
        %v4989 = vadd.f32 %v4957, 1e-06
        %v4990 = vadd.f32 %v4958, 1e-06
        %v4991 = vadd.f32 %v4959, 1e-06
        %v4992 = vadd.f32 %v4960, 1e-06
        %v4993 = vadd.f32 %v4961, 1e-06
        %v4994 = vadd.f32 %v4962, 1e-06
        %v4995 = vadd.f32 %v4963, 1e-06
        %v4996 = vadd.f32 %v4964, 1e-06
        %v4997 = vadd.f32 %v4965, 1e-06
        %v4998 = vadd.f32 %v4966, 1e-06
        %v4999 = vadd.f32 %v4967, 1e-06
        %v5000 = vadd.f32 %v4968, 1e-06
        %v5001 = vadd.f32 %v4969, 1e-06
        %v5002 = vadd.f32 %v4970, 1e-06
        %v5003 = vadd.f32 %v4971, 1e-06
        %v5004 = vadd.f32 %v4972, 1e-06
        %v5005 = vadd.f32 %v4973, 1e-06
        %v5006 = vrsqrt.pop %v4974
        %v5007 = vmul.f32 %v5006, %v4974
        %v5008 = vmul.f32 %v5007, %v5006
        %v5009 = vmul.f32 0.5, %v5008
        %v5010 = vsub.f32 1.5, %v5009
        %v5011 = vmul.f32 %v5006, %v5010
        %vm5012 = vweird.f32 %v4974
        %vm5013 = vweird.f32 %v5006
        %vm5014 = vmor %vm5012, %vm5013
        %v5015 = vsel %vm5014, %v5006, %v5011
        %v5016 = vrsqrt.pop %v4975
        %v5017 = vmul.f32 %v5016, %v4975
        %v5018 = vmul.f32 %v5017, %v5016
        %v5019 = vmul.f32 0.5, %v5018
        %v5020 = vsub.f32 1.5, %v5019
        %v5021 = vmul.f32 %v5016, %v5020
        %vm5022 = vweird.f32 %v4975
        %vm5023 = vweird.f32 %v5016
        %vm5024 = vmor %vm5022, %vm5023
        %v5025 = vsel %vm5024, %v5016, %v5021
        %v5026 = vrsqrt.pop %v4976
        %v5027 = vmul.f32 %v5026, %v4976
        %v5028 = vmul.f32 %v5027, %v5026
        %v5029 = vmul.f32 0.5, %v5028
        %v5030 = vsub.f32 1.5, %v5029
        %v5031 = vmul.f32 %v5026, %v5030
        %vm5032 = vweird.f32 %v4976
        %vm5033 = vweird.f32 %v5026
        %vm5034 = vmor %vm5032, %vm5033
        %v5035 = vsel %vm5034, %v5026, %v5031
        %v5036 = vrsqrt.pop %v4977
        %v5037 = vmul.f32 %v5036, %v4977
        %v5038 = vmul.f32 %v5037, %v5036
        %v5039 = vmul.f32 0.5, %v5038
        %v5040 = vsub.f32 1.5, %v5039
        %v5041 = vmul.f32 %v5036, %v5040
        %vm5042 = vweird.f32 %v4977
        %vm5043 = vweird.f32 %v5036
        %vm5044 = vmor %vm5042, %vm5043
        %v5045 = vsel %vm5044, %v5036, %v5041
        %v5046 = vrsqrt.pop %v4978
        %v5047 = vmul.f32 %v5046, %v4978
        %v5048 = vmul.f32 %v5047, %v5046
        %v5049 = vmul.f32 0.5, %v5048
        %v5050 = vsub.f32 1.5, %v5049
        %v5051 = vmul.f32 %v5046, %v5050
        %vm5052 = vweird.f32 %v4978
        %vm5053 = vweird.f32 %v5046
        %vm5054 = vmor %vm5052, %vm5053
        %v5055 = vsel %vm5054, %v5046, %v5051
        %v5056 = vrsqrt.pop %v4979
        %v5057 = vmul.f32 %v5056, %v4979
        %v5058 = vmul.f32 %v5057, %v5056
        %v5059 = vmul.f32 0.5, %v5058
        %v5060 = vsub.f32 1.5, %v5059
        %v5061 = vmul.f32 %v5056, %v5060
        %vm5062 = vweird.f32 %v4979
        %vm5063 = vweird.f32 %v5056
        %vm5064 = vmor %vm5062, %vm5063
        %v5065 = vsel %vm5064, %v5056, %v5061
        %v5066 = vrsqrt.pop %v4980
        %v5067 = vmul.f32 %v5066, %v4980
        %v5068 = vmul.f32 %v5067, %v5066
        %v5069 = vmul.f32 0.5, %v5068
        %v5070 = vsub.f32 1.5, %v5069
        %v5071 = vmul.f32 %v5066, %v5070
        %vm5072 = vweird.f32 %v4980
        %vm5073 = vweird.f32 %v5066
        %vm5074 = vmor %vm5072, %vm5073
        %v5075 = vsel %vm5074, %v5066, %v5071
        %v5076 = vrsqrt.pop %v4981
        %v5077 = vmul.f32 %v5076, %v4981
        %v5078 = vmul.f32 %v5077, %v5076
        %v5079 = vmul.f32 0.5, %v5078
        %v5080 = vsub.f32 1.5, %v5079
        %v5081 = vmul.f32 %v5076, %v5080
        %vm5082 = vweird.f32 %v4981
        %vm5083 = vweird.f32 %v5076
        %vm5084 = vmor %vm5082, %vm5083
        %v5085 = vsel %vm5084, %v5076, %v5081
        %v5086 = vrsqrt.pop %v4982
        %v5087 = vmul.f32 %v5086, %v4982
        %v5088 = vmul.f32 %v5087, %v5086
        %v5089 = vmul.f32 0.5, %v5088
        %v5090 = vsub.f32 1.5, %v5089
        %v5091 = vmul.f32 %v5086, %v5090
        %vm5092 = vweird.f32 %v4982
        %vm5093 = vweird.f32 %v5086
        %vm5094 = vmor %vm5092, %vm5093
        %v5095 = vsel %vm5094, %v5086, %v5091
        %v5096 = vrsqrt.pop %v4983
        %v5097 = vmul.f32 %v5096, %v4983
        %v5098 = vmul.f32 %v5097, %v5096
        %v5099 = vmul.f32 0.5, %v5098
        %v5100 = vsub.f32 1.5, %v5099
        %v5101 = vmul.f32 %v5096, %v5100
        %vm5102 = vweird.f32 %v4983
        %vm5103 = vweird.f32 %v5096
        %vm5104 = vmor %vm5102, %vm5103
        %v5105 = vsel %vm5104, %v5096, %v5101
        %v5106 = vrsqrt.pop %v4984
        %v5107 = vmul.f32 %v5106, %v4984
        %v5108 = vmul.f32 %v5107, %v5106
        %v5109 = vmul.f32 0.5, %v5108
        %v5110 = vsub.f32 1.5, %v5109
        %v5111 = vmul.f32 %v5106, %v5110
        %vm5112 = vweird.f32 %v4984
        %vm5113 = vweird.f32 %v5106
        %vm5114 = vmor %vm5112, %vm5113
        %v5115 = vsel %vm5114, %v5106, %v5111
        %v5116 = vrsqrt.pop %v4985
        %v5117 = vmul.f32 %v5116, %v4985
        %v5118 = vmul.f32 %v5117, %v5116
        %v5119 = vmul.f32 0.5, %v5118
        %v5120 = vsub.f32 1.5, %v5119
        %v5121 = vmul.f32 %v5116, %v5120
        %vm5122 = vweird.f32 %v4985
        %vm5123 = vweird.f32 %v5116
        %vm5124 = vmor %vm5122, %vm5123
        %v5125 = vsel %vm5124, %v5116, %v5121
        %v5126 = vrsqrt.pop %v4986
        %v5127 = vmul.f32 %v5126, %v4986
        %v5128 = vmul.f32 %v5127, %v5126
        %v5129 = vmul.f32 0.5, %v5128
        %v5130 = vsub.f32 1.5, %v5129
        %v5131 = vmul.f32 %v5126, %v5130
        %vm5132 = vweird.f32 %v4986
        %vm5133 = vweird.f32 %v5126
        %vm5134 = vmor %vm5132, %vm5133
        %v5135 = vsel %vm5134, %v5126, %v5131
        %v5136 = vrsqrt.pop %v4987
        %v5137 = vmul.f32 %v5136, %v4987
        %v5138 = vmul.f32 %v5137, %v5136
        %v5139 = vmul.f32 0.5, %v5138
        %v5140 = vsub.f32 1.5, %v5139
        %v5141 = vmul.f32 %v5136, %v5140
        %vm5142 = vweird.f32 %v4987
        %vm5143 = vweird.f32 %v5136
        %vm5144 = vmor %vm5142, %vm5143
        %v5145 = vsel %vm5144, %v5136, %v5141
        %v5146 = vrsqrt.pop %v4988
        %v5147 = vmul.f32 %v5146, %v4988
        %v5148 = vmul.f32 %v5147, %v5146
        %v5149 = vmul.f32 0.5, %v5148
        %v5150 = vsub.f32 1.5, %v5149
        %v5151 = vmul.f32 %v5146, %v5150
        %vm5152 = vweird.f32 %v4988
        %vm5153 = vweird.f32 %v5146
        %vm5154 = vmor %vm5152, %vm5153
        %v5155 = vsel %vm5154, %v5146, %v5151
        %v5156 = vrsqrt.pop %v4989
        %v5157 = vmul.f32 %v5156, %v4989
        %v5158 = vmul.f32 %v5157, %v5156
        %v5159 = vmul.f32 0.5, %v5158
        %v5160 = vsub.f32 1.5, %v5159
        %v5161 = vmul.f32 %v5156, %v5160
        %vm5162 = vweird.f32 %v4989
        %vm5163 = vweird.f32 %v5156
        %vm5164 = vmor %vm5162, %vm5163
        %v5165 = vsel %vm5164, %v5156, %v5161
        %v5166 = vrsqrt.pop %v4990
        %v5167 = vmul.f32 %v5166, %v4990
        %v5168 = vmul.f32 %v5167, %v5166
        %v5169 = vmul.f32 0.5, %v5168
        %v5170 = vsub.f32 1.5, %v5169
        %v5171 = vmul.f32 %v5166, %v5170
        %vm5172 = vweird.f32 %v4990
        %vm5173 = vweird.f32 %v5166
        %vm5174 = vmor %vm5172, %vm5173
        %v5175 = vsel %vm5174, %v5166, %v5171
        %v5176 = vrsqrt.pop %v4991
        %v5177 = vmul.f32 %v5176, %v4991
        %v5178 = vmul.f32 %v5177, %v5176
        %v5179 = vmul.f32 0.5, %v5178
        %v5180 = vsub.f32 1.5, %v5179
        %v5181 = vmul.f32 %v5176, %v5180
        %vm5182 = vweird.f32 %v4991
        %vm5183 = vweird.f32 %v5176
        %vm5184 = vmor %vm5182, %vm5183
        %v5185 = vsel %vm5184, %v5176, %v5181
        %v5186 = vrsqrt.pop %v4992
        %v5187 = vmul.f32 %v5186, %v4992
        %v5188 = vmul.f32 %v5187, %v5186
        %v5189 = vmul.f32 0.5, %v5188
        %v5190 = vsub.f32 1.5, %v5189
        %v5191 = vmul.f32 %v5186, %v5190
        %vm5192 = vweird.f32 %v4992
        %vm5193 = vweird.f32 %v5186
        %vm5194 = vmor %vm5192, %vm5193
        %v5195 = vsel %vm5194, %v5186, %v5191
        %v5196 = vrsqrt.pop %v4993
        %v5197 = vmul.f32 %v5196, %v4993
        %v5198 = vmul.f32 %v5197, %v5196
        %v5199 = vmul.f32 0.5, %v5198
        %v5200 = vsub.f32 1.5, %v5199
        %v5201 = vmul.f32 %v5196, %v5200
        %vm5202 = vweird.f32 %v4993
        %vm5203 = vweird.f32 %v5196
        %vm5204 = vmor %vm5202, %vm5203
        %v5205 = vsel %vm5204, %v5196, %v5201
        %v5206 = vrsqrt.pop %v4994
        %v5207 = vmul.f32 %v5206, %v4994
        %v5208 = vmul.f32 %v5207, %v5206
        %v5209 = vmul.f32 0.5, %v5208
        %v5210 = vsub.f32 1.5, %v5209
        %v5211 = vmul.f32 %v5206, %v5210
        %vm5212 = vweird.f32 %v4994
        %vm5213 = vweird.f32 %v5206
        %vm5214 = vmor %vm5212, %vm5213
        %v5215 = vsel %vm5214, %v5206, %v5211
        %v5216 = vrsqrt.pop %v4995
        %v5217 = vmul.f32 %v5216, %v4995
        %v5218 = vmul.f32 %v5217, %v5216
        %v5219 = vmul.f32 0.5, %v5218
        %v5220 = vsub.f32 1.5, %v5219
        %v5221 = vmul.f32 %v5216, %v5220
        %vm5222 = vweird.f32 %v4995
        %vm5223 = vweird.f32 %v5216
        %vm5224 = vmor %vm5222, %vm5223
        %v5225 = vsel %vm5224, %v5216, %v5221
        %v5226 = vrsqrt.pop %v4996
        %v5227 = vmul.f32 %v5226, %v4996
        %v5228 = vmul.f32 %v5227, %v5226
        %v5229 = vmul.f32 0.5, %v5228
        %v5230 = vsub.f32 1.5, %v5229
        %v5231 = vmul.f32 %v5226, %v5230
        %vm5232 = vweird.f32 %v4996
        %vm5233 = vweird.f32 %v5226
        %vm5234 = vmor %vm5232, %vm5233
        %v5235 = vsel %vm5234, %v5226, %v5231
        %v5236 = vrsqrt.pop %v4997
        %v5237 = vmul.f32 %v5236, %v4997
        %v5238 = vmul.f32 %v5237, %v5236
        %v5239 = vmul.f32 0.5, %v5238
        %v5240 = vsub.f32 1.5, %v5239
        %v5241 = vmul.f32 %v5236, %v5240
        %vm5242 = vweird.f32 %v4997
        %vm5243 = vweird.f32 %v5236
        %vm5244 = vmor %vm5242, %vm5243
        %v5245 = vsel %vm5244, %v5236, %v5241
        %v5246 = vrsqrt.pop %v4998
        %v5247 = vmul.f32 %v5246, %v4998
        %v5248 = vmul.f32 %v5247, %v5246
        %v5249 = vmul.f32 0.5, %v5248
        %v5250 = vsub.f32 1.5, %v5249
        %v5251 = vmul.f32 %v5246, %v5250
        %vm5252 = vweird.f32 %v4998
        %vm5253 = vweird.f32 %v5246
        %vm5254 = vmor %vm5252, %vm5253
        %v5255 = vsel %vm5254, %v5246, %v5251
        %v5256 = vrsqrt.pop %v4999
        %v5257 = vmul.f32 %v5256, %v4999
        %v5258 = vmul.f32 %v5257, %v5256
        %v5259 = vmul.f32 0.5, %v5258
        %v5260 = vsub.f32 1.5, %v5259
        %v5261 = vmul.f32 %v5256, %v5260
        %vm5262 = vweird.f32 %v4999
        %vm5263 = vweird.f32 %v5256
        %vm5264 = vmor %vm5262, %vm5263
        %v5265 = vsel %vm5264, %v5256, %v5261
        %v5266 = vrsqrt.pop %v5000
        %v5267 = vmul.f32 %v5266, %v5000
        %v5268 = vmul.f32 %v5267, %v5266
        %v5269 = vmul.f32 0.5, %v5268
        %v5270 = vsub.f32 1.5, %v5269
        %v5271 = vmul.f32 %v5266, %v5270
        %vm5272 = vweird.f32 %v5000
        %vm5273 = vweird.f32 %v5266
        %vm5274 = vmor %vm5272, %vm5273
        %v5275 = vsel %vm5274, %v5266, %v5271
        %v5276 = vrsqrt.pop %v5001
        %v5277 = vmul.f32 %v5276, %v5001
        %v5278 = vmul.f32 %v5277, %v5276
        %v5279 = vmul.f32 0.5, %v5278
        %v5280 = vsub.f32 1.5, %v5279
        %v5281 = vmul.f32 %v5276, %v5280
        %vm5282 = vweird.f32 %v5001
        %vm5283 = vweird.f32 %v5276
        %vm5284 = vmor %vm5282, %vm5283
        %v5285 = vsel %vm5284, %v5276, %v5281
        %v5286 = vrsqrt.pop %v5002
        %v5287 = vmul.f32 %v5286, %v5002
        %v5288 = vmul.f32 %v5287, %v5286
        %v5289 = vmul.f32 0.5, %v5288
        %v5290 = vsub.f32 1.5, %v5289
        %v5291 = vmul.f32 %v5286, %v5290
        %vm5292 = vweird.f32 %v5002
        %vm5293 = vweird.f32 %v5286
        %vm5294 = vmor %vm5292, %vm5293
        %v5295 = vsel %vm5294, %v5286, %v5291
        %v5296 = vrsqrt.pop %v5003
        %v5297 = vmul.f32 %v5296, %v5003
        %v5298 = vmul.f32 %v5297, %v5296
        %v5299 = vmul.f32 0.5, %v5298
        %v5300 = vsub.f32 1.5, %v5299
        %v5301 = vmul.f32 %v5296, %v5300
        %vm5302 = vweird.f32 %v5003
        %vm5303 = vweird.f32 %v5296
        %vm5304 = vmor %vm5302, %vm5303
        %v5305 = vsel %vm5304, %v5296, %v5301
        %v5306 = vrsqrt.pop %v5004
        %v5307 = vmul.f32 %v5306, %v5004
        %v5308 = vmul.f32 %v5307, %v5306
        %v5309 = vmul.f32 0.5, %v5308
        %v5310 = vsub.f32 1.5, %v5309
        %v5311 = vmul.f32 %v5306, %v5310
        %vm5312 = vweird.f32 %v5004
        %vm5313 = vweird.f32 %v5306
        %vm5314 = vmor %vm5312, %vm5313
        %v5315 = vsel %vm5314, %v5306, %v5311
        %v5316 = vrsqrt.pop %v5005
        %v5317 = vmul.f32 %v5316, %v5005
        %v5318 = vmul.f32 %v5317, %v5316
        %v5319 = vmul.f32 0.5, %v5318
        %v5320 = vsub.f32 1.5, %v5319
        %v5321 = vmul.f32 %v5316, %v5320
        %vm5322 = vweird.f32 %v5005
        %vm5323 = vweird.f32 %v5316
        %vm5324 = vmor %vm5322, %vm5323
        %v5325 = vsel %vm5324, %v5316, %v5321
        %v5326 = vmul.f32 %v4782, %v5015
        %v5327 = vmul.f32 %v4783, %v5025
        %v5328 = vmul.f32 %v4784, %v5035
        %v5329 = vmul.f32 %v4785, %v5045
        %v5330 = vmul.f32 %v4786, %v5055
        %v5331 = vmul.f32 %v4787, %v5065
        %v5332 = vmul.f32 %v4788, %v5075
        %v5333 = vmul.f32 %v4789, %v5085
        %v5334 = vmul.f32 %v4790, %v5095
        %v5335 = vmul.f32 %v4791, %v5105
        %v5336 = vmul.f32 %v4792, %v5115
        %v5337 = vmul.f32 %v4793, %v5125
        %v5338 = vmul.f32 %v4794, %v5135
        %v5339 = vmul.f32 %v4795, %v5145
        %v5340 = vmul.f32 %v4796, %v5155
        %v5341 = vmul.f32 %v4797, %v5165
        %v5342 = vmul.f32 %v4798, %v5175
        %v5343 = vmul.f32 %v4799, %v5185
        %v5344 = vmul.f32 %v4800, %v5195
        %v5345 = vmul.f32 %v4801, %v5205
        %v5346 = vmul.f32 %v4802, %v5215
        %v5347 = vmul.f32 %v4803, %v5225
        %v5348 = vmul.f32 %v4804, %v5235
        %v5349 = vmul.f32 %v4805, %v5245
        %v5350 = vmul.f32 %v4806, %v5255
        %v5351 = vmul.f32 %v4807, %v5265
        %v5352 = vmul.f32 %v4808, %v5275
        %v5353 = vmul.f32 %v4809, %v5285
        %v5354 = vmul.f32 %v4810, %v5295
        %v5355 = vmul.f32 %v4811, %v5305
        %v5356 = vmul.f32 %v4812, %v5315
        %v5357 = vmul.f32 %v4813, %v5325
        %v5359 = vperm.slane %v449, 0
        %v5361 = vmul.f32 %v5326, %v5359
        %v5362 = vmul.f32 %v5327, %v5359
        %v5363 = vmul.f32 %v5328, %v5359
        %v5364 = vmul.f32 %v5329, %v5359
        %v5365 = vmul.f32 %v5330, %v5359
        %v5366 = vmul.f32 %v5331, %v5359
        %v5367 = vmul.f32 %v5332, %v5359
        %v5368 = vmul.f32 %v5333, %v5359
        %v5369 = vmul.f32 %v5334, %v5359
        %v5370 = vmul.f32 %v5335, %v5359
        %v5371 = vmul.f32 %v5336, %v5359
        %v5372 = vmul.f32 %v5337, %v5359
        %v5373 = vmul.f32 %v5338, %v5359
        %v5374 = vmul.f32 %v5339, %v5359
        %v5375 = vmul.f32 %v5340, %v5359
        %v5376 = vmul.f32 %v5341, %v5359
        %v5377 = vmul.f32 %v5342, %v5359
        %v5378 = vmul.f32 %v5343, %v5359
        %v5379 = vmul.f32 %v5344, %v5359
        %v5380 = vmul.f32 %v5345, %v5359
        %v5381 = vmul.f32 %v5346, %v5359
        %v5382 = vmul.f32 %v5347, %v5359
        %v5383 = vmul.f32 %v5348, %v5359
        %v5384 = vmul.f32 %v5349, %v5359
        %v5385 = vmul.f32 %v5350, %v5359
        %v5386 = vmul.f32 %v5351, %v5359
        %v5387 = vmul.f32 %v5352, %v5359
        %v5388 = vmul.f32 %v5353, %v5359
        %v5389 = vmul.f32 %v5354, %v5359
        %v5390 = vmul.f32 %v5355, %v5359
        %v5391 = vmul.f32 %v5356, %v5359
        %v5392 = vmul.f32 %v5357, %v5359
        %v5394 = vperm.slane %v451, 0
        %v5396 = vadd.f32 %v5361, %v5394
        %v5397 = vadd.f32 %v5362, %v5394
        %v5398 = vadd.f32 %v5363, %v5394
        %v5399 = vadd.f32 %v5364, %v5394
        %v5400 = vadd.f32 %v5365, %v5394
        %v5401 = vadd.f32 %v5366, %v5394
        %v5402 = vadd.f32 %v5367, %v5394
        %v5403 = vadd.f32 %v5368, %v5394
        %v5404 = vadd.f32 %v5369, %v5394
        %v5405 = vadd.f32 %v5370, %v5394
        %v5406 = vadd.f32 %v5371, %v5394
        %v5407 = vadd.f32 %v5372, %v5394
        %v5408 = vadd.f32 %v5373, %v5394
        %v5409 = vadd.f32 %v5374, %v5394
        %v5410 = vadd.f32 %v5375, %v5394
        %v5411 = vadd.f32 %v5376, %v5394
        %v5412 = vadd.f32 %v5377, %v5394
        %v5413 = vadd.f32 %v5378, %v5394
        %v5414 = vadd.f32 %v5379, %v5394
        %v5415 = vadd.f32 %v5380, %v5394
        %v5416 = vadd.f32 %v5381, %v5394
        %v5417 = vadd.f32 %v5382, %v5394
        %v5418 = vadd.f32 %v5383, %v5394
        %v5419 = vadd.f32 %v5384, %v5394
        %v5420 = vadd.f32 %v5385, %v5394
        %v5421 = vadd.f32 %v5386, %v5394
        %v5422 = vadd.f32 %v5387, %v5394
        %v5423 = vadd.f32 %v5388, %v5394
        %v5424 = vadd.f32 %v5389, %v5394
        %v5425 = vadd.f32 %v5390, %v5394
        %v5426 = vadd.f32 %v5391, %v5394
        %v5427 = vadd.f32 %v5392, %v5394
        %v5428 = vpack.c.bf16 %v5397, %v5396
        %v5429 = vpack.c.bf16 %v5399, %v5398
        %v5430 = vpack.c.bf16 %v5401, %v5400
        %v5431 = vpack.c.bf16 %v5403, %v5402
        %v5432 = vpack.c.bf16 %v5405, %v5404
        %v5433 = vpack.c.bf16 %v5407, %v5406
        %v5434 = vpack.c.bf16 %v5409, %v5408
        %v5435 = vpack.c.bf16 %v5411, %v5410
        %v5436 = vpack.c.bf16 %v5413, %v5412
        %v5437 = vpack.c.bf16 %v5415, %v5414
        %v5438 = vpack.c.bf16 %v5417, %v5416
        %v5439 = vpack.c.bf16 %v5419, %v5418
        %v5440 = vpack.c.bf16 %v5421, %v5420
        %v5441 = vpack.c.bf16 %v5423, %v5422
        %v5442 = vpack.c.bf16 %v5425, %v5424
        %v5443 = vpack.c.bf16 %v5427, %v5426
        %v5445 = vperm.slane %v461, 0
        %v5451 = vunpack.c.l.b16 %v456
        %v5452 = vunpack.c.l.b16 %v457
        %v5453 = vunpack.c.l.b16 %v458
        %v5454 = vunpack.c.l.b16 %v459
        %v5455 = vpack.c.b16 %v5452, %v5451
        %v5456 = vpack.c.b16 %v5454, %v5453
        %v5460 = vsel %vm496, %v5428, 0
        %v5463 = vsel %vm496, %v5429, 0
        %v5466 = vsel %vm496, %v5430, 0
        %v5469 = vsel %vm496, %v5431, 0
        %v5472 = vsel %vm496, %v5432, 0
        %v5475 = vsel %vm496, %v5433, 0
        %v5478 = vsel %vm496, %v5434, 0
        %v5481 = vsel %vm496, %v5435, 0
        %v5484 = vsel %vm496, %v5436, 0
        %v5487 = vsel %vm496, %v5437, 0
        %v5490 = vsel %vm496, %v5438, 0
        %v5493 = vsel %vm496, %v5439, 0
        %v5496 = vsel %vm496, %v5440, 0
        %v5499 = vsel %vm496, %v5441, 0
        %v5502 = vsel %vm496, %v5442, 0
        %v5505 = vsel %vm496, %v5443, 0
        %5507 = vmatpush.bf16.msra.mxu0 0
        %5508 = vmatpush.bf16.msra.mxu0 0
        %5509 = vmatpush.bf16.msra.mxu0 0
        %5510 = vmatpush.bf16.msra.mxu0 0
        %5511 = vmatpush.bf16.msra.mxu0 0
        %5512 = vmatpush.bf16.msra.mxu0 0
        %5513 = vmatpush.bf16.msra.mxu0 %v5456
        %5514 = vmatpush.bf16.msra.mxu0 %v5455
        %5515 = vmatmul.bf16.gmra.mxu0 %v5460
        %v5516 = vpop.f32.mrf.mxu0
        %v5517 = vadd.f32 %v5445, %v5516
        %v5518 = vpop.f32.mrf.mxu0
        %v5519 = vadd.f32 %v5445, %v5518
        %5520 = vmatmul.bf16.gmra.mxu0 %v5463
        %v5521 = vpop.f32.mrf.mxu0
        %v5522 = vadd.f32 %v5445, %v5521
        %v5523 = vpop.f32.mrf.mxu0
        %v5524 = vadd.f32 %v5445, %v5523
        %5525 = vmatmul.bf16.gmra.mxu0 %v5466
        %v5526 = vpop.f32.mrf.mxu0
        %v5527 = vadd.f32 %v5445, %v5526
        %v5528 = vpop.f32.mrf.mxu0
        %v5529 = vadd.f32 %v5445, %v5528
        %5530 = vmatmul.bf16.gmra.mxu0 %v5469
        %v5531 = vpop.f32.mrf.mxu0
        %v5532 = vadd.f32 %v5445, %v5531
        %v5533 = vpop.f32.mrf.mxu0
        %v5534 = vadd.f32 %v5445, %v5533
        %5535 = vmatmul.bf16.gmra.mxu0 %v5472
        %v5536 = vpop.f32.mrf.mxu0
        %v5537 = vadd.f32 %v5445, %v5536
        %v5538 = vpop.f32.mrf.mxu0
        %v5539 = vadd.f32 %v5445, %v5538
        %5540 = vmatmul.bf16.gmra.mxu0 %v5475
        %v5541 = vpop.f32.mrf.mxu0
        %v5542 = vadd.f32 %v5445, %v5541
        %v5543 = vpop.f32.mrf.mxu0
        %v5544 = vadd.f32 %v5445, %v5543
        %5545 = vmatmul.bf16.gmra.mxu0 %v5478
        %v5546 = vpop.f32.mrf.mxu0
        %v5547 = vadd.f32 %v5445, %v5546
        %v5548 = vpop.f32.mrf.mxu0
        %v5549 = vadd.f32 %v5445, %v5548
        %5550 = vmatmul.bf16.gmra.mxu0 %v5481
        %v5551 = vpop.f32.mrf.mxu0
        %v5552 = vadd.f32 %v5445, %v5551
        %v5553 = vpop.f32.mrf.mxu0
        %v5554 = vadd.f32 %v5445, %v5553
        %5555 = vmatmul.bf16.gmra.mxu0 %v5484
        %v5556 = vpop.f32.mrf.mxu0
        %v5557 = vadd.f32 %v5445, %v5556
        %v5558 = vpop.f32.mrf.mxu0
        %v5559 = vadd.f32 %v5445, %v5558
        %5560 = vmatmul.bf16.gmra.mxu0 %v5487
        %v5561 = vpop.f32.mrf.mxu0
        %v5562 = vadd.f32 %v5445, %v5561
        %v5563 = vpop.f32.mrf.mxu0
        %v5564 = vadd.f32 %v5445, %v5563
        %5565 = vmatmul.bf16.gmra.mxu0 %v5490
        %v5566 = vpop.f32.mrf.mxu0
        %v5567 = vadd.f32 %v5445, %v5566
        %v5568 = vpop.f32.mrf.mxu0
        %v5569 = vadd.f32 %v5445, %v5568
        %5570 = vmatmul.bf16.gmra.mxu0 %v5493
        %v5571 = vpop.f32.mrf.mxu0
        %v5572 = vadd.f32 %v5445, %v5571
        %v5573 = vpop.f32.mrf.mxu0
        %v5574 = vadd.f32 %v5445, %v5573
        %5575 = vmatmul.bf16.gmra.mxu0 %v5496
        %v5576 = vpop.f32.mrf.mxu0
        %v5577 = vadd.f32 %v5445, %v5576
        %v5578 = vpop.f32.mrf.mxu0
        %v5579 = vadd.f32 %v5445, %v5578
        %5580 = vmatmul.bf16.gmra.mxu0 %v5499
        %v5581 = vpop.f32.mrf.mxu0
        %v5582 = vadd.f32 %v5445, %v5581
        %v5583 = vpop.f32.mrf.mxu0
        %v5584 = vadd.f32 %v5445, %v5583
        %5585 = vmatmul.bf16.gmra.mxu0 %v5502
        %v5586 = vpop.f32.mrf.mxu0
        %v5587 = vadd.f32 %v5445, %v5586
        %v5588 = vpop.f32.mrf.mxu0
        %v5589 = vadd.f32 %v5445, %v5588
        %5590 = vmatmul.bf16.gmra.mxu0 %v5505
        %v5591 = vpop.f32.mrf.mxu0
        %v5592 = vadd.f32 %v5445, %v5591
        %v5593 = vpop.f32.mrf.mxu0
        %v5594 = vadd.f32 %v5445, %v5593
        %5595 = vdwg.mxu0
        %v5596 = vmul.f32 %v5517, 0.5
        %v5597 = vmul.f32 %v5519, 0.5
        %v5598 = vmul.f32 %v5522, 0.5
        %v5599 = vmul.f32 %v5524, 0.5
        %v5600 = vmul.f32 %v5527, 0.5
        %v5601 = vmul.f32 %v5529, 0.5
        %v5602 = vmul.f32 %v5532, 0.5
        %v5603 = vmul.f32 %v5534, 0.5
        %v5604 = vmul.f32 %v5537, 0.5
        %v5605 = vmul.f32 %v5539, 0.5
        %v5606 = vmul.f32 %v5542, 0.5
        %v5607 = vmul.f32 %v5544, 0.5
        %v5608 = vmul.f32 %v5547, 0.5
        %v5609 = vmul.f32 %v5549, 0.5
        %v5610 = vmul.f32 %v5552, 0.5
        %v5611 = vmul.f32 %v5554, 0.5
        %v5612 = vmul.f32 %v5557, 0.5
        %v5613 = vmul.f32 %v5559, 0.5
        %v5614 = vmul.f32 %v5562, 0.5
        %v5615 = vmul.f32 %v5564, 0.5
        %v5616 = vmul.f32 %v5567, 0.5
        %v5617 = vmul.f32 %v5569, 0.5
        %v5618 = vmul.f32 %v5572, 0.5
        %v5619 = vmul.f32 %v5574, 0.5
        %v5620 = vmul.f32 %v5577, 0.5
        %v5621 = vmul.f32 %v5579, 0.5
        %v5622 = vmul.f32 %v5582, 0.5
        %v5623 = vmul.f32 %v5584, 0.5
        %v5624 = vmul.f32 %v5587, 0.5
        %v5625 = vmul.f32 %v5589, 0.5
        %v5626 = vmul.f32 %v5592, 0.5
        %v5627 = vmul.f32 %v5594, 0.5
        %v5628 = vmul.f32 %v5517, 0.70710677
        %v5629 = vmul.f32 %v5519, 0.70710677
        %v5630 = vmul.f32 %v5522, 0.70710677
        %v5631 = vmul.f32 %v5524, 0.70710677
        %v5632 = vmul.f32 %v5527, 0.70710677
        %v5633 = vmul.f32 %v5529, 0.70710677
        %v5634 = vmul.f32 %v5532, 0.70710677
        %v5635 = vmul.f32 %v5534, 0.70710677
        %v5636 = vmul.f32 %v5537, 0.70710677
        %v5637 = vmul.f32 %v5539, 0.70710677
        %v5638 = vmul.f32 %v5542, 0.70710677
        %v5639 = vmul.f32 %v5544, 0.70710677
        %v5640 = vmul.f32 %v5547, 0.70710677
        %v5641 = vmul.f32 %v5549, 0.70710677
        %v5642 = vmul.f32 %v5552, 0.70710677
        %v5643 = vmul.f32 %v5554, 0.70710677
        %v5644 = vmul.f32 %v5557, 0.70710677
        %v5645 = vmul.f32 %v5559, 0.70710677
        %v5646 = vmul.f32 %v5562, 0.70710677
        %v5647 = vmul.f32 %v5564, 0.70710677
        %v5648 = vmul.f32 %v5567, 0.70710677
        %v5649 = vmul.f32 %v5569, 0.70710677
        %v5650 = vmul.f32 %v5572, 0.70710677
        %v5651 = vmul.f32 %v5574, 0.70710677
        %v5652 = vmul.f32 %v5577, 0.70710677
        %v5653 = vmul.f32 %v5579, 0.70710677
        %v5654 = vmul.f32 %v5582, 0.70710677
        %v5655 = vmul.f32 %v5584, 0.70710677
        %v5656 = vmul.f32 %v5587, 0.70710677
        %v5657 = vmul.f32 %v5589, 0.70710677
        %v5658 = vmul.f32 %v5592, 0.70710677
        %v5659 = vmul.f32 %v5594, 0.70710677
        %v5660 = vmul.f32 %v5628, %v5628
        %v5661 = vmin.f32 16.0, %v5660
        %v5662 = vmul.f32 %v5661, 2.1237322e-06
        %v5663 = vadd.f32 %v5662, 0.00028619796
        %v5664 = vmul.f32 %v5661, %v5663
        %v5665 = vadd.f32 %v5664, 0.0036580483
        %v5666 = vmul.f32 %v5661, %v5665
        %v5667 = vadd.f32 %v5666, 0.05243302
        %v5668 = vmul.f32 %v5661, %v5667
        %v5669 = vadd.f32 %v5668, 0.18741608
        %v5670 = vmul.f32 %v5661, %v5669
        %v5671 = vadd.f32 %v5670, 1.1283791
        %v5672 = vmul.f32 %v5628, %v5671
        %v5673 = vmul.f32 %v5661, 3.8918573e-05
        %v5674 = vadd.f32 %v5673, 0.001143296
        %v5675 = vmul.f32 %v5661, %v5674
        %v5676 = vadd.f32 %v5675, 0.014752088
        %v5677 = vmul.f32 %v5661, %v5676
        %v5678 = vadd.f32 %v5677, 0.112945676
        %v5679 = vmul.f32 %v5661, %v5678
        %v5680 = vadd.f32 %v5679, 0.4994258
        %v5681 = vmul.f32 %v5661, %v5680
        %v5682 = vadd.f32 %v5681, 1.0
        %v5683 = vrcp.pop %v5682
        %v5684 = vmul.f32 %v5682, %v5683
        %v5685 = vsub.f32 1.0, %v5684
        %v5686 = vmul.f32 %v5683, %v5685
        %v5687 = vadd.f32 %v5683, %v5686
        %vm5688 = vweird.f32 %v5682
        %vm5689 = vweird.f32 %v5683
        %vm5690 = vmor %vm5688, %vm5689
        %v5691 = vsel %vm5690, %v5683, %v5687
        %v5692 = vand.u32 2147483647, %v5682
        %vm5693 = vcmp.eq.f32.partialorder %v5692, 8.507059e+37
        %v5694 = vand.u32 %v5682, 2147483648
        %v5695 = vor.u32 1.1754944e-38, %v5694
        %v5696 = vsel %vm5693, %v5695, %v5691
        %v5697 = vmul.f32 %v5672, %v5696
        %v5698 = vmin.f32 %v5697, 1.0
        %v5699 = vmax.f32 %v5698, -1.0
        %v5700 = vmul.f32 %v5629, %v5629
        %v5701 = vmin.f32 16.0, %v5700
        %v5702 = vmul.f32 %v5701, 2.1237322e-06
        %v5703 = vadd.f32 %v5702, 0.00028619796
        %v5704 = vmul.f32 %v5701, %v5703
        %v5705 = vadd.f32 %v5704, 0.0036580483
        %v5706 = vmul.f32 %v5701, %v5705
        %v5707 = vadd.f32 %v5706, 0.05243302
        %v5708 = vmul.f32 %v5701, %v5707
        %v5709 = vadd.f32 %v5708, 0.18741608
        %v5710 = vmul.f32 %v5701, %v5709
        %v5711 = vadd.f32 %v5710, 1.1283791
        %v5712 = vmul.f32 %v5629, %v5711
        %v5713 = vmul.f32 %v5701, 3.8918573e-05
        %v5714 = vadd.f32 %v5713, 0.001143296
        %v5715 = vmul.f32 %v5701, %v5714
        %v5716 = vadd.f32 %v5715, 0.014752088
        %v5717 = vmul.f32 %v5701, %v5716
        %v5718 = vadd.f32 %v5717, 0.112945676
        %v5719 = vmul.f32 %v5701, %v5718
        %v5720 = vadd.f32 %v5719, 0.4994258
        %v5721 = vmul.f32 %v5701, %v5720
        %v5722 = vadd.f32 %v5721, 1.0
        %v5723 = vrcp.pop %v5722
        %v5724 = vmul.f32 %v5722, %v5723
        %v5725 = vsub.f32 1.0, %v5724
        %v5726 = vmul.f32 %v5723, %v5725
        %v5727 = vadd.f32 %v5723, %v5726
        %vm5728 = vweird.f32 %v5722
        %vm5729 = vweird.f32 %v5723
        %vm5730 = vmor %vm5728, %vm5729
        %v5731 = vsel %vm5730, %v5723, %v5727
        %v5732 = vand.u32 2147483647, %v5722
        %vm5733 = vcmp.eq.f32.partialorder %v5732, 8.507059e+37
        %v5734 = vand.u32 %v5722, 2147483648
        %v5735 = vor.u32 1.1754944e-38, %v5734
        %v5736 = vsel %vm5733, %v5735, %v5731
        %v5737 = vmul.f32 %v5712, %v5736
        %v5738 = vmin.f32 %v5737, 1.0
        %v5739 = vmax.f32 %v5738, -1.0
        %v5740 = vmul.f32 %v5630, %v5630
        %v5741 = vmin.f32 16.0, %v5740
        %v5742 = vmul.f32 %v5741, 2.1237322e-06
        %v5743 = vadd.f32 %v5742, 0.00028619796
        %v5744 = vmul.f32 %v5741, %v5743
        %v5745 = vadd.f32 %v5744, 0.0036580483
        %v5746 = vmul.f32 %v5741, %v5745
        %v5747 = vadd.f32 %v5746, 0.05243302
        %v5748 = vmul.f32 %v5741, %v5747
        %v5749 = vadd.f32 %v5748, 0.18741608
        %v5750 = vmul.f32 %v5741, %v5749
        %v5751 = vadd.f32 %v5750, 1.1283791
        %v5752 = vmul.f32 %v5630, %v5751
        %v5753 = vmul.f32 %v5741, 3.8918573e-05
        %v5754 = vadd.f32 %v5753, 0.001143296
        %v5755 = vmul.f32 %v5741, %v5754
        %v5756 = vadd.f32 %v5755, 0.014752088
        %v5757 = vmul.f32 %v5741, %v5756
        %v5758 = vadd.f32 %v5757, 0.112945676
        %v5759 = vmul.f32 %v5741, %v5758
        %v5760 = vadd.f32 %v5759, 0.4994258
        %v5761 = vmul.f32 %v5741, %v5760
        %v5762 = vadd.f32 %v5761, 1.0
        %v5763 = vrcp.pop %v5762
        %v5764 = vmul.f32 %v5762, %v5763
        %v5765 = vsub.f32 1.0, %v5764
        %v5766 = vmul.f32 %v5763, %v5765
        %v5767 = vadd.f32 %v5763, %v5766
        %vm5768 = vweird.f32 %v5762
        %vm5769 = vweird.f32 %v5763
        %vm5770 = vmor %vm5768, %vm5769
        %v5771 = vsel %vm5770, %v5763, %v5767
        %v5772 = vand.u32 2147483647, %v5762
        %vm5773 = vcmp.eq.f32.partialorder %v5772, 8.507059e+37
        %v5774 = vand.u32 %v5762, 2147483648
        %v5775 = vor.u32 1.1754944e-38, %v5774
        %v5776 = vsel %vm5773, %v5775, %v5771
        %v5777 = vmul.f32 %v5752, %v5776
        %v5778 = vmin.f32 %v5777, 1.0
        %v5779 = vmax.f32 %v5778, -1.0
        %v5780 = vmul.f32 %v5631, %v5631
        %v5781 = vmin.f32 16.0, %v5780
        %v5782 = vmul.f32 %v5781, 2.1237322e-06
        %v5783 = vadd.f32 %v5782, 0.00028619796
        %v5784 = vmul.f32 %v5781, %v5783
        %v5785 = vadd.f32 %v5784, 0.0036580483
        %v5786 = vmul.f32 %v5781, %v5785
        %v5787 = vadd.f32 %v5786, 0.05243302
        %v5788 = vmul.f32 %v5781, %v5787
        %v5789 = vadd.f32 %v5788, 0.18741608
        %v5790 = vmul.f32 %v5781, %v5789
        %v5791 = vadd.f32 %v5790, 1.1283791
        %v5792 = vmul.f32 %v5631, %v5791
        %v5793 = vmul.f32 %v5781, 3.8918573e-05
        %v5794 = vadd.f32 %v5793, 0.001143296
        %v5795 = vmul.f32 %v5781, %v5794
        %v5796 = vadd.f32 %v5795, 0.014752088
        %v5797 = vmul.f32 %v5781, %v5796
        %v5798 = vadd.f32 %v5797, 0.112945676
        %v5799 = vmul.f32 %v5781, %v5798
        %v5800 = vadd.f32 %v5799, 0.4994258
        %v5801 = vmul.f32 %v5781, %v5800
        %v5802 = vadd.f32 %v5801, 1.0
        %v5803 = vrcp.pop %v5802
        %v5804 = vmul.f32 %v5802, %v5803
        %v5805 = vsub.f32 1.0, %v5804
        %v5806 = vmul.f32 %v5803, %v5805
        %v5807 = vadd.f32 %v5803, %v5806
        %vm5808 = vweird.f32 %v5802
        %vm5809 = vweird.f32 %v5803
        %vm5810 = vmor %vm5808, %vm5809
        %v5811 = vsel %vm5810, %v5803, %v5807
        %v5812 = vand.u32 2147483647, %v5802
        %vm5813 = vcmp.eq.f32.partialorder %v5812, 8.507059e+37
        %v5814 = vand.u32 %v5802, 2147483648
        %v5815 = vor.u32 1.1754944e-38, %v5814
        %v5816 = vsel %vm5813, %v5815, %v5811
        %v5817 = vmul.f32 %v5792, %v5816
        %v5818 = vmin.f32 %v5817, 1.0
        %v5819 = vmax.f32 %v5818, -1.0
        %v5820 = vmul.f32 %v5632, %v5632
        %v5821 = vmin.f32 16.0, %v5820
        %v5822 = vmul.f32 %v5821, 2.1237322e-06
        %v5823 = vadd.f32 %v5822, 0.00028619796
        %v5824 = vmul.f32 %v5821, %v5823
        %v5825 = vadd.f32 %v5824, 0.0036580483
        %v5826 = vmul.f32 %v5821, %v5825
        %v5827 = vadd.f32 %v5826, 0.05243302
        %v5828 = vmul.f32 %v5821, %v5827
        %v5829 = vadd.f32 %v5828, 0.18741608
        %v5830 = vmul.f32 %v5821, %v5829
        %v5831 = vadd.f32 %v5830, 1.1283791
        %v5832 = vmul.f32 %v5632, %v5831
        %v5833 = vmul.f32 %v5821, 3.8918573e-05
        %v5834 = vadd.f32 %v5833, 0.001143296
        %v5835 = vmul.f32 %v5821, %v5834
        %v5836 = vadd.f32 %v5835, 0.014752088
        %v5837 = vmul.f32 %v5821, %v5836
        %v5838 = vadd.f32 %v5837, 0.112945676
        %v5839 = vmul.f32 %v5821, %v5838
        %v5840 = vadd.f32 %v5839, 0.4994258
        %v5841 = vmul.f32 %v5821, %v5840
        %v5842 = vadd.f32 %v5841, 1.0
        %v5843 = vrcp.pop %v5842
        %v5844 = vmul.f32 %v5842, %v5843
        %v5845 = vsub.f32 1.0, %v5844
        %v5846 = vmul.f32 %v5843, %v5845
        %v5847 = vadd.f32 %v5843, %v5846
        %vm5848 = vweird.f32 %v5842
        %vm5849 = vweird.f32 %v5843
        %vm5850 = vmor %vm5848, %vm5849
        %v5851 = vsel %vm5850, %v5843, %v5847
        %v5852 = vand.u32 2147483647, %v5842
        %vm5853 = vcmp.eq.f32.partialorder %v5852, 8.507059e+37
        %v5854 = vand.u32 %v5842, 2147483648
        %v5855 = vor.u32 1.1754944e-38, %v5854
        %v5856 = vsel %vm5853, %v5855, %v5851
        %v5857 = vmul.f32 %v5832, %v5856
        %v5858 = vmin.f32 %v5857, 1.0
        %v5859 = vmax.f32 %v5858, -1.0
        %v5860 = vmul.f32 %v5633, %v5633
        %v5861 = vmin.f32 16.0, %v5860
        %v5862 = vmul.f32 %v5861, 2.1237322e-06
        %v5863 = vadd.f32 %v5862, 0.00028619796
        %v5864 = vmul.f32 %v5861, %v5863
        %v5865 = vadd.f32 %v5864, 0.0036580483
        %v5866 = vmul.f32 %v5861, %v5865
        %v5867 = vadd.f32 %v5866, 0.05243302
        %v5868 = vmul.f32 %v5861, %v5867
        %v5869 = vadd.f32 %v5868, 0.18741608
        %v5870 = vmul.f32 %v5861, %v5869
        %v5871 = vadd.f32 %v5870, 1.1283791
        %v5872 = vmul.f32 %v5633, %v5871
        %v5873 = vmul.f32 %v5861, 3.8918573e-05
        %v5874 = vadd.f32 %v5873, 0.001143296
        %v5875 = vmul.f32 %v5861, %v5874
        %v5876 = vadd.f32 %v5875, 0.014752088
        %v5877 = vmul.f32 %v5861, %v5876
        %v5878 = vadd.f32 %v5877, 0.112945676
        %v5879 = vmul.f32 %v5861, %v5878
        %v5880 = vadd.f32 %v5879, 0.4994258
        %v5881 = vmul.f32 %v5861, %v5880
        %v5882 = vadd.f32 %v5881, 1.0
        %v5883 = vrcp.pop %v5882
        %v5884 = vmul.f32 %v5882, %v5883
        %v5885 = vsub.f32 1.0, %v5884
        %v5886 = vmul.f32 %v5883, %v5885
        %v5887 = vadd.f32 %v5883, %v5886
        %vm5888 = vweird.f32 %v5882
        %vm5889 = vweird.f32 %v5883
        %vm5890 = vmor %vm5888, %vm5889
        %v5891 = vsel %vm5890, %v5883, %v5887
        %v5892 = vand.u32 2147483647, %v5882
        %vm5893 = vcmp.eq.f32.partialorder %v5892, 8.507059e+37
        %v5894 = vand.u32 %v5882, 2147483648
        %v5895 = vor.u32 1.1754944e-38, %v5894
        %v5896 = vsel %vm5893, %v5895, %v5891
        %v5897 = vmul.f32 %v5872, %v5896
        %v5898 = vmin.f32 %v5897, 1.0
        %v5899 = vmax.f32 %v5898, -1.0
        %v5900 = vmul.f32 %v5634, %v5634
        %v5901 = vmin.f32 16.0, %v5900
        %v5902 = vmul.f32 %v5901, 2.1237322e-06
        %v5903 = vadd.f32 %v5902, 0.00028619796
        %v5904 = vmul.f32 %v5901, %v5903
        %v5905 = vadd.f32 %v5904, 0.0036580483
        %v5906 = vmul.f32 %v5901, %v5905
        %v5907 = vadd.f32 %v5906, 0.05243302
        %v5908 = vmul.f32 %v5901, %v5907
        %v5909 = vadd.f32 %v5908, 0.18741608
        %v5910 = vmul.f32 %v5901, %v5909
        %v5911 = vadd.f32 %v5910, 1.1283791
        %v5912 = vmul.f32 %v5634, %v5911
        %v5913 = vmul.f32 %v5901, 3.8918573e-05
        %v5914 = vadd.f32 %v5913, 0.001143296
        %v5915 = vmul.f32 %v5901, %v5914
        %v5916 = vadd.f32 %v5915, 0.014752088
        %v5917 = vmul.f32 %v5901, %v5916
        %v5918 = vadd.f32 %v5917, 0.112945676
        %v5919 = vmul.f32 %v5901, %v5918
        %v5920 = vadd.f32 %v5919, 0.4994258
        %v5921 = vmul.f32 %v5901, %v5920
        %v5922 = vadd.f32 %v5921, 1.0
        %v5923 = vrcp.pop %v5922
        %v5924 = vmul.f32 %v5922, %v5923
        %v5925 = vsub.f32 1.0, %v5924
        %v5926 = vmul.f32 %v5923, %v5925
        %v5927 = vadd.f32 %v5923, %v5926
        %vm5928 = vweird.f32 %v5922
        %vm5929 = vweird.f32 %v5923
        %vm5930 = vmor %vm5928, %vm5929
        %v5931 = vsel %vm5930, %v5923, %v5927
        %v5932 = vand.u32 2147483647, %v5922
        %vm5933 = vcmp.eq.f32.partialorder %v5932, 8.507059e+37
        %v5934 = vand.u32 %v5922, 2147483648
        %v5935 = vor.u32 1.1754944e-38, %v5934
        %v5936 = vsel %vm5933, %v5935, %v5931
        %v5937 = vmul.f32 %v5912, %v5936
        %v5938 = vmin.f32 %v5937, 1.0
        %v5939 = vmax.f32 %v5938, -1.0
        %v5940 = vmul.f32 %v5635, %v5635
        %v5941 = vmin.f32 16.0, %v5940
        %v5942 = vmul.f32 %v5941, 2.1237322e-06
        %v5943 = vadd.f32 %v5942, 0.00028619796
        %v5944 = vmul.f32 %v5941, %v5943
        %v5945 = vadd.f32 %v5944, 0.0036580483
        %v5946 = vmul.f32 %v5941, %v5945
        %v5947 = vadd.f32 %v5946, 0.05243302
        %v5948 = vmul.f32 %v5941, %v5947
        %v5949 = vadd.f32 %v5948, 0.18741608
        %v5950 = vmul.f32 %v5941, %v5949
        %v5951 = vadd.f32 %v5950, 1.1283791
        %v5952 = vmul.f32 %v5635, %v5951
        %v5953 = vmul.f32 %v5941, 3.8918573e-05
        %v5954 = vadd.f32 %v5953, 0.001143296
        %v5955 = vmul.f32 %v5941, %v5954
        %v5956 = vadd.f32 %v5955, 0.014752088
        %v5957 = vmul.f32 %v5941, %v5956
        %v5958 = vadd.f32 %v5957, 0.112945676
        %v5959 = vmul.f32 %v5941, %v5958
        %v5960 = vadd.f32 %v5959, 0.4994258
        %v5961 = vmul.f32 %v5941, %v5960
        %v5962 = vadd.f32 %v5961, 1.0
        %v5963 = vrcp.pop %v5962
        %v5964 = vmul.f32 %v5962, %v5963
        %v5965 = vsub.f32 1.0, %v5964
        %v5966 = vmul.f32 %v5963, %v5965
        %v5967 = vadd.f32 %v5963, %v5966
        %vm5968 = vweird.f32 %v5962
        %vm5969 = vweird.f32 %v5963
        %vm5970 = vmor %vm5968, %vm5969
        %v5971 = vsel %vm5970, %v5963, %v5967
        %v5972 = vand.u32 2147483647, %v5962
        %vm5973 = vcmp.eq.f32.partialorder %v5972, 8.507059e+37
        %v5974 = vand.u32 %v5962, 2147483648
        %v5975 = vor.u32 1.1754944e-38, %v5974
        %v5976 = vsel %vm5973, %v5975, %v5971
        %v5977 = vmul.f32 %v5952, %v5976
        %v5978 = vmin.f32 %v5977, 1.0
        %v5979 = vmax.f32 %v5978, -1.0
        %v5980 = vmul.f32 %v5636, %v5636
        %v5981 = vmin.f32 16.0, %v5980
        %v5982 = vmul.f32 %v5981, 2.1237322e-06
        %v5983 = vadd.f32 %v5982, 0.00028619796
        %v5984 = vmul.f32 %v5981, %v5983
        %v5985 = vadd.f32 %v5984, 0.0036580483
        %v5986 = vmul.f32 %v5981, %v5985
        %v5987 = vadd.f32 %v5986, 0.05243302
        %v5988 = vmul.f32 %v5981, %v5987
        %v5989 = vadd.f32 %v5988, 0.18741608
        %v5990 = vmul.f32 %v5981, %v5989
        %v5991 = vadd.f32 %v5990, 1.1283791
        %v5992 = vmul.f32 %v5636, %v5991
        %v5993 = vmul.f32 %v5981, 3.8918573e-05
        %v5994 = vadd.f32 %v5993, 0.001143296
        %v5995 = vmul.f32 %v5981, %v5994
        %v5996 = vadd.f32 %v5995, 0.014752088
        %v5997 = vmul.f32 %v5981, %v5996
        %v5998 = vadd.f32 %v5997, 0.112945676
        %v5999 = vmul.f32 %v5981, %v5998
        %v6000 = vadd.f32 %v5999, 0.4994258
        %v6001 = vmul.f32 %v5981, %v6000
        %v6002 = vadd.f32 %v6001, 1.0
        %v6003 = vrcp.pop %v6002
        %v6004 = vmul.f32 %v6002, %v6003
        %v6005 = vsub.f32 1.0, %v6004
        %v6006 = vmul.f32 %v6003, %v6005
        %v6007 = vadd.f32 %v6003, %v6006
        %vm6008 = vweird.f32 %v6002
        %vm6009 = vweird.f32 %v6003
        %vm6010 = vmor %vm6008, %vm6009
        %v6011 = vsel %vm6010, %v6003, %v6007
        %v6012 = vand.u32 2147483647, %v6002
        %vm6013 = vcmp.eq.f32.partialorder %v6012, 8.507059e+37
        %v6014 = vand.u32 %v6002, 2147483648
        %v6015 = vor.u32 1.1754944e-38, %v6014
        %v6016 = vsel %vm6013, %v6015, %v6011
        %v6017 = vmul.f32 %v5992, %v6016
        %v6018 = vmin.f32 %v6017, 1.0
        %v6019 = vmax.f32 %v6018, -1.0
        %v6020 = vmul.f32 %v5637, %v5637
        %v6021 = vmin.f32 16.0, %v6020
        %v6022 = vmul.f32 %v6021, 2.1237322e-06
        %v6023 = vadd.f32 %v6022, 0.00028619796
        %v6024 = vmul.f32 %v6021, %v6023
        %v6025 = vadd.f32 %v6024, 0.0036580483
        %v6026 = vmul.f32 %v6021, %v6025
        %v6027 = vadd.f32 %v6026, 0.05243302
        %v6028 = vmul.f32 %v6021, %v6027
        %v6029 = vadd.f32 %v6028, 0.18741608
        %v6030 = vmul.f32 %v6021, %v6029
        %v6031 = vadd.f32 %v6030, 1.1283791
        %v6032 = vmul.f32 %v5637, %v6031
        %v6033 = vmul.f32 %v6021, 3.8918573e-05
        %v6034 = vadd.f32 %v6033, 0.001143296
        %v6035 = vmul.f32 %v6021, %v6034
        %v6036 = vadd.f32 %v6035, 0.014752088
        %v6037 = vmul.f32 %v6021, %v6036
        %v6038 = vadd.f32 %v6037, 0.112945676
        %v6039 = vmul.f32 %v6021, %v6038
        %v6040 = vadd.f32 %v6039, 0.4994258
        %v6041 = vmul.f32 %v6021, %v6040
        %v6042 = vadd.f32 %v6041, 1.0
        %v6043 = vrcp.pop %v6042
        %v6044 = vmul.f32 %v6042, %v6043
        %v6045 = vsub.f32 1.0, %v6044
        %v6046 = vmul.f32 %v6043, %v6045
        %v6047 = vadd.f32 %v6043, %v6046
        %vm6048 = vweird.f32 %v6042
        %vm6049 = vweird.f32 %v6043
        %vm6050 = vmor %vm6048, %vm6049
        %v6051 = vsel %vm6050, %v6043, %v6047
        %v6052 = vand.u32 2147483647, %v6042
        %vm6053 = vcmp.eq.f32.partialorder %v6052, 8.507059e+37
        %v6054 = vand.u32 %v6042, 2147483648
        %v6055 = vor.u32 1.1754944e-38, %v6054
        %v6056 = vsel %vm6053, %v6055, %v6051
        %v6057 = vmul.f32 %v6032, %v6056
        %v6058 = vmin.f32 %v6057, 1.0
        %v6059 = vmax.f32 %v6058, -1.0
        %v6060 = vmul.f32 %v5638, %v5638
        %v6061 = vmin.f32 16.0, %v6060
        %v6062 = vmul.f32 %v6061, 2.1237322e-06
        %v6063 = vadd.f32 %v6062, 0.00028619796
        %v6064 = vmul.f32 %v6061, %v6063
        %v6065 = vadd.f32 %v6064, 0.0036580483
        %v6066 = vmul.f32 %v6061, %v6065
        %v6067 = vadd.f32 %v6066, 0.05243302
        %v6068 = vmul.f32 %v6061, %v6067
        %v6069 = vadd.f32 %v6068, 0.18741608
        %v6070 = vmul.f32 %v6061, %v6069
        %v6071 = vadd.f32 %v6070, 1.1283791
        %v6072 = vmul.f32 %v5638, %v6071
        %v6073 = vmul.f32 %v6061, 3.8918573e-05
        %v6074 = vadd.f32 %v6073, 0.001143296
        %v6075 = vmul.f32 %v6061, %v6074
        %v6076 = vadd.f32 %v6075, 0.014752088
        %v6077 = vmul.f32 %v6061, %v6076
        %v6078 = vadd.f32 %v6077, 0.112945676
        %v6079 = vmul.f32 %v6061, %v6078
        %v6080 = vadd.f32 %v6079, 0.4994258
        %v6081 = vmul.f32 %v6061, %v6080
        %v6082 = vadd.f32 %v6081, 1.0
        %v6083 = vrcp.pop %v6082
        %v6084 = vmul.f32 %v6082, %v6083
        %v6085 = vsub.f32 1.0, %v6084
        %v6086 = vmul.f32 %v6083, %v6085
        %v6087 = vadd.f32 %v6083, %v6086
        %vm6088 = vweird.f32 %v6082
        %vm6089 = vweird.f32 %v6083
        %vm6090 = vmor %vm6088, %vm6089
        %v6091 = vsel %vm6090, %v6083, %v6087
        %v6092 = vand.u32 2147483647, %v6082
        %vm6093 = vcmp.eq.f32.partialorder %v6092, 8.507059e+37
        %v6094 = vand.u32 %v6082, 2147483648
        %v6095 = vor.u32 1.1754944e-38, %v6094
        %v6096 = vsel %vm6093, %v6095, %v6091
        %v6097 = vmul.f32 %v6072, %v6096
        %v6098 = vmin.f32 %v6097, 1.0
        %v6099 = vmax.f32 %v6098, -1.0
        %v6100 = vmul.f32 %v5639, %v5639
        %v6101 = vmin.f32 16.0, %v6100
        %v6102 = vmul.f32 %v6101, 2.1237322e-06
        %v6103 = vadd.f32 %v6102, 0.00028619796
        %v6104 = vmul.f32 %v6101, %v6103
        %v6105 = vadd.f32 %v6104, 0.0036580483
        %v6106 = vmul.f32 %v6101, %v6105
        %v6107 = vadd.f32 %v6106, 0.05243302
        %v6108 = vmul.f32 %v6101, %v6107
        %v6109 = vadd.f32 %v6108, 0.18741608
        %v6110 = vmul.f32 %v6101, %v6109
        %v6111 = vadd.f32 %v6110, 1.1283791
        %v6112 = vmul.f32 %v5639, %v6111
        %v6113 = vmul.f32 %v6101, 3.8918573e-05
        %v6114 = vadd.f32 %v6113, 0.001143296
        %v6115 = vmul.f32 %v6101, %v6114
        %v6116 = vadd.f32 %v6115, 0.014752088
        %v6117 = vmul.f32 %v6101, %v6116
        %v6118 = vadd.f32 %v6117, 0.112945676
        %v6119 = vmul.f32 %v6101, %v6118
        %v6120 = vadd.f32 %v6119, 0.4994258
        %v6121 = vmul.f32 %v6101, %v6120
        %v6122 = vadd.f32 %v6121, 1.0
        %v6123 = vrcp.pop %v6122
        %v6124 = vmul.f32 %v6122, %v6123
        %v6125 = vsub.f32 1.0, %v6124
        %v6126 = vmul.f32 %v6123, %v6125
        %v6127 = vadd.f32 %v6123, %v6126
        %vm6128 = vweird.f32 %v6122
        %vm6129 = vweird.f32 %v6123
        %vm6130 = vmor %vm6128, %vm6129
        %v6131 = vsel %vm6130, %v6123, %v6127
        %v6132 = vand.u32 2147483647, %v6122
        %vm6133 = vcmp.eq.f32.partialorder %v6132, 8.507059e+37
        %v6134 = vand.u32 %v6122, 2147483648
        %v6135 = vor.u32 1.1754944e-38, %v6134
        %v6136 = vsel %vm6133, %v6135, %v6131
        %v6137 = vmul.f32 %v6112, %v6136
        %v6138 = vmin.f32 %v6137, 1.0
        %v6139 = vmax.f32 %v6138, -1.0
        %v6140 = vmul.f32 %v5640, %v5640
        %v6141 = vmin.f32 16.0, %v6140
        %v6142 = vmul.f32 %v6141, 2.1237322e-06
        %v6143 = vadd.f32 %v6142, 0.00028619796
        %v6144 = vmul.f32 %v6141, %v6143
        %v6145 = vadd.f32 %v6144, 0.0036580483
        %v6146 = vmul.f32 %v6141, %v6145
        %v6147 = vadd.f32 %v6146, 0.05243302
        %v6148 = vmul.f32 %v6141, %v6147
        %v6149 = vadd.f32 %v6148, 0.18741608
        %v6150 = vmul.f32 %v6141, %v6149
        %v6151 = vadd.f32 %v6150, 1.1283791
        %v6152 = vmul.f32 %v5640, %v6151
        %v6153 = vmul.f32 %v6141, 3.8918573e-05
        %v6154 = vadd.f32 %v6153, 0.001143296
        %v6155 = vmul.f32 %v6141, %v6154
        %v6156 = vadd.f32 %v6155, 0.014752088
        %v6157 = vmul.f32 %v6141, %v6156
        %v6158 = vadd.f32 %v6157, 0.112945676
        %v6159 = vmul.f32 %v6141, %v6158
        %v6160 = vadd.f32 %v6159, 0.4994258
        %v6161 = vmul.f32 %v6141, %v6160
        %v6162 = vadd.f32 %v6161, 1.0
        %v6163 = vrcp.pop %v6162
        %v6164 = vmul.f32 %v6162, %v6163
        %v6165 = vsub.f32 1.0, %v6164
        %v6166 = vmul.f32 %v6163, %v6165
        %v6167 = vadd.f32 %v6163, %v6166
        %vm6168 = vweird.f32 %v6162
        %vm6169 = vweird.f32 %v6163
        %vm6170 = vmor %vm6168, %vm6169
        %v6171 = vsel %vm6170, %v6163, %v6167
        %v6172 = vand.u32 2147483647, %v6162
        %vm6173 = vcmp.eq.f32.partialorder %v6172, 8.507059e+37
        %v6174 = vand.u32 %v6162, 2147483648
        %v6175 = vor.u32 1.1754944e-38, %v6174
        %v6176 = vsel %vm6173, %v6175, %v6171
        %v6177 = vmul.f32 %v6152, %v6176
        %v6178 = vmin.f32 %v6177, 1.0
        %v6179 = vmax.f32 %v6178, -1.0
        %v6180 = vmul.f32 %v5641, %v5641
        %v6181 = vmin.f32 16.0, %v6180
        %v6182 = vmul.f32 %v6181, 2.1237322e-06
        %v6183 = vadd.f32 %v6182, 0.00028619796
        %v6184 = vmul.f32 %v6181, %v6183
        %v6185 = vadd.f32 %v6184, 0.0036580483
        %v6186 = vmul.f32 %v6181, %v6185
        %v6187 = vadd.f32 %v6186, 0.05243302
        %v6188 = vmul.f32 %v6181, %v6187
        %v6189 = vadd.f32 %v6188, 0.18741608
        %v6190 = vmul.f32 %v6181, %v6189
        %v6191 = vadd.f32 %v6190, 1.1283791
        %v6192 = vmul.f32 %v5641, %v6191
        %v6193 = vmul.f32 %v6181, 3.8918573e-05
        %v6194 = vadd.f32 %v6193, 0.001143296
        %v6195 = vmul.f32 %v6181, %v6194
        %v6196 = vadd.f32 %v6195, 0.014752088
        %v6197 = vmul.f32 %v6181, %v6196
        %v6198 = vadd.f32 %v6197, 0.112945676
        %v6199 = vmul.f32 %v6181, %v6198
        %v6200 = vadd.f32 %v6199, 0.4994258
        %v6201 = vmul.f32 %v6181, %v6200
        %v6202 = vadd.f32 %v6201, 1.0
        %v6203 = vrcp.pop %v6202
        %v6204 = vmul.f32 %v6202, %v6203
        %v6205 = vsub.f32 1.0, %v6204
        %v6206 = vmul.f32 %v6203, %v6205
        %v6207 = vadd.f32 %v6203, %v6206
        %vm6208 = vweird.f32 %v6202
        %vm6209 = vweird.f32 %v6203
        %vm6210 = vmor %vm6208, %vm6209
        %v6211 = vsel %vm6210, %v6203, %v6207
        %v6212 = vand.u32 2147483647, %v6202
        %vm6213 = vcmp.eq.f32.partialorder %v6212, 8.507059e+37
        %v6214 = vand.u32 %v6202, 2147483648
        %v6215 = vor.u32 1.1754944e-38, %v6214
        %v6216 = vsel %vm6213, %v6215, %v6211
        %v6217 = vmul.f32 %v6192, %v6216
        %v6218 = vmin.f32 %v6217, 1.0
        %v6219 = vmax.f32 %v6218, -1.0
        %v6220 = vmul.f32 %v5642, %v5642
        %v6221 = vmin.f32 16.0, %v6220
        %v6222 = vmul.f32 %v6221, 2.1237322e-06
        %v6223 = vadd.f32 %v6222, 0.00028619796
        %v6224 = vmul.f32 %v6221, %v6223
        %v6225 = vadd.f32 %v6224, 0.0036580483
        %v6226 = vmul.f32 %v6221, %v6225
        %v6227 = vadd.f32 %v6226, 0.05243302
        %v6228 = vmul.f32 %v6221, %v6227
        %v6229 = vadd.f32 %v6228, 0.18741608
        %v6230 = vmul.f32 %v6221, %v6229
        %v6231 = vadd.f32 %v6230, 1.1283791
        %v6232 = vmul.f32 %v5642, %v6231
        %v6233 = vmul.f32 %v6221, 3.8918573e-05
        %v6234 = vadd.f32 %v6233, 0.001143296
        %v6235 = vmul.f32 %v6221, %v6234
        %v6236 = vadd.f32 %v6235, 0.014752088
        %v6237 = vmul.f32 %v6221, %v6236
        %v6238 = vadd.f32 %v6237, 0.112945676
        %v6239 = vmul.f32 %v6221, %v6238
        %v6240 = vadd.f32 %v6239, 0.4994258
        %v6241 = vmul.f32 %v6221, %v6240
        %v6242 = vadd.f32 %v6241, 1.0
        %v6243 = vrcp.pop %v6242
        %v6244 = vmul.f32 %v6242, %v6243
        %v6245 = vsub.f32 1.0, %v6244
        %v6246 = vmul.f32 %v6243, %v6245
        %v6247 = vadd.f32 %v6243, %v6246
        %vm6248 = vweird.f32 %v6242
        %vm6249 = vweird.f32 %v6243
        %vm6250 = vmor %vm6248, %vm6249
        %v6251 = vsel %vm6250, %v6243, %v6247
        %v6252 = vand.u32 2147483647, %v6242
        %vm6253 = vcmp.eq.f32.partialorder %v6252, 8.507059e+37
        %v6254 = vand.u32 %v6242, 2147483648
        %v6255 = vor.u32 1.1754944e-38, %v6254
        %v6256 = vsel %vm6253, %v6255, %v6251
        %v6257 = vmul.f32 %v6232, %v6256
        %v6258 = vmin.f32 %v6257, 1.0
        %v6259 = vmax.f32 %v6258, -1.0
        %v6260 = vmul.f32 %v5643, %v5643
        %v6261 = vmin.f32 16.0, %v6260
        %v6262 = vmul.f32 %v6261, 2.1237322e-06
        %v6263 = vadd.f32 %v6262, 0.00028619796
        %v6264 = vmul.f32 %v6261, %v6263
        %v6265 = vadd.f32 %v6264, 0.0036580483
        %v6266 = vmul.f32 %v6261, %v6265
        %v6267 = vadd.f32 %v6266, 0.05243302
        %v6268 = vmul.f32 %v6261, %v6267
        %v6269 = vadd.f32 %v6268, 0.18741608
        %v6270 = vmul.f32 %v6261, %v6269
        %v6271 = vadd.f32 %v6270, 1.1283791
        %v6272 = vmul.f32 %v5643, %v6271
        %v6273 = vmul.f32 %v6261, 3.8918573e-05
        %v6274 = vadd.f32 %v6273, 0.001143296
        %v6275 = vmul.f32 %v6261, %v6274
        %v6276 = vadd.f32 %v6275, 0.014752088
        %v6277 = vmul.f32 %v6261, %v6276
        %v6278 = vadd.f32 %v6277, 0.112945676
        %v6279 = vmul.f32 %v6261, %v6278
        %v6280 = vadd.f32 %v6279, 0.4994258
        %v6281 = vmul.f32 %v6261, %v6280
        %v6282 = vadd.f32 %v6281, 1.0
        %v6283 = vrcp.pop %v6282
        %v6284 = vmul.f32 %v6282, %v6283
        %v6285 = vsub.f32 1.0, %v6284
        %v6286 = vmul.f32 %v6283, %v6285
        %v6287 = vadd.f32 %v6283, %v6286
        %vm6288 = vweird.f32 %v6282
        %vm6289 = vweird.f32 %v6283
        %vm6290 = vmor %vm6288, %vm6289
        %v6291 = vsel %vm6290, %v6283, %v6287
        %v6292 = vand.u32 2147483647, %v6282
        %vm6293 = vcmp.eq.f32.partialorder %v6292, 8.507059e+37
        %v6294 = vand.u32 %v6282, 2147483648
        %v6295 = vor.u32 1.1754944e-38, %v6294
        %v6296 = vsel %vm6293, %v6295, %v6291
        %v6297 = vmul.f32 %v6272, %v6296
        %v6298 = vmin.f32 %v6297, 1.0
        %v6299 = vmax.f32 %v6298, -1.0
        %v6300 = vmul.f32 %v5644, %v5644
        %v6301 = vmin.f32 16.0, %v6300
        %v6302 = vmul.f32 %v6301, 2.1237322e-06
        %v6303 = vadd.f32 %v6302, 0.00028619796
        %v6304 = vmul.f32 %v6301, %v6303
        %v6305 = vadd.f32 %v6304, 0.0036580483
        %v6306 = vmul.f32 %v6301, %v6305
        %v6307 = vadd.f32 %v6306, 0.05243302
        %v6308 = vmul.f32 %v6301, %v6307
        %v6309 = vadd.f32 %v6308, 0.18741608
        %v6310 = vmul.f32 %v6301, %v6309
        %v6311 = vadd.f32 %v6310, 1.1283791
        %v6312 = vmul.f32 %v5644, %v6311
        %v6313 = vmul.f32 %v6301, 3.8918573e-05
        %v6314 = vadd.f32 %v6313, 0.001143296
        %v6315 = vmul.f32 %v6301, %v6314
        %v6316 = vadd.f32 %v6315, 0.014752088
        %v6317 = vmul.f32 %v6301, %v6316
        %v6318 = vadd.f32 %v6317, 0.112945676
        %v6319 = vmul.f32 %v6301, %v6318
        %v6320 = vadd.f32 %v6319, 0.4994258
        %v6321 = vmul.f32 %v6301, %v6320
        %v6322 = vadd.f32 %v6321, 1.0
        %v6323 = vrcp.pop %v6322
        %v6324 = vmul.f32 %v6322, %v6323
        %v6325 = vsub.f32 1.0, %v6324
        %v6326 = vmul.f32 %v6323, %v6325
        %v6327 = vadd.f32 %v6323, %v6326
        %vm6328 = vweird.f32 %v6322
        %vm6329 = vweird.f32 %v6323
        %vm6330 = vmor %vm6328, %vm6329
        %v6331 = vsel %vm6330, %v6323, %v6327
        %v6332 = vand.u32 2147483647, %v6322
        %vm6333 = vcmp.eq.f32.partialorder %v6332, 8.507059e+37
        %v6334 = vand.u32 %v6322, 2147483648
        %v6335 = vor.u32 1.1754944e-38, %v6334
        %v6336 = vsel %vm6333, %v6335, %v6331
        %v6337 = vmul.f32 %v6312, %v6336
        %v6338 = vmin.f32 %v6337, 1.0
        %v6339 = vmax.f32 %v6338, -1.0
        %v6340 = vmul.f32 %v5645, %v5645
        %v6341 = vmin.f32 16.0, %v6340
        %v6342 = vmul.f32 %v6341, 2.1237322e-06
        %v6343 = vadd.f32 %v6342, 0.00028619796
        %v6344 = vmul.f32 %v6341, %v6343
        %v6345 = vadd.f32 %v6344, 0.0036580483
        %v6346 = vmul.f32 %v6341, %v6345
        %v6347 = vadd.f32 %v6346, 0.05243302
        %v6348 = vmul.f32 %v6341, %v6347
        %v6349 = vadd.f32 %v6348, 0.18741608
        %v6350 = vmul.f32 %v6341, %v6349
        %v6351 = vadd.f32 %v6350, 1.1283791
        %v6352 = vmul.f32 %v5645, %v6351
        %v6353 = vmul.f32 %v6341, 3.8918573e-05
        %v6354 = vadd.f32 %v6353, 0.001143296
        %v6355 = vmul.f32 %v6341, %v6354
        %v6356 = vadd.f32 %v6355, 0.014752088
        %v6357 = vmul.f32 %v6341, %v6356
        %v6358 = vadd.f32 %v6357, 0.112945676
        %v6359 = vmul.f32 %v6341, %v6358
        %v6360 = vadd.f32 %v6359, 0.4994258
        %v6361 = vmul.f32 %v6341, %v6360
        %v6362 = vadd.f32 %v6361, 1.0
        %v6363 = vrcp.pop %v6362
        %v6364 = vmul.f32 %v6362, %v6363
        %v6365 = vsub.f32 1.0, %v6364
        %v6366 = vmul.f32 %v6363, %v6365
        %v6367 = vadd.f32 %v6363, %v6366
        %vm6368 = vweird.f32 %v6362
        %vm6369 = vweird.f32 %v6363
        %vm6370 = vmor %vm6368, %vm6369
        %v6371 = vsel %vm6370, %v6363, %v6367
        %v6372 = vand.u32 2147483647, %v6362
        %vm6373 = vcmp.eq.f32.partialorder %v6372, 8.507059e+37
        %v6374 = vand.u32 %v6362, 2147483648
        %v6375 = vor.u32 1.1754944e-38, %v6374
        %v6376 = vsel %vm6373, %v6375, %v6371
        %v6377 = vmul.f32 %v6352, %v6376
        %v6378 = vmin.f32 %v6377, 1.0
        %v6379 = vmax.f32 %v6378, -1.0
        %v6380 = vmul.f32 %v5646, %v5646
        %v6381 = vmin.f32 16.0, %v6380
        %v6382 = vmul.f32 %v6381, 2.1237322e-06
        %v6383 = vadd.f32 %v6382, 0.00028619796
        %v6384 = vmul.f32 %v6381, %v6383
        %v6385 = vadd.f32 %v6384, 0.0036580483
        %v6386 = vmul.f32 %v6381, %v6385
        %v6387 = vadd.f32 %v6386, 0.05243302
        %v6388 = vmul.f32 %v6381, %v6387
        %v6389 = vadd.f32 %v6388, 0.18741608
        %v6390 = vmul.f32 %v6381, %v6389
        %v6391 = vadd.f32 %v6390, 1.1283791
        %v6392 = vmul.f32 %v5646, %v6391
        %v6393 = vmul.f32 %v6381, 3.8918573e-05
        %v6394 = vadd.f32 %v6393, 0.001143296
        %v6395 = vmul.f32 %v6381, %v6394
        %v6396 = vadd.f32 %v6395, 0.014752088
        %v6397 = vmul.f32 %v6381, %v6396
        %v6398 = vadd.f32 %v6397, 0.112945676
        %v6399 = vmul.f32 %v6381, %v6398
        %v6400 = vadd.f32 %v6399, 0.4994258
        %v6401 = vmul.f32 %v6381, %v6400
        %v6402 = vadd.f32 %v6401, 1.0
        %v6403 = vrcp.pop %v6402
        %v6404 = vmul.f32 %v6402, %v6403
        %v6405 = vsub.f32 1.0, %v6404
        %v6406 = vmul.f32 %v6403, %v6405
        %v6407 = vadd.f32 %v6403, %v6406
        %vm6408 = vweird.f32 %v6402
        %vm6409 = vweird.f32 %v6403
        %vm6410 = vmor %vm6408, %vm6409
        %v6411 = vsel %vm6410, %v6403, %v6407
        %v6412 = vand.u32 2147483647, %v6402
        %vm6413 = vcmp.eq.f32.partialorder %v6412, 8.507059e+37
        %v6414 = vand.u32 %v6402, 2147483648
        %v6415 = vor.u32 1.1754944e-38, %v6414
        %v6416 = vsel %vm6413, %v6415, %v6411
        %v6417 = vmul.f32 %v6392, %v6416
        %v6418 = vmin.f32 %v6417, 1.0
        %v6419 = vmax.f32 %v6418, -1.0
        %v6420 = vmul.f32 %v5647, %v5647
        %v6421 = vmin.f32 16.0, %v6420
        %v6422 = vmul.f32 %v6421, 2.1237322e-06
        %v6423 = vadd.f32 %v6422, 0.00028619796
        %v6424 = vmul.f32 %v6421, %v6423
        %v6425 = vadd.f32 %v6424, 0.0036580483
        %v6426 = vmul.f32 %v6421, %v6425
        %v6427 = vadd.f32 %v6426, 0.05243302
        %v6428 = vmul.f32 %v6421, %v6427
        %v6429 = vadd.f32 %v6428, 0.18741608
        %v6430 = vmul.f32 %v6421, %v6429
        %v6431 = vadd.f32 %v6430, 1.1283791
        %v6432 = vmul.f32 %v5647, %v6431
        %v6433 = vmul.f32 %v6421, 3.8918573e-05
        %v6434 = vadd.f32 %v6433, 0.001143296
        %v6435 = vmul.f32 %v6421, %v6434
        %v6436 = vadd.f32 %v6435, 0.014752088
        %v6437 = vmul.f32 %v6421, %v6436
        %v6438 = vadd.f32 %v6437, 0.112945676
        %v6439 = vmul.f32 %v6421, %v6438
        %v6440 = vadd.f32 %v6439, 0.4994258
        %v6441 = vmul.f32 %v6421, %v6440
        %v6442 = vadd.f32 %v6441, 1.0
        %v6443 = vrcp.pop %v6442
        %v6444 = vmul.f32 %v6442, %v6443
        %v6445 = vsub.f32 1.0, %v6444
        %v6446 = vmul.f32 %v6443, %v6445
        %v6447 = vadd.f32 %v6443, %v6446
        %vm6448 = vweird.f32 %v6442
        %vm6449 = vweird.f32 %v6443
        %vm6450 = vmor %vm6448, %vm6449
        %v6451 = vsel %vm6450, %v6443, %v6447
        %v6452 = vand.u32 2147483647, %v6442
        %vm6453 = vcmp.eq.f32.partialorder %v6452, 8.507059e+37
        %v6454 = vand.u32 %v6442, 2147483648
        %v6455 = vor.u32 1.1754944e-38, %v6454
        %v6456 = vsel %vm6453, %v6455, %v6451
        %v6457 = vmul.f32 %v6432, %v6456
        %v6458 = vmin.f32 %v6457, 1.0
        %v6459 = vmax.f32 %v6458, -1.0
        %v6460 = vmul.f32 %v5648, %v5648
        %v6461 = vmin.f32 16.0, %v6460
        %v6462 = vmul.f32 %v6461, 2.1237322e-06
        %v6463 = vadd.f32 %v6462, 0.00028619796
        %v6464 = vmul.f32 %v6461, %v6463
        %v6465 = vadd.f32 %v6464, 0.0036580483
        %v6466 = vmul.f32 %v6461, %v6465
        %v6467 = vadd.f32 %v6466, 0.05243302
        %v6468 = vmul.f32 %v6461, %v6467
        %v6469 = vadd.f32 %v6468, 0.18741608
        %v6470 = vmul.f32 %v6461, %v6469
        %v6471 = vadd.f32 %v6470, 1.1283791
        %v6472 = vmul.f32 %v5648, %v6471
        %v6473 = vmul.f32 %v6461, 3.8918573e-05
        %v6474 = vadd.f32 %v6473, 0.001143296
        %v6475 = vmul.f32 %v6461, %v6474
        %v6476 = vadd.f32 %v6475, 0.014752088
        %v6477 = vmul.f32 %v6461, %v6476
        %v6478 = vadd.f32 %v6477, 0.112945676
        %v6479 = vmul.f32 %v6461, %v6478
        %v6480 = vadd.f32 %v6479, 0.4994258
        %v6481 = vmul.f32 %v6461, %v6480
        %v6482 = vadd.f32 %v6481, 1.0
        %v6483 = vrcp.pop %v6482
        %v6484 = vmul.f32 %v6482, %v6483
        %v6485 = vsub.f32 1.0, %v6484
        %v6486 = vmul.f32 %v6483, %v6485
        %v6487 = vadd.f32 %v6483, %v6486
        %vm6488 = vweird.f32 %v6482
        %vm6489 = vweird.f32 %v6483
        %vm6490 = vmor %vm6488, %vm6489
        %v6491 = vsel %vm6490, %v6483, %v6487
        %v6492 = vand.u32 2147483647, %v6482
        %vm6493 = vcmp.eq.f32.partialorder %v6492, 8.507059e+37
        %v6494 = vand.u32 %v6482, 2147483648
        %v6495 = vor.u32 1.1754944e-38, %v6494
        %v6496 = vsel %vm6493, %v6495, %v6491
        %v6497 = vmul.f32 %v6472, %v6496
        %v6498 = vmin.f32 %v6497, 1.0
        %v6499 = vmax.f32 %v6498, -1.0
        %v6500 = vmul.f32 %v5649, %v5649
        %v6501 = vmin.f32 16.0, %v6500
        %v6502 = vmul.f32 %v6501, 2.1237322e-06
        %v6503 = vadd.f32 %v6502, 0.00028619796
        %v6504 = vmul.f32 %v6501, %v6503
        %v6505 = vadd.f32 %v6504, 0.0036580483
        %v6506 = vmul.f32 %v6501, %v6505
        %v6507 = vadd.f32 %v6506, 0.05243302
        %v6508 = vmul.f32 %v6501, %v6507
        %v6509 = vadd.f32 %v6508, 0.18741608
        %v6510 = vmul.f32 %v6501, %v6509
        %v6511 = vadd.f32 %v6510, 1.1283791
        %v6512 = vmul.f32 %v5649, %v6511
        %v6513 = vmul.f32 %v6501, 3.8918573e-05
        %v6514 = vadd.f32 %v6513, 0.001143296
        %v6515 = vmul.f32 %v6501, %v6514
        %v6516 = vadd.f32 %v6515, 0.014752088
        %v6517 = vmul.f32 %v6501, %v6516
        %v6518 = vadd.f32 %v6517, 0.112945676
        %v6519 = vmul.f32 %v6501, %v6518
        %v6520 = vadd.f32 %v6519, 0.4994258
        %v6521 = vmul.f32 %v6501, %v6520
        %v6522 = vadd.f32 %v6521, 1.0
        %v6523 = vrcp.pop %v6522
        %v6524 = vmul.f32 %v6522, %v6523
        %v6525 = vsub.f32 1.0, %v6524
        %v6526 = vmul.f32 %v6523, %v6525
        %v6527 = vadd.f32 %v6523, %v6526
        %vm6528 = vweird.f32 %v6522
        %vm6529 = vweird.f32 %v6523
        %vm6530 = vmor %vm6528, %vm6529
        %v6531 = vsel %vm6530, %v6523, %v6527
        %v6532 = vand.u32 2147483647, %v6522
        %vm6533 = vcmp.eq.f32.partialorder %v6532, 8.507059e+37
        %v6534 = vand.u32 %v6522, 2147483648
        %v6535 = vor.u32 1.1754944e-38, %v6534
        %v6536 = vsel %vm6533, %v6535, %v6531
        %v6537 = vmul.f32 %v6512, %v6536
        %v6538 = vmin.f32 %v6537, 1.0
        %v6539 = vmax.f32 %v6538, -1.0
        %v6540 = vmul.f32 %v5650, %v5650
        %v6541 = vmin.f32 16.0, %v6540
        %v6542 = vmul.f32 %v6541, 2.1237322e-06
        %v6543 = vadd.f32 %v6542, 0.00028619796
        %v6544 = vmul.f32 %v6541, %v6543
        %v6545 = vadd.f32 %v6544, 0.0036580483
        %v6546 = vmul.f32 %v6541, %v6545
        %v6547 = vadd.f32 %v6546, 0.05243302
        %v6548 = vmul.f32 %v6541, %v6547
        %v6549 = vadd.f32 %v6548, 0.18741608
        %v6550 = vmul.f32 %v6541, %v6549
        %v6551 = vadd.f32 %v6550, 1.1283791
        %v6552 = vmul.f32 %v5650, %v6551
        %v6553 = vmul.f32 %v6541, 3.8918573e-05
        %v6554 = vadd.f32 %v6553, 0.001143296
        %v6555 = vmul.f32 %v6541, %v6554
        %v6556 = vadd.f32 %v6555, 0.014752088
        %v6557 = vmul.f32 %v6541, %v6556
        %v6558 = vadd.f32 %v6557, 0.112945676
        %v6559 = vmul.f32 %v6541, %v6558
        %v6560 = vadd.f32 %v6559, 0.4994258
        %v6561 = vmul.f32 %v6541, %v6560
        %v6562 = vadd.f32 %v6561, 1.0
        %v6563 = vrcp.pop %v6562
        %v6564 = vmul.f32 %v6562, %v6563
        %v6565 = vsub.f32 1.0, %v6564
        %v6566 = vmul.f32 %v6563, %v6565
        %v6567 = vadd.f32 %v6563, %v6566
        %vm6568 = vweird.f32 %v6562
        %vm6569 = vweird.f32 %v6563
        %vm6570 = vmor %vm6568, %vm6569
        %v6571 = vsel %vm6570, %v6563, %v6567
        %v6572 = vand.u32 2147483647, %v6562
        %vm6573 = vcmp.eq.f32.partialorder %v6572, 8.507059e+37
        %v6574 = vand.u32 %v6562, 2147483648
        %v6575 = vor.u32 1.1754944e-38, %v6574
        %v6576 = vsel %vm6573, %v6575, %v6571
        %v6577 = vmul.f32 %v6552, %v6576
        %v6578 = vmin.f32 %v6577, 1.0
        %v6579 = vmax.f32 %v6578, -1.0
        %v6580 = vmul.f32 %v5651, %v5651
        %v6581 = vmin.f32 16.0, %v6580
        %v6582 = vmul.f32 %v6581, 2.1237322e-06
        %v6583 = vadd.f32 %v6582, 0.00028619796
        %v6584 = vmul.f32 %v6581, %v6583
        %v6585 = vadd.f32 %v6584, 0.0036580483
        %v6586 = vmul.f32 %v6581, %v6585
        %v6587 = vadd.f32 %v6586, 0.05243302
        %v6588 = vmul.f32 %v6581, %v6587
        %v6589 = vadd.f32 %v6588, 0.18741608
        %v6590 = vmul.f32 %v6581, %v6589
        %v6591 = vadd.f32 %v6590, 1.1283791
        %v6592 = vmul.f32 %v5651, %v6591
        %v6593 = vmul.f32 %v6581, 3.8918573e-05
        %v6594 = vadd.f32 %v6593, 0.001143296
        %v6595 = vmul.f32 %v6581, %v6594
        %v6596 = vadd.f32 %v6595, 0.014752088
        %v6597 = vmul.f32 %v6581, %v6596
        %v6598 = vadd.f32 %v6597, 0.112945676
        %v6599 = vmul.f32 %v6581, %v6598
        %v6600 = vadd.f32 %v6599, 0.4994258
        %v6601 = vmul.f32 %v6581, %v6600
        %v6602 = vadd.f32 %v6601, 1.0
        %v6603 = vrcp.pop %v6602
        %v6604 = vmul.f32 %v6602, %v6603
        %v6605 = vsub.f32 1.0, %v6604
        %v6606 = vmul.f32 %v6603, %v6605
        %v6607 = vadd.f32 %v6603, %v6606
        %vm6608 = vweird.f32 %v6602
        %vm6609 = vweird.f32 %v6603
        %vm6610 = vmor %vm6608, %vm6609
        %v6611 = vsel %vm6610, %v6603, %v6607
        %v6612 = vand.u32 2147483647, %v6602
        %vm6613 = vcmp.eq.f32.partialorder %v6612, 8.507059e+37
        %v6614 = vand.u32 %v6602, 2147483648
        %v6615 = vor.u32 1.1754944e-38, %v6614
        %v6616 = vsel %vm6613, %v6615, %v6611
        %v6617 = vmul.f32 %v6592, %v6616
        %v6618 = vmin.f32 %v6617, 1.0
        %v6619 = vmax.f32 %v6618, -1.0
        %v6620 = vmul.f32 %v5652, %v5652
        %v6621 = vmin.f32 16.0, %v6620
        %v6622 = vmul.f32 %v6621, 2.1237322e-06
        %v6623 = vadd.f32 %v6622, 0.00028619796
        %v6624 = vmul.f32 %v6621, %v6623
        %v6625 = vadd.f32 %v6624, 0.0036580483
        %v6626 = vmul.f32 %v6621, %v6625
        %v6627 = vadd.f32 %v6626, 0.05243302
        %v6628 = vmul.f32 %v6621, %v6627
        %v6629 = vadd.f32 %v6628, 0.18741608
        %v6630 = vmul.f32 %v6621, %v6629
        %v6631 = vadd.f32 %v6630, 1.1283791
        %v6632 = vmul.f32 %v5652, %v6631
        %v6633 = vmul.f32 %v6621, 3.8918573e-05
        %v6634 = vadd.f32 %v6633, 0.001143296
        %v6635 = vmul.f32 %v6621, %v6634
        %v6636 = vadd.f32 %v6635, 0.014752088
        %v6637 = vmul.f32 %v6621, %v6636
        %v6638 = vadd.f32 %v6637, 0.112945676
        %v6639 = vmul.f32 %v6621, %v6638
        %v6640 = vadd.f32 %v6639, 0.4994258
        %v6641 = vmul.f32 %v6621, %v6640
        %v6642 = vadd.f32 %v6641, 1.0
        %v6643 = vrcp.pop %v6642
        %v6644 = vmul.f32 %v6642, %v6643
        %v6645 = vsub.f32 1.0, %v6644
        %v6646 = vmul.f32 %v6643, %v6645
        %v6647 = vadd.f32 %v6643, %v6646
        %vm6648 = vweird.f32 %v6642
        %vm6649 = vweird.f32 %v6643
        %vm6650 = vmor %vm6648, %vm6649
        %v6651 = vsel %vm6650, %v6643, %v6647
        %v6652 = vand.u32 2147483647, %v6642
        %vm6653 = vcmp.eq.f32.partialorder %v6652, 8.507059e+37
        %v6654 = vand.u32 %v6642, 2147483648
        %v6655 = vor.u32 1.1754944e-38, %v6654
        %v6656 = vsel %vm6653, %v6655, %v6651
        %v6657 = vmul.f32 %v6632, %v6656
        %v6658 = vmin.f32 %v6657, 1.0
        %v6659 = vmax.f32 %v6658, -1.0
        %v6660 = vmul.f32 %v5653, %v5653
        %v6661 = vmin.f32 16.0, %v6660
        %v6662 = vmul.f32 %v6661, 2.1237322e-06
        %v6663 = vadd.f32 %v6662, 0.00028619796
        %v6664 = vmul.f32 %v6661, %v6663
        %v6665 = vadd.f32 %v6664, 0.0036580483
        %v6666 = vmul.f32 %v6661, %v6665
        %v6667 = vadd.f32 %v6666, 0.05243302
        %v6668 = vmul.f32 %v6661, %v6667
        %v6669 = vadd.f32 %v6668, 0.18741608
        %v6670 = vmul.f32 %v6661, %v6669
        %v6671 = vadd.f32 %v6670, 1.1283791
        %v6672 = vmul.f32 %v5653, %v6671
        %v6673 = vmul.f32 %v6661, 3.8918573e-05
        %v6674 = vadd.f32 %v6673, 0.001143296
        %v6675 = vmul.f32 %v6661, %v6674
        %v6676 = vadd.f32 %v6675, 0.014752088
        %v6677 = vmul.f32 %v6661, %v6676
        %v6678 = vadd.f32 %v6677, 0.112945676
        %v6679 = vmul.f32 %v6661, %v6678
        %v6680 = vadd.f32 %v6679, 0.4994258
        %v6681 = vmul.f32 %v6661, %v6680
        %v6682 = vadd.f32 %v6681, 1.0
        %v6683 = vrcp.pop %v6682
        %v6684 = vmul.f32 %v6682, %v6683
        %v6685 = vsub.f32 1.0, %v6684
        %v6686 = vmul.f32 %v6683, %v6685
        %v6687 = vadd.f32 %v6683, %v6686
        %vm6688 = vweird.f32 %v6682
        %vm6689 = vweird.f32 %v6683
        %vm6690 = vmor %vm6688, %vm6689
        %v6691 = vsel %vm6690, %v6683, %v6687
        %v6692 = vand.u32 2147483647, %v6682
        %vm6693 = vcmp.eq.f32.partialorder %v6692, 8.507059e+37
        %v6694 = vand.u32 %v6682, 2147483648
        %v6695 = vor.u32 1.1754944e-38, %v6694
        %v6696 = vsel %vm6693, %v6695, %v6691
        %v6697 = vmul.f32 %v6672, %v6696
        %v6698 = vmin.f32 %v6697, 1.0
        %v6699 = vmax.f32 %v6698, -1.0
        %v6700 = vmul.f32 %v5654, %v5654
        %v6701 = vmin.f32 16.0, %v6700
        %v6702 = vmul.f32 %v6701, 2.1237322e-06
        %v6703 = vadd.f32 %v6702, 0.00028619796
        %v6704 = vmul.f32 %v6701, %v6703
        %v6705 = vadd.f32 %v6704, 0.0036580483
        %v6706 = vmul.f32 %v6701, %v6705
        %v6707 = vadd.f32 %v6706, 0.05243302
        %v6708 = vmul.f32 %v6701, %v6707
        %v6709 = vadd.f32 %v6708, 0.18741608
        %v6710 = vmul.f32 %v6701, %v6709
        %v6711 = vadd.f32 %v6710, 1.1283791
        %v6712 = vmul.f32 %v5654, %v6711
        %v6713 = vmul.f32 %v6701, 3.8918573e-05
        %v6714 = vadd.f32 %v6713, 0.001143296
        %v6715 = vmul.f32 %v6701, %v6714
        %v6716 = vadd.f32 %v6715, 0.014752088
        %v6717 = vmul.f32 %v6701, %v6716
        %v6718 = vadd.f32 %v6717, 0.112945676
        %v6719 = vmul.f32 %v6701, %v6718
        %v6720 = vadd.f32 %v6719, 0.4994258
        %v6721 = vmul.f32 %v6701, %v6720
        %v6722 = vadd.f32 %v6721, 1.0
        %v6723 = vrcp.pop %v6722
        %v6724 = vmul.f32 %v6722, %v6723
        %v6725 = vsub.f32 1.0, %v6724
        %v6726 = vmul.f32 %v6723, %v6725
        %v6727 = vadd.f32 %v6723, %v6726
        %vm6728 = vweird.f32 %v6722
        %vm6729 = vweird.f32 %v6723
        %vm6730 = vmor %vm6728, %vm6729
        %v6731 = vsel %vm6730, %v6723, %v6727
        %v6732 = vand.u32 2147483647, %v6722
        %vm6733 = vcmp.eq.f32.partialorder %v6732, 8.507059e+37
        %v6734 = vand.u32 %v6722, 2147483648
        %v6735 = vor.u32 1.1754944e-38, %v6734
        %v6736 = vsel %vm6733, %v6735, %v6731
        %v6737 = vmul.f32 %v6712, %v6736
        %v6738 = vmin.f32 %v6737, 1.0
        %v6739 = vmax.f32 %v6738, -1.0
        %v6740 = vmul.f32 %v5655, %v5655
        %v6741 = vmin.f32 16.0, %v6740
        %v6742 = vmul.f32 %v6741, 2.1237322e-06
        %v6743 = vadd.f32 %v6742, 0.00028619796
        %v6744 = vmul.f32 %v6741, %v6743
        %v6745 = vadd.f32 %v6744, 0.0036580483
        %v6746 = vmul.f32 %v6741, %v6745
        %v6747 = vadd.f32 %v6746, 0.05243302
        %v6748 = vmul.f32 %v6741, %v6747
        %v6749 = vadd.f32 %v6748, 0.18741608
        %v6750 = vmul.f32 %v6741, %v6749
        %v6751 = vadd.f32 %v6750, 1.1283791
        %v6752 = vmul.f32 %v5655, %v6751
        %v6753 = vmul.f32 %v6741, 3.8918573e-05
        %v6754 = vadd.f32 %v6753, 0.001143296
        %v6755 = vmul.f32 %v6741, %v6754
        %v6756 = vadd.f32 %v6755, 0.014752088
        %v6757 = vmul.f32 %v6741, %v6756
        %v6758 = vadd.f32 %v6757, 0.112945676
        %v6759 = vmul.f32 %v6741, %v6758
        %v6760 = vadd.f32 %v6759, 0.4994258
        %v6761 = vmul.f32 %v6741, %v6760
        %v6762 = vadd.f32 %v6761, 1.0
        %v6763 = vrcp.pop %v6762
        %v6764 = vmul.f32 %v6762, %v6763
        %v6765 = vsub.f32 1.0, %v6764
        %v6766 = vmul.f32 %v6763, %v6765
        %v6767 = vadd.f32 %v6763, %v6766
        %vm6768 = vweird.f32 %v6762
        %vm6769 = vweird.f32 %v6763
        %vm6770 = vmor %vm6768, %vm6769
        %v6771 = vsel %vm6770, %v6763, %v6767
        %v6772 = vand.u32 2147483647, %v6762
        %vm6773 = vcmp.eq.f32.partialorder %v6772, 8.507059e+37
        %v6774 = vand.u32 %v6762, 2147483648
        %v6775 = vor.u32 1.1754944e-38, %v6774
        %v6776 = vsel %vm6773, %v6775, %v6771
        %v6777 = vmul.f32 %v6752, %v6776
        %v6778 = vmin.f32 %v6777, 1.0
        %v6779 = vmax.f32 %v6778, -1.0
        %v6780 = vmul.f32 %v5656, %v5656
        %v6781 = vmin.f32 16.0, %v6780
        %v6782 = vmul.f32 %v6781, 2.1237322e-06
        %v6783 = vadd.f32 %v6782, 0.00028619796
        %v6784 = vmul.f32 %v6781, %v6783
        %v6785 = vadd.f32 %v6784, 0.0036580483
        %v6786 = vmul.f32 %v6781, %v6785
        %v6787 = vadd.f32 %v6786, 0.05243302
        %v6788 = vmul.f32 %v6781, %v6787
        %v6789 = vadd.f32 %v6788, 0.18741608
        %v6790 = vmul.f32 %v6781, %v6789
        %v6791 = vadd.f32 %v6790, 1.1283791
        %v6792 = vmul.f32 %v5656, %v6791
        %v6793 = vmul.f32 %v6781, 3.8918573e-05
        %v6794 = vadd.f32 %v6793, 0.001143296
        %v6795 = vmul.f32 %v6781, %v6794
        %v6796 = vadd.f32 %v6795, 0.014752088
        %v6797 = vmul.f32 %v6781, %v6796
        %v6798 = vadd.f32 %v6797, 0.112945676
        %v6799 = vmul.f32 %v6781, %v6798
        %v6800 = vadd.f32 %v6799, 0.4994258
        %v6801 = vmul.f32 %v6781, %v6800
        %v6802 = vadd.f32 %v6801, 1.0
        %v6803 = vrcp.pop %v6802
        %v6804 = vmul.f32 %v6802, %v6803
        %v6805 = vsub.f32 1.0, %v6804
        %v6806 = vmul.f32 %v6803, %v6805
        %v6807 = vadd.f32 %v6803, %v6806
        %vm6808 = vweird.f32 %v6802
        %vm6809 = vweird.f32 %v6803
        %vm6810 = vmor %vm6808, %vm6809
        %v6811 = vsel %vm6810, %v6803, %v6807
        %v6812 = vand.u32 2147483647, %v6802
        %vm6813 = vcmp.eq.f32.partialorder %v6812, 8.507059e+37
        %v6814 = vand.u32 %v6802, 2147483648
        %v6815 = vor.u32 1.1754944e-38, %v6814
        %v6816 = vsel %vm6813, %v6815, %v6811
        %v6817 = vmul.f32 %v6792, %v6816
        %v6818 = vmin.f32 %v6817, 1.0
        %v6819 = vmax.f32 %v6818, -1.0
        %v6820 = vmul.f32 %v5657, %v5657
        %v6821 = vmin.f32 16.0, %v6820
        %v6822 = vmul.f32 %v6821, 2.1237322e-06
        %v6823 = vadd.f32 %v6822, 0.00028619796
        %v6824 = vmul.f32 %v6821, %v6823
        %v6825 = vadd.f32 %v6824, 0.0036580483
        %v6826 = vmul.f32 %v6821, %v6825
        %v6827 = vadd.f32 %v6826, 0.05243302
        %v6828 = vmul.f32 %v6821, %v6827
        %v6829 = vadd.f32 %v6828, 0.18741608
        %v6830 = vmul.f32 %v6821, %v6829
        %v6831 = vadd.f32 %v6830, 1.1283791
        %v6832 = vmul.f32 %v5657, %v6831
        %v6833 = vmul.f32 %v6821, 3.8918573e-05
        %v6834 = vadd.f32 %v6833, 0.001143296
        %v6835 = vmul.f32 %v6821, %v6834
        %v6836 = vadd.f32 %v6835, 0.014752088
        %v6837 = vmul.f32 %v6821, %v6836
        %v6838 = vadd.f32 %v6837, 0.112945676
        %v6839 = vmul.f32 %v6821, %v6838
        %v6840 = vadd.f32 %v6839, 0.4994258
        %v6841 = vmul.f32 %v6821, %v6840
        %v6842 = vadd.f32 %v6841, 1.0
        %v6843 = vrcp.pop %v6842
        %v6844 = vmul.f32 %v6842, %v6843
        %v6845 = vsub.f32 1.0, %v6844
        %v6846 = vmul.f32 %v6843, %v6845
        %v6847 = vadd.f32 %v6843, %v6846
        %vm6848 = vweird.f32 %v6842
        %vm6849 = vweird.f32 %v6843
        %vm6850 = vmor %vm6848, %vm6849
        %v6851 = vsel %vm6850, %v6843, %v6847
        %v6852 = vand.u32 2147483647, %v6842
        %vm6853 = vcmp.eq.f32.partialorder %v6852, 8.507059e+37
        %v6854 = vand.u32 %v6842, 2147483648
        %v6855 = vor.u32 1.1754944e-38, %v6854
        %v6856 = vsel %vm6853, %v6855, %v6851
        %v6857 = vmul.f32 %v6832, %v6856
        %v6858 = vmin.f32 %v6857, 1.0
        %v6859 = vmax.f32 %v6858, -1.0
        %v6860 = vmul.f32 %v5658, %v5658
        %v6861 = vmin.f32 16.0, %v6860
        %v6862 = vmul.f32 %v6861, 2.1237322e-06
        %v6863 = vadd.f32 %v6862, 0.00028619796
        %v6864 = vmul.f32 %v6861, %v6863
        %v6865 = vadd.f32 %v6864, 0.0036580483
        %v6866 = vmul.f32 %v6861, %v6865
        %v6867 = vadd.f32 %v6866, 0.05243302
        %v6868 = vmul.f32 %v6861, %v6867
        %v6869 = vadd.f32 %v6868, 0.18741608
        %v6870 = vmul.f32 %v6861, %v6869
        %v6871 = vadd.f32 %v6870, 1.1283791
        %v6872 = vmul.f32 %v5658, %v6871
        %v6873 = vmul.f32 %v6861, 3.8918573e-05
        %v6874 = vadd.f32 %v6873, 0.001143296
        %v6875 = vmul.f32 %v6861, %v6874
        %v6876 = vadd.f32 %v6875, 0.014752088
        %v6877 = vmul.f32 %v6861, %v6876
        %v6878 = vadd.f32 %v6877, 0.112945676
        %v6879 = vmul.f32 %v6861, %v6878
        %v6880 = vadd.f32 %v6879, 0.4994258
        %v6881 = vmul.f32 %v6861, %v6880
        %v6882 = vadd.f32 %v6881, 1.0
        %v6883 = vrcp.pop %v6882
        %v6884 = vmul.f32 %v6882, %v6883
        %v6885 = vsub.f32 1.0, %v6884
        %v6886 = vmul.f32 %v6883, %v6885
        %v6887 = vadd.f32 %v6883, %v6886
        %vm6888 = vweird.f32 %v6882
        %vm6889 = vweird.f32 %v6883
        %vm6890 = vmor %vm6888, %vm6889
        %v6891 = vsel %vm6890, %v6883, %v6887
        %v6892 = vand.u32 2147483647, %v6882
        %vm6893 = vcmp.eq.f32.partialorder %v6892, 8.507059e+37
        %v6894 = vand.u32 %v6882, 2147483648
        %v6895 = vor.u32 1.1754944e-38, %v6894
        %v6896 = vsel %vm6893, %v6895, %v6891
        %v6897 = vmul.f32 %v6872, %v6896
        %v6898 = vmin.f32 %v6897, 1.0
        %v6899 = vmax.f32 %v6898, -1.0
        %v6900 = vmul.f32 %v5659, %v5659
        %v6901 = vmin.f32 16.0, %v6900
        %v6902 = vmul.f32 %v6901, 2.1237322e-06
        %v6903 = vadd.f32 %v6902, 0.00028619796
        %v6904 = vmul.f32 %v6901, %v6903
        %v6905 = vadd.f32 %v6904, 0.0036580483
        %v6906 = vmul.f32 %v6901, %v6905
        %v6907 = vadd.f32 %v6906, 0.05243302
        %v6908 = vmul.f32 %v6901, %v6907
        %v6909 = vadd.f32 %v6908, 0.18741608
        %v6910 = vmul.f32 %v6901, %v6909
        %v6911 = vadd.f32 %v6910, 1.1283791
        %v6912 = vmul.f32 %v5659, %v6911
        %v6913 = vmul.f32 %v6901, 3.8918573e-05
        %v6914 = vadd.f32 %v6913, 0.001143296
        %v6915 = vmul.f32 %v6901, %v6914
        %v6916 = vadd.f32 %v6915, 0.014752088
        %v6917 = vmul.f32 %v6901, %v6916
        %v6918 = vadd.f32 %v6917, 0.112945676
        %v6919 = vmul.f32 %v6901, %v6918
        %v6920 = vadd.f32 %v6919, 0.4994258
        %v6921 = vmul.f32 %v6901, %v6920
        %v6922 = vadd.f32 %v6921, 1.0
        %v6923 = vrcp.pop %v6922
        %v6924 = vmul.f32 %v6922, %v6923
        %v6925 = vsub.f32 1.0, %v6924
        %v6926 = vmul.f32 %v6923, %v6925
        %v6927 = vadd.f32 %v6923, %v6926
        %vm6928 = vweird.f32 %v6922
        %vm6929 = vweird.f32 %v6923
        %vm6930 = vmor %vm6928, %vm6929
        %v6931 = vsel %vm6930, %v6923, %v6927
        %v6932 = vand.u32 2147483647, %v6922
        %vm6933 = vcmp.eq.f32.partialorder %v6932, 8.507059e+37
        %v6934 = vand.u32 %v6922, 2147483648
        %v6935 = vor.u32 1.1754944e-38, %v6934
        %v6936 = vsel %vm6933, %v6935, %v6931
        %v6937 = vmul.f32 %v6912, %v6936
        %v6938 = vmin.f32 %v6937, 1.0
        %v6939 = vmax.f32 %v6938, -1.0
        %v6940 = vadd.f32 %v5699, 1.0
        %v6941 = vadd.f32 %v5739, 1.0
        %v6942 = vadd.f32 %v5779, 1.0
        %v6943 = vadd.f32 %v5819, 1.0
        %v6944 = vadd.f32 %v5859, 1.0
        %v6945 = vadd.f32 %v5899, 1.0
        %v6946 = vadd.f32 %v5939, 1.0
        %v6947 = vadd.f32 %v5979, 1.0
        %v6948 = vadd.f32 %v6019, 1.0
        %v6949 = vadd.f32 %v6059, 1.0
        %v6950 = vadd.f32 %v6099, 1.0
        %v6951 = vadd.f32 %v6139, 1.0
        %v6952 = vadd.f32 %v6179, 1.0
        %v6953 = vadd.f32 %v6219, 1.0
        %v6954 = vadd.f32 %v6259, 1.0
        %v6955 = vadd.f32 %v6299, 1.0
        %v6956 = vadd.f32 %v6339, 1.0
        %v6957 = vadd.f32 %v6379, 1.0
        %v6958 = vadd.f32 %v6419, 1.0
        %v6959 = vadd.f32 %v6459, 1.0
        %v6960 = vadd.f32 %v6499, 1.0
        %v6961 = vadd.f32 %v6539, 1.0
        %v6962 = vadd.f32 %v6579, 1.0
        %v6963 = vadd.f32 %v6619, 1.0
        %v6964 = vadd.f32 %v6659, 1.0
        %v6965 = vadd.f32 %v6699, 1.0
        %v6966 = vadd.f32 %v6739, 1.0
        %v6967 = vadd.f32 %v6779, 1.0
        %v6968 = vadd.f32 %v6819, 1.0
        %v6969 = vadd.f32 %v6859, 1.0
        %v6970 = vadd.f32 %v6899, 1.0
        %v6971 = vadd.f32 %v6939, 1.0
        %v6972 = vmul.f32 %v5596, %v6940
        %v6973 = vmul.f32 %v5597, %v6941
        %v6974 = vmul.f32 %v5598, %v6942
        %v6975 = vmul.f32 %v5599, %v6943
        %v6976 = vmul.f32 %v5600, %v6944
        %v6977 = vmul.f32 %v5601, %v6945
        %v6978 = vmul.f32 %v5602, %v6946
        %v6979 = vmul.f32 %v5603, %v6947
        %v6980 = vmul.f32 %v5604, %v6948
        %v6981 = vmul.f32 %v5605, %v6949
        %v6982 = vmul.f32 %v5606, %v6950
        %v6983 = vmul.f32 %v5607, %v6951
        %v6984 = vmul.f32 %v5608, %v6952
        %v6985 = vmul.f32 %v5609, %v6953
        %v6986 = vmul.f32 %v5610, %v6954
        %v6987 = vmul.f32 %v5611, %v6955
        %v6988 = vmul.f32 %v5612, %v6956
        %v6989 = vmul.f32 %v5613, %v6957
        %v6990 = vmul.f32 %v5614, %v6958
        %v6991 = vmul.f32 %v5615, %v6959
        %v6992 = vmul.f32 %v5616, %v6960
        %v6993 = vmul.f32 %v5617, %v6961
        %v6994 = vmul.f32 %v5618, %v6962
        %v6995 = vmul.f32 %v5619, %v6963
        %v6996 = vmul.f32 %v5620, %v6964
        %v6997 = vmul.f32 %v5621, %v6965
        %v6998 = vmul.f32 %v5622, %v6966
        %v6999 = vmul.f32 %v5623, %v6967
        %v7000 = vmul.f32 %v5624, %v6968
        %v7001 = vmul.f32 %v5625, %v6969
        %v7002 = vmul.f32 %v5626, %v6970
        %v7003 = vmul.f32 %v5627, %v6971
        %v7004 = vpack.c.bf16 %v6973, %v6972
        %v7005 = vpack.c.bf16 %v6975, %v6974
        %v7006 = vpack.c.bf16 %v6977, %v6976
        %v7007 = vpack.c.bf16 %v6979, %v6978
        %v7008 = vpack.c.bf16 %v6981, %v6980
        %v7009 = vpack.c.bf16 %v6983, %v6982
        %v7010 = vpack.c.bf16 %v6985, %v6984
        %v7011 = vpack.c.bf16 %v6987, %v6986
        %v7012 = vpack.c.bf16 %v6989, %v6988
        %v7013 = vpack.c.bf16 %v6991, %v6990
        %v7014 = vpack.c.bf16 %v6993, %v6992
        %v7015 = vpack.c.bf16 %v6995, %v6994
        %v7016 = vpack.c.bf16 %v6997, %v6996
        %v7017 = vpack.c.bf16 %v6999, %v6998
        %v7018 = vpack.c.bf16 %v7001, %v7000
        %v7019 = vpack.c.bf16 %v7003, %v7002
        %v7021 = vperm.slane %v495, 0
        %v7039 = vunpack.c.l.b16 %v478
        %v7040 = vunpack.c.l.b16 %v479
        %v7041 = vunpack.c.l.b16 %v480
        %v7042 = vunpack.c.l.b16 %v481
        %v7043 = vunpack.c.l.b16 %v482
        %v7044 = vunpack.c.l.b16 %v483
        %v7045 = vunpack.c.l.b16 %v484
        %v7046 = vunpack.c.l.b16 %v485
        %v7047 = vunpack.c.l.b16 %v486
        %v7048 = vunpack.c.l.b16 %v487
        %v7049 = vunpack.c.l.b16 %v488
        %v7050 = vunpack.c.l.b16 %v489
        %v7051 = vunpack.c.l.b16 %v490
        %v7052 = vunpack.c.l.b16 %v491
        %v7053 = vunpack.c.l.b16 %v492
        %v7054 = vunpack.c.l.b16 %v493
        %v7055 = vpack.c.b16 %v7040, %v7039
        %v7056 = vpack.c.b16 %v7042, %v7041
        %v7057 = vpack.c.b16 %v7044, %v7043
        %v7058 = vpack.c.b16 %v7046, %v7045
        %v7059 = vpack.c.b16 %v7048, %v7047
        %v7060 = vpack.c.b16 %v7050, %v7049
        %v7061 = vpack.c.b16 %v7052, %v7051
        %v7062 = vpack.c.b16 %v7054, %v7053
        %7071 = vmatpush.bf16.msra.mxu0 %v7062
        %7072 = vmatpush.bf16.msra.mxu0 %v7061
        %7073 = vmatpush.bf16.msra.mxu0 %v7060
        %7074 = vmatpush.bf16.msra.mxu0 %v7059
        %7075 = vmatpush.bf16.msra.mxu0 %v7058
        %7076 = vmatpush.bf16.msra.mxu0 %v7057
        %7077 = vmatpush.bf16.msra.mxu0 %v7056
        %7078 = vmatpush.bf16.msra.mxu0 %v7055
        %7079 = vmatmul.bf16.gmra.mxu0 %v7004
        %v7080 = vpop.f32.mrf.mxu0
        %v7081 = vadd.f32 %v7021, %v7080
        %v7082 = vpop.f32.mrf.mxu0
        %v7083 = vadd.f32 %v7021, %v7082
        %7084 = vmatmul.bf16.gmra.mxu0 %v7005
        %v7085 = vpop.f32.mrf.mxu0
        %v7086 = vadd.f32 %v7021, %v7085
        %v7087 = vpop.f32.mrf.mxu0
        %v7088 = vadd.f32 %v7021, %v7087
        %7089 = vmatmul.bf16.gmra.mxu0 %v7006
        %v7090 = vpop.f32.mrf.mxu0
        %v7091 = vadd.f32 %v7021, %v7090
        %v7092 = vpop.f32.mrf.mxu0
        %v7093 = vadd.f32 %v7021, %v7092
        %7094 = vmatmul.bf16.gmra.mxu0 %v7007
        %v7095 = vpop.f32.mrf.mxu0
        %v7096 = vadd.f32 %v7021, %v7095
        %v7097 = vpop.f32.mrf.mxu0
        %v7098 = vadd.f32 %v7021, %v7097
        %7099 = vmatmul.bf16.gmra.mxu0 %v7008
        %v7100 = vpop.f32.mrf.mxu0
        %v7101 = vadd.f32 %v7021, %v7100
        %v7102 = vpop.f32.mrf.mxu0
        %v7103 = vadd.f32 %v7021, %v7102
        %7104 = vmatmul.bf16.gmra.mxu0 %v7009
        %v7105 = vpop.f32.mrf.mxu0
        %v7106 = vadd.f32 %v7021, %v7105
        %v7107 = vpop.f32.mrf.mxu0
        %v7108 = vadd.f32 %v7021, %v7107
        %7109 = vmatmul.bf16.gmra.mxu0 %v7010
        %v7110 = vpop.f32.mrf.mxu0
        %v7111 = vadd.f32 %v7021, %v7110
        %v7112 = vpop.f32.mrf.mxu0
        %v7113 = vadd.f32 %v7021, %v7112
        %7114 = vmatmul.bf16.gmra.mxu0 %v7011
        %v7115 = vpop.f32.mrf.mxu0
        %v7116 = vadd.f32 %v7021, %v7115
        %v7117 = vpop.f32.mrf.mxu0
        %v7118 = vadd.f32 %v7021, %v7117
        %7119 = vmatmul.bf16.gmra.mxu0 %v7012
        %v7120 = vpop.f32.mrf.mxu0
        %v7121 = vadd.f32 %v7021, %v7120
        %v7122 = vpop.f32.mrf.mxu0
        %v7123 = vadd.f32 %v7021, %v7122
        %7124 = vmatmul.bf16.gmra.mxu0 %v7013
        %v7125 = vpop.f32.mrf.mxu0
        %v7126 = vadd.f32 %v7021, %v7125
        %v7127 = vpop.f32.mrf.mxu0
        %v7128 = vadd.f32 %v7021, %v7127
        %7129 = vmatmul.bf16.gmra.mxu0 %v7014
        %v7130 = vpop.f32.mrf.mxu0
        %v7131 = vadd.f32 %v7021, %v7130
        %v7132 = vpop.f32.mrf.mxu0
        %v7133 = vadd.f32 %v7021, %v7132
        %7134 = vmatmul.bf16.gmra.mxu0 %v7015
        %v7135 = vpop.f32.mrf.mxu0
        %v7136 = vadd.f32 %v7021, %v7135
        %v7137 = vpop.f32.mrf.mxu0
        %v7138 = vadd.f32 %v7021, %v7137
        %7139 = vmatmul.bf16.gmra.mxu0 %v7016
        %v7140 = vpop.f32.mrf.mxu0
        %v7141 = vadd.f32 %v7021, %v7140
        %v7142 = vpop.f32.mrf.mxu0
        %v7143 = vadd.f32 %v7021, %v7142
        %7144 = vmatmul.bf16.gmra.mxu0 %v7017
        %v7145 = vpop.f32.mrf.mxu0
        %v7146 = vadd.f32 %v7021, %v7145
        %v7147 = vpop.f32.mrf.mxu0
        %v7148 = vadd.f32 %v7021, %v7147
        %7149 = vmatmul.bf16.gmra.mxu0 %v7018
        %v7150 = vpop.f32.mrf.mxu0
        %v7151 = vadd.f32 %v7021, %v7150
        %v7152 = vpop.f32.mrf.mxu0
        %v7153 = vadd.f32 %v7021, %v7152
        %7154 = vmatmul.bf16.gmra.mxu0 %v7019
        %v7155 = vpop.f32.mrf.mxu0
        %v7156 = vadd.f32 %v7021, %v7155
        %v7157 = vpop.f32.mrf.mxu0
        %v7158 = vadd.f32 %v7021, %v7157
        %7159 = vdwg.mxu0
        %v7160 = vadd.f32 %v4622, %v7081
        %v7161 = vadd.f32 %v4623, %v7083
        %v7162 = vadd.f32 %v4624, %v7086
        %v7163 = vadd.f32 %v4625, %v7088
        %v7164 = vadd.f32 %v4626, %v7091
        %v7165 = vadd.f32 %v4627, %v7093
        %v7166 = vadd.f32 %v4628, %v7096
        %v7167 = vadd.f32 %v4629, %v7098
        %v7168 = vadd.f32 %v4630, %v7101
        %v7169 = vadd.f32 %v4631, %v7103
        %v7170 = vadd.f32 %v4632, %v7106
        %v7171 = vadd.f32 %v4633, %v7108
        %v7172 = vadd.f32 %v4634, %v7111
        %v7173 = vadd.f32 %v4635, %v7113
        %v7174 = vadd.f32 %v4636, %v7116
        %v7175 = vadd.f32 %v4637, %v7118
        %v7176 = vadd.f32 %v4638, %v7121
        %v7177 = vadd.f32 %v4639, %v7123
        %v7178 = vadd.f32 %v4640, %v7126
        %v7179 = vadd.f32 %v4641, %v7128
        %v7180 = vadd.f32 %v4642, %v7131
        %v7181 = vadd.f32 %v4643, %v7133
        %v7182 = vadd.f32 %v4644, %v7136
        %v7183 = vadd.f32 %v4645, %v7138
        %v7184 = vadd.f32 %v4646, %v7141
        %v7185 = vadd.f32 %v4647, %v7143
        %v7186 = vadd.f32 %v4648, %v7146
        %v7187 = vadd.f32 %v4649, %v7148
        %v7188 = vadd.f32 %v4650, %v7151
        %v7189 = vadd.f32 %v4651, %v7153
        %v7190 = vadd.f32 %v4652, %v7156
        %v7191 = vadd.f32 %v4653, %v7158
        %v7192 = vld [vmem:[%s9] sm:$0x1]
        %v7193 = vld [vmem:[%s10] sm:$0x1]
        %v7194 = vsel %vm496, %v7160, 0.0
        %7195 = vadd.xlane.f32.xlu0 %v7194
        %v7196 = vpop.xlane.xlu0 %7195
        %v7197 = vsel %vm496, %v7161, 0.0
        %7198 = vadd.xlane.f32.xlu0 %v7197
        %v7199 = vpop.xlane.xlu0 %7198
        %v7200 = vsel %vm496, %v7162, 0.0
        %7201 = vadd.xlane.f32.xlu0 %v7200
        %v7202 = vpop.xlane.xlu0 %7201
        %v7203 = vsel %vm496, %v7163, 0.0
        %7204 = vadd.xlane.f32.xlu0 %v7203
        %v7205 = vpop.xlane.xlu0 %7204
        %v7206 = vsel %vm496, %v7164, 0.0
        %7207 = vadd.xlane.f32.xlu0 %v7206
        %v7208 = vpop.xlane.xlu0 %7207
        %v7209 = vsel %vm496, %v7165, 0.0
        %7210 = vadd.xlane.f32.xlu0 %v7209
        %v7211 = vpop.xlane.xlu0 %7210
        %v7212 = vsel %vm496, %v7166, 0.0
        %7213 = vadd.xlane.f32.xlu0 %v7212
        %v7214 = vpop.xlane.xlu0 %7213
        %v7215 = vsel %vm496, %v7167, 0.0
        %7216 = vadd.xlane.f32.xlu0 %v7215
        %v7217 = vpop.xlane.xlu0 %7216
        %v7218 = vsel %vm496, %v7168, 0.0
        %7219 = vadd.xlane.f32.xlu0 %v7218
        %v7220 = vpop.xlane.xlu0 %7219
        %v7221 = vsel %vm496, %v7169, 0.0
        %7222 = vadd.xlane.f32.xlu0 %v7221
        %v7223 = vpop.xlane.xlu0 %7222
        %v7224 = vsel %vm496, %v7170, 0.0
        %7225 = vadd.xlane.f32.xlu0 %v7224
        %v7226 = vpop.xlane.xlu0 %7225
        %v7227 = vsel %vm496, %v7171, 0.0
        %7228 = vadd.xlane.f32.xlu0 %v7227
        %v7229 = vpop.xlane.xlu0 %7228
        %v7230 = vsel %vm496, %v7172, 0.0
        %7231 = vadd.xlane.f32.xlu0 %v7230
        %v7232 = vpop.xlane.xlu0 %7231
        %v7233 = vsel %vm496, %v7173, 0.0
        %7234 = vadd.xlane.f32.xlu0 %v7233
        %v7235 = vpop.xlane.xlu0 %7234
        %v7236 = vsel %vm496, %v7174, 0.0
        %7237 = vadd.xlane.f32.xlu0 %v7236
        %v7238 = vpop.xlane.xlu0 %7237
        %v7239 = vsel %vm496, %v7175, 0.0
        %7240 = vadd.xlane.f32.xlu0 %v7239
        %v7241 = vpop.xlane.xlu0 %7240
        %v7242 = vsel %vm496, %v7176, 0.0
        %7243 = vadd.xlane.f32.xlu0 %v7242
        %v7244 = vpop.xlane.xlu0 %7243
        %v7245 = vsel %vm496, %v7177, 0.0
        %7246 = vadd.xlane.f32.xlu0 %v7245
        %v7247 = vpop.xlane.xlu0 %7246
        %v7248 = vsel %vm496, %v7178, 0.0
        %7249 = vadd.xlane.f32.xlu0 %v7248
        %v7250 = vpop.xlane.xlu0 %7249
        %v7251 = vsel %vm496, %v7179, 0.0
        %7252 = vadd.xlane.f32.xlu0 %v7251
        %v7253 = vpop.xlane.xlu0 %7252
        %v7254 = vsel %vm496, %v7180, 0.0
        %7255 = vadd.xlane.f32.xlu0 %v7254
        %v7256 = vpop.xlane.xlu0 %7255
        %v7257 = vsel %vm496, %v7181, 0.0
        %7258 = vadd.xlane.f32.xlu0 %v7257
        %v7259 = vpop.xlane.xlu0 %7258
        %v7260 = vsel %vm496, %v7182, 0.0
        %7261 = vadd.xlane.f32.xlu0 %v7260
        %v7262 = vpop.xlane.xlu0 %7261
        %v7263 = vsel %vm496, %v7183, 0.0
        %7264 = vadd.xlane.f32.xlu0 %v7263
        %v7265 = vpop.xlane.xlu0 %7264
        %v7266 = vsel %vm496, %v7184, 0.0
        %7267 = vadd.xlane.f32.xlu0 %v7266
        %v7268 = vpop.xlane.xlu0 %7267
        %v7269 = vsel %vm496, %v7185, 0.0
        %7270 = vadd.xlane.f32.xlu0 %v7269
        %v7271 = vpop.xlane.xlu0 %7270
        %v7272 = vsel %vm496, %v7186, 0.0
        %7273 = vadd.xlane.f32.xlu0 %v7272
        %v7274 = vpop.xlane.xlu0 %7273
        %v7275 = vsel %vm496, %v7187, 0.0
        %7276 = vadd.xlane.f32.xlu0 %v7275
        %v7277 = vpop.xlane.xlu0 %7276
        %v7278 = vsel %vm496, %v7188, 0.0
        %7279 = vadd.xlane.f32.xlu0 %v7278
        %v7280 = vpop.xlane.xlu0 %7279
        %v7281 = vsel %vm496, %v7189, 0.0
        %7282 = vadd.xlane.f32.xlu0 %v7281
        %v7283 = vpop.xlane.xlu0 %7282
        %v7284 = vsel %vm496, %v7190, 0.0
        %7285 = vadd.xlane.f32.xlu0 %v7284
        %v7286 = vpop.xlane.xlu0 %7285
        %v7287 = vsel %vm496, %v7191, 0.0
        %7288 = vadd.xlane.f32.xlu0 %v7287
        %v7289 = vpop.xlane.xlu0 %7288
        %v7290 = vmul.f32 %v7196, %v599
        %v7291 = vmul.f32 %v7199, %v599
        %v7292 = vmul.f32 %v7202, %v599
        %v7293 = vmul.f32 %v7205, %v599
        %v7294 = vmul.f32 %v7208, %v599
        %v7295 = vmul.f32 %v7211, %v599
        %v7296 = vmul.f32 %v7214, %v599
        %v7297 = vmul.f32 %v7217, %v599
        %v7298 = vmul.f32 %v7220, %v599
        %v7299 = vmul.f32 %v7223, %v599
        %v7300 = vmul.f32 %v7226, %v599
        %v7301 = vmul.f32 %v7229, %v599
        %v7302 = vmul.f32 %v7232, %v599
        %v7303 = vmul.f32 %v7235, %v599
        %v7304 = vmul.f32 %v7238, %v599
        %v7305 = vmul.f32 %v7241, %v599
        %v7306 = vmul.f32 %v7244, %v599
        %v7307 = vmul.f32 %v7247, %v599
        %v7308 = vmul.f32 %v7250, %v599
        %v7309 = vmul.f32 %v7253, %v599
        %v7310 = vmul.f32 %v7256, %v599
        %v7311 = vmul.f32 %v7259, %v599
        %v7312 = vmul.f32 %v7262, %v599
        %v7313 = vmul.f32 %v7265, %v599
        %v7314 = vmul.f32 %v7268, %v599
        %v7315 = vmul.f32 %v7271, %v599
        %v7316 = vmul.f32 %v7274, %v599
        %v7317 = vmul.f32 %v7277, %v599
        %v7318 = vmul.f32 %v7280, %v599
        %v7319 = vmul.f32 %v7283, %v599
        %v7320 = vmul.f32 %v7286, %v599
        %v7321 = vmul.f32 %v7289, %v599
        %v7322 = vsub.f32 %v7160, %v7290
        %v7323 = vsub.f32 %v7161, %v7291
        %v7324 = vsub.f32 %v7162, %v7292
        %v7325 = vsub.f32 %v7163, %v7293
        %v7326 = vsub.f32 %v7164, %v7294
        %v7327 = vsub.f32 %v7165, %v7295
        %v7328 = vsub.f32 %v7166, %v7296
        %v7329 = vsub.f32 %v7167, %v7297
        %v7330 = vsub.f32 %v7168, %v7298
        %v7331 = vsub.f32 %v7169, %v7299
        %v7332 = vsub.f32 %v7170, %v7300
        %v7333 = vsub.f32 %v7171, %v7301
        %v7334 = vsub.f32 %v7172, %v7302
        %v7335 = vsub.f32 %v7173, %v7303
        %v7336 = vsub.f32 %v7174, %v7304
        %v7337 = vsub.f32 %v7175, %v7305
        %v7338 = vsub.f32 %v7176, %v7306
        %v7339 = vsub.f32 %v7177, %v7307
        %v7340 = vsub.f32 %v7178, %v7308
        %v7341 = vsub.f32 %v7179, %v7309
        %v7342 = vsub.f32 %v7180, %v7310
        %v7343 = vsub.f32 %v7181, %v7311
        %v7344 = vsub.f32 %v7182, %v7312
        %v7345 = vsub.f32 %v7183, %v7313
        %v7346 = vsub.f32 %v7184, %v7314
        %v7347 = vsub.f32 %v7185, %v7315
        %v7348 = vsub.f32 %v7186, %v7316
        %v7349 = vsub.f32 %v7187, %v7317
        %v7350 = vsub.f32 %v7188, %v7318
        %v7351 = vsub.f32 %v7189, %v7319
        %v7352 = vsub.f32 %v7190, %v7320
        %v7353 = vsub.f32 %v7191, %v7321
        %v7354 = vmul.f32 %v7322, %v7322
        %v7355 = vmul.f32 %v7323, %v7323
        %v7356 = vmul.f32 %v7324, %v7324
        %v7357 = vmul.f32 %v7325, %v7325
        %v7358 = vmul.f32 %v7326, %v7326
        %v7359 = vmul.f32 %v7327, %v7327
        %v7360 = vmul.f32 %v7328, %v7328
        %v7361 = vmul.f32 %v7329, %v7329
        %v7362 = vmul.f32 %v7330, %v7330
        %v7363 = vmul.f32 %v7331, %v7331
        %v7364 = vmul.f32 %v7332, %v7332
        %v7365 = vmul.f32 %v7333, %v7333
        %v7366 = vmul.f32 %v7334, %v7334
        %v7367 = vmul.f32 %v7335, %v7335
        %v7368 = vmul.f32 %v7336, %v7336
        %v7369 = vmul.f32 %v7337, %v7337
        %v7370 = vmul.f32 %v7338, %v7338
        %v7371 = vmul.f32 %v7339, %v7339
        %v7372 = vmul.f32 %v7340, %v7340
        %v7373 = vmul.f32 %v7341, %v7341
        %v7374 = vmul.f32 %v7342, %v7342
        %v7375 = vmul.f32 %v7343, %v7343
        %v7376 = vmul.f32 %v7344, %v7344
        %v7377 = vmul.f32 %v7345, %v7345
        %v7378 = vmul.f32 %v7346, %v7346
        %v7379 = vmul.f32 %v7347, %v7347
        %v7380 = vmul.f32 %v7348, %v7348
        %v7381 = vmul.f32 %v7349, %v7349
        %v7382 = vmul.f32 %v7350, %v7350
        %v7383 = vmul.f32 %v7351, %v7351
        %v7384 = vmul.f32 %v7352, %v7352
        %v7385 = vmul.f32 %v7353, %v7353
        %v7386 = vsel %vm496, %v7354, 0.0
        %7387 = vadd.xlane.f32.xlu0 %v7386
        %v7388 = vpop.xlane.xlu0 %7387
        %v7389 = vsel %vm496, %v7355, 0.0
        %7390 = vadd.xlane.f32.xlu0 %v7389
        %v7391 = vpop.xlane.xlu0 %7390
        %v7392 = vsel %vm496, %v7356, 0.0
        %7393 = vadd.xlane.f32.xlu0 %v7392
        %v7394 = vpop.xlane.xlu0 %7393
        %v7395 = vsel %vm496, %v7357, 0.0
        %7396 = vadd.xlane.f32.xlu0 %v7395
        %v7397 = vpop.xlane.xlu0 %7396
        %v7398 = vsel %vm496, %v7358, 0.0
        %7399 = vadd.xlane.f32.xlu0 %v7398
        %v7400 = vpop.xlane.xlu0 %7399
        %v7401 = vsel %vm496, %v7359, 0.0
        %7402 = vadd.xlane.f32.xlu0 %v7401
        %v7403 = vpop.xlane.xlu0 %7402
        %v7404 = vsel %vm496, %v7360, 0.0
        %7405 = vadd.xlane.f32.xlu0 %v7404
        %v7406 = vpop.xlane.xlu0 %7405
        %v7407 = vsel %vm496, %v7361, 0.0
        %7408 = vadd.xlane.f32.xlu0 %v7407
        %v7409 = vpop.xlane.xlu0 %7408
        %v7410 = vsel %vm496, %v7362, 0.0
        %7411 = vadd.xlane.f32.xlu0 %v7410
        %v7412 = vpop.xlane.xlu0 %7411
        %v7413 = vsel %vm496, %v7363, 0.0
        %7414 = vadd.xlane.f32.xlu0 %v7413
        %v7415 = vpop.xlane.xlu0 %7414
        %v7416 = vsel %vm496, %v7364, 0.0
        %7417 = vadd.xlane.f32.xlu0 %v7416
        %v7418 = vpop.xlane.xlu0 %7417
        %v7419 = vsel %vm496, %v7365, 0.0
        %7420 = vadd.xlane.f32.xlu0 %v7419
        %v7421 = vpop.xlane.xlu0 %7420
        %v7422 = vsel %vm496, %v7366, 0.0
        %7423 = vadd.xlane.f32.xlu0 %v7422
        %v7424 = vpop.xlane.xlu0 %7423
        %v7425 = vsel %vm496, %v7367, 0.0
        %7426 = vadd.xlane.f32.xlu0 %v7425
        %v7427 = vpop.xlane.xlu0 %7426
        %v7428 = vsel %vm496, %v7368, 0.0
        %7429 = vadd.xlane.f32.xlu0 %v7428
        %v7430 = vpop.xlane.xlu0 %7429
        %v7431 = vsel %vm496, %v7369, 0.0
        %7432 = vadd.xlane.f32.xlu0 %v7431
        %v7433 = vpop.xlane.xlu0 %7432
        %v7434 = vsel %vm496, %v7370, 0.0
        %7435 = vadd.xlane.f32.xlu0 %v7434
        %v7436 = vpop.xlane.xlu0 %7435
        %v7437 = vsel %vm496, %v7371, 0.0
        %7438 = vadd.xlane.f32.xlu0 %v7437
        %v7439 = vpop.xlane.xlu0 %7438
        %v7440 = vsel %vm496, %v7372, 0.0
        %7441 = vadd.xlane.f32.xlu0 %v7440
        %v7442 = vpop.xlane.xlu0 %7441
        %v7443 = vsel %vm496, %v7373, 0.0
        %7444 = vadd.xlane.f32.xlu0 %v7443
        %v7445 = vpop.xlane.xlu0 %7444
        %v7446 = vsel %vm496, %v7374, 0.0
        %7447 = vadd.xlane.f32.xlu0 %v7446
        %v7448 = vpop.xlane.xlu0 %7447
        %v7449 = vsel %vm496, %v7375, 0.0
        %7450 = vadd.xlane.f32.xlu0 %v7449
        %v7451 = vpop.xlane.xlu0 %7450
        %v7452 = vsel %vm496, %v7376, 0.0
        %7453 = vadd.xlane.f32.xlu0 %v7452
        %v7454 = vpop.xlane.xlu0 %7453
        %v7455 = vsel %vm496, %v7377, 0.0
        %7456 = vadd.xlane.f32.xlu0 %v7455
        %v7457 = vpop.xlane.xlu0 %7456
        %v7458 = vsel %vm496, %v7378, 0.0
        %7459 = vadd.xlane.f32.xlu0 %v7458
        %v7460 = vpop.xlane.xlu0 %7459
        %v7461 = vsel %vm496, %v7379, 0.0
        %7462 = vadd.xlane.f32.xlu0 %v7461
        %v7463 = vpop.xlane.xlu0 %7462
        %v7464 = vsel %vm496, %v7380, 0.0
        %7465 = vadd.xlane.f32.xlu0 %v7464
        %v7466 = vpop.xlane.xlu0 %7465
        %v7467 = vsel %vm496, %v7381, 0.0
        %7468 = vadd.xlane.f32.xlu0 %v7467
        %v7469 = vpop.xlane.xlu0 %7468
        %v7470 = vsel %vm496, %v7382, 0.0
        %7471 = vadd.xlane.f32.xlu0 %v7470
        %v7472 = vpop.xlane.xlu0 %7471
        %v7473 = vsel %vm496, %v7383, 0.0
        %7474 = vadd.xlane.f32.xlu0 %v7473
        %v7475 = vpop.xlane.xlu0 %7474
        %v7476 = vsel %vm496, %v7384, 0.0
        %7477 = vadd.xlane.f32.xlu0 %v7476
        %v7478 = vpop.xlane.xlu0 %7477
        %v7479 = vsel %vm496, %v7385, 0.0
        %7480 = vadd.xlane.f32.xlu0 %v7479
        %v7481 = vpop.xlane.xlu0 %7480
        %v7482 = vmul.f32 %v7388, %v599
        %v7483 = vmul.f32 %v7391, %v599
        %v7484 = vmul.f32 %v7394, %v599
        %v7485 = vmul.f32 %v7397, %v599
        %v7486 = vmul.f32 %v7400, %v599
        %v7487 = vmul.f32 %v7403, %v599
        %v7488 = vmul.f32 %v7406, %v599
        %v7489 = vmul.f32 %v7409, %v599
        %v7490 = vmul.f32 %v7412, %v599
        %v7491 = vmul.f32 %v7415, %v599
        %v7492 = vmul.f32 %v7418, %v599
        %v7493 = vmul.f32 %v7421, %v599
        %v7494 = vmul.f32 %v7424, %v599
        %v7495 = vmul.f32 %v7427, %v599
        %v7496 = vmul.f32 %v7430, %v599
        %v7497 = vmul.f32 %v7433, %v599
        %v7498 = vmul.f32 %v7436, %v599
        %v7499 = vmul.f32 %v7439, %v599
        %v7500 = vmul.f32 %v7442, %v599
        %v7501 = vmul.f32 %v7445, %v599
        %v7502 = vmul.f32 %v7448, %v599
        %v7503 = vmul.f32 %v7451, %v599
        %v7504 = vmul.f32 %v7454, %v599
        %v7505 = vmul.f32 %v7457, %v599
        %v7506 = vmul.f32 %v7460, %v599
        %v7507 = vmul.f32 %v7463, %v599
        %v7508 = vmul.f32 %v7466, %v599
        %v7509 = vmul.f32 %v7469, %v599
        %v7510 = vmul.f32 %v7472, %v599
        %v7511 = vmul.f32 %v7475, %v599
        %v7512 = vmul.f32 %v7478, %v599
        %v7513 = vmul.f32 %v7481, %v599
        %v7514 = vadd.f32 %v7482, 1e-06
        %v7515 = vadd.f32 %v7483, 1e-06
        %v7516 = vadd.f32 %v7484, 1e-06
        %v7517 = vadd.f32 %v7485, 1e-06
        %v7518 = vadd.f32 %v7486, 1e-06
        %v7519 = vadd.f32 %v7487, 1e-06
        %v7520 = vadd.f32 %v7488, 1e-06
        %v7521 = vadd.f32 %v7489, 1e-06
        %v7522 = vadd.f32 %v7490, 1e-06
        %v7523 = vadd.f32 %v7491, 1e-06
        %v7524 = vadd.f32 %v7492, 1e-06
        %v7525 = vadd.f32 %v7493, 1e-06
        %v7526 = vadd.f32 %v7494, 1e-06
        %v7527 = vadd.f32 %v7495, 1e-06
        %v7528 = vadd.f32 %v7496, 1e-06
        %v7529 = vadd.f32 %v7497, 1e-06
        %v7530 = vadd.f32 %v7498, 1e-06
        %v7531 = vadd.f32 %v7499, 1e-06
        %v7532 = vadd.f32 %v7500, 1e-06
        %v7533 = vadd.f32 %v7501, 1e-06
        %v7534 = vadd.f32 %v7502, 1e-06
        %v7535 = vadd.f32 %v7503, 1e-06
        %v7536 = vadd.f32 %v7504, 1e-06
        %v7537 = vadd.f32 %v7505, 1e-06
        %v7538 = vadd.f32 %v7506, 1e-06
        %v7539 = vadd.f32 %v7507, 1e-06
        %v7540 = vadd.f32 %v7508, 1e-06
        %v7541 = vadd.f32 %v7509, 1e-06
        %v7542 = vadd.f32 %v7510, 1e-06
        %v7543 = vadd.f32 %v7511, 1e-06
        %v7544 = vadd.f32 %v7512, 1e-06
        %v7545 = vadd.f32 %v7513, 1e-06
        %v7546 = vrsqrt.pop %v7514
        %v7547 = vmul.f32 %v7546, %v7514
        %v7548 = vmul.f32 %v7547, %v7546
        %v7549 = vmul.f32 0.5, %v7548
        %v7550 = vsub.f32 1.5, %v7549
        %v7551 = vmul.f32 %v7546, %v7550
        %vm7552 = vweird.f32 %v7514
        %vm7553 = vweird.f32 %v7546
        %vm7554 = vmor %vm7552, %vm7553
        %v7555 = vsel %vm7554, %v7546, %v7551
        %v7556 = vrsqrt.pop %v7515
        %v7557 = vmul.f32 %v7556, %v7515
        %v7558 = vmul.f32 %v7557, %v7556
        %v7559 = vmul.f32 0.5, %v7558
        %v7560 = vsub.f32 1.5, %v7559
        %v7561 = vmul.f32 %v7556, %v7560
        %vm7562 = vweird.f32 %v7515
        %vm7563 = vweird.f32 %v7556
        %vm7564 = vmor %vm7562, %vm7563
        %v7565 = vsel %vm7564, %v7556, %v7561
        %v7566 = vrsqrt.pop %v7516
        %v7567 = vmul.f32 %v7566, %v7516
        %v7568 = vmul.f32 %v7567, %v7566
        %v7569 = vmul.f32 0.5, %v7568
        %v7570 = vsub.f32 1.5, %v7569
        %v7571 = vmul.f32 %v7566, %v7570
        %vm7572 = vweird.f32 %v7516
        %vm7573 = vweird.f32 %v7566
        %vm7574 = vmor %vm7572, %vm7573
        %v7575 = vsel %vm7574, %v7566, %v7571
        %v7576 = vrsqrt.pop %v7517
        %v7577 = vmul.f32 %v7576, %v7517
        %v7578 = vmul.f32 %v7577, %v7576
        %v7579 = vmul.f32 0.5, %v7578
        %v7580 = vsub.f32 1.5, %v7579
        %v7581 = vmul.f32 %v7576, %v7580
        %vm7582 = vweird.f32 %v7517
        %vm7583 = vweird.f32 %v7576
        %vm7584 = vmor %vm7582, %vm7583
        %v7585 = vsel %vm7584, %v7576, %v7581
        %v7586 = vrsqrt.pop %v7518
        %v7587 = vmul.f32 %v7586, %v7518
        %v7588 = vmul.f32 %v7587, %v7586
        %v7589 = vmul.f32 0.5, %v7588
        %v7590 = vsub.f32 1.5, %v7589
        %v7591 = vmul.f32 %v7586, %v7590
        %vm7592 = vweird.f32 %v7518
        %vm7593 = vweird.f32 %v7586
        %vm7594 = vmor %vm7592, %vm7593
        %v7595 = vsel %vm7594, %v7586, %v7591
        %v7596 = vrsqrt.pop %v7519
        %v7597 = vmul.f32 %v7596, %v7519
        %v7598 = vmul.f32 %v7597, %v7596
        %v7599 = vmul.f32 0.5, %v7598
        %v7600 = vsub.f32 1.5, %v7599
        %v7601 = vmul.f32 %v7596, %v7600
        %vm7602 = vweird.f32 %v7519
        %vm7603 = vweird.f32 %v7596
        %vm7604 = vmor %vm7602, %vm7603
        %v7605 = vsel %vm7604, %v7596, %v7601
        %v7606 = vrsqrt.pop %v7520
        %v7607 = vmul.f32 %v7606, %v7520
        %v7608 = vmul.f32 %v7607, %v7606
        %v7609 = vmul.f32 0.5, %v7608
        %v7610 = vsub.f32 1.5, %v7609
        %v7611 = vmul.f32 %v7606, %v7610
        %vm7612 = vweird.f32 %v7520
        %vm7613 = vweird.f32 %v7606
        %vm7614 = vmor %vm7612, %vm7613
        %v7615 = vsel %vm7614, %v7606, %v7611
        %v7616 = vrsqrt.pop %v7521
        %v7617 = vmul.f32 %v7616, %v7521
        %v7618 = vmul.f32 %v7617, %v7616
        %v7619 = vmul.f32 0.5, %v7618
        %v7620 = vsub.f32 1.5, %v7619
        %v7621 = vmul.f32 %v7616, %v7620
        %vm7622 = vweird.f32 %v7521
        %vm7623 = vweird.f32 %v7616
        %vm7624 = vmor %vm7622, %vm7623
        %v7625 = vsel %vm7624, %v7616, %v7621
        %v7626 = vrsqrt.pop %v7522
        %v7627 = vmul.f32 %v7626, %v7522
        %v7628 = vmul.f32 %v7627, %v7626
        %v7629 = vmul.f32 0.5, %v7628
        %v7630 = vsub.f32 1.5, %v7629
        %v7631 = vmul.f32 %v7626, %v7630
        %vm7632 = vweird.f32 %v7522
        %vm7633 = vweird.f32 %v7626
        %vm7634 = vmor %vm7632, %vm7633
        %v7635 = vsel %vm7634, %v7626, %v7631
        %v7636 = vrsqrt.pop %v7523
        %v7637 = vmul.f32 %v7636, %v7523
        %v7638 = vmul.f32 %v7637, %v7636
        %v7639 = vmul.f32 0.5, %v7638
        %v7640 = vsub.f32 1.5, %v7639
        %v7641 = vmul.f32 %v7636, %v7640
        %vm7642 = vweird.f32 %v7523
        %vm7643 = vweird.f32 %v7636
        %vm7644 = vmor %vm7642, %vm7643
        %v7645 = vsel %vm7644, %v7636, %v7641
        %v7646 = vrsqrt.pop %v7524
        %v7647 = vmul.f32 %v7646, %v7524
        %v7648 = vmul.f32 %v7647, %v7646
        %v7649 = vmul.f32 0.5, %v7648
        %v7650 = vsub.f32 1.5, %v7649
        %v7651 = vmul.f32 %v7646, %v7650
        %vm7652 = vweird.f32 %v7524
        %vm7653 = vweird.f32 %v7646
        %vm7654 = vmor %vm7652, %vm7653
        %v7655 = vsel %vm7654, %v7646, %v7651
        %v7656 = vrsqrt.pop %v7525
        %v7657 = vmul.f32 %v7656, %v7525
        %v7658 = vmul.f32 %v7657, %v7656
        %v7659 = vmul.f32 0.5, %v7658
        %v7660 = vsub.f32 1.5, %v7659
        %v7661 = vmul.f32 %v7656, %v7660
        %vm7662 = vweird.f32 %v7525
        %vm7663 = vweird.f32 %v7656
        %vm7664 = vmor %vm7662, %vm7663
        %v7665 = vsel %vm7664, %v7656, %v7661
        %v7666 = vrsqrt.pop %v7526
        %v7667 = vmul.f32 %v7666, %v7526
        %v7668 = vmul.f32 %v7667, %v7666
        %v7669 = vmul.f32 0.5, %v7668
        %v7670 = vsub.f32 1.5, %v7669
        %v7671 = vmul.f32 %v7666, %v7670
        %vm7672 = vweird.f32 %v7526
        %vm7673 = vweird.f32 %v7666
        %vm7674 = vmor %vm7672, %vm7673
        %v7675 = vsel %vm7674, %v7666, %v7671
        %v7676 = vrsqrt.pop %v7527
        %v7677 = vmul.f32 %v7676, %v7527
        %v7678 = vmul.f32 %v7677, %v7676
        %v7679 = vmul.f32 0.5, %v7678
        %v7680 = vsub.f32 1.5, %v7679
        %v7681 = vmul.f32 %v7676, %v7680
        %vm7682 = vweird.f32 %v7527
        %vm7683 = vweird.f32 %v7676
        %vm7684 = vmor %vm7682, %vm7683
        %v7685 = vsel %vm7684, %v7676, %v7681
        %v7686 = vrsqrt.pop %v7528
        %v7687 = vmul.f32 %v7686, %v7528
        %v7688 = vmul.f32 %v7687, %v7686
        %v7689 = vmul.f32 0.5, %v7688
        %v7690 = vsub.f32 1.5, %v7689
        %v7691 = vmul.f32 %v7686, %v7690
        %vm7692 = vweird.f32 %v7528
        %vm7693 = vweird.f32 %v7686
        %vm7694 = vmor %vm7692, %vm7693
        %v7695 = vsel %vm7694, %v7686, %v7691
        %v7696 = vrsqrt.pop %v7529
        %v7697 = vmul.f32 %v7696, %v7529
        %v7698 = vmul.f32 %v7697, %v7696
        %v7699 = vmul.f32 0.5, %v7698
        %v7700 = vsub.f32 1.5, %v7699
        %v7701 = vmul.f32 %v7696, %v7700
        %vm7702 = vweird.f32 %v7529
        %vm7703 = vweird.f32 %v7696
        %vm7704 = vmor %vm7702, %vm7703
        %v7705 = vsel %vm7704, %v7696, %v7701
        %v7706 = vrsqrt.pop %v7530
        %v7707 = vmul.f32 %v7706, %v7530
        %v7708 = vmul.f32 %v7707, %v7706
        %v7709 = vmul.f32 0.5, %v7708
        %v7710 = vsub.f32 1.5, %v7709
        %v7711 = vmul.f32 %v7706, %v7710
        %vm7712 = vweird.f32 %v7530
        %vm7713 = vweird.f32 %v7706
        %vm7714 = vmor %vm7712, %vm7713
        %v7715 = vsel %vm7714, %v7706, %v7711
        %v7716 = vrsqrt.pop %v7531
        %v7717 = vmul.f32 %v7716, %v7531
        %v7718 = vmul.f32 %v7717, %v7716
        %v7719 = vmul.f32 0.5, %v7718
        %v7720 = vsub.f32 1.5, %v7719
        %v7721 = vmul.f32 %v7716, %v7720
        %vm7722 = vweird.f32 %v7531
        %vm7723 = vweird.f32 %v7716
        %vm7724 = vmor %vm7722, %vm7723
        %v7725 = vsel %vm7724, %v7716, %v7721
        %v7726 = vrsqrt.pop %v7532
        %v7727 = vmul.f32 %v7726, %v7532
        %v7728 = vmul.f32 %v7727, %v7726
        %v7729 = vmul.f32 0.5, %v7728
        %v7730 = vsub.f32 1.5, %v7729
        %v7731 = vmul.f32 %v7726, %v7730
        %vm7732 = vweird.f32 %v7532
        %vm7733 = vweird.f32 %v7726
        %vm7734 = vmor %vm7732, %vm7733
        %v7735 = vsel %vm7734, %v7726, %v7731
        %v7736 = vrsqrt.pop %v7533
        %v7737 = vmul.f32 %v7736, %v7533
        %v7738 = vmul.f32 %v7737, %v7736
        %v7739 = vmul.f32 0.5, %v7738
        %v7740 = vsub.f32 1.5, %v7739
        %v7741 = vmul.f32 %v7736, %v7740
        %vm7742 = vweird.f32 %v7533
        %vm7743 = vweird.f32 %v7736
        %vm7744 = vmor %vm7742, %vm7743
        %v7745 = vsel %vm7744, %v7736, %v7741
        %v7746 = vrsqrt.pop %v7534
        %v7747 = vmul.f32 %v7746, %v7534
        %v7748 = vmul.f32 %v7747, %v7746
        %v7749 = vmul.f32 0.5, %v7748
        %v7750 = vsub.f32 1.5, %v7749
        %v7751 = vmul.f32 %v7746, %v7750
        %vm7752 = vweird.f32 %v7534
        %vm7753 = vweird.f32 %v7746
        %vm7754 = vmor %vm7752, %vm7753
        %v7755 = vsel %vm7754, %v7746, %v7751
        %v7756 = vrsqrt.pop %v7535
        %v7757 = vmul.f32 %v7756, %v7535
        %v7758 = vmul.f32 %v7757, %v7756
        %v7759 = vmul.f32 0.5, %v7758
        %v7760 = vsub.f32 1.5, %v7759
        %v7761 = vmul.f32 %v7756, %v7760
        %vm7762 = vweird.f32 %v7535
        %vm7763 = vweird.f32 %v7756
        %vm7764 = vmor %vm7762, %vm7763
        %v7765 = vsel %vm7764, %v7756, %v7761
        %v7766 = vrsqrt.pop %v7536
        %v7767 = vmul.f32 %v7766, %v7536
        %v7768 = vmul.f32 %v7767, %v7766
        %v7769 = vmul.f32 0.5, %v7768
        %v7770 = vsub.f32 1.5, %v7769
        %v7771 = vmul.f32 %v7766, %v7770
        %vm7772 = vweird.f32 %v7536
        %vm7773 = vweird.f32 %v7766
        %vm7774 = vmor %vm7772, %vm7773
        %v7775 = vsel %vm7774, %v7766, %v7771
        %v7776 = vrsqrt.pop %v7537
        %v7777 = vmul.f32 %v7776, %v7537
        %v7778 = vmul.f32 %v7777, %v7776
        %v7779 = vmul.f32 0.5, %v7778
        %v7780 = vsub.f32 1.5, %v7779
        %v7781 = vmul.f32 %v7776, %v7780
        %vm7782 = vweird.f32 %v7537
        %vm7783 = vweird.f32 %v7776
        %vm7784 = vmor %vm7782, %vm7783
        %v7785 = vsel %vm7784, %v7776, %v7781
        %v7786 = vrsqrt.pop %v7538
        %v7787 = vmul.f32 %v7786, %v7538
        %v7788 = vmul.f32 %v7787, %v7786
        %v7789 = vmul.f32 0.5, %v7788
        %v7790 = vsub.f32 1.5, %v7789
        %v7791 = vmul.f32 %v7786, %v7790
        %vm7792 = vweird.f32 %v7538
        %vm7793 = vweird.f32 %v7786
        %vm7794 = vmor %vm7792, %vm7793
        %v7795 = vsel %vm7794, %v7786, %v7791
        %v7796 = vrsqrt.pop %v7539
        %v7797 = vmul.f32 %v7796, %v7539
        %v7798 = vmul.f32 %v7797, %v7796
        %v7799 = vmul.f32 0.5, %v7798
        %v7800 = vsub.f32 1.5, %v7799
        %v7801 = vmul.f32 %v7796, %v7800
        %vm7802 = vweird.f32 %v7539
        %vm7803 = vweird.f32 %v7796
        %vm7804 = vmor %vm7802, %vm7803
        %v7805 = vsel %vm7804, %v7796, %v7801
        %v7806 = vrsqrt.pop %v7540
        %v7807 = vmul.f32 %v7806, %v7540
        %v7808 = vmul.f32 %v7807, %v7806
        %v7809 = vmul.f32 0.5, %v7808
        %v7810 = vsub.f32 1.5, %v7809
        %v7811 = vmul.f32 %v7806, %v7810
        %vm7812 = vweird.f32 %v7540
        %vm7813 = vweird.f32 %v7806
        %vm7814 = vmor %vm7812, %vm7813
        %v7815 = vsel %vm7814, %v7806, %v7811
        %v7816 = vrsqrt.pop %v7541
        %v7817 = vmul.f32 %v7816, %v7541
        %v7818 = vmul.f32 %v7817, %v7816
        %v7819 = vmul.f32 0.5, %v7818
        %v7820 = vsub.f32 1.5, %v7819
        %v7821 = vmul.f32 %v7816, %v7820
        %vm7822 = vweird.f32 %v7541
        %vm7823 = vweird.f32 %v7816
        %vm7824 = vmor %vm7822, %vm7823
        %v7825 = vsel %vm7824, %v7816, %v7821
        %v7826 = vrsqrt.pop %v7542
        %v7827 = vmul.f32 %v7826, %v7542
        %v7828 = vmul.f32 %v7827, %v7826
        %v7829 = vmul.f32 0.5, %v7828
        %v7830 = vsub.f32 1.5, %v7829
        %v7831 = vmul.f32 %v7826, %v7830
        %vm7832 = vweird.f32 %v7542
        %vm7833 = vweird.f32 %v7826
        %vm7834 = vmor %vm7832, %vm7833
        %v7835 = vsel %vm7834, %v7826, %v7831
        %v7836 = vrsqrt.pop %v7543
        %v7837 = vmul.f32 %v7836, %v7543
        %v7838 = vmul.f32 %v7837, %v7836
        %v7839 = vmul.f32 0.5, %v7838
        %v7840 = vsub.f32 1.5, %v7839
        %v7841 = vmul.f32 %v7836, %v7840
        %vm7842 = vweird.f32 %v7543
        %vm7843 = vweird.f32 %v7836
        %vm7844 = vmor %vm7842, %vm7843
        %v7845 = vsel %vm7844, %v7836, %v7841
        %v7846 = vrsqrt.pop %v7544
        %v7847 = vmul.f32 %v7846, %v7544
        %v7848 = vmul.f32 %v7847, %v7846
        %v7849 = vmul.f32 0.5, %v7848
        %v7850 = vsub.f32 1.5, %v7849
        %v7851 = vmul.f32 %v7846, %v7850
        %vm7852 = vweird.f32 %v7544
        %vm7853 = vweird.f32 %v7846
        %vm7854 = vmor %vm7852, %vm7853
        %v7855 = vsel %vm7854, %v7846, %v7851
        %v7856 = vrsqrt.pop %v7545
        %v7857 = vmul.f32 %v7856, %v7545
        %v7858 = vmul.f32 %v7857, %v7856
        %v7859 = vmul.f32 0.5, %v7858
        %v7860 = vsub.f32 1.5, %v7859
        %v7861 = vmul.f32 %v7856, %v7860
        %vm7862 = vweird.f32 %v7545
        %vm7863 = vweird.f32 %v7856
        %vm7864 = vmor %vm7862, %vm7863
        %v7865 = vsel %vm7864, %v7856, %v7861
        %v7866 = vmul.f32 %v7322, %v7555
        %v7867 = vmul.f32 %v7323, %v7565
        %v7868 = vmul.f32 %v7324, %v7575
        %v7869 = vmul.f32 %v7325, %v7585
        %v7870 = vmul.f32 %v7326, %v7595
        %v7871 = vmul.f32 %v7327, %v7605
        %v7872 = vmul.f32 %v7328, %v7615
        %v7873 = vmul.f32 %v7329, %v7625
        %v7874 = vmul.f32 %v7330, %v7635
        %v7875 = vmul.f32 %v7331, %v7645
        %v7876 = vmul.f32 %v7332, %v7655
        %v7877 = vmul.f32 %v7333, %v7665
        %v7878 = vmul.f32 %v7334, %v7675
        %v7879 = vmul.f32 %v7335, %v7685
        %v7880 = vmul.f32 %v7336, %v7695
        %v7881 = vmul.f32 %v7337, %v7705
        %v7882 = vmul.f32 %v7338, %v7715
        %v7883 = vmul.f32 %v7339, %v7725
        %v7884 = vmul.f32 %v7340, %v7735
        %v7885 = vmul.f32 %v7341, %v7745
        %v7886 = vmul.f32 %v7342, %v7755
        %v7887 = vmul.f32 %v7343, %v7765
        %v7888 = vmul.f32 %v7344, %v7775
        %v7889 = vmul.f32 %v7345, %v7785
        %v7890 = vmul.f32 %v7346, %v7795
        %v7891 = vmul.f32 %v7347, %v7805
        %v7892 = vmul.f32 %v7348, %v7815
        %v7893 = vmul.f32 %v7349, %v7825
        %v7894 = vmul.f32 %v7350, %v7835
        %v7895 = vmul.f32 %v7351, %v7845
        %v7896 = vmul.f32 %v7352, %v7855
        %v7897 = vmul.f32 %v7353, %v7865
        %v7899 = vperm.slane %v7192, 0
        %v7901 = vmul.f32 %v7866, %v7899
        %v7902 = vmul.f32 %v7867, %v7899
        %v7903 = vmul.f32 %v7868, %v7899
        %v7904 = vmul.f32 %v7869, %v7899
        %v7905 = vmul.f32 %v7870, %v7899
        %v7906 = vmul.f32 %v7871, %v7899
        %v7907 = vmul.f32 %v7872, %v7899
        %v7908 = vmul.f32 %v7873, %v7899
        %v7909 = vmul.f32 %v7874, %v7899
        %v7910 = vmul.f32 %v7875, %v7899
        %v7911 = vmul.f32 %v7876, %v7899
        %v7912 = vmul.f32 %v7877, %v7899
        %v7913 = vmul.f32 %v7878, %v7899
        %v7914 = vmul.f32 %v7879, %v7899
        %v7915 = vmul.f32 %v7880, %v7899
        %v7916 = vmul.f32 %v7881, %v7899
        %v7917 = vmul.f32 %v7882, %v7899
        %v7918 = vmul.f32 %v7883, %v7899
        %v7919 = vmul.f32 %v7884, %v7899
        %v7920 = vmul.f32 %v7885, %v7899
        %v7921 = vmul.f32 %v7886, %v7899
        %v7922 = vmul.f32 %v7887, %v7899
        %v7923 = vmul.f32 %v7888, %v7899
        %v7924 = vmul.f32 %v7889, %v7899
        %v7925 = vmul.f32 %v7890, %v7899
        %v7926 = vmul.f32 %v7891, %v7899
        %v7927 = vmul.f32 %v7892, %v7899
        %v7928 = vmul.f32 %v7893, %v7899
        %v7929 = vmul.f32 %v7894, %v7899
        %v7930 = vmul.f32 %v7895, %v7899
        %v7931 = vmul.f32 %v7896, %v7899
        %v7932 = vmul.f32 %v7897, %v7899
        %v7934 = vperm.slane %v7193, 0
        %v7936 = vadd.f32 %v7901, %v7934
        %v7937 = vadd.f32 %v7902, %v7934
        %v7938 = vadd.f32 %v7903, %v7934
        %v7939 = vadd.f32 %v7904, %v7934
        %v7940 = vadd.f32 %v7905, %v7934
        %v7941 = vadd.f32 %v7906, %v7934
        %v7942 = vadd.f32 %v7907, %v7934
        %v7943 = vadd.f32 %v7908, %v7934
        %v7944 = vadd.f32 %v7909, %v7934
        %v7945 = vadd.f32 %v7910, %v7934
        %v7946 = vadd.f32 %v7911, %v7934
        %v7947 = vadd.f32 %v7912, %v7934
        %v7948 = vadd.f32 %v7913, %v7934
        %v7949 = vadd.f32 %v7914, %v7934
        %v7950 = vadd.f32 %v7915, %v7934
        %v7951 = vadd.f32 %v7916, %v7934
        %v7952 = vadd.f32 %v7917, %v7934
        %v7953 = vadd.f32 %v7918, %v7934
        %v7954 = vadd.f32 %v7919, %v7934
        %v7955 = vadd.f32 %v7920, %v7934
        %v7956 = vadd.f32 %v7921, %v7934
        %v7957 = vadd.f32 %v7922, %v7934
        %v7958 = vadd.f32 %v7923, %v7934
        %v7959 = vadd.f32 %v7924, %v7934
        %v7960 = vadd.f32 %v7925, %v7934
        %v7961 = vadd.f32 %v7926, %v7934
        %v7962 = vadd.f32 %v7927, %v7934
        %v7963 = vadd.f32 %v7928, %v7934
        %v7964 = vadd.f32 %v7929, %v7934
        %v7965 = vadd.f32 %v7930, %v7934
        %v7966 = vadd.f32 %v7931, %v7934
        %v7967 = vadd.f32 %v7932, %v7934
        %7968 = vst.msk [vmem:[%s409] sm:$0xff] %vm496, %v7936
        %7969 = vst.msk [vmem:[%s409 + $0x8] sm:$0xff] %vm496, %v7937
        %7970 = vst.msk [vmem:[%s409 + $0x10] sm:$0xff] %vm496, %v7938
        %7971 = vst.msk [vmem:[%s409 + $0x18] sm:$0xff] %vm496, %v7939
        %7972 = vst.msk [vmem:[%s409 + $0x20] sm:$0xff] %vm496, %v7940
        %7973 = vst.msk [vmem:[%s409 + $0x28] sm:$0xff] %vm496, %v7941
        %7974 = vst.msk [vmem:[%s409 + $0x30] sm:$0xff] %vm496, %v7942
        %7975 = vst.msk [vmem:[%s409 + $0x38] sm:$0xff] %vm496, %v7943
        %7976 = vst.msk [vmem:[%s409 + $0x40] sm:$0xff] %vm496, %v7944
        %7977 = vst.msk [vmem:[%s409 + $0x48] sm:$0xff] %vm496, %v7945
        %7978 = vst.msk [vmem:[%s409 + $0x50] sm:$0xff] %vm496, %v7946
        %7979 = vst.msk [vmem:[%s409 + $0x58] sm:$0xff] %vm496, %v7947
        %7980 = vst.msk [vmem:[%s409 + $0x60] sm:$0xff] %vm496, %v7948
        %7981 = vst.msk [vmem:[%s409 + $0x68] sm:$0xff] %vm496, %v7949
        %7982 = vst.msk [vmem:[%s409 + $0x70] sm:$0xff] %vm496, %v7950
        %7983 = vst.msk [vmem:[%s409 + $0x78] sm:$0xff] %vm496, %v7951
        %7984 = vst.msk [vmem:[%s409 + $0x80] sm:$0xff] %vm496, %v7952
        %7985 = vst.msk [vmem:[%s409 + $0x88] sm:$0xff] %vm496, %v7953
        %7986 = vst.msk [vmem:[%s409 + $0x90] sm:$0xff] %vm496, %v7954
        %7987 = vst.msk [vmem:[%s409 + $0x98] sm:$0xff] %vm496, %v7955
        %7988 = vst.msk [vmem:[%s409 + $0xa0] sm:$0xff] %vm496, %v7956
        %7989 = vst.msk [vmem:[%s409 + $0xa8] sm:$0xff] %vm496, %v7957
        %7990 = vst.msk [vmem:[%s409 + $0xb0] sm:$0xff] %vm496, %v7958
        %7991 = vst.msk [vmem:[%s409 + $0xb8] sm:$0xff] %vm496, %v7959
        %7992 = vst.msk [vmem:[%s409 + $0xc0] sm:$0xff] %vm496, %v7960
        %7993 = vst.msk [vmem:[%s409 + $0xc8] sm:$0xff] %vm496, %v7961
        %7994 = vst.msk [vmem:[%s409 + $0xd0] sm:$0xff] %vm496, %v7962
        %7995 = vst.msk [vmem:[%s409 + $0xd8] sm:$0xff] %vm496, %v7963
        %7996 = vst.msk [vmem:[%s409 + $0xe0] sm:$0xff] %vm496, %v7964
        %7997 = vst.msk [vmem:[%s409 + $0xe8] sm:$0xff] %vm496, %v7965
        %7998 = vst.msk [vmem:[%s409 + $0xf0] sm:$0xff] %vm496, %v7966
        %7999 = vst.msk [vmem:[%s409 + $0xf8] sm:$0xff] %vm496, %v7967
        %s8000 = smul.u32 32, %s25
        %p8001 = scmp.lt.s32.totalorder %s8000, 63
        %s8002 = scalar_select %p8001, %s8000, 63
        %s8003 = smul.addr %s8002, 8
        %s8004 = scalar_lea.vmem %s11, %s8003
        // Predicated region
        $region69: #{ttm_block_forward.2} parent=63 // pred_check
          %p8005 = pneg %p279
        $region70: #{ttm_block_forward.2} parent=63 // pred_check_branch
          %8007 = sbr.rel (%p8005) target = $region72
        $region71: #{ttm_block_forward.2} parent=63 // pred_region
          %s8008 = smul.u32 32, %s25
        $region72: #{ttm_block_forward.2} parent=63 // pred_fallthru
          _
      $region64: #{ttm_block_forward.2} parent=5 // pred_fallthru
        _
      %p8009 = scmp.le.s32.totalorder 2, %s20
      // Predicated region
      $region73: #{ttm_block_forward.2} parent=5 // pred_check
        %p8010 = pneg %p8009
      $region74: #{ttm_block_forward.2} parent=5 // pred_check_branch
        %8012 = sbr.rel (%p8010) target = $region76
      $region75: #{ttm_block_forward.2} parent=5 // pred_region
        %s8013 = ssub.s32 %s20, 2
        // Predicated region
        $region77: #{ttm_block_forward.2} parent=75 // pred_check
          %p8014 = pneg %p285
        $region78: #{ttm_block_forward.2} parent=75 // pred_check_branch
          %8016 = sbr.rel (%p8014) target = $region80
        $region79: #{ttm_block_forward.2} parent=75 // pred_region
          %s8017 = smul.u32 32, %s26
          %p8018 = scmp.lt.s32.totalorder %s8017, 63
          %s8019 = scalar_select %p8018, %s8017, 63
          %s8020 = smul.addr %s8019, 8
          %s8021 = scalar_lea.vmem %s11, %s8020
        $region80: #{ttm_block_forward.2} parent=75 // pred_fallthru
          _
      $region76: #{ttm_block_forward.2} parent=5 // pred_fallthru
        _
    $region6: #{ttm_block_forward.2} parent=1 // loop_footer
      %s24 = sadd.s32 1, %s20
    $region7: #{ttm_block_forward.2} parent=1 // loop_footer_branch
      %19 = sbr.rel target = $region3
    $region8: #{ttm_block_forward.2} parent=1 // loop_exit
      _
    %8022 = vsyncpa [#allocation3], 1
    %s8023 = scalar_lea.sflag [#allocation3], 1
    %8024 = vsyncpa %s8023, 1

</llo_original>
